<compile_context>
chip_gen: v7x
topology: tpu7x:2x2x1
jax: 0.10.0
libtpu: 0.0.40
codegen_flags: <defaults>
</compile_context>

<pallas_src>
import functools

import jax
import jax.numpy as jnp
from jax.experimental import pallas as pl
from jax.experimental.pallas import tpu as pltpu


def _round_up(x, m):
    return (x + m - 1) // m * m


def _cnn_superres_kernel(Bt, H, W, C, CH,
                         xpad_ref, xres_ref, w1_ref, b1_ref, w2_ref, b2_ref,
                         w3_ref, b3_ref, out_ref, hpad_ref, hcol_ref):
    """One grid step = one block of Bt images.

    xpad_ref : (Bt, H+2, W+2)      f32   zero-padded 1-channel input
    xres_ref : (Bt, 1, H*W)        f32   residual (original input, lane-dense)
    w1_ref   : (9, C)              f32   conv1 weights, tap k = dy*3+dx
    b1_ref   : (1, C)              f32
    w2_ref   : (5*128, C)          bf16  conv2 weights, 2 taps per 128-lane K group
    b2_ref   : (1, C)              f32
    w3_ref   : (9, C)              f32   conv3 weights per tap
    b3_ref   : (1, 1)              f32
    out_ref  : (Bt, 1, H*W)        f32   lane-dense output
    hpad_ref : (Bt, H+2, W+2, C)   bf16  haloed hidden activations (scratch)
    hcol_ref : (Bt*H*W, 5*128)     bf16  packed im2col of hidden acts (scratch)
    """
    f32 = jnp.float32
    bf16 = jnp.bfloat16
    M = Bt * H * W
    CHW = CH * W
    n_chunks = H // CH

    # Zero only the halo strips; the interior is fully overwritten below.
    # Done EVERY step (not program_id==0 gated) so correctness never depends on
    # which core / which step touches this private scratch first.
    hpad_ref[:, 0:1, :, :] = jnp.zeros((Bt, 1, W + 2, C), bf16)
    hpad_ref[:, H + 1:H + 2, :, :] = jnp.zeros((Bt, 1, W + 2, C), bf16)
    hpad_ref[:, :, 0:1, :] = jnp.zeros((Bt, H + 2, 1, C), bf16)
    hpad_ref[:, :, W + 1:W + 2, :] = jnp.zeros((Bt, H + 2, 1, C), bf16)

    # ---- conv1 (1 -> C): 9 VPU broadcast-MACs per row chunk over the raw
    #      padded input (f32 accumulate, ReLU, stored as bf16). ----
    for c in range(n_chunks):
        r0 = c * CH
        h1 = jnp.zeros((Bt, CH, W, C), f32)
        for dy in range(3):
            for dx in range(3):
                k = dy * 3 + dx
                tap = xpad_ref[:, r0 + dy:r0 + dy + CH, dx:dx + W]  # (Bt,CH,W)
                h1 = h1 + tap[..., None] * w1_ref[k, :]             # bcast C
        h1 = jnp.maximum(h1 + b1_ref[...], 0.0)
        hpad_ref[:, r0 + 1:r0 + 1 + CH, 1:W + 1, :] = h1.astype(bf16)

    # ---- packed im2col of h1: two 64-channel taps per 128-lane K group, so
    #      every hcol store is a full, 128-lane-aligned, unmasked store. ----
    def tap_cols(k):
        dy, dx = k // 3, k % 3
        return hpad_ref[:, dy:dy + H, dx:dx + W, :].reshape(M, C)   # bf16

    for g in range(4):
        hcol_ref[:, g * 128:(g + 1) * 128] = jnp.concatenate(
            [tap_cols(2 * g), tap_cols(2 * g + 1)], axis=-1)
    # Last group: tap 8 + explicit zeros (scratch VMEM may be uninitialized).
    hcol_ref[:, 4 * 128:5 * 128] = jnp.concatenate(
        [tap_cols(8), jnp.zeros((M, C), bf16)], axis=-1)

    # ---- conv2 (C -> C): ONE bf16 GEMM (M, 640) x (640, C), f32 accumulation.
    #      (bf16 storage/GEMM is an intentional precision trade; accumulation
    #      stays f32.) ----
    h2 = jnp.dot(hcol_ref[...], w2_ref[...], preferred_element_type=f32)
    h2 = jnp.maximum(h2 + b2_ref[...], 0.0)
    hpad_ref[:, 1:H + 1, 1:W + 1, :] = h2.reshape(Bt, H, W, C).astype(bf16)

    # ---- conv3 (C -> 1) + bias + residual, chunked over CH rows: per-chunk
    #      tap accumulation stays in vregs, one lane reduction per chunk, and
    #      a CH*W-lane (multiple of 128 when 128 % W == 0) aligned store. ----
    for c in range(n_chunks):
        r0 = c * CH
        acc = jnp.zeros((Bt, CH, W, C), f32)
        for dy in range(3):
            for dx in range(3):
                k = dy * 3 + dx
                sl = hpad_ref[:, r0 + dy:r0 + dy + CH, dx:dx + W, :]
                acc = acc + sl.astype(f32) * w3_ref[k, :]
        row = jnp.sum(acc, axis=-1).reshape(Bt, 1, CHW)
        off = c * CHW
        out_ref[:, :, off:off + CHW] = (
            row + b3_ref[...] + xres_ref[:, :, off:off + CHW]
        ).astype(out_ref.dtype)


def _vmem_limit_bytes():
    cap = 64 << 20                       # conservative fallback (v7x physical)
    try:
        info = pltpu.get_tpu_info()
        cap = int(getattr(info, "vmem_capacity_bytes", cap))
    except Exception:
        pass
    # v5e's default scoped limit is only 16 MiB -> raise it, but keep ~1/4 of
    # physical VMEM as headroom (important on v7x: 64 MiB physical).
    return int(min(100 << 20, (cap * 3) // 4))


def _pick_row_chunk(H, W):
    """Rows per chunk so that chunk*W is a multiple of 128 lanes (when possible)."""
    if W <= 128 and 128 % W == 0:
        ch = max(1, 128 // W)
        while ch > 1 and H % ch != 0:
            ch //= 2
        if H % ch == 0:
            return ch
    return 1   # falls back to narrower (masked) stores; still correct


def _pick_block_b(B, H, W, C, vmem_budget):
    """Largest batch block whose VMEM working set fits, preferring grid >= 2."""
    HW = H * W

    def working_set(bb):
        M = bb * HW
        hcol = M * 5 * 128 * 2                                        # bf16
        hpad = bb * (H + 2) * _round_up(W + 2, 16) * 128 * 2          # bf16
        xin = 2 * bb * _round_up(H + 2, 8) * _round_up(W + 2, 128) * 4  # dbl buf
        xres = 2 * bb * 8 * _round_up(HW, 128) * 4
        outb = 2 * bb * 8 * _round_up(HW, 128) * 4
        return hcol + hpad + xin + xres + outb

    divisors = [d for d in range(1, B + 1) if B % d == 0]
    fitting = [d for d in divisors if working_set(d) <= vmem_budget] or [1]
    # v7x has 2 TensorCores (and megacore wants >= 2 parallel grid steps):
    # prefer block sizes leaving at least 2 grid steps.
    preferred = [d for d in fitting if B // d >= 2] or fitting
    return max(preferred)


def cnn_superres_forward(x_nchw, params, *, block_b=None):
    """Forward pass matching CNNSuperRes. x_nchw: (B, 1, H, W) float32."""
    w1, b1, w2, b2, w3, b3 = params
    B, Cin, H, W = x_nchw.shape
    assert Cin == 1
    C = w1.shape[0]                      # 64
    assert 2 * C == 128, "2-taps-per-128-lane packing assumes 64 hidden channels"
    HW = H * W

    vmem_limit = _vmem_limit_bytes()
    if block_b is None:
        block_b = _pick_block_b(B, H, W, C, vmem_budget=(vmem_limit * 3) // 4)
    assert B % block_b == 0
    CH = _pick_row_chunk(H, W)
    # TODO(synk): for real super-resolution image sizes add a second grid axis
    # tiling H with a 1-row halo so per-step scratch stays bounded on v7x.

    x = x_nchw.reshape(B, H, W).astype(jnp.float32)
    xpad = jnp.pad(x, ((0, 0), (1, 1), (1, 1)))
    xres = x.reshape(B, 1, HW)

    # PyTorch OIHW weights -> kernel layouts.
    w1r = jnp.transpose(w1, (2, 3, 1, 0)).reshape(9, C).astype(jnp.float32)
    # conv2: (tap, cin, cout); pack taps (0,1),(2,3),(4,5),(6,7),(8,zeros) into
    # five 128-row K groups -> GEMM K is 640 instead of 9*128 = 1152.
    w2t = jnp.transpose(w2, (2, 3, 1, 0)).reshape(9, C, C)
    w2p = jnp.zeros((5, 2 * C, C), jnp.float32)
    w2p = w2p.at[:4, :C, :].set(w2t[0:8:2])
    w2p = w2p.at[:4, C:, :].set(w2t[1:8:2])
    w2p = w2p.at[4, :C, :].set(w2t[8])
    w2r = w2p.reshape(5 * 2 * C, C).astype(jnp.bfloat16)
    w3r = jnp.transpose(w3, (2, 3, 1, 0)).reshape(9, C).astype(jnp.float32)
    b1r = b1.reshape(1, C).astype(jnp.float32)
    b2r = b2.reshape(1, C).astype(jnp.float32)
    b3r = b3.reshape(1, 1).astype(jnp.float32)

    flops = int(2 * B * HW * (9 * C + 9 * C * C + 9 * C))
    bytes_accessed = int(4 * (xpad.size + xres.size + B * HW)
                         + 4 * (w1r.size + w3r.size + 2 * C + 1) + 2 * w2r.size)

    kernel = functools.partial(_cnn_superres_kernel, block_b, H, W, C, CH)
    out = pl.pallas_call(
        kernel,
        out_shape=jax.ShapeDtypeStruct((B, 1, HW), jnp.float32),
        grid=(B // block_b,),
        in_specs=[
            pl.BlockSpec((block_b, H + 2, W + 2), lambda b: (b, 0, 0)),
            pl.BlockSpec((block_b, 1, HW), lambda b: (b, 0, 0)),
            pl.BlockSpec((9, C), lambda b: (0, 0)),
            pl.BlockSpec((1, C), lambda b: (0, 0)),
            pl.BlockSpec((5 * 2 * C, C), lambda b: (0, 0)),
            pl.BlockSpec((1, C), lambda b: (0, 0)),
            pl.BlockSpec((9, C), lambda b: (0, 0)),
            pl.BlockSpec((1, 1), lambda b: (0, 0)),
        ],
        out_specs=pl.BlockSpec((block_b, 1, HW), lambda b: (b, 0, 0)),
        scratch_shapes=[
            pltpu.VMEM((block_b, H + 2, W + 2, C), jnp.bfloat16),
            pltpu.VMEM((block_b * HW, 5 * 128), jnp.bfloat16),
        ],
        compiler_params=pltpu.CompilerParams(
            dimension_semantics=("parallel",),
            vmem_limit_bytes=vmem_limit),
        cost_estimate=pl.CostEstimate(flops=flops, transcendentals=0,
                                      bytes_accessed=bytes_accessed),
    )(xpad, xres, w1r, b1r, w2r, b2r, w3r, b3r)

    # (B, 1, H*W) is already NCHW-ordered; just reshape.
    return out.reshape(B, 1, H, W)


def _reference_forward(x, w1, b1, w2, b2, w3, b3):
    """Pure-JAX (XLA conv) reference with PyTorch semantics (NCHW, OIHW)."""
    def conv(inp, w, b):
        dn = jax.lax.conv_dimension_numbers(inp.shape, w.shape,
                                            ("NCHW", "OIHW", "NCHW"))
        y = jax.lax.conv_general_dilated(inp, w, (1, 1), "SAME",
                                         dimension_numbers=dn,
                                         precision=jax.lax.Precision.HIGHEST)
        return y + b[None, :, None, None]

    h = jax.nn.relu(conv(x, w1, b1))
    h = jax.nn.relu(conv(h, w2, b2))
    return conv(h, w3, b3) + x


if __name__ == "__main__":
    key = jax.random.PRNGKey(0)
    kx, k1, k2, k3, k4, k5, k6 = jax.random.split(key, 7)

    B, H, W, C = 2, 16, 16, 64
    # PyTorch-style NCHW input with 1 channel.
    x = jax.random.normal(kx, (B, 1, H, W), jnp.float32)

    # Deterministic synthetic parameters (shapes from CNNSuperRes.__init__).
    w1 = 0.10 * jax.random.normal(k1, (C, 1, 3, 3), jnp.float32)
    b1 = 0.10 * jax.random.normal(k2, (C,), jnp.float32)
    w2 = 0.05 * jax.random.normal(k3, (C, C, 3, 3), jnp.float32)
    b2 = 0.10 * jax.random.normal(k4, (C,), jnp.float32)
    w3 = 0.05 * jax.random.normal(k5, (1, C, 3, 3), jnp.float32)
    b3 = 0.10 * jax.random.normal(k6, (1,), jnp.float32)
    params = (w1, b1, w2, b2, w3, b3)

    out = jax.jit(cnn_superres_forward)(x, params)
    out = jax.block_until_ready(out)

    ref = _reference_forward(x, w1, b1, w2, b2, w3, b3)
    assert out.shape == x.shape and out.dtype == x.dtype
    max_err = float(jnp.max(jnp.abs(out - ref)))
    if not bool(jnp.allclose(out, ref, atol=3e-2, rtol=3e-2)):
        raise AssertionError(f"Pallas kernel mismatch vs reference, "
                             f"max abs err = {max_err}")
    print("KERNEL_OK")
</pallas_src>

<mosaic_0001>
module attributes {stable_mosaic.version = 11 : i64} {
  func.func @_cnn_superres_kernel(%arg0: i32, %arg1: memref<1x18x18xf32, #tpu.memory_space<vmem>>, %arg2: memref<1x1x256xf32, #tpu.memory_space<vmem>>, %arg3: memref<9x64xf32, #tpu.memory_space<vmem>>, %arg4: memref<1x64xf32, #tpu.memory_space<vmem>>, %arg5: memref<640x64xbf16, #tpu.memory_space<vmem>>, %arg6: memref<1x64xf32, #tpu.memory_space<vmem>>, %arg7: memref<9x64xf32, #tpu.memory_space<vmem>>, %arg8: memref<1x1xf32, #tpu.memory_space<vmem>>, %arg9: memref<1x1x256xf32, #tpu.memory_space<vmem>>, %arg10: memref<1x18x18x64xbf16, #tpu.memory_space<vmem>>, %arg11: memref<256x640xbf16, #tpu.memory_space<vmem>>) attributes {dimension_semantics = [#tpu.dimension_semantics<parallel>], iteration_bounds = array<i64: 2>, scalar_prefetch = 0 : i64, scratch_operands = 2 : i64, tpu.core_type = #tpu.core_type<tc>, window_params = [{transform_indices = @transform_0, window_bounds = array<i64: 1, 18, 18>}, {transform_indices = @transform_1, window_bounds = array<i64: 1, 1, 256>}, {pipeline_mode = #tpu.pipeline_mode<synchronous>, transform_indices = @transform_2, window_bounds = array<i64: 9, 64>}, {pipeline_mode = #tpu.pipeline_mode<synchronous>, transform_indices = @transform_3, window_bounds = array<i64: 1, 64>}, {pipeline_mode = #tpu.pipeline_mode<synchronous>, transform_indices = @transform_4, window_bounds = array<i64: 640, 64>}, {pipeline_mode = #tpu.pipeline_mode<synchronous>, transform_indices = @transform_5, window_bounds = array<i64: 1, 64>}, {pipeline_mode = #tpu.pipeline_mode<synchronous>, transform_indices = @transform_6, window_bounds = array<i64: 9, 64>}, {pipeline_mode = #tpu.pipeline_mode<synchronous>, transform_indices = @transform_7, window_bounds = array<i64: 1, 1>}, {transform_indices = @transform_8, window_bounds = array<i64: 1, 1, 256>}]} {
    %cst = arith.constant 0.000000e+00 : bf16
    %0 = vector.broadcast %cst : bf16 to vector<1x1x18x64xbf16>
    %c0 = arith.constant 0 : index
    %c0_0 = arith.constant 0 : index
    %c0_1 = arith.constant 0 : index
    %c0_2 = arith.constant 0 : index
    %1 = vector.load %arg10[%c0, %c0_0, %c0_1, %c0_2] : memref<1x18x18x64xbf16, #tpu.memory_space<vmem>>, vector<1x1x18x64xbf16>
    tpu.vector_store %arg10[%c0, %c0_0, %c0_1, %c0_2], %0 {strides = array<i32>} : memref<1x18x18x64xbf16, #tpu.memory_space<vmem>>, vector<1x1x18x64xbf16>,
    %cst_3 = arith.constant 0.000000e+00 : bf16
    %2 = vector.broadcast %cst_3 : bf16 to vector<1x1x18x64xbf16>
    %c0_4 = arith.constant 0 : index
    %c17 = arith.constant 17 : index
    %c0_5 = arith.constant 0 : index
    %c0_6 = arith.constant 0 : index
    %3 = vector.load %arg10[%c0_4, %c17, %c0_5, %c0_6] : memref<1x18x18x64xbf16, #tpu.memory_space<vmem>>, vector<1x1x18x64xbf16>
    tpu.vector_store %arg10[%c0_4, %c17, %c0_5, %c0_6], %2 {strides = array<i32>} : memref<1x18x18x64xbf16, #tpu.memory_space<vmem>>, vector<1x1x18x64xbf16>,
    %cst_7 = arith.constant 0.000000e+00 : bf16
    %4 = vector.broadcast %cst_7 : bf16 to vector<1x18x1x64xbf16>
    %c0_8 = arith.constant 0 : index
    %c0_9 = arith.constant 0 : index
    %c0_10 = arith.constant 0 : index
    %c0_11 = arith.constant 0 : index
    %5 = vector.load %arg10[%c0_8, %c0_9, %c0_10, %c0_11] : memref<1x18x18x64xbf16, #tpu.memory_space<vmem>>, vector<1x18x1x64xbf16>
    tpu.vector_store %arg10[%c0_8, %c0_9, %c0_10, %c0_11], %4 {strides = array<i32>} : memref<1x18x18x64xbf16, #tpu.memory_space<vmem>>, vector<1x18x1x64xbf16>,
    %cst_12 = arith.constant 0.000000e+00 : bf16
    %6 = vector.broadcast %cst_12 : bf16 to vector<1x18x1x64xbf16>
    %c0_13 = arith.constant 0 : index
    %c0_14 = arith.constant 0 : index
    %c17_15 = arith.constant 17 : index
    %c0_16 = arith.constant 0 : index
    %7 = vector.load %arg10[%c0_13, %c0_14, %c17_15, %c0_16] : memref<1x18x18x64xbf16, #tpu.memory_space<vmem>>, vector<1x18x1x64xbf16>
    tpu.vector_store %arg10[%c0_13, %c0_14, %c17_15, %c0_16], %6 {strides = array<i32>} : memref<1x18x18x64xbf16, #tpu.memory_space<vmem>>, vector<1x18x1x64xbf16>,
    %cst_17 = arith.constant 0.000000e+00 : f32
    %8 = vector.broadcast %cst_17 : f32 to vector<1x8x16x64xf32>
    %c0_18 = arith.constant 0 : index
    %c0_19 = arith.constant 0 : index
    %c0_20 = arith.constant 0 : index
    %9 = vector.load %arg1[%c0_18, %c0_19, %c0_20] : memref<1x18x18xf32, #tpu.memory_space<vmem>>, vector<1x8x16xf32>
    %10 = vector.shape_cast %9 : vector<1x8x16xf32> to vector<1x8x16x1xf32>
    %c0_21 = arith.constant 0 : index
    %c0_22 = arith.constant 0 : index
    %11 = vector.load %arg3[%c0_21, %c0_22] : memref<9x64xf32, #tpu.memory_space<vmem>>, vector<1x64xf32>
    %12 = vector.shape_cast %11 : vector<1x64xf32> to vector<64xf32>
    %13 = vector.shape_cast %12 : vector<64xf32> to vector<1x1x1x64xf32>
    %14 = vector.broadcast %10 : vector<1x8x16x1xf32> to vector<1x8x16x64xf32>
    %15 = vector.broadcast %13 : vector<1x1x1x64xf32> to vector<1x8x16x64xf32>
    %16 = arith.mulf %14, %15 : vector<1x8x16x64xf32>
    %17 = arith.addf %8, %16 : vector<1x8x16x64xf32>
    %c0_23 = arith.constant 0 : index
    %c0_24 = arith.constant 0 : index
    %c1 = arith.constant 1 : index
    %18 = vector.load %arg1[%c0_23, %c0_24, %c1] : memref<1x18x18xf32, #tpu.memory_space<vmem>>, vector<1x8x16xf32>
    %19 = vector.shape_cast %18 : vector<1x8x16xf32> to vector<1x8x16x1xf32>
    %c1_25 = arith.constant 1 : index
    %c0_26 = arith.constant 0 : index
    %20 = vector.load %arg3[%c1_25, %c0_26] : memref<9x64xf32, #tpu.memory_space<vmem>>, vector<1x64xf32>
    %21 = vector.shape_cast %20 : vector<1x64xf32> to vector<64xf32>
    %22 = vector.shape_cast %21 : vector<64xf32> to vector<1x1x1x64xf32>
    %23 = vector.broadcast %19 : vector<1x8x16x1xf32> to vector<1x8x16x64xf32>
    %24 = vector.broadcast %22 : vector<1x1x1x64xf32> to vector<1x8x16x64xf32>
    %25 = arith.mulf %23, %24 : vector<1x8x16x64xf32>
    %26 = arith.addf %17, %25 : vector<1x8x16x64xf32>
    %c0_27 = arith.constant 0 : index
    %c0_28 = arith.constant 0 : index
    %c2 = arith.constant 2 : index
    %27 = vector.load %arg1[%c0_27, %c0_28, %c2] : memref<1x18x18xf32, #tpu.memory_space<vmem>>, vector<1x8x16xf32>
    %28 = vector.shape_cast %27 : vector<1x8x16xf32> to vector<1x8x16x1xf32>
    %c2_29 = arith.constant 2 : index
    %c0_30 = arith.constant 0 : index
    %29 = vector.load %arg3[%c2_29, %c0_30] : memref<9x64xf32, #tpu.memory_space<vmem>>, vector<1x64xf32>
    %30 = vector.shape_cast %29 : vector<1x64xf32> to vector<64xf32>
    %31 = vector.shape_cast %30 : vector<64xf32> to vector<1x1x1x64xf32>
    %32 = vector.broadcast %28 : vector<1x8x16x1xf32> to vector<1x8x16x64xf32>
    %33 = vector.broadcast %31 : vector<1x1x1x64xf32> to vector<1x8x16x64xf32>
    %34 = arith.mulf %32, %33 : vector<1x8x16x64xf32>
    %35 = arith.addf %26, %34 : vector<1x8x16x64xf32>
    %c0_31 = arith.constant 0 : index
    %c1_32 = arith.constant 1 : index
    %c0_33 = arith.constant 0 : index
    %36 = vector.load %arg1[%c0_31, %c1_32, %c0_33] : memref<1x18x18xf32, #tpu.memory_space<vmem>>, vector<1x8x16xf32>
    %37 = vector.shape_cast %36 : vector<1x8x16xf32> to vector<1x8x16x1xf32>
    %c3 = arith.constant 3 : index
    %c0_34 = arith.constant 0 : index
    %38 = vector.load %arg3[%c3, %c0_34] : memref<9x64xf32, #tpu.memory_space<vmem>>, vector<1x64xf32>
    %39 = vector.shape_cast %38 : vector<1x64xf32> to vector<64xf32>
    %40 = vector.shape_cast %39 : vector<64xf32> to vector<1x1x1x64xf32>
    %41 = vector.broadcast %37 : vector<1x8x16x1xf32> to vector<1x8x16x64xf32>
    %42 = vector.broadcast %40 : vector<1x1x1x64xf32> to vector<1x8x16x64xf32>
    %43 = arith.mulf %41, %42 : vector<1x8x16x64xf32>
    %44 = arith.addf %35, %43 : vector<1x8x16x64xf32>
    %c0_35 = arith.constant 0 : index
    %c1_36 = arith.constant 1 : index
    %c1_37 = arith.constant 1 : index
    %45 = vector.load %arg1[%c0_35, %c1_36, %c1_37] : memref<1x18x18xf32, #tpu.memory_space<vmem>>, vector<1x8x16xf32>
    %46 = vector.shape_cast %45 : vector<1x8x16xf32> to vector<1x8x16x1xf32>
    %c4 = arith.constant 4 : index
    %c0_38 = arith.constant 0 : index
    %47 = vector.load %arg3[%c4, %c0_38] : memref<9x64xf32, #tpu.memory_space<vmem>>, vector<1x64xf32>
    %48 = vector.shape_cast %47 : vector<1x64xf32> to vector<64xf32>
    %49 = vector.shape_cast %48 : vector<64xf32> to vector<1x1x1x64xf32>
    %50 = vector.broadcast %46 : vector<1x8x16x1xf32> to vector<1x8x16x64xf32>
    %51 = vector.broadcast %49 : vector<1x1x1x64xf32> to vector<1x8x16x64xf32>
    %52 = arith.mulf %50, %51 : vector<1x8x16x64xf32>
    %53 = arith.addf %44, %52 : vector<1x8x16x64xf32>
    %c0_39 = arith.constant 0 : index
    %c1_40 = arith.constant 1 : index
    %c2_41 = arith.constant 2 : index
    %54 = vector.load %arg1[%c0_39, %c1_40, %c2_41] : memref<1x18x18xf32, #tpu.memory_space<vmem>>, vector<1x8x16xf32>
    %55 = vector.shape_cast %54 : vector<1x8x16xf32> to vector<1x8x16x1xf32>
    %c5 = arith.constant 5 : index
    %c0_42 = arith.constant 0 : index
    %56 = vector.load %arg3[%c5, %c0_42] : memref<9x64xf32, #tpu.memory_space<vmem>>, vector<1x64xf32>
    %57 = vector.shape_cast %56 : vector<1x64xf32> to vector<64xf32>
    %58 = vector.shape_cast %57 : vector<64xf32> to vector<1x1x1x64xf32>
    %59 = vector.broadcast %55 : vector<1x8x16x1xf32> to vector<1x8x16x64xf32>
    %60 = vector.broadcast %58 : vector<1x1x1x64xf32> to vector<1x8x16x64xf32>
    %61 = arith.mulf %59, %60 : vector<1x8x16x64xf32>
    %62 = arith.addf %53, %61 : vector<1x8x16x64xf32>
    %c0_43 = arith.constant 0 : index
    %c2_44 = arith.constant 2 : index
    %c0_45 = arith.constant 0 : index
    %63 = vector.load %arg1[%c0_43, %c2_44, %c0_45] : memref<1x18x18xf32, #tpu.memory_space<vmem>>, vector<1x8x16xf32>
    %64 = vector.shape_cast %63 : vector<1x8x16xf32> to vector<1x8x16x1xf32>
    %c6 = arith.constant 6 : index
    %c0_46 = arith.constant 0 : index
    %65 = vector.load %arg3[%c6, %c0_46] : memref<9x64xf32, #tpu.memory_space<vmem>>, vector<1x64xf32>
    %66 = vector.shape_cast %65 : vector<1x64xf32> to vector<64xf32>
    %67 = vector.shape_cast %66 : vector<64xf32> to vector<1x1x1x64xf32>
    %68 = vector.broadcast %64 : vector<1x8x16x1xf32> to vector<1x8x16x64xf32>
    %69 = vector.broadcast %67 : vector<1x1x1x64xf32> to vector<1x8x16x64xf32>
    %70 = arith.mulf %68, %69 : vector<1x8x16x64xf32>
    %71 = arith.addf %62, %70 : vector<1x8x16x64xf32>
    %c0_47 = arith.constant 0 : index
    %c2_48 = arith.constant 2 : index
    %c1_49 = arith.constant 1 : index
    %72 = vector.load %arg1[%c0_47, %c2_48, %c1_49] : memref<1x18x18xf32, #tpu.memory_space<vmem>>, vector<1x8x16xf32>
    %73 = vector.shape_cast %72 : vector<1x8x16xf32> to vector<1x8x16x1xf32>
    %c7 = arith.constant 7 : index
    %c0_50 = arith.constant 0 : index
    %74 = vector.load %arg3[%c7, %c0_50] : memref<9x64xf32, #tpu.memory_space<vmem>>, vector<1x64xf32>
    %75 = vector.shape_cast %74 : vector<1x64xf32> to vector<64xf32>
    %76 = vector.shape_cast %75 : vector<64xf32> to vector<1x1x1x64xf32>
    %77 = vector.broadcast %73 : vector<1x8x16x1xf32> to vector<1x8x16x64xf32>
    %78 = vector.broadcast %76 : vector<1x1x1x64xf32> to vector<1x8x16x64xf32>
    %79 = arith.mulf %77, %78 : vector<1x8x16x64xf32>
    %80 = arith.addf %71, %79 : vector<1x8x16x64xf32>
    %c0_51 = arith.constant 0 : index
    %c2_52 = arith.constant 2 : index
    %c2_53 = arith.constant 2 : index
    %81 = vector.load %arg1[%c0_51, %c2_52, %c2_53] : memref<1x18x18xf32, #tpu.memory_space<vmem>>, vector<1x8x16xf32>
    %82 = vector.shape_cast %81 : vector<1x8x16xf32> to vector<1x8x16x1xf32>
    %c8 = arith.constant 8 : index
    %c0_54 = arith.constant 0 : index
    %83 = vector.load %arg3[%c8, %c0_54] : memref<9x64xf32, #tpu.memory_space<vmem>>, vector<1x64xf32>
    %84 = vector.shape_cast %83 : vector<1x64xf32> to vector<64xf32>
    %85 = vector.shape_cast %84 : vector<64xf32> to vector<1x1x1x64xf32>
    %86 = vector.broadcast %82 : vector<1x8x16x1xf32> to vector<1x8x16x64xf32>
    %87 = vector.broadcast %85 : vector<1x1x1x64xf32> to vector<1x8x16x64xf32>
    %88 = arith.mulf %86, %87 : vector<1x8x16x64xf32>
    %89 = arith.addf %80, %88 : vector<1x8x16x64xf32>
    %c0_55 = arith.constant 0 : index
    %c0_56 = arith.constant 0 : index
    %90 = vector.load %arg4[%c0_55, %c0_56] : memref<1x64xf32, #tpu.memory_space<vmem>>, vector<1x64xf32>
    %91 = vector.shape_cast %90 : vector<1x64xf32> to vector<1x1x1x64xf32>
    %92 = vector.broadcast %91 : vector<1x1x1x64xf32> to vector<1x8x16x64xf32>
    %93 = arith.addf %89, %92 : vector<1x8x16x64xf32>
    %cst_57 = arith.constant 0.000000e+00 : f32
    %94 = vector.broadcast %cst_57 : f32 to vector<1x8x16x64xf32>
    %95 = arith.maximumf %93, %94 : vector<1x8x16x64xf32>
    %96 = arith.truncf %95 : vector<1x8x16x64xf32> to vector<1x8x16x64xbf16>
    %c0_58 = arith.constant 0 : index
    %c1_59 = arith.constant 1 : index
    %c1_60 = arith.constant 1 : index
    %c0_61 = arith.constant 0 : index
    %97 = vector.load %arg10[%c0_58, %c1_59, %c1_60, %c0_61] : memref<1x18x18x64xbf16, #tpu.memory_space<vmem>>, vector<1x8x16x64xbf16>
    tpu.vector_store %arg10[%c0_58, %c1_59, %c1_60, %c0_61], %96 {strides = array<i32>} : memref<1x18x18x64xbf16, #tpu.memory_space<vmem>>, vector<1x8x16x64xbf16>,
    %cst_62 = arith.constant 0.000000e+00 : f32
    %98 = vector.broadcast %cst_62 : f32 to vector<1x8x16x64xf32>
    %c0_63 = arith.constant 0 : index
    %c8_64 = arith.constant 8 : index
    %c0_65 = arith.constant 0 : index
    %99 = vector.load %arg1[%c0_63, %c8_64, %c0_65] : memref<1x18x18xf32, #tpu.memory_space<vmem>>, vector<1x8x16xf32>
    %100 = vector.shape_cast %99 : vector<1x8x16xf32> to vector<1x8x16x1xf32>
    %c0_66 = arith.constant 0 : index
    %c0_67 = arith.constant 0 : index
    %101 = vector.load %arg3[%c0_66, %c0_67] : memref<9x64xf32, #tpu.memory_space<vmem>>, vector<1x64xf32>
    %102 = vector.shape_cast %101 : vector<1x64xf32> to vector<64xf32>
    %103 = vector.shape_cast %102 : vector<64xf32> to vector<1x1x1x64xf32>
    %104 = vector.broadcast %100 : vector<1x8x16x1xf32> to vector<1x8x16x64xf32>
    %105 = vector.broadcast %103 : vector<1x1x1x64xf32> to vector<1x8x16x64xf32>
    %106 = arith.mulf %104, %105 : vector<1x8x16x64xf32>
    %107 = arith.addf %98, %106 : vector<1x8x16x64xf32>
    %c0_68 = arith.constant 0 : index
    %c8_69 = arith.constant 8 : index
    %c1_70 = arith.constant 1 : index
    %108 = vector.load %arg1[%c0_68, %c8_69, %c1_70] : memref<1x18x18xf32, #tpu.memory_space<vmem>>, vector<1x8x16xf32>
    %109 = vector.shape_cast %108 : vector<1x8x16xf32> to vector<1x8x16x1xf32>
    %c1_71 = arith.constant 1 : index
    %c0_72 = arith.constant 0 : index
    %110 = vector.load %arg3[%c1_71, %c0_72] : memref<9x64xf32, #tpu.memory_space<vmem>>, vector<1x64xf32>
    %111 = vector.shape_cast %110 : vector<1x64xf32> to vector<64xf32>
    %112 = vector.shape_cast %111 : vector<64xf32> to vector<1x1x1x64xf32>
    %113 = vector.broadcast %109 : vector<1x8x16x1xf32> to vector<1x8x16x64xf32>
    %114 = vector.broadcast %112 : vector<1x1x1x64xf32> to vector<1x8x16x64xf32>
    %115 = arith.mulf %113, %114 : vector<1x8x16x64xf32>
    %116 = arith.addf %107, %115 : vector<1x8x16x64xf32>
    %c0_73 = arith.constant 0 : index
    %c8_74 = arith.constant 8 : index
    %c2_75 = arith.constant 2 : index
    %117 = vector.load %arg1[%c0_73, %c8_74, %c2_75] : memref<1x18x18xf32, #tpu.memory_space<vmem>>, vector<1x8x16xf32>
    %118 = vector.shape_cast %117 : vector<1x8x16xf32> to vector<1x8x16x1xf32>
    %c2_76 = arith.constant 2 : index
    %c0_77 = arith.constant 0 : index
    %119 = vector.load %arg3[%c2_76, %c0_77] : memref<9x64xf32, #tpu.memory_space<vmem>>, vector<1x64xf32>
    %120 = vector.shape_cast %119 : vector<1x64xf32> to vector<64xf32>
    %121 = vector.shape_cast %120 : vector<64xf32> to vector<1x1x1x64xf32>
    %122 = vector.broadcast %118 : vector<1x8x16x1xf32> to vector<1x8x16x64xf32>
    %123 = vector.broadcast %121 : vector<1x1x1x64xf32> to vector<1x8x16x64xf32>
    %124 = arith.mulf %122, %123 : vector<1x8x16x64xf32>
    %125 = arith.addf %116, %124 : vector<1x8x16x64xf32>
    %c0_78 = arith.constant 0 : index
    %c9 = arith.constant 9 : index
    %c0_79 = arith.constant 0 : index
    %126 = vector.load %arg1[%c0_78, %c9, %c0_79] : memref<1x18x18xf32, #tpu.memory_space<vmem>>, vector<1x8x16xf32>
    %127 = vector.shape_cast %126 : vector<1x8x16xf32> to vector<1x8x16x1xf32>
    %c3_80 = arith.constant 3 : index
    %c0_81 = arith.constant 0 : index
    %128 = vector.load %arg3[%c3_80, %c0_81] : memref<9x64xf32, #tpu.memory_space<vmem>>, vector<1x64xf32>
    %129 = vector.shape_cast %128 : vector<1x64xf32> to vector<64xf32>
    %130 = vector.shape_cast %129 : vector<64xf32> to vector<1x1x1x64xf32>
    %131 = vector.broadcast %127 : vector<1x8x16x1xf32> to vector<1x8x16x64xf32>
    %132 = vector.broadcast %130 : vector<1x1x1x64xf32> to vector<1x8x16x64xf32>
    %133 = arith.mulf %131, %132 : vector<1x8x16x64xf32>
    %134 = arith.addf %125, %133 : vector<1x8x16x64xf32>
    %c0_82 = arith.constant 0 : index
    %c9_83 = arith.constant 9 : index
    %c1_84 = arith.constant 1 : index
    %135 = vector.load %arg1[%c0_82, %c9_83, %c1_84] : memref<1x18x18xf32, #tpu.memory_space<vmem>>, vector<1x8x16xf32>
    %136 = vector.shape_cast %135 : vector<1x8x16xf32> to vector<1x8x16x1xf32>
    %c4_85 = arith.constant 4 : index
    %c0_86 = arith.constant 0 : index
    %137 = vector.load %arg3[%c4_85, %c0_86] : memref<9x64xf32, #tpu.memory_space<vmem>>, vector<1x64xf32>
    %138 = vector.shape_cast %137 : vector<1x64xf32> to vector<64xf32>
    %139 = vector.shape_cast %138 : vector<64xf32> to vector<1x1x1x64xf32>
    %140 = vector.broadcast %136 : vector<1x8x16x1xf32> to vector<1x8x16x64xf32>
    %141 = vector.broadcast %139 : vector<1x1x1x64xf32> to vector<1x8x16x64xf32>
    %142 = arith.mulf %140, %141 : vector<1x8x16x64xf32>
    %143 = arith.addf %134, %142 : vector<1x8x16x64xf32>
    %c0_87 = arith.constant 0 : index
    %c9_88 = arith.constant 9 : index
    %c2_89 = arith.constant 2 : index
    %144 = vector.load %arg1[%c0_87, %c9_88, %c2_89] : memref<1x18x18xf32, #tpu.memory_space<vmem>>, vector<1x8x16xf32>
    %145 = vector.shape_cast %144 : vector<1x8x16xf32> to vector<1x8x16x1xf32>
    %c5_90 = arith.constant 5 : index
    %c0_91 = arith.constant 0 : index
    %146 = vector.load %arg3[%c5_90, %c0_91] : memref<9x64xf32, #tpu.memory_space<vmem>>, vector<1x64xf32>
    %147 = vector.shape_cast %146 : vector<1x64xf32> to vector<64xf32>
    %148 = vector.shape_cast %147 : vector<64xf32> to vector<1x1x1x64xf32>
    %149 = vector.broadcast %145 : vector<1x8x16x1xf32> to vector<1x8x16x64xf32>
    %150 = vector.broadcast %148 : vector<1x1x1x64xf32> to vector<1x8x16x64xf32>
    %151 = arith.mulf %149, %150 : vector<1x8x16x64xf32>
    %152 = arith.addf %143, %151 : vector<1x8x16x64xf32>
    %c0_92 = arith.constant 0 : index
    %c10 = arith.constant 10 : index
    %c0_93 = arith.constant 0 : index
    %153 = vector.load %arg1[%c0_92, %c10, %c0_93] : memref<1x18x18xf32, #tpu.memory_space<vmem>>, vector<1x8x16xf32>
    %154 = vector.shape_cast %153 : vector<1x8x16xf32> to vector<1x8x16x1xf32>
    %c6_94 = arith.constant 6 : index
    %c0_95 = arith.constant 0 : index
    %155 = vector.load %arg3[%c6_94, %c0_95] : memref<9x64xf32, #tpu.memory_space<vmem>>, vector<1x64xf32>
    %156 = vector.shape_cast %155 : vector<1x64xf32> to vector<64xf32>
    %157 = vector.shape_cast %156 : vector<64xf32> to vector<1x1x1x64xf32>
    %158 = vector.broadcast %154 : vector<1x8x16x1xf32> to vector<1x8x16x64xf32>
    %159 = vector.broadcast %157 : vector<1x1x1x64xf32> to vector<1x8x16x64xf32>
    %160 = arith.mulf %158, %159 : vector<1x8x16x64xf32>
    %161 = arith.addf %152, %160 : vector<1x8x16x64xf32>
    %c0_96 = arith.constant 0 : index
    %c10_97 = arith.constant 10 : index
    %c1_98 = arith.constant 1 : index
    %162 = vector.load %arg1[%c0_96, %c10_97, %c1_98] : memref<1x18x18xf32, #tpu.memory_space<vmem>>, vector<1x8x16xf32>
    %163 = vector.shape_cast %162 : vector<1x8x16xf32> to vector<1x8x16x1xf32>
    %c7_99 = arith.constant 7 : index
    %c0_100 = arith.constant 0 : index
    %164 = vector.load %arg3[%c7_99, %c0_100] : memref<9x64xf32, #tpu.memory_space<vmem>>, vector<1x64xf32>
    %165 = vector.shape_cast %164 : vector<1x64xf32> to vector<64xf32>
    %166 = vector.shape_cast %165 : vector<64xf32> to vector<1x1x1x64xf32>
    %167 = vector.broadcast %163 : vector<1x8x16x1xf32> to vector<1x8x16x64xf32>
    %168 = vector.broadcast %166 : vector<1x1x1x64xf32> to vector<1x8x16x64xf32>
    %169 = arith.mulf %167, %168 : vector<1x8x16x64xf32>
    %170 = arith.addf %161, %169 : vector<1x8x16x64xf32>
    %c0_101 = arith.constant 0 : index
    %c10_102 = arith.constant 10 : index
    %c2_103 = arith.constant 2 : index
    %171 = vector.load %arg1[%c0_101, %c10_102, %c2_103] : memref<1x18x18xf32, #tpu.memory_space<vmem>>, vector<1x8x16xf32>
    %172 = vector.shape_cast %171 : vector<1x8x16xf32> to vector<1x8x16x1xf32>
    %c8_104 = arith.constant 8 : index
    %c0_105 = arith.constant 0 : index
    %173 = vector.load %arg3[%c8_104, %c0_105] : memref<9x64xf32, #tpu.memory_space<vmem>>, vector<1x64xf32>
    %174 = vector.shape_cast %173 : vector<1x64xf32> to vector<64xf32>
    %175 = vector.shape_cast %174 : vector<64xf32> to vector<1x1x1x64xf32>
    %176 = vector.broadcast %172 : vector<1x8x16x1xf32> to vector<1x8x16x64xf32>
    %177 = vector.broadcast %175 : vector<1x1x1x64xf32> to vector<1x8x16x64xf32>
    %178 = arith.mulf %176, %177 : vector<1x8x16x64xf32>
    %179 = arith.addf %170, %178 : vector<1x8x16x64xf32>
    %c0_106 = arith.constant 0 : index
    %c0_107 = arith.constant 0 : index
    %180 = vector.load %arg4[%c0_106, %c0_107] : memref<1x64xf32, #tpu.memory_space<vmem>>, vector<1x64xf32>
    %181 = vector.shape_cast %180 : vector<1x64xf32> to vector<1x1x1x64xf32>
    %182 = vector.broadcast %181 : vector<1x1x1x64xf32> to vector<1x8x16x64xf32>
    %183 = arith.addf %179, %182 : vector<1x8x16x64xf32>
    %cst_108 = arith.constant 0.000000e+00 : f32
    %184 = vector.broadcast %cst_108 : f32 to vector<1x8x16x64xf32>
    %185 = arith.maximumf %183, %184 : vector<1x8x16x64xf32>
    %186 = arith.truncf %185 : vector<1x8x16x64xf32> to vector<1x8x16x64xbf16>
    %c0_109 = arith.constant 0 : index
    %c9_110 = arith.constant 9 : index
    %c1_111 = arith.constant 1 : index
    %c0_112 = arith.constant 0 : index
    %187 = vector.load %arg10[%c0_109, %c9_110, %c1_111, %c0_112] : memref<1x18x18x64xbf16, #tpu.memory_space<vmem>>, vector<1x8x16x64xbf16>
    tpu.vector_store %arg10[%c0_109, %c9_110, %c1_111, %c0_112], %186 {strides = array<i32>} : memref<1x18x18x64xbf16, #tpu.memory_space<vmem>>, vector<1x8x16x64xbf16>,
    %c0_113 = arith.constant 0 : index
    %c0_114 = arith.constant 0 : index
    %c0_115 = arith.constant 0 : index
    %c0_116 = arith.constant 0 : index
    %188 = vector.load %arg10[%c0_113, %c0_114, %c0_115, %c0_116] : memref<1x18x18x64xbf16, #tpu.memory_space<vmem>>, vector<1x16x16x64xbf16>
    %189 = vector.shape_cast %188 : vector<1x16x16x64xbf16> to vector<256x64xbf16>
    %c0_117 = arith.constant 0 : index
    %c0_118 = arith.constant 0 : index
    %c1_119 = arith.constant 1 : index
    %c0_120 = arith.constant 0 : index
    %190 = vector.load %arg10[%c0_117, %c0_118, %c1_119, %c0_120] : memref<1x18x18x64xbf16, #tpu.memory_space<vmem>>, vector<1x16x16x64xbf16>
    %191 = vector.shape_cast %190 : vector<1x16x16x64xbf16> to vector<256x64xbf16>
    %192 = tpu.concatenate %189, %191 in 1 : vector<256x64xbf16>, vector<256x64xbf16> -> vector<256x128xbf16>
    %c0_121 = arith.constant 0 : index
    %c0_122 = arith.constant 0 : index
    %193 = vector.load %arg11[%c0_121, %c0_122] : memref<256x640xbf16, #tpu.memory_space<vmem>>, vector<256x128xbf16>
    tpu.vector_store %arg11[%c0_121, %c0_122], %192 {strides = array<i32>} : memref<256x640xbf16, #tpu.memory_space<vmem>>, vector<256x128xbf16>,
    %c0_123 = arith.constant 0 : index
    %c0_124 = arith.constant 0 : index
    %c2_125 = arith.constant 2 : index
    %c0_126 = arith.constant 0 : index
    %194 = vector.load %arg10[%c0_123, %c0_124, %c2_125, %c0_126] : memref<1x18x18x64xbf16, #tpu.memory_space<vmem>>, vector<1x16x16x64xbf16>
    %195 = vector.shape_cast %194 : vector<1x16x16x64xbf16> to vector<256x64xbf16>
    %c0_127 = arith.constant 0 : index
    %c1_128 = arith.constant 1 : index
    %c0_129 = arith.constant 0 : index
    %c0_130 = arith.constant 0 : index
    %196 = vector.load %arg10[%c0_127, %c1_128, %c0_129, %c0_130] : memref<1x18x18x64xbf16, #tpu.memory_space<vmem>>, vector<1x16x16x64xbf16>
    %197 = vector.shape_cast %196 : vector<1x16x16x64xbf16> to vector<256x64xbf16>
    %198 = tpu.concatenate %195, %197 in 1 : vector<256x64xbf16>, vector<256x64xbf16> -> vector<256x128xbf16>
    %c0_131 = arith.constant 0 : index
    %c128 = arith.constant 128 : index
    %199 = vector.load %arg11[%c0_131, %c128] : memref<256x640xbf16, #tpu.memory_space<vmem>>, vector<256x128xbf16>
    tpu.vector_store %arg11[%c0_131, %c128], %198 {strides = array<i32>} : memref<256x640xbf16, #tpu.memory_space<vmem>>, vector<256x128xbf16>,
    %c0_132 = arith.constant 0 : index
    %c1_133 = arith.constant 1 : index
    %c1_134 = arith.constant 1 : index
    %c0_135 = arith.constant 0 : index
    %200 = vector.load %arg10[%c0_132, %c1_133, %c1_134, %c0_135] : memref<1x18x18x64xbf16, #tpu.memory_space<vmem>>, vector<1x16x16x64xbf16>
    %201 = vector.shape_cast %200 : vector<1x16x16x64xbf16> to vector<256x64xbf16>
    %c0_136 = arith.constant 0 : index
    %c1_137 = arith.constant 1 : index
    %c2_138 = arith.constant 2 : index
    %c0_139 = arith.constant 0 : index
    %202 = vector.load %arg10[%c0_136, %c1_137, %c2_138, %c0_139] : memref<1x18x18x64xbf16, #tpu.memory_space<vmem>>, vector<1x16x16x64xbf16>
    %203 = vector.shape_cast %202 : vector<1x16x16x64xbf16> to vector<256x64xbf16>
    %204 = tpu.concatenate %201, %203 in 1 : vector<256x64xbf16>, vector<256x64xbf16> -> vector<256x128xbf16>
    %c0_140 = arith.constant 0 : index
    %c256 = arith.constant 256 : index
    %205 = vector.load %arg11[%c0_140, %c256] : memref<256x640xbf16, #tpu.memory_space<vmem>>, vector<256x128xbf16>
    tpu.vector_store %arg11[%c0_140, %c256], %204 {strides = array<i32>} : memref<256x640xbf16, #tpu.memory_space<vmem>>, vector<256x128xbf16>,
    %c0_141 = arith.constant 0 : index
    %c2_142 = arith.constant 2 : index
    %c0_143 = arith.constant 0 : index
    %c0_144 = arith.constant 0 : index
    %206 = vector.load %arg10[%c0_141, %c2_142, %c0_143, %c0_144] : memref<1x18x18x64xbf16, #tpu.memory_space<vmem>>, vector<1x16x16x64xbf16>
    %207 = vector.shape_cast %206 : vector<1x16x16x64xbf16> to vector<256x64xbf16>
    %c0_145 = arith.constant 0 : index
    %c2_146 = arith.constant 2 : index
    %c1_147 = arith.constant 1 : index
    %c0_148 = arith.constant 0 : index
    %208 = vector.load %arg10[%c0_145, %c2_146, %c1_147, %c0_148] : memref<1x18x18x64xbf16, #tpu.memory_space<vmem>>, vector<1x16x16x64xbf16>
    %209 = vector.shape_cast %208 : vector<1x16x16x64xbf16> to vector<256x64xbf16>
    %210 = tpu.concatenate %207, %209 in 1 : vector<256x64xbf16>, vector<256x64xbf16> -> vector<256x128xbf16>
    %c0_149 = arith.constant 0 : index
    %c384 = arith.constant 384 : index
    %211 = vector.load %arg11[%c0_149, %c384] : memref<256x640xbf16, #tpu.memory_space<vmem>>, vector<256x128xbf16>
    tpu.vector_store %arg11[%c0_149, %c384], %210 {strides = array<i32>} : memref<256x640xbf16, #tpu.memory_space<vmem>>, vector<256x128xbf16>,
    %c0_150 = arith.constant 0 : index
    %c2_151 = arith.constant 2 : index
    %c2_152 = arith.constant 2 : index
    %c0_153 = arith.constant 0 : index
    %212 = vector.load %arg10[%c0_150, %c2_151, %c2_152, %c0_153] : memref<1x18x18x64xbf16, #tpu.memory_space<vmem>>, vector<1x16x16x64xbf16>
    %213 = vector.shape_cast %212 : vector<1x16x16x64xbf16> to vector<256x64xbf16>
    %cst_154 = arith.constant 0.000000e+00 : bf16
    %214 = vector.broadcast %cst_154 : bf16 to vector<256x64xbf16>
    %215 = tpu.concatenate %213, %214 in 1 : vector<256x64xbf16>, vector<256x64xbf16> -> vector<256x128xbf16>
    %c0_155 = arith.constant 0 : index
    %c512 = arith.constant 512 : index
    %216 = vector.load %arg11[%c0_155, %c512] : memref<256x640xbf16, #tpu.memory_space<vmem>>, vector<256x128xbf16>
    tpu.vector_store %arg11[%c0_155, %c512], %215 {strides = array<i32>} : memref<256x640xbf16, #tpu.memory_space<vmem>>, vector<256x128xbf16>,
    %c0_156 = arith.constant 0 : index
    %c0_157 = arith.constant 0 : index
    %217 = vector.load %arg11[%c0_156, %c0_157] : memref<256x640xbf16, #tpu.memory_space<vmem>>, vector<256x640xbf16>
    %c0_158 = arith.constant 0 : index
    %c0_159 = arith.constant 0 : index
    %218 = vector.load %arg5[%c0_158, %c0_159] : memref<640x64xbf16, #tpu.memory_space<vmem>>, vector<640x64xbf16>
    %cst_160 = arith.constant dense<0.000000e+00> : vector<256x64xf32>
    %219 = tpu.matmul %217, %218, %cst_160 {dimension_numbers = #tpu.dot_dimension_numbers<[1], [0], [0], [1], [0, 0, 1, 1], [], []>} : vector<256x640xbf16>, vector<640x64xbf16>, vector<256x64xf32> -> vector<256x64xf32>
    %c0_161 = arith.constant 0 : index
    %c0_162 = arith.constant 0 : index
    %220 = vector.load %arg6[%c0_161, %c0_162] : memref<1x64xf32, #tpu.memory_space<vmem>>, vector<1x64xf32>
    %221 = vector.broadcast %220 : vector<1x64xf32> to vector<256x64xf32>
    %222 = arith.addf %219, %221 : vector<256x64xf32>
    %cst_163 = arith.constant 0.000000e+00 : f32
    %223 = vector.broadcast %cst_163 : f32 to vector<256x64xf32>
    %224 = arith.maximumf %222, %223 : vector<256x64xf32>
    %225 = vector.shape_cast %224 : vector<256x64xf32> to vector<1x16x16x64xf32>
    %226 = arith.truncf %225 : vector<1x16x16x64xf32> to vector<1x16x16x64xbf16>
    %c0_164 = arith.constant 0 : index
    %c1_165 = arith.constant 1 : index
    %c1_166 = arith.constant 1 : index
    %c0_167 = arith.constant 0 : index
    %227 = vector.load %arg10[%c0_164, %c1_165, %c1_166, %c0_167] : memref<1x18x18x64xbf16, #tpu.memory_space<vmem>>, vector<1x16x16x64xbf16>
    tpu.vector_store %arg10[%c0_164, %c1_165, %c1_166, %c0_167], %226 {strides = array<i32>} : memref<1x18x18x64xbf16, #tpu.memory_space<vmem>>, vector<1x16x16x64xbf16>,
    %cst_168 = arith.constant 0.000000e+00 : f32
    %228 = vector.broadcast %cst_168 : f32 to vector<1x8x16x64xf32>
    %c0_169 = arith.constant 0 : index
    %c0_170 = arith.constant 0 : index
    %c0_171 = arith.constant 0 : index
    %c0_172 = arith.constant 0 : index
    %229 = vector.load %arg10[%c0_169, %c0_170, %c0_171, %c0_172] : memref<1x18x18x64xbf16, #tpu.memory_space<vmem>>, vector<1x8x16x64xbf16>
    %230 = arith.extf %229 : vector<1x8x16x64xbf16> to vector<1x8x16x64xf32>
    %c0_173 = arith.constant 0 : index
    %c0_174 = arith.constant 0 : index
    %231 = vector.load %arg7[%c0_173, %c0_174] : memref<9x64xf32, #tpu.memory_space<vmem>>, vector<1x64xf32>
    %232 = vector.shape_cast %231 : vector<1x64xf32> to vector<64xf32>
    %233 = vector.shape_cast %232 : vector<64xf32> to vector<1x1x1x64xf32>
    %234 = vector.broadcast %233 : vector<1x1x1x64xf32> to vector<1x8x16x64xf32>
    %235 = arith.mulf %230, %234 : vector<1x8x16x64xf32>
    %236 = arith.addf %228, %235 : vector<1x8x16x64xf32>
    %c0_175 = arith.constant 0 : index
    %c0_176 = arith.constant 0 : index
    %c1_177 = arith.constant 1 : index
    %c0_178 = arith.constant 0 : index
    %237 = vector.load %arg10[%c0_175, %c0_176, %c1_177, %c0_178] : memref<1x18x18x64xbf16, #tpu.memory_space<vmem>>, vector<1x8x16x64xbf16>
    %238 = arith.extf %237 : vector<1x8x16x64xbf16> to vector<1x8x16x64xf32>
    %c1_179 = arith.constant 1 : index
    %c0_180 = arith.constant 0 : index
    %239 = vector.load %arg7[%c1_179, %c0_180] : memref<9x64xf32, #tpu.memory_space<vmem>>, vector<1x64xf32>
    %240 = vector.shape_cast %239 : vector<1x64xf32> to vector<64xf32>
    %241 = vector.shape_cast %240 : vector<64xf32> to vector<1x1x1x64xf32>
    %242 = vector.broadcast %241 : vector<1x1x1x64xf32> to vector<1x8x16x64xf32>
    %243 = arith.mulf %238, %242 : vector<1x8x16x64xf32>
    %244 = arith.addf %236, %243 : vector<1x8x16x64xf32>
    %c0_181 = arith.constant 0 : index
    %c0_182 = arith.constant 0 : index
    %c2_183 = arith.constant 2 : index
    %c0_184 = arith.constant 0 : index
    %245 = vector.load %arg10[%c0_181, %c0_182, %c2_183, %c0_184] : memref<1x18x18x64xbf16, #tpu.memory_space<vmem>>, vector<1x8x16x64xbf16>
    %246 = arith.extf %245 : vector<1x8x16x64xbf16> to vector<1x8x16x64xf32>
    %c2_185 = arith.constant 2 : index
    %c0_186 = arith.constant 0 : index
    %247 = vector.load %arg7[%c2_185, %c0_186] : memref<9x64xf32, #tpu.memory_space<vmem>>, vector<1x64xf32>
    %248 = vector.shape_cast %247 : vector<1x64xf32> to vector<64xf32>
    %249 = vector.shape_cast %248 : vector<64xf32> to vector<1x1x1x64xf32>
    %250 = vector.broadcast %249 : vector<1x1x1x64xf32> to vector<1x8x16x64xf32>
    %251 = arith.mulf %246, %250 : vector<1x8x16x64xf32>
    %252 = arith.addf %244, %251 : vector<1x8x16x64xf32>
    %c0_187 = arith.constant 0 : index
    %c1_188 = arith.constant 1 : index
    %c0_189 = arith.constant 0 : index
    %c0_190 = arith.constant 0 : index
    %253 = vector.load %arg10[%c0_187, %c1_188, %c0_189, %c0_190] : memref<1x18x18x64xbf16, #tpu.memory_space<vmem>>, vector<1x8x16x64xbf16>
    %254 = arith.extf %253 : vector<1x8x16x64xbf16> to vector<1x8x16x64xf32>
    %c3_191 = arith.constant 3 : index
    %c0_192 = arith.constant 0 : index
    %255 = vector.load %arg7[%c3_191, %c0_192] : memref<9x64xf32, #tpu.memory_space<vmem>>, vector<1x64xf32>
    %256 = vector.shape_cast %255 : vector<1x64xf32> to vector<64xf32>
    %257 = vector.shape_cast %256 : vector<64xf32> to vector<1x1x1x64xf32>
    %258 = vector.broadcast %257 : vector<1x1x1x64xf32> to vector<1x8x16x64xf32>
    %259 = arith.mulf %254, %258 : vector<1x8x16x64xf32>
    %260 = arith.addf %252, %259 : vector<1x8x16x64xf32>
    %c0_193 = arith.constant 0 : index
    %c1_194 = arith.constant 1 : index
    %c1_195 = arith.constant 1 : index
    %c0_196 = arith.constant 0 : index
    %261 = vector.load %arg10[%c0_193, %c1_194, %c1_195, %c0_196] : memref<1x18x18x64xbf16, #tpu.memory_space<vmem>>, vector<1x8x16x64xbf16>
    %262 = arith.extf %261 : vector<1x8x16x64xbf16> to vector<1x8x16x64xf32>
    %c4_197 = arith.constant 4 : index
    %c0_198 = arith.constant 0 : index
    %263 = vector.load %arg7[%c4_197, %c0_198] : memref<9x64xf32, #tpu.memory_space<vmem>>, vector<1x64xf32>
    %264 = vector.shape_cast %263 : vector<1x64xf32> to vector<64xf32>
    %265 = vector.shape_cast %264 : vector<64xf32> to vector<1x1x1x64xf32>
    %266 = vector.broadcast %265 : vector<1x1x1x64xf32> to vector<1x8x16x64xf32>
    %267 = arith.mulf %262, %266 : vector<1x8x16x64xf32>
    %268 = arith.addf %260, %267 : vector<1x8x16x64xf32>
    %c0_199 = arith.constant 0 : index
    %c1_200 = arith.constant 1 : index
    %c2_201 = arith.constant 2 : index
    %c0_202 = arith.constant 0 : index
    %269 = vector.load %arg10[%c0_199, %c1_200, %c2_201, %c0_202] : memref<1x18x18x64xbf16, #tpu.memory_space<vmem>>, vector<1x8x16x64xbf16>
    %270 = arith.extf %269 : vector<1x8x16x64xbf16> to vector<1x8x16x64xf32>
    %c5_203 = arith.constant 5 : index
    %c0_204 = arith.constant 0 : index
    %271 = vector.load %arg7[%c5_203, %c0_204] : memref<9x64xf32, #tpu.memory_space<vmem>>, vector<1x64xf32>
    %272 = vector.shape_cast %271 : vector<1x64xf32> to vector<64xf32>
    %273 = vector.shape_cast %272 : vector<64xf32> to vector<1x1x1x64xf32>
    %274 = vector.broadcast %273 : vector<1x1x1x64xf32> to vector<1x8x16x64xf32>
    %275 = arith.mulf %270, %274 : vector<1x8x16x64xf32>
    %276 = arith.addf %268, %275 : vector<1x8x16x64xf32>
    %c0_205 = arith.constant 0 : index
    %c2_206 = arith.constant 2 : index
    %c0_207 = arith.constant 0 : index
    %c0_208 = arith.constant 0 : index
    %277 = vector.load %arg10[%c0_205, %c2_206, %c0_207, %c0_208] : memref<1x18x18x64xbf16, #tpu.memory_space<vmem>>, vector<1x8x16x64xbf16>
    %278 = arith.extf %277 : vector<1x8x16x64xbf16> to vector<1x8x16x64xf32>
    %c6_209 = arith.constant 6 : index
    %c0_210 = arith.constant 0 : index
    %279 = vector.load %arg7[%c6_209, %c0_210] : memref<9x64xf32, #tpu.memory_space<vmem>>, vector<1x64xf32>
    %280 = vector.shape_cast %279 : vector<1x64xf32> to vector<64xf32>
    %281 = vector.shape_cast %280 : vector<64xf32> to vector<1x1x1x64xf32>
    %282 = vector.broadcast %281 : vector<1x1x1x64xf32> to vector<1x8x16x64xf32>
    %283 = arith.mulf %278, %282 : vector<1x8x16x64xf32>
    %284 = arith.addf %276, %283 : vector<1x8x16x64xf32>
    %c0_211 = arith.constant 0 : index
    %c2_212 = arith.constant 2 : index
    %c1_213 = arith.constant 1 : index
    %c0_214 = arith.constant 0 : index
    %285 = vector.load %arg10[%c0_211, %c2_212, %c1_213, %c0_214] : memref<1x18x18x64xbf16, #tpu.memory_space<vmem>>, vector<1x8x16x64xbf16>
    %286 = arith.extf %285 : vector<1x8x16x64xbf16> to vector<1x8x16x64xf32>
    %c7_215 = arith.constant 7 : index
    %c0_216 = arith.constant 0 : index
    %287 = vector.load %arg7[%c7_215, %c0_216] : memref<9x64xf32, #tpu.memory_space<vmem>>, vector<1x64xf32>
    %288 = vector.shape_cast %287 : vector<1x64xf32> to vector<64xf32>
    %289 = vector.shape_cast %288 : vector<64xf32> to vector<1x1x1x64xf32>
    %290 = vector.broadcast %289 : vector<1x1x1x64xf32> to vector<1x8x16x64xf32>
    %291 = arith.mulf %286, %290 : vector<1x8x16x64xf32>
    %292 = arith.addf %284, %291 : vector<1x8x16x64xf32>
    %c0_217 = arith.constant 0 : index
    %c2_218 = arith.constant 2 : index
    %c2_219 = arith.constant 2 : index
    %c0_220 = arith.constant 0 : index
    %293 = vector.load %arg10[%c0_217, %c2_218, %c2_219, %c0_220] : memref<1x18x18x64xbf16, #tpu.memory_space<vmem>>, vector<1x8x16x64xbf16>
    %294 = arith.extf %293 : vector<1x8x16x64xbf16> to vector<1x8x16x64xf32>
    %c8_221 = arith.constant 8 : index
    %c0_222 = arith.constant 0 : index
    %295 = vector.load %arg7[%c8_221, %c0_222] : memref<9x64xf32, #tpu.memory_space<vmem>>, vector<1x64xf32>
    %296 = vector.shape_cast %295 : vector<1x64xf32> to vector<64xf32>
    %297 = vector.shape_cast %296 : vector<64xf32> to vector<1x1x1x64xf32>
    %298 = vector.broadcast %297 : vector<1x1x1x64xf32> to vector<1x8x16x64xf32>
    %299 = arith.mulf %294, %298 : vector<1x8x16x64xf32>
    %300 = arith.addf %292, %299 : vector<1x8x16x64xf32>
    %cst_223 = arith.constant dense<0.000000e+00> : vector<1x8x16xf32>
    %301 = vector.multi_reduction <add>, %300, %cst_223 [3] : vector<1x8x16x64xf32> to vector<1x8x16xf32>
    %302 = vector.shape_cast %301 : vector<1x8x16xf32> to vector<1x1x128xf32>
    %c0_224 = arith.constant 0 : index
    %c0_225 = arith.constant 0 : index
    %303 = vector.load %arg8[%c0_224, %c0_225] : memref<1x1xf32, #tpu.memory_space<vmem>>, vector<1x1xf32>
    %304 = vector.shape_cast %303 : vector<1x1xf32> to vector<1x1x1xf32>
    %305 = vector.broadcast %304 : vector<1x1x1xf32> to vector<1x1x128xf32>
    %306 = arith.addf %302, %305 : vector<1x1x128xf32>
    %c0_226 = arith.constant 0 : index
    %c0_227 = arith.constant 0 : index
    %c0_228 = arith.constant 0 : index
    %307 = vector.load %arg2[%c0_226, %c0_227, %c0_228] : memref<1x1x256xf32, #tpu.memory_space<vmem>>, vector<1x1x128xf32>
    %308 = arith.addf %306, %307 : vector<1x1x128xf32>
    %c0_229 = arith.constant 0 : index
    %c0_230 = arith.constant 0 : index
    %c0_231 = arith.constant 0 : index
    %309 = vector.load %arg9[%c0_229, %c0_230, %c0_231] : memref<1x1x256xf32, #tpu.memory_space<vmem>>, vector<1x1x128xf32>
    tpu.vector_store %arg9[%c0_229, %c0_230, %c0_231], %308 {strides = array<i32>} : memref<1x1x256xf32, #tpu.memory_space<vmem>>, vector<1x1x128xf32>,
    %cst_232 = arith.constant 0.000000e+00 : f32
    %310 = vector.broadcast %cst_232 : f32 to vector<1x8x16x64xf32>
    %c0_233 = arith.constant 0 : index
    %c8_234 = arith.constant 8 : index
    %c0_235 = arith.constant 0 : index
    %c0_236 = arith.constant 0 : index
    %311 = vector.load %arg10[%c0_233, %c8_234, %c0_235, %c0_236] : memref<1x18x18x64xbf16, #tpu.memory_space<vmem>>, vector<1x8x16x64xbf16>
    %312 = arith.extf %311 : vector<1x8x16x64xbf16> to vector<1x8x16x64xf32>
    %c0_237 = arith.constant 0 : index
    %c0_238 = arith.constant 0 : index
    %313 = vector.load %arg7[%c0_237, %c0_238] : memref<9x64xf32, #tpu.memory_space<vmem>>, vector<1x64xf32>
    %314 = vector.shape_cast %313 : vector<1x64xf32> to vector<64xf32>
    %315 = vector.shape_cast %314 : vector<64xf32> to vector<1x1x1x64xf32>
    %316 = vector.broadcast %315 : vector<1x1x1x64xf32> to vector<1x8x16x64xf32>
    %317 = arith.mulf %312, %316 : vector<1x8x16x64xf32>
    %318 = arith.addf %310, %317 : vector<1x8x16x64xf32>
    %c0_239 = arith.constant 0 : index
    %c8_240 = arith.constant 8 : index
    %c1_241 = arith.constant 1 : index
    %c0_242 = arith.constant 0 : index
    %319 = vector.load %arg10[%c0_239, %c8_240, %c1_241, %c0_242] : memref<1x18x18x64xbf16, #tpu.memory_space<vmem>>, vector<1x8x16x64xbf16>
    %320 = arith.extf %319 : vector<1x8x16x64xbf16> to vector<1x8x16x64xf32>
    %c1_243 = arith.constant 1 : index
    %c0_244 = arith.constant 0 : index
    %321 = vector.load %arg7[%c1_243, %c0_244] : memref<9x64xf32, #tpu.memory_space<vmem>>, vector<1x64xf32>
    %322 = vector.shape_cast %321 : vector<1x64xf32> to vector<64xf32>
    %323 = vector.shape_cast %322 : vector<64xf32> to vector<1x1x1x64xf32>
    %324 = vector.broadcast %323 : vector<1x1x1x64xf32> to vector<1x8x16x64xf32>
    %325 = arith.mulf %320, %324 : vector<1x8x16x64xf32>
    %326 = arith.addf %318, %325 : vector<1x8x16x64xf32>
    %c0_245 = arith.constant 0 : index
    %c8_246 = arith.constant 8 : index
    %c2_247 = arith.constant 2 : index
    %c0_248 = arith.constant 0 : index
    %327 = vector.load %arg10[%c0_245, %c8_246, %c2_247, %c0_248] : memref<1x18x18x64xbf16, #tpu.memory_space<vmem>>, vector<1x8x16x64xbf16>
    %328 = arith.extf %327 : vector<1x8x16x64xbf16> to vector<1x8x16x64xf32>
    %c2_249 = arith.constant 2 : index
    %c0_250 = arith.constant 0 : index
    %329 = vector.load %arg7[%c2_249, %c0_250] : memref<9x64xf32, #tpu.memory_space<vmem>>, vector<1x64xf32>
    %330 = vector.shape_cast %329 : vector<1x64xf32> to vector<64xf32>
    %331 = vector.shape_cast %330 : vector<64xf32> to vector<1x1x1x64xf32>
    %332 = vector.broadcast %331 : vector<1x1x1x64xf32> to vector<1x8x16x64xf32>
    %333 = arith.mulf %328, %332 : vector<1x8x16x64xf32>
    %334 = arith.addf %326, %333 : vector<1x8x16x64xf32>
    %c0_251 = arith.constant 0 : index
    %c9_252 = arith.constant 9 : index
    %c0_253 = arith.constant 0 : index
    %c0_254 = arith.constant 0 : index
    %335 = vector.load %arg10[%c0_251, %c9_252, %c0_253, %c0_254] : memref<1x18x18x64xbf16, #tpu.memory_space<vmem>>, vector<1x8x16x64xbf16>
    %336 = arith.extf %335 : vector<1x8x16x64xbf16> to vector<1x8x16x64xf32>
    %c3_255 = arith.constant 3 : index
    %c0_256 = arith.constant 0 : index
    %337 = vector.load %arg7[%c3_255, %c0_256] : memref<9x64xf32, #tpu.memory_space<vmem>>, vector<1x64xf32>
    %338 = vector.shape_cast %337 : vector<1x64xf32> to vector<64xf32>
    %339 = vector.shape_cast %338 : vector<64xf32> to vector<1x1x1x64xf32>
    %340 = vector.broadcast %339 : vector<1x1x1x64xf32> to vector<1x8x16x64xf32>
    %341 = arith.mulf %336, %340 : vector<1x8x16x64xf32>
    %342 = arith.addf %334, %341 : vector<1x8x16x64xf32>
    %c0_257 = arith.constant 0 : index
    %c9_258 = arith.constant 9 : index
    %c1_259 = arith.constant 1 : index
    %c0_260 = arith.constant 0 : index
    %343 = vector.load %arg10[%c0_257, %c9_258, %c1_259, %c0_260] : memref<1x18x18x64xbf16, #tpu.memory_space<vmem>>, vector<1x8x16x64xbf16>
    %344 = arith.extf %343 : vector<1x8x16x64xbf16> to vector<1x8x16x64xf32>
    %c4_261 = arith.constant 4 : index
    %c0_262 = arith.constant 0 : index
    %345 = vector.load %arg7[%c4_261, %c0_262] : memref<9x64xf32, #tpu.memory_space<vmem>>, vector<1x64xf32>
    %346 = vector.shape_cast %345 : vector<1x64xf32> to vector<64xf32>
    %347 = vector.shape_cast %346 : vector<64xf32> to vector<1x1x1x64xf32>
    %348 = vector.broadcast %347 : vector<1x1x1x64xf32> to vector<1x8x16x64xf32>
    %349 = arith.mulf %344, %348 : vector<1x8x16x64xf32>
    %350 = arith.addf %342, %349 : vector<1x8x16x64xf32>
    %c0_263 = arith.constant 0 : index
    %c9_264 = arith.constant 9 : index
    %c2_265 = arith.constant 2 : index
    %c0_266 = arith.constant 0 : index
    %351 = vector.load %arg10[%c0_263, %c9_264, %c2_265, %c0_266] : memref<1x18x18x64xbf16, #tpu.memory_space<vmem>>, vector<1x8x16x64xbf16>
    %352 = arith.extf %351 : vector<1x8x16x64xbf16> to vector<1x8x16x64xf32>
    %c5_267 = arith.constant 5 : index
    %c0_268 = arith.constant 0 : index
    %353 = vector.load %arg7[%c5_267, %c0_268] : memref<9x64xf32, #tpu.memory_space<vmem>>, vector<1x64xf32>
    %354 = vector.shape_cast %353 : vector<1x64xf32> to vector<64xf32>
    %355 = vector.shape_cast %354 : vector<64xf32> to vector<1x1x1x64xf32>
    %356 = vector.broadcast %355 : vector<1x1x1x64xf32> to vector<1x8x16x64xf32>
    %357 = arith.mulf %352, %356 : vector<1x8x16x64xf32>
    %358 = arith.addf %350, %357 : vector<1x8x16x64xf32>
    %c0_269 = arith.constant 0 : index
    %c10_270 = arith.constant 10 : index
    %c0_271 = arith.constant 0 : index
    %c0_272 = arith.constant 0 : index
    %359 = vector.load %arg10[%c0_269, %c10_270, %c0_271, %c0_272] : memref<1x18x18x64xbf16, #tpu.memory_space<vmem>>, vector<1x8x16x64xbf16>
    %360 = arith.extf %359 : vector<1x8x16x64xbf16> to vector<1x8x16x64xf32>
    %c6_273 = arith.constant 6 : index
    %c0_274 = arith.constant 0 : index
    %361 = vector.load %arg7[%c6_273, %c0_274] : memref<9x64xf32, #tpu.memory_space<vmem>>, vector<1x64xf32>
    %362 = vector.shape_cast %361 : vector<1x64xf32> to vector<64xf32>
    %363 = vector.shape_cast %362 : vector<64xf32> to vector<1x1x1x64xf32>
    %364 = vector.broadcast %363 : vector<1x1x1x64xf32> to vector<1x8x16x64xf32>
    %365 = arith.mulf %360, %364 : vector<1x8x16x64xf32>
    %366 = arith.addf %358, %365 : vector<1x8x16x64xf32>
    %c0_275 = arith.constant 0 : index
    %c10_276 = arith.constant 10 : index
    %c1_277 = arith.constant 1 : index
    %c0_278 = arith.constant 0 : index
    %367 = vector.load %arg10[%c0_275, %c10_276, %c1_277, %c0_278] : memref<1x18x18x64xbf16, #tpu.memory_space<vmem>>, vector<1x8x16x64xbf16>
    %368 = arith.extf %367 : vector<1x8x16x64xbf16> to vector<1x8x16x64xf32>
    %c7_279 = arith.constant 7 : index
    %c0_280 = arith.constant 0 : index
    %369 = vector.load %arg7[%c7_279, %c0_280] : memref<9x64xf32, #tpu.memory_space<vmem>>, vector<1x64xf32>
    %370 = vector.shape_cast %369 : vector<1x64xf32> to vector<64xf32>
    %371 = vector.shape_cast %370 : vector<64xf32> to vector<1x1x1x64xf32>
    %372 = vector.broadcast %371 : vector<1x1x1x64xf32> to vector<1x8x16x64xf32>
    %373 = arith.mulf %368, %372 : vector<1x8x16x64xf32>
    %374 = arith.addf %366, %373 : vector<1x8x16x64xf32>
    %c0_281 = arith.constant 0 : index
    %c10_282 = arith.constant 10 : index
    %c2_283 = arith.constant 2 : index
    %c0_284 = arith.constant 0 : index
    %375 = vector.load %arg10[%c0_281, %c10_282, %c2_283, %c0_284] : memref<1x18x18x64xbf16, #tpu.memory_space<vmem>>, vector<1x8x16x64xbf16>
    %376 = arith.extf %375 : vector<1x8x16x64xbf16> to vector<1x8x16x64xf32>
    %c8_285 = arith.constant 8 : index
    %c0_286 = arith.constant 0 : index
    %377 = vector.load %arg7[%c8_285, %c0_286] : memref<9x64xf32, #tpu.memory_space<vmem>>, vector<1x64xf32>
    %378 = vector.shape_cast %377 : vector<1x64xf32> to vector<64xf32>
    %379 = vector.shape_cast %378 : vector<64xf32> to vector<1x1x1x64xf32>
    %380 = vector.broadcast %379 : vector<1x1x1x64xf32> to vector<1x8x16x64xf32>
    %381 = arith.mulf %376, %380 : vector<1x8x16x64xf32>
    %382 = arith.addf %374, %381 : vector<1x8x16x64xf32>
    %cst_287 = arith.constant dense<0.000000e+00> : vector<1x8x16xf32>
    %383 = vector.multi_reduction <add>, %382, %cst_287 [3] : vector<1x8x16x64xf32> to vector<1x8x16xf32>
    %384 = vector.shape_cast %383 : vector<1x8x16xf32> to vector<1x1x128xf32>
    %c0_288 = arith.constant 0 : index
    %c0_289 = arith.constant 0 : index
    %385 = vector.load %arg8[%c0_288, %c0_289] : memref<1x1xf32, #tpu.memory_space<vmem>>, vector<1x1xf32>
    %386 = vector.shape_cast %385 : vector<1x1xf32> to vector<1x1x1xf32>
    %387 = vector.broadcast %386 : vector<1x1x1xf32> to vector<1x1x128xf32>
    %388 = arith.addf %384, %387 : vector<1x1x128xf32>
    %c0_290 = arith.constant 0 : index
    %c0_291 = arith.constant 0 : index
    %c128_292 = arith.constant 128 : index
    %389 = vector.load %arg2[%c0_290, %c0_291, %c128_292] : memref<1x1x256xf32, #tpu.memory_space<vmem>>, vector<1x1x128xf32>
    %390 = arith.addf %388, %389 : vector<1x1x128xf32>
    %c0_293 = arith.constant 0 : index
    %c0_294 = arith.constant 0 : index
    %c128_295 = arith.constant 128 : index
    %391 = vector.load %arg9[%c0_293, %c0_294, %c128_295] : memref<1x1x256xf32, #tpu.memory_space<vmem>>, vector<1x1x128xf32>
    tpu.vector_store %arg9[%c0_293, %c0_294, %c128_295], %390 {strides = array<i32>} : memref<1x1x256xf32, #tpu.memory_space<vmem>>, vector<1x1x128xf32>,
    return
  }
  func.func @transform_0(%arg0: i32) -> (i32, i32, i32) {
    %c0_i32 = arith.constant 0 : i32
    %c0_i32_0 = arith.constant 0 : i32
    %c0_i32_1 = arith.constant 0 : i32
    return %arg0, %c0_i32, %c0_i32_0 : i32, i32, i32
  }
  func.func @transform_1(%arg0: i32) -> (i32, i32, i32) {
    %c0_i32 = arith.constant 0 : i32
    %c0_i32_0 = arith.constant 0 : i32
    %c0_i32_1 = arith.constant 0 : i32
    return %arg0, %c0_i32, %c0_i32_0 : i32, i32, i32
  }
  func.func @transform_2(%arg0: i32) -> (i32, i32) {
    %c0_i32 = arith.constant 0 : i32
    %c0_i32_0 = arith.constant 0 : i32
    %c0_i32_1 = arith.constant 0 : i32
    return %c0_i32, %c0_i32_0 : i32, i32
  }
  func.func @transform_3(%arg0: i32) -> (i32, i32) {
    %c0_i32 = arith.constant 0 : i32
    %c0_i32_0 = arith.constant 0 : i32
    %c0_i32_1 = arith.constant 0 : i32
    return %c0_i32, %c0_i32_0 : i32, i32
  }
  func.func @transform_4(%arg0: i32) -> (i32, i32) {
    %c0_i32 = arith.constant 0 : i32
    %c0_i32_0 = arith.constant 0 : i32
    %c0_i32_1 = arith.constant 0 : i32
    return %c0_i32, %c0_i32_0 : i32, i32
  }
  func.func @transform_5(%arg0: i32) -> (i32, i32) {
    %c0_i32 = arith.constant 0 : i32
    %c0_i32_0 = arith.constant 0 : i32
    %c0_i32_1 = arith.constant 0 : i32
    return %c0_i32, %c0_i32_0 : i32, i32
  }
  func.func @transform_6(%arg0: i32) -> (i32, i32) {
    %c0_i32 = arith.constant 0 : i32
    %c0_i32_0 = arith.constant 0 : i32
    %c0_i32_1 = arith.constant 0 : i32
    return %c0_i32, %c0_i32_0 : i32, i32
  }
  func.func @transform_7(%arg0: i32) -> (i32, i32) {
    %c0_i32 = arith.constant 0 : i32
    %c0_i32_0 = arith.constant 0 : i32
    %c0_i32_1 = arith.constant 0 : i32
    return %c0_i32, %c0_i32_0 : i32, i32
  }
  func.func @transform_8(%arg0: i32) -> (i32, i32, i32) {
    %c0_i32 = arith.constant 0 : i32
    %c0_i32_0 = arith.constant 0 : i32
    %c0_i32_1 = arith.constant 0 : i32
    return %arg0, %c0_i32, %c0_i32_0 : i32, i32, i32
  }
}

</mosaic_0001>

<llo_original>
// kernel: cnn_superres_forward.1
$region0: #{cnn_superres_forward.1}
  #allocation0 [shape = 'u32[]', space=smem, size = 0x4, offset = 0x4, fixed_abs, tag = 'smem constant byte address 0x4 - core index']
  #allocation1 [shape = 'u32[144,128]{1,0:T(1,128)}', space=vmem, size = 0x12000, scoped, tag = 'internal scratch']
  #allocation2 [shape = 'bf16[1,18,18,64]{3,2,1,0:T(8,128)(2,1)}', space=vmem, size = 0x1b000, scoped, tag = 'scratch operand']
  #allocation3 [shape = 'bf16[256,640]{1,0:T(16,128)(2,1)}', space=vmem, size = 0x50000, scoped, tag = 'scratch operand']
  #allocation4 [shape = 'f32[1,1]{1,0:T(1,128)S(1)}', space=vmem, size = 0x200, scoped, tag = 'scoped memory for cnn_superres_forward.1']
  %s0 = inlined_call_operand.vmem [shape: f32[2,18,18], index: 0, kind: input, shape index: {}]
  %s1 = inlined_call_operand.vmem [shape: f32[2,1,256], index: 1, kind: input, shape index: {}]
  %s2 = inlined_call_operand.vmem [shape: f32[9,64], index: 2, kind: input, shape index: {}]
  %s3 = inlined_call_operand.vmem [shape: f32[1,64], index: 3, kind: input, shape index: {}]
  %s4 = inlined_call_operand.vmem [shape: bf16[640,64], index: 4, kind: input, shape index: {}]
  %s5 = inlined_call_operand.vmem [shape: f32[1,64], index: 5, kind: input, shape index: {}]
  %s6 = inlined_call_operand.vmem [shape: f32[9,64], index: 6, kind: input, shape index: {}]
  %s7 = inlined_call_operand.<no memory space> [shape: f32[1,1], index: 7, kind: input, shape index: {}]
  %s8 = inlined_call_operand.vmem [shape: f32[2,1,256], index: 8, kind: output, shape index: {}]
  %s9 = sld [smem:[#allocation0]]
  $region65: #{cnn_superres_forward.1} parent=0
    _
  %s11 = ssub.s32 1, %s9
  %s12 = scalar_select 0, %s11, %s9
  %v13 = vstv %s7
  %14 = vst [vmem:[#allocation4] sm:$0x1] %v13
  loop: start=0, step=1, limit=4
  $region2: #{cnn_superres_forward.1} parent=0 // loop_pre_header
    _
  $region3: #{cnn_superres_forward.1} parent=0 // loop_header
    %s16 = sphi 0, %s20
    %p17 = scmp.ge.s32.totalorder %s16, 4
    %s26 = sphi 0, %s28
    %s29 = sphi 0, %s26
    %s30 = sphi 0, %s29
    %s46 = sphi 0, %s30
    %s52 = sphi 0, %s54
    %s55 = sphi 0, %s52
    %s56 = sphi 0, %s55
    %s72 = sphi 0, %s56
    %s76 = sphi 0, %s76
    %s78 = sphi 0, %s76
    %s79 = sphi 0, %s78
    %s93 = sphi 0, %s79
    %s97 = sphi 0, %s97
    %s99 = sphi 0, %s97
    %s100 = sphi 0, %s99
    %s114 = sphi 0, %s100
    %s118 = sphi 0, %s118
    %s120 = sphi 0, %s118
    %s121 = sphi 0, %s120
    %s135 = sphi 0, %s121
    %s139 = sphi 0, %s139
    %s141 = sphi 0, %s139
    %s142 = sphi 0, %s141
    %s156 = sphi 0, %s142
    %s160 = sphi 0, %s160
    %s162 = sphi 0, %s160
    %s163 = sphi 0, %s162
    %s177 = sphi 0, %s163
    %s181 = sphi 0, %s181
    %s183 = sphi 0, %s181
    %s184 = sphi 0, %s183
    %s198 = sphi 0, %s184
    %s204 = sphi 0, %s206
    %s207 = sphi 0, %s204
    %s208 = sphi 0, %s207
    %s224 = sphi 0, %s208
  $region4: #{cnn_superres_forward.1} parent=0 // loop_header_branch
    %19 = sbr.rel (%p17) target = $region8
  $region5: #{cnn_superres_forward.1} parent=0 // loop_body
    %s21 = ssub.s32 %s16, 1
    %s22 = ssub.s32 %s16, 2
    %s23 = sadd.s32 %s16, 1
    %s24 = ssub.s32 %s16, %s23
    %p25 = scmp.eq.s32.totalorder %s24, 0
    %s27 = sadd.s32 %s26, 1
    %s28 = scalar_select %p25, %s26, %s27
    %p31 = pneg %p25
    %p32 = scmp.eq.s32.totalorder %s16, 1
    %p33 = por %p31, %p32
    %p34 = scmp.ne.s32.totalorder %s26, %s29
    %p35 = scmp.eq.s32.totalorder %s16, 0
    %p36 = por %p34, %p35
    %p37 = scmp.ne.s32.totalorder %s26, %s29
    %p38 = scmp.eq.s32.totalorder %s21, 1
    %p39 = por %p37, %p38
    %p40 = scmp.ne.s32.totalorder %s29, %s30
    %p41 = scmp.eq.s32.totalorder %s21, 0
    %p42 = por %p40, %p41
    %p43 = scmp.ne.s32.totalorder %s29, %s30
    %p44 = scmp.eq.s32.totalorder %s22, 1
    %p45 = por %p43, %p44
    %p47 = scmp.ne.s32.totalorder %s30, %s46
    %p48 = scmp.eq.s32.totalorder %s22, 0
    %p49 = por %p47, %p48
    %s50 = ssub.s32 %s16, %s23
    %p51 = scmp.eq.s32.totalorder %s50, 0
    %s53 = sadd.s32 %s52, 1
    %s54 = scalar_select %p51, %s52, %s53
    %p57 = pneg %p51
    %p58 = scmp.eq.s32.totalorder %s16, 1
    %p59 = por %p57, %p58
    %p60 = scmp.ne.s32.totalorder %s52, %s55
    %p61 = scmp.eq.s32.totalorder %s16, 0
    %p62 = por %p60, %p61
    %p63 = scmp.ne.s32.totalorder %s52, %s55
    %p64 = scmp.eq.s32.totalorder %s21, 1
    %p65 = por %p63, %p64
    %p66 = scmp.ne.s32.totalorder %s55, %s56
    %p67 = scmp.eq.s32.totalorder %s21, 0
    %p68 = por %p66, %p67
    %p69 = scmp.ne.s32.totalorder %s55, %s56
    %p70 = scmp.eq.s32.totalorder %s22, 1
    %p71 = por %p69, %p70
    %p73 = scmp.ne.s32.totalorder %s56, %s72
    %p74 = scmp.eq.s32.totalorder %s22, 0
    %p75 = por %p73, %p74
    %s77 = sadd.s32 %s76, 1
    %p80 = scmp.eq.s32.totalorder %s16, 1
    %p81 = scmp.ne.s32.totalorder %s76, %s78
    %p82 = scmp.eq.s32.totalorder %s16, 0
    %p83 = por %p81, %p82
    %p84 = scmp.ne.s32.totalorder %s76, %s78
    %p85 = scmp.eq.s32.totalorder %s21, 1
    %p86 = por %p84, %p85
    %p87 = scmp.ne.s32.totalorder %s78, %s79
    %p88 = scmp.eq.s32.totalorder %s21, 0
    %p89 = por %p87, %p88
    %p90 = scmp.ne.s32.totalorder %s78, %s79
    %p91 = scmp.eq.s32.totalorder %s22, 1
    %p92 = por %p90, %p91
    %p94 = scmp.ne.s32.totalorder %s79, %s93
    %p95 = scmp.eq.s32.totalorder %s22, 0
    %p96 = por %p94, %p95
    %s98 = sadd.s32 %s97, 1
    %p101 = scmp.eq.s32.totalorder %s16, 1
    %p102 = scmp.ne.s32.totalorder %s97, %s99
    %p103 = scmp.eq.s32.totalorder %s16, 0
    %p104 = por %p102, %p103
    %p105 = scmp.ne.s32.totalorder %s97, %s99
    %p106 = scmp.eq.s32.totalorder %s21, 1
    %p107 = por %p105, %p106
    %p108 = scmp.ne.s32.totalorder %s99, %s100
    %p109 = scmp.eq.s32.totalorder %s21, 0
    %p110 = por %p108, %p109
    %p111 = scmp.ne.s32.totalorder %s99, %s100
    %p112 = scmp.eq.s32.totalorder %s22, 1
    %p113 = por %p111, %p112
    %p115 = scmp.ne.s32.totalorder %s100, %s114
    %p116 = scmp.eq.s32.totalorder %s22, 0
    %p117 = por %p115, %p116
    %s119 = sadd.s32 %s118, 1
    %p122 = scmp.eq.s32.totalorder %s16, 1
    %p123 = scmp.ne.s32.totalorder %s118, %s120
    %p124 = scmp.eq.s32.totalorder %s16, 0
    %p125 = por %p123, %p124
    %p126 = scmp.ne.s32.totalorder %s118, %s120
    %p127 = scmp.eq.s32.totalorder %s21, 1
    %p128 = por %p126, %p127
    %p129 = scmp.ne.s32.totalorder %s120, %s121
    %p130 = scmp.eq.s32.totalorder %s21, 0
    %p131 = por %p129, %p130
    %p132 = scmp.ne.s32.totalorder %s120, %s121
    %p133 = scmp.eq.s32.totalorder %s22, 1
    %p134 = por %p132, %p133
    %p136 = scmp.ne.s32.totalorder %s121, %s135
    %p137 = scmp.eq.s32.totalorder %s22, 0
    %p138 = por %p136, %p137
    %s140 = sadd.s32 %s139, 1
    %p143 = scmp.eq.s32.totalorder %s16, 1
    %p144 = scmp.ne.s32.totalorder %s139, %s141
    %p145 = scmp.eq.s32.totalorder %s16, 0
    %p146 = por %p144, %p145
    %p147 = scmp.ne.s32.totalorder %s139, %s141
    %p148 = scmp.eq.s32.totalorder %s21, 1
    %p149 = por %p147, %p148
    %p150 = scmp.ne.s32.totalorder %s141, %s142
    %p151 = scmp.eq.s32.totalorder %s21, 0
    %p152 = por %p150, %p151
    %p153 = scmp.ne.s32.totalorder %s141, %s142
    %p154 = scmp.eq.s32.totalorder %s22, 1
    %p155 = por %p153, %p154
    %p157 = scmp.ne.s32.totalorder %s142, %s156
    %p158 = scmp.eq.s32.totalorder %s22, 0
    %p159 = por %p157, %p158
    %s161 = sadd.s32 %s160, 1
    %p164 = scmp.eq.s32.totalorder %s16, 1
    %p165 = scmp.ne.s32.totalorder %s160, %s162
    %p166 = scmp.eq.s32.totalorder %s16, 0
    %p167 = por %p165, %p166
    %p168 = scmp.ne.s32.totalorder %s160, %s162
    %p169 = scmp.eq.s32.totalorder %s21, 1
    %p170 = por %p168, %p169
    %p171 = scmp.ne.s32.totalorder %s162, %s163
    %p172 = scmp.eq.s32.totalorder %s21, 0
    %p173 = por %p171, %p172
    %p174 = scmp.ne.s32.totalorder %s162, %s163
    %p175 = scmp.eq.s32.totalorder %s22, 1
    %p176 = por %p174, %p175
    %p178 = scmp.ne.s32.totalorder %s163, %s177
    %p179 = scmp.eq.s32.totalorder %s22, 0
    %p180 = por %p178, %p179
    %s182 = sadd.s32 %s181, 1
    %p185 = scmp.eq.s32.totalorder %s16, 1
    %p186 = scmp.ne.s32.totalorder %s181, %s183
    %p187 = scmp.eq.s32.totalorder %s16, 0
    %p188 = por %p186, %p187
    %p189 = scmp.ne.s32.totalorder %s181, %s183
    %p190 = scmp.eq.s32.totalorder %s21, 1
    %p191 = por %p189, %p190
    %p192 = scmp.ne.s32.totalorder %s183, %s184
    %p193 = scmp.eq.s32.totalorder %s21, 0
    %p194 = por %p192, %p193
    %p195 = scmp.ne.s32.totalorder %s183, %s184
    %p196 = scmp.eq.s32.totalorder %s22, 1
    %p197 = por %p195, %p196
    %p199 = scmp.ne.s32.totalorder %s184, %s198
    %p200 = scmp.eq.s32.totalorder %s22, 0
    %p201 = por %p199, %p200
    %s202 = ssub.s32 %s16, %s23
    %p203 = scmp.eq.s32.totalorder %s202, 0
    %s205 = sadd.s32 %s204, 1
    %s206 = scalar_select %p203, %s204, %s205
    %p209 = pneg %p203
    %p210 = scmp.eq.s32.totalorder %s16, 1
    %p211 = por %p209, %p210
    %p212 = scmp.ne.s32.totalorder %s204, %s207
    %p213 = scmp.eq.s32.totalorder %s16, 0
    %p214 = por %p212, %p213
    %p215 = scmp.ne.s32.totalorder %s204, %s207
    %p216 = scmp.eq.s32.totalorder %s21, 1
    %p217 = por %p215, %p216
    %p218 = scmp.ne.s32.totalorder %s207, %s208
    %p219 = scmp.eq.s32.totalorder %s21, 0
    %p220 = por %p218, %p219
    %p221 = scmp.ne.s32.totalorder %s207, %s208
    %p222 = scmp.eq.s32.totalorder %s22, 1
    %p223 = por %p221, %p222
    %p225 = scmp.ne.s32.totalorder %s208, %s224
    %p226 = scmp.eq.s32.totalorder %s22, 0
    %p227 = por %p225, %p226
    %p228 = scmp.le.s32.totalorder 1, %s16
    %p229 = scmp.lt.s32.totalorder %s16, 3
    %p230 = pnand %p228, %p229
    %p231 = pneg %p230
    // Predicated region
    $region9: #{cnn_superres_forward.1} parent=5 // pred_check
      _
    $region10: #{cnn_superres_forward.1} parent=5 // pred_check_branch
      %233 = sbr.rel (%p230) target = $region12
    $region11: #{cnn_superres_forward.1} parent=5 // pred_region
      %s234 = ssub.s32 %s16, 1
      // Predicated region
      $region13: #{cnn_superres_forward.1} parent=11 // pred_check
        %p235 = pneg %p89
      $region14: #{cnn_superres_forward.1} parent=11 // pred_check_branch
        %237 = sbr.rel (%p235) target = $region16
      $region15: #{cnn_superres_forward.1} parent=11 // pred_region
        _
      $region16: #{cnn_superres_forward.1} parent=11 // pred_fallthru
        _
      // Predicated region
      $region17: #{cnn_superres_forward.1} parent=11 // pred_check
        %p238 = pneg %p110
      $region18: #{cnn_superres_forward.1} parent=11 // pred_check_branch
        %240 = sbr.rel (%p238) target = $region20
      $region19: #{cnn_superres_forward.1} parent=11 // pred_region
        _
      $region20: #{cnn_superres_forward.1} parent=11 // pred_fallthru
        _
      // Predicated region
      $region21: #{cnn_superres_forward.1} parent=11 // pred_check
        %p241 = pneg %p131
      $region22: #{cnn_superres_forward.1} parent=11 // pred_check_branch
        %243 = sbr.rel (%p241) target = $region24
      $region23: #{cnn_superres_forward.1} parent=11 // pred_region
        _
      $region24: #{cnn_superres_forward.1} parent=11 // pred_fallthru
        _
      // Predicated region
      $region25: #{cnn_superres_forward.1} parent=11 // pred_check
        %p244 = pneg %p152
      $region26: #{cnn_superres_forward.1} parent=11 // pred_check_branch
        %246 = sbr.rel (%p244) target = $region28
      $region27: #{cnn_superres_forward.1} parent=11 // pred_region
        _
      $region28: #{cnn_superres_forward.1} parent=11 // pred_fallthru
        _
      // Predicated region
      $region29: #{cnn_superres_forward.1} parent=11 // pred_check
        %p247 = pneg %p173
      $region30: #{cnn_superres_forward.1} parent=11 // pred_check_branch
        %249 = sbr.rel (%p247) target = $region32
      $region31: #{cnn_superres_forward.1} parent=11 // pred_region
        _
      $region32: #{cnn_superres_forward.1} parent=11 // pred_fallthru
        _
      // Predicated region
      $region33: #{cnn_superres_forward.1} parent=11 // pred_check
        %p250 = pneg %p194
      $region34: #{cnn_superres_forward.1} parent=11 // pred_check_branch
        %252 = sbr.rel (%p250) target = $region36
      $region35: #{cnn_superres_forward.1} parent=11 // pred_region
        _
      $region36: #{cnn_superres_forward.1} parent=11 // pred_fallthru
        _
    $region12: #{cnn_superres_forward.1} parent=5 // pred_fallthru
      _
    %p253 = scmp.lt.s32.totalorder %s16, 2
    // Predicated region
    $region37: #{cnn_superres_forward.1} parent=5 // pred_check
      %p254 = pneg %p253
    $region38: #{cnn_superres_forward.1} parent=5 // pred_check_branch
      %256 = sbr.rel (%p254) target = $region40
    $region39: #{cnn_superres_forward.1} parent=5 // pred_region
      // Predicated region
      $region41: #{cnn_superres_forward.1} parent=39 // pred_check
        %p257 = pneg %p36
      $region42: #{cnn_superres_forward.1} parent=39 // pred_check_branch
        %259 = sbr.rel (%p257) target = $region44
      $region43: #{cnn_superres_forward.1} parent=39 // pred_region
        %p260 = scmp.lt.s32.totalorder %s16, 1
        %s261 = scalar_select %p260, %s16, 1
        %s262 = smul.addr %s261, 3
        %s263 = smul.addr %s262, 8
        %s264 = scalar_lea.vmem %s0, %s263
      $region44: #{cnn_superres_forward.1} parent=39 // pred_fallthru
        _
      // Predicated region
      $region45: #{cnn_superres_forward.1} parent=39 // pred_check
        %p265 = pneg %p62
      $region46: #{cnn_superres_forward.1} parent=39 // pred_check_branch
        %267 = sbr.rel (%p265) target = $region48
      $region47: #{cnn_superres_forward.1} parent=39 // pred_region
        %p268 = scmp.lt.s32.totalorder %s16, 1
        %s269 = scalar_select %p268, %s16, 1
        %s270 = smul.addr %s269, 2
        %s271 = scalar_lea.vmem %s1, %s270
      $region48: #{cnn_superres_forward.1} parent=39 // pred_fallthru
        _
    $region40: #{cnn_superres_forward.1} parent=5 // pred_fallthru
      _
    %p272 = scmp.le.s32.totalorder 1, %s16
    %p273 = scmp.lt.s32.totalorder %s16, 3
    %p274 = pnand %p272, %p273
    %p275 = pneg %p274
    // Predicated region
    $region49: #{cnn_superres_forward.1} parent=5 // pred_check
      _
    $region50: #{cnn_superres_forward.1} parent=5 // pred_check_branch
      %277 = sbr.rel (%p274) target = $region52
    $region51: #{cnn_superres_forward.1} parent=5 // pred_region
      %s278 = ssub.s32 %s16, 1
      %p279 = scmp.lt.s32.totalorder %s21, 1
      %s280 = scalar_select %p279, %s21, 1
      %s281 = smul.addr %s280, 3
      %s282 = smul.addr %s281, 8
      %s283 = scalar_lea.vmem %s0, %s282
      %p284 = pneg %p42
      %p285 = pneg %p39
      %p286 = scmp.lt.s32.totalorder %s21, 1
      %s287 = scalar_select %p286, %s21, 1
      %s288 = smul.addr %s287, 2
      %s289 = scalar_lea.vmem %s1, %s288
      %p290 = pneg %p68
      %p291 = pneg %p65
      %p292 = pneg %p89
      %p293 = pneg %p86
      %p294 = pneg %p110
      %p295 = pneg %p107
      %p296 = pneg %p131
      %p297 = pneg %p128
      %p298 = pneg %p152
      %p299 = pneg %p149
      %p300 = pneg %p173
      %p301 = pneg %p170
      %p302 = pneg %p194
      %p303 = pneg %p191
      %p304 = pneg %p220
      %p305 = pneg %p217
      %p306 = scmp.lt.s32.totalorder %s21, 1
      %s307 = scalar_select %p306, %s21, 1
      %s308 = smul.addr %s307, 2
      %s309 = scalar_lea.vmem %s8, %s308
      %p310 = scmp.lt.s32.totalorder %s21, 1
      %s311 = scalar_select %p310, %s21, 1
      %s312 = smul.addr %s311, 3
      %s313 = smul.addr %s312, 8
      %s314 = scalar_lea.vmem %s0, %s313
      %p315 = scmp.lt.s32.totalorder %s21, 1
      %s316 = scalar_select %p315, %s21, 1
      %s317 = smul.addr %s316, 2
      %s318 = scalar_lea.vmem %s1, %s317
      %p319 = scmp.lt.s32.totalorder %s21, 1
      %s320 = scalar_select %p319, %s21, 1
      %s321 = smul.addr %s320, 2
      %s322 = scalar_lea.vmem %s8, %s321
      %vm324 = vcmask 519168
      %325 = vst.msk [vmem:[#allocation2] sm:$0xf] %vm324, 0
      %326 = vst.msk [vmem:[#allocation2 + $0x4] sm:$0xf] %vm324, 0
      %vm327 = vcmask 516096
      %328 = vst.msk [vmem:[#allocation2 + $0x8] sm:$0x1] %vm327, 0
      %s329 = scalar_lea.vmem [#allocation2], 204
      %330 = vst.msk [vmem:[%s329] sm:$0xf] %vm324, 0
      %331 = vst.msk [vmem:[%s329 + $0x4] sm:$0xf] %vm324, 0
      %332 = vst.msk [vmem:[%s329 + $0x8] sm:$0x1] %vm327, 0
      %vm333 = vcmask 516096
      %vm334 = vsmask.f32 256
      %vm335 = vmand %vm333, %vm334
      %v336 = vld [vmem:[#allocation2] sm:$0x1]
      %v337 = vsel %vm335, 0, %v336
      %338 = vst [vmem:[#allocation2] sm:$0x1] %v337
      %v339 = vld [vmem:[#allocation2 + $0xc] sm:$0x1]
      %v340 = vsel %vm335, 0, %v339
      %341 = vst [vmem:[#allocation2 + $0xc] sm:$0x1] %v340
      %v342 = vld [vmem:[#allocation2 + $0x18] sm:$0x1]
      %v343 = vsel %vm335, 0, %v342
      %344 = vst [vmem:[#allocation2 + $0x18] sm:$0x1] %v343
      %v345 = vld [vmem:[#allocation2 + $0x24] sm:$0x1]
      %v346 = vsel %vm335, 0, %v345
      %347 = vst [vmem:[#allocation2 + $0x24] sm:$0x1] %v346
      %v348 = vld [vmem:[#allocation2 + $0x30] sm:$0x1]
      %v349 = vsel %vm335, 0, %v348
      %350 = vst [vmem:[#allocation2 + $0x30] sm:$0x1] %v349
      %v351 = vld [vmem:[#allocation2 + $0x3c] sm:$0x1]
      %v352 = vsel %vm335, 0, %v351
      %353 = vst [vmem:[#allocation2 + $0x3c] sm:$0x1] %v352
      %v354 = vld [vmem:[#allocation2 + $0x48] sm:$0x1]
      %v355 = vsel %vm335, 0, %v354
      %356 = vst [vmem:[#allocation2 + $0x48] sm:$0x1] %v355
      %v357 = vld [vmem:[#allocation2 + $0x54] sm:$0x1]
      %v358 = vsel %vm335, 0, %v357
      %359 = vst [vmem:[#allocation2 + $0x54] sm:$0x1] %v358
      %v360 = vld [vmem:[#allocation2 + $0x60] sm:$0x1]
      %v361 = vsel %vm335, 0, %v360
      %362 = vst [vmem:[#allocation2 + $0x60] sm:$0x1] %v361
      %v363 = vld [vmem:[#allocation2 + $0x6c] sm:$0x1]
      %v364 = vsel %vm335, 0, %v363
      %365 = vst [vmem:[#allocation2 + $0x6c] sm:$0x1] %v364
      %v366 = vld [vmem:[#allocation2 + $0x78] sm:$0x1]
      %v367 = vsel %vm335, 0, %v366
      %368 = vst [vmem:[#allocation2 + $0x78] sm:$0x1] %v367
      %v369 = vld [vmem:[#allocation2 + $0x84] sm:$0x1]
      %v370 = vsel %vm335, 0, %v369
      %371 = vst [vmem:[#allocation2 + $0x84] sm:$0x1] %v370
      %v372 = vld [vmem:[#allocation2 + $0x90] sm:$0x1]
      %v373 = vsel %vm335, 0, %v372
      %374 = vst [vmem:[#allocation2 + $0x90] sm:$0x1] %v373
      %v375 = vld [vmem:[#allocation2 + $0x9c] sm:$0x1]
      %v376 = vsel %vm335, 0, %v375
      %377 = vst [vmem:[#allocation2 + $0x9c] sm:$0x1] %v376
      %v378 = vld [vmem:[#allocation2 + $0xa8] sm:$0x1]
      %v379 = vsel %vm335, 0, %v378
      %380 = vst [vmem:[#allocation2 + $0xa8] sm:$0x1] %v379
      %v381 = vld [vmem:[#allocation2 + $0xb4] sm:$0x1]
      %v382 = vsel %vm335, 0, %v381
      %383 = vst [vmem:[#allocation2 + $0xb4] sm:$0x1] %v382
      %v384 = vld [vmem:[#allocation2 + $0xc0] sm:$0x1]
      %v385 = vsel %vm335, 0, %v384
      %386 = vst [vmem:[#allocation2 + $0xc0] sm:$0x1] %v385
      %v387 = vld [vmem:[#allocation2 + $0xcc] sm:$0x1]
      %v388 = vsel %vm335, 0, %v387
      %389 = vst [vmem:[#allocation2 + $0xcc] sm:$0x1] %v388
      %vm390 = vsmask.f32 7938
      %vm391 = vmand %vm333, %vm390
      %v392 = vld [vmem:[#allocation2 + $0x8] sm:$0x1]
      %v393 = vsel %vm391, 0, %v392
      %394 = vst [vmem:[#allocation2 + $0x8] sm:$0x1] %v393
      %v395 = vld [vmem:[#allocation2 + $0x14] sm:$0x1]
      %v396 = vsel %vm391, 0, %v395
      %397 = vst [vmem:[#allocation2 + $0x14] sm:$0x1] %v396
      %v398 = vld [vmem:[#allocation2 + $0x20] sm:$0x1]
      %v399 = vsel %vm391, 0, %v398
      %400 = vst [vmem:[#allocation2 + $0x20] sm:$0x1] %v399
      %v401 = vld [vmem:[#allocation2 + $0x2c] sm:$0x1]
      %v402 = vsel %vm391, 0, %v401
      %403 = vst [vmem:[#allocation2 + $0x2c] sm:$0x1] %v402
      %v404 = vld [vmem:[#allocation2 + $0x38] sm:$0x1]
      %v405 = vsel %vm391, 0, %v404
      %406 = vst [vmem:[#allocation2 + $0x38] sm:$0x1] %v405
      %v407 = vld [vmem:[#allocation2 + $0x44] sm:$0x1]
      %v408 = vsel %vm391, 0, %v407
      %409 = vst [vmem:[#allocation2 + $0x44] sm:$0x1] %v408
      %v410 = vld [vmem:[#allocation2 + $0x50] sm:$0x1]
      %v411 = vsel %vm391, 0, %v410
      %412 = vst [vmem:[#allocation2 + $0x50] sm:$0x1] %v411
      %v413 = vld [vmem:[#allocation2 + $0x5c] sm:$0x1]
      %v414 = vsel %vm391, 0, %v413
      %415 = vst [vmem:[#allocation2 + $0x5c] sm:$0x1] %v414
      %v416 = vld [vmem:[#allocation2 + $0x68] sm:$0x1]
      %v417 = vsel %vm391, 0, %v416
      %418 = vst [vmem:[#allocation2 + $0x68] sm:$0x1] %v417
      %v419 = vld [vmem:[#allocation2 + $0x74] sm:$0x1]
      %v420 = vsel %vm391, 0, %v419
      %421 = vst [vmem:[#allocation2 + $0x74] sm:$0x1] %v420
      %v422 = vld [vmem:[#allocation2 + $0x80] sm:$0x1]
      %v423 = vsel %vm391, 0, %v422
      %424 = vst [vmem:[#allocation2 + $0x80] sm:$0x1] %v423
      %v425 = vld [vmem:[#allocation2 + $0x8c] sm:$0x1]
      %v426 = vsel %vm391, 0, %v425
      %427 = vst [vmem:[#allocation2 + $0x8c] sm:$0x1] %v426
      %v428 = vld [vmem:[#allocation2 + $0x98] sm:$0x1]
      %v429 = vsel %vm391, 0, %v428
      %430 = vst [vmem:[#allocation2 + $0x98] sm:$0x1] %v429
      %v431 = vld [vmem:[#allocation2 + $0xa4] sm:$0x1]
      %v432 = vsel %vm391, 0, %v431
      %433 = vst [vmem:[#allocation2 + $0xa4] sm:$0x1] %v432
      %v434 = vld [vmem:[#allocation2 + $0xb0] sm:$0x1]
      %v435 = vsel %vm391, 0, %v434
      %436 = vst [vmem:[#allocation2 + $0xb0] sm:$0x1] %v435
      %v437 = vld [vmem:[#allocation2 + $0xbc] sm:$0x1]
      %v438 = vsel %vm391, 0, %v437
      %439 = vst [vmem:[#allocation2 + $0xbc] sm:$0x1] %v438
      %v440 = vld [vmem:[#allocation2 + $0xc8] sm:$0x1]
      %v441 = vsel %vm391, 0, %v440
      %442 = vst [vmem:[#allocation2 + $0xc8] sm:$0x1] %v441
      %v443 = vld [vmem:[#allocation2 + $0xd4] sm:$0x1]
      %v444 = vsel %vm391, 0, %v443
      %445 = vst [vmem:[#allocation2 + $0xd4] sm:$0x1] %v444
      %v446 = vld [vmem:[%s314] sm:$0xff]
      %v447 = vlaneseq
      %v448 = vshrl.u32 %v447, 7
      %v449 = vsub.s32 0, %v448
      %v450 = vrot.slane %v446, %v449
      %452 = vbcast.lane.b32.xlu0 %v450, 256
      %v453 = vpop.permute.xlu0 %452
      %s455 = sor.u32 256, 8
      %456 = vbcast.lane.b32.xlu0 %v450, %s455
      %v457 = vpop.permute.xlu0 %456
      %v458 = vlaneseq
      %v459 = vshrl.u32 %v458, 7
      %v460 = vsub.s32 1, %v459
      %v461 = vrot.slane %v446, %v460
      %463 = vbcast.lane.b32.xlu0 %v461, 256
      %v464 = vpop.permute.xlu0 %463
      %s466 = sor.u32 256, 8
      %467 = vbcast.lane.b32.xlu0 %v461, %s466
      %v468 = vpop.permute.xlu0 %467
      %v469 = vlaneseq
      %v470 = vshrl.u32 %v469, 7
      %v471 = vsub.s32 2, %v470
      %v472 = vrot.slane %v446, %v471
      %474 = vbcast.lane.b32.xlu0 %v472, 256
      %v475 = vpop.permute.xlu0 %474
      %s477 = sor.u32 256, 8
      %478 = vbcast.lane.b32.xlu0 %v472, %s477
      %v479 = vpop.permute.xlu0 %478
      %v480 = vlaneseq
      %v481 = vshrl.u32 %v480, 7
      %v482 = vsub.s32 3, %v481
      %v483 = vrot.slane %v446, %v482
      %485 = vbcast.lane.b32.xlu0 %v483, 256
      %v486 = vpop.permute.xlu0 %485
      %s488 = sor.u32 256, 8
      %489 = vbcast.lane.b32.xlu0 %v483, %s488
      %v490 = vpop.permute.xlu0 %489
      %v491 = vlaneseq
      %v492 = vshrl.u32 %v491, 7
      %v493 = vsub.s32 4, %v492
      %v494 = vrot.slane %v446, %v493
      %496 = vbcast.lane.b32.xlu0 %v494, 256
      %v497 = vpop.permute.xlu0 %496
      %s499 = sor.u32 256, 8
      %500 = vbcast.lane.b32.xlu0 %v494, %s499
      %v501 = vpop.permute.xlu0 %500
      %v502 = vlaneseq
      %v503 = vshrl.u32 %v502, 7
      %v504 = vsub.s32 5, %v503
      %v505 = vrot.slane %v446, %v504
      %507 = vbcast.lane.b32.xlu0 %v505, 256
      %v508 = vpop.permute.xlu0 %507
      %s510 = sor.u32 256, 8
      %511 = vbcast.lane.b32.xlu0 %v505, %s510
      %v512 = vpop.permute.xlu0 %511
      %v513 = vlaneseq
      %v514 = vshrl.u32 %v513, 7
      %v515 = vsub.s32 6, %v514
      %v516 = vrot.slane %v446, %v515
      %518 = vbcast.lane.b32.xlu0 %v516, 256
      %v519 = vpop.permute.xlu0 %518
      %s521 = sor.u32 256, 8
      %522 = vbcast.lane.b32.xlu0 %v516, %s521
      %v523 = vpop.permute.xlu0 %522
      %v524 = vlaneseq
      %v525 = vshrl.u32 %v524, 7
      %v526 = vsub.s32 7, %v525
      %v527 = vrot.slane %v446, %v526
      %529 = vbcast.lane.b32.xlu0 %v527, 256
      %v530 = vpop.permute.xlu0 %529
      %s532 = sor.u32 256, 8
      %533 = vbcast.lane.b32.xlu0 %v527, %s532
      %v534 = vpop.permute.xlu0 %533
      %v535 = vld [vmem:[%s2] sm:$0x1]
      %v536 = vlaneseq
      %v537 = vshrl.u32 %v536, 7
      %v538 = vsub.s32 0, %v537
      %v539 = vrot.slane %v535, %v538
      %v540 = vmul.f32 %v453, %v539
      %v541 = vmul.f32 %v457, %v539
      %v542 = vmul.f32 %v464, %v539
      %v543 = vmul.f32 %v468, %v539
      %v544 = vmul.f32 %v475, %v539
      %v545 = vmul.f32 %v479, %v539
      %v546 = vmul.f32 %v486, %v539
      %v547 = vmul.f32 %v490, %v539
      %v548 = vmul.f32 %v497, %v539
      %v549 = vmul.f32 %v501, %v539
      %v550 = vmul.f32 %v508, %v539
      %v551 = vmul.f32 %v512, %v539
      %v552 = vmul.f32 %v519, %v539
      %v553 = vmul.f32 %v523, %v539
      %v554 = vmul.f32 %v530, %v539
      %v555 = vmul.f32 %v534, %v539
      %v556 = vadd.f32 %v540, 0.0
      %v557 = vadd.f32 %v541, 0.0
      %v558 = vadd.f32 %v542, 0.0
      %v559 = vadd.f32 %v543, 0.0
      %v560 = vadd.f32 %v544, 0.0
      %v561 = vadd.f32 %v545, 0.0
      %v562 = vadd.f32 %v546, 0.0
      %v563 = vadd.f32 %v547, 0.0
      %v564 = vadd.f32 %v548, 0.0
      %v565 = vadd.f32 %v549, 0.0
      %v566 = vadd.f32 %v550, 0.0
      %v567 = vadd.f32 %v551, 0.0
      %v568 = vadd.f32 %v552, 0.0
      %v569 = vadd.f32 %v553, 0.0
      %v570 = vadd.f32 %v554, 0.0
      %v571 = vadd.f32 %v555, 0.0
      %s573 = sor.u32 256, 1
      %574 = vbcast.lane.b32.xlu0 %v450, %s573
      %v575 = vpop.permute.xlu0 %574
      %s577 = sor.u32 256, 9
      %578 = vbcast.lane.b32.xlu0 %v450, %s577
      %v579 = vpop.permute.xlu0 %578
      %s581 = sor.u32 256, 1
      %582 = vbcast.lane.b32.xlu0 %v461, %s581
      %v583 = vpop.permute.xlu0 %582
      %s585 = sor.u32 256, 9
      %586 = vbcast.lane.b32.xlu0 %v461, %s585
      %v587 = vpop.permute.xlu0 %586
      %s589 = sor.u32 256, 1
      %590 = vbcast.lane.b32.xlu0 %v472, %s589
      %v591 = vpop.permute.xlu0 %590
      %s593 = sor.u32 256, 9
      %594 = vbcast.lane.b32.xlu0 %v472, %s593
      %v595 = vpop.permute.xlu0 %594
      %s597 = sor.u32 256, 1
      %598 = vbcast.lane.b32.xlu0 %v483, %s597
      %v599 = vpop.permute.xlu0 %598
      %s601 = sor.u32 256, 9
      %602 = vbcast.lane.b32.xlu0 %v483, %s601
      %v603 = vpop.permute.xlu0 %602
      %s605 = sor.u32 256, 1
      %606 = vbcast.lane.b32.xlu0 %v494, %s605
      %v607 = vpop.permute.xlu0 %606
      %s609 = sor.u32 256, 9
      %610 = vbcast.lane.b32.xlu0 %v494, %s609
      %v611 = vpop.permute.xlu0 %610
      %s613 = sor.u32 256, 1
      %614 = vbcast.lane.b32.xlu0 %v505, %s613
      %v615 = vpop.permute.xlu0 %614
      %s617 = sor.u32 256, 9
      %618 = vbcast.lane.b32.xlu0 %v505, %s617
      %v619 = vpop.permute.xlu0 %618
      %s621 = sor.u32 256, 1
      %622 = vbcast.lane.b32.xlu0 %v516, %s621
      %v623 = vpop.permute.xlu0 %622
      %s625 = sor.u32 256, 9
      %626 = vbcast.lane.b32.xlu0 %v516, %s625
      %v627 = vpop.permute.xlu0 %626
      %s629 = sor.u32 256, 1
      %630 = vbcast.lane.b32.xlu0 %v527, %s629
      %v631 = vpop.permute.xlu0 %630
      %s633 = sor.u32 256, 9
      %634 = vbcast.lane.b32.xlu0 %v527, %s633
      %v635 = vpop.permute.xlu0 %634
      %v636 = vld [vmem:[%s2 + $0x1] sm:$0x1]
      %v637 = vlaneseq
      %v638 = vshrl.u32 %v637, 7
      %v639 = vsub.s32 0, %v638
      %v640 = vrot.slane %v636, %v639
      %v641 = vmul.f32 %v575, %v640
      %v642 = vmul.f32 %v579, %v640
      %v643 = vmul.f32 %v583, %v640
      %v644 = vmul.f32 %v587, %v640
      %v645 = vmul.f32 %v591, %v640
      %v646 = vmul.f32 %v595, %v640
      %v647 = vmul.f32 %v599, %v640
      %v648 = vmul.f32 %v603, %v640
      %v649 = vmul.f32 %v607, %v640
      %v650 = vmul.f32 %v611, %v640
      %v651 = vmul.f32 %v615, %v640
      %v652 = vmul.f32 %v619, %v640
      %v653 = vmul.f32 %v623, %v640
      %v654 = vmul.f32 %v627, %v640
      %v655 = vmul.f32 %v631, %v640
      %v656 = vmul.f32 %v635, %v640
      %v657 = vadd.f32 %v556, %v641
      %v658 = vadd.f32 %v557, %v642
      %v659 = vadd.f32 %v558, %v643
      %v660 = vadd.f32 %v559, %v644
      %v661 = vadd.f32 %v560, %v645
      %v662 = vadd.f32 %v561, %v646
      %v663 = vadd.f32 %v562, %v647
      %v664 = vadd.f32 %v563, %v648
      %v665 = vadd.f32 %v564, %v649
      %v666 = vadd.f32 %v565, %v650
      %v667 = vadd.f32 %v566, %v651
      %v668 = vadd.f32 %v567, %v652
      %v669 = vadd.f32 %v568, %v653
      %v670 = vadd.f32 %v569, %v654
      %v671 = vadd.f32 %v570, %v655
      %v672 = vadd.f32 %v571, %v656
      %s674 = sor.u32 256, 2
      %675 = vbcast.lane.b32.xlu0 %v450, %s674
      %v676 = vpop.permute.xlu0 %675
      %s678 = sor.u32 256, 10
      %679 = vbcast.lane.b32.xlu0 %v450, %s678
      %v680 = vpop.permute.xlu0 %679
      %s682 = sor.u32 256, 2
      %683 = vbcast.lane.b32.xlu0 %v461, %s682
      %v684 = vpop.permute.xlu0 %683
      %s686 = sor.u32 256, 10
      %687 = vbcast.lane.b32.xlu0 %v461, %s686
      %v688 = vpop.permute.xlu0 %687
      %s690 = sor.u32 256, 2
      %691 = vbcast.lane.b32.xlu0 %v472, %s690
      %v692 = vpop.permute.xlu0 %691
      %s694 = sor.u32 256, 10
      %695 = vbcast.lane.b32.xlu0 %v472, %s694
      %v696 = vpop.permute.xlu0 %695
      %s698 = sor.u32 256, 2
      %699 = vbcast.lane.b32.xlu0 %v483, %s698
      %v700 = vpop.permute.xlu0 %699
      %s702 = sor.u32 256, 10
      %703 = vbcast.lane.b32.xlu0 %v483, %s702
      %v704 = vpop.permute.xlu0 %703
      %s706 = sor.u32 256, 2
      %707 = vbcast.lane.b32.xlu0 %v494, %s706
      %v708 = vpop.permute.xlu0 %707
      %s710 = sor.u32 256, 10
      %711 = vbcast.lane.b32.xlu0 %v494, %s710
      %v712 = vpop.permute.xlu0 %711
      %s714 = sor.u32 256, 2
      %715 = vbcast.lane.b32.xlu0 %v505, %s714
      %v716 = vpop.permute.xlu0 %715
      %s718 = sor.u32 256, 10
      %719 = vbcast.lane.b32.xlu0 %v505, %s718
      %v720 = vpop.permute.xlu0 %719
      %s722 = sor.u32 256, 2
      %723 = vbcast.lane.b32.xlu0 %v516, %s722
      %v724 = vpop.permute.xlu0 %723
      %s726 = sor.u32 256, 10
      %727 = vbcast.lane.b32.xlu0 %v516, %s726
      %v728 = vpop.permute.xlu0 %727
      %s730 = sor.u32 256, 2
      %731 = vbcast.lane.b32.xlu0 %v527, %s730
      %v732 = vpop.permute.xlu0 %731
      %s734 = sor.u32 256, 10
      %735 = vbcast.lane.b32.xlu0 %v527, %s734
      %v736 = vpop.permute.xlu0 %735
      %v737 = vld [vmem:[%s2 + $0x2] sm:$0x1]
      %v738 = vlaneseq
      %v739 = vshrl.u32 %v738, 7
      %v740 = vsub.s32 0, %v739
      %v741 = vrot.slane %v737, %v740
      %v742 = vmul.f32 %v676, %v741
      %v743 = vmul.f32 %v680, %v741
      %v744 = vmul.f32 %v684, %v741
      %v745 = vmul.f32 %v688, %v741
      %v746 = vmul.f32 %v692, %v741
      %v747 = vmul.f32 %v696, %v741
      %v748 = vmul.f32 %v700, %v741
      %v749 = vmul.f32 %v704, %v741
      %v750 = vmul.f32 %v708, %v741
      %v751 = vmul.f32 %v712, %v741
      %v752 = vmul.f32 %v716, %v741
      %v753 = vmul.f32 %v720, %v741
      %v754 = vmul.f32 %v724, %v741
      %v755 = vmul.f32 %v728, %v741
      %v756 = vmul.f32 %v732, %v741
      %v757 = vmul.f32 %v736, %v741
      %v758 = vadd.f32 %v657, %v742
      %v759 = vadd.f32 %v658, %v743
      %v760 = vadd.f32 %v659, %v744
      %v761 = vadd.f32 %v660, %v745
      %v762 = vadd.f32 %v661, %v746
      %v763 = vadd.f32 %v662, %v747
      %v764 = vadd.f32 %v663, %v748
      %v765 = vadd.f32 %v664, %v749
      %v766 = vadd.f32 %v665, %v750
      %v767 = vadd.f32 %v666, %v751
      %v768 = vadd.f32 %v667, %v752
      %v769 = vadd.f32 %v668, %v753
      %v770 = vadd.f32 %v669, %v754
      %v771 = vadd.f32 %v670, %v755
      %v772 = vadd.f32 %v671, %v756
      %v773 = vadd.f32 %v672, %v757
      %v774 = vld [vmem:[%s314 + $0x1] sm:$0xff]
      %v775 = vlaneseq
      %v776 = vshrl.u32 %v775, 7
      %v777 = vsub.s32 0, %v776
      %v778 = vrot.slane %v774, %v777
      %780 = vbcast.lane.b32.xlu0 %v778, 256
      %v781 = vpop.permute.xlu0 %780
      %s783 = sor.u32 256, 8
      %784 = vbcast.lane.b32.xlu0 %v778, %s783
      %v785 = vpop.permute.xlu0 %784
      %v786 = vlaneseq
      %v787 = vshrl.u32 %v786, 7
      %v788 = vsub.s32 1, %v787
      %v789 = vrot.slane %v774, %v788
      %791 = vbcast.lane.b32.xlu0 %v789, 256
      %v792 = vpop.permute.xlu0 %791
      %s794 = sor.u32 256, 8
      %795 = vbcast.lane.b32.xlu0 %v789, %s794
      %v796 = vpop.permute.xlu0 %795
      %v797 = vlaneseq
      %v798 = vshrl.u32 %v797, 7
      %v799 = vsub.s32 2, %v798
      %v800 = vrot.slane %v774, %v799
      %802 = vbcast.lane.b32.xlu0 %v800, 256
      %v803 = vpop.permute.xlu0 %802
      %s805 = sor.u32 256, 8
      %806 = vbcast.lane.b32.xlu0 %v800, %s805
      %v807 = vpop.permute.xlu0 %806
      %v808 = vlaneseq
      %v809 = vshrl.u32 %v808, 7
      %v810 = vsub.s32 3, %v809
      %v811 = vrot.slane %v774, %v810
      %813 = vbcast.lane.b32.xlu0 %v811, 256
      %v814 = vpop.permute.xlu0 %813
      %s816 = sor.u32 256, 8
      %817 = vbcast.lane.b32.xlu0 %v811, %s816
      %v818 = vpop.permute.xlu0 %817
      %v819 = vlaneseq
      %v820 = vshrl.u32 %v819, 7
      %v821 = vsub.s32 4, %v820
      %v822 = vrot.slane %v774, %v821
      %824 = vbcast.lane.b32.xlu0 %v822, 256
      %v825 = vpop.permute.xlu0 %824
      %s827 = sor.u32 256, 8
      %828 = vbcast.lane.b32.xlu0 %v822, %s827
      %v829 = vpop.permute.xlu0 %828
      %v830 = vlaneseq
      %v831 = vshrl.u32 %v830, 7
      %v832 = vsub.s32 5, %v831
      %v833 = vrot.slane %v774, %v832
      %835 = vbcast.lane.b32.xlu0 %v833, 256
      %v836 = vpop.permute.xlu0 %835
      %s838 = sor.u32 256, 8
      %839 = vbcast.lane.b32.xlu0 %v833, %s838
      %v840 = vpop.permute.xlu0 %839
      %v841 = vlaneseq
      %v842 = vshrl.u32 %v841, 7
      %v843 = vsub.s32 6, %v842
      %v844 = vrot.slane %v774, %v843
      %846 = vbcast.lane.b32.xlu0 %v844, 256
      %v847 = vpop.permute.xlu0 %846
      %s849 = sor.u32 256, 8
      %850 = vbcast.lane.b32.xlu0 %v844, %s849
      %v851 = vpop.permute.xlu0 %850
      %v852 = vlaneseq
      %v853 = vshrl.u32 %v852, 7
      %v854 = vsub.s32 7, %v853
      %v855 = vrot.slane %v774, %v854
      %857 = vbcast.lane.b32.xlu0 %v855, 256
      %v858 = vpop.permute.xlu0 %857
      %s860 = sor.u32 256, 8
      %861 = vbcast.lane.b32.xlu0 %v855, %s860
      %v862 = vpop.permute.xlu0 %861
      %v863 = vld [vmem:[%s2 + $0x3] sm:$0x1]
      %v864 = vlaneseq
      %v865 = vshrl.u32 %v864, 7
      %v866 = vsub.s32 0, %v865
      %v867 = vrot.slane %v863, %v866
      %v868 = vmul.f32 %v781, %v867
      %v869 = vmul.f32 %v785, %v867
      %v870 = vmul.f32 %v792, %v867
      %v871 = vmul.f32 %v796, %v867
      %v872 = vmul.f32 %v803, %v867
      %v873 = vmul.f32 %v807, %v867
      %v874 = vmul.f32 %v814, %v867
      %v875 = vmul.f32 %v818, %v867
      %v876 = vmul.f32 %v825, %v867
      %v877 = vmul.f32 %v829, %v867
      %v878 = vmul.f32 %v836, %v867
      %v879 = vmul.f32 %v840, %v867
      %v880 = vmul.f32 %v847, %v867
      %v881 = vmul.f32 %v851, %v867
      %v882 = vmul.f32 %v858, %v867
      %v883 = vmul.f32 %v862, %v867
      %v884 = vadd.f32 %v758, %v868
      %v885 = vadd.f32 %v759, %v869
      %v886 = vadd.f32 %v760, %v870
      %v887 = vadd.f32 %v761, %v871
      %v888 = vadd.f32 %v762, %v872
      %v889 = vadd.f32 %v763, %v873
      %v890 = vadd.f32 %v764, %v874
      %v891 = vadd.f32 %v765, %v875
      %v892 = vadd.f32 %v766, %v876
      %v893 = vadd.f32 %v767, %v877
      %v894 = vadd.f32 %v768, %v878
      %v895 = vadd.f32 %v769, %v879
      %v896 = vadd.f32 %v770, %v880
      %v897 = vadd.f32 %v771, %v881
      %v898 = vadd.f32 %v772, %v882
      %v899 = vadd.f32 %v773, %v883
      %s901 = sor.u32 256, 1
      %902 = vbcast.lane.b32.xlu0 %v778, %s901
      %v903 = vpop.permute.xlu0 %902
      %s905 = sor.u32 256, 9
      %906 = vbcast.lane.b32.xlu0 %v778, %s905
      %v907 = vpop.permute.xlu0 %906
      %s909 = sor.u32 256, 1
      %910 = vbcast.lane.b32.xlu0 %v789, %s909
      %v911 = vpop.permute.xlu0 %910
      %s913 = sor.u32 256, 9
      %914 = vbcast.lane.b32.xlu0 %v789, %s913
      %v915 = vpop.permute.xlu0 %914
      %s917 = sor.u32 256, 1
      %918 = vbcast.lane.b32.xlu0 %v800, %s917
      %v919 = vpop.permute.xlu0 %918
      %s921 = sor.u32 256, 9
      %922 = vbcast.lane.b32.xlu0 %v800, %s921
      %v923 = vpop.permute.xlu0 %922
      %s925 = sor.u32 256, 1
      %926 = vbcast.lane.b32.xlu0 %v811, %s925
      %v927 = vpop.permute.xlu0 %926
      %s929 = sor.u32 256, 9
      %930 = vbcast.lane.b32.xlu0 %v811, %s929
      %v931 = vpop.permute.xlu0 %930
      %s933 = sor.u32 256, 1
      %934 = vbcast.lane.b32.xlu0 %v822, %s933
      %v935 = vpop.permute.xlu0 %934
      %s937 = sor.u32 256, 9
      %938 = vbcast.lane.b32.xlu0 %v822, %s937
      %v939 = vpop.permute.xlu0 %938
      %s941 = sor.u32 256, 1
      %942 = vbcast.lane.b32.xlu0 %v833, %s941
      %v943 = vpop.permute.xlu0 %942
      %s945 = sor.u32 256, 9
      %946 = vbcast.lane.b32.xlu0 %v833, %s945
      %v947 = vpop.permute.xlu0 %946
      %s949 = sor.u32 256, 1
      %950 = vbcast.lane.b32.xlu0 %v844, %s949
      %v951 = vpop.permute.xlu0 %950
      %s953 = sor.u32 256, 9
      %954 = vbcast.lane.b32.xlu0 %v844, %s953
      %v955 = vpop.permute.xlu0 %954
      %s957 = sor.u32 256, 1
      %958 = vbcast.lane.b32.xlu0 %v855, %s957
      %v959 = vpop.permute.xlu0 %958
      %s961 = sor.u32 256, 9
      %962 = vbcast.lane.b32.xlu0 %v855, %s961
      %v963 = vpop.permute.xlu0 %962
      %v964 = vld [vmem:[%s2 + $0x4] sm:$0x1]
      %v965 = vlaneseq
      %v966 = vshrl.u32 %v965, 7
      %v967 = vsub.s32 0, %v966
      %v968 = vrot.slane %v964, %v967
      %v969 = vmul.f32 %v903, %v968
      %v970 = vmul.f32 %v907, %v968
      %v971 = vmul.f32 %v911, %v968
      %v972 = vmul.f32 %v915, %v968
      %v973 = vmul.f32 %v919, %v968
      %v974 = vmul.f32 %v923, %v968
      %v975 = vmul.f32 %v927, %v968
      %v976 = vmul.f32 %v931, %v968
      %v977 = vmul.f32 %v935, %v968
      %v978 = vmul.f32 %v939, %v968
      %v979 = vmul.f32 %v943, %v968
      %v980 = vmul.f32 %v947, %v968
      %v981 = vmul.f32 %v951, %v968
      %v982 = vmul.f32 %v955, %v968
      %v983 = vmul.f32 %v959, %v968
      %v984 = vmul.f32 %v963, %v968
      %v985 = vadd.f32 %v884, %v969
      %v986 = vadd.f32 %v885, %v970
      %v987 = vadd.f32 %v886, %v971
      %v988 = vadd.f32 %v887, %v972
      %v989 = vadd.f32 %v888, %v973
      %v990 = vadd.f32 %v889, %v974
      %v991 = vadd.f32 %v890, %v975
      %v992 = vadd.f32 %v891, %v976
      %v993 = vadd.f32 %v892, %v977
      %v994 = vadd.f32 %v893, %v978
      %v995 = vadd.f32 %v894, %v979
      %v996 = vadd.f32 %v895, %v980
      %v997 = vadd.f32 %v896, %v981
      %v998 = vadd.f32 %v897, %v982
      %v999 = vadd.f32 %v898, %v983
      %v1000 = vadd.f32 %v899, %v984
      %s1002 = sor.u32 256, 2
      %1003 = vbcast.lane.b32.xlu0 %v778, %s1002
      %v1004 = vpop.permute.xlu0 %1003
      %s1006 = sor.u32 256, 10
      %1007 = vbcast.lane.b32.xlu0 %v778, %s1006
      %v1008 = vpop.permute.xlu0 %1007
      %s1010 = sor.u32 256, 2
      %1011 = vbcast.lane.b32.xlu0 %v789, %s1010
      %v1012 = vpop.permute.xlu0 %1011
      %s1014 = sor.u32 256, 10
      %1015 = vbcast.lane.b32.xlu0 %v789, %s1014
      %v1016 = vpop.permute.xlu0 %1015
      %s1018 = sor.u32 256, 2
      %1019 = vbcast.lane.b32.xlu0 %v800, %s1018
      %v1020 = vpop.permute.xlu0 %1019
      %s1022 = sor.u32 256, 10
      %1023 = vbcast.lane.b32.xlu0 %v800, %s1022
      %v1024 = vpop.permute.xlu0 %1023
      %s1026 = sor.u32 256, 2
      %1027 = vbcast.lane.b32.xlu0 %v811, %s1026
      %v1028 = vpop.permute.xlu0 %1027
      %s1030 = sor.u32 256, 10
      %1031 = vbcast.lane.b32.xlu0 %v811, %s1030
      %v1032 = vpop.permute.xlu0 %1031
      %s1034 = sor.u32 256, 2
      %1035 = vbcast.lane.b32.xlu0 %v822, %s1034
      %v1036 = vpop.permute.xlu0 %1035
      %s1038 = sor.u32 256, 10
      %1039 = vbcast.lane.b32.xlu0 %v822, %s1038
      %v1040 = vpop.permute.xlu0 %1039
      %s1042 = sor.u32 256, 2
      %1043 = vbcast.lane.b32.xlu0 %v833, %s1042
      %v1044 = vpop.permute.xlu0 %1043
      %s1046 = sor.u32 256, 10
      %1047 = vbcast.lane.b32.xlu0 %v833, %s1046
      %v1048 = vpop.permute.xlu0 %1047
      %s1050 = sor.u32 256, 2
      %1051 = vbcast.lane.b32.xlu0 %v844, %s1050
      %v1052 = vpop.permute.xlu0 %1051
      %s1054 = sor.u32 256, 10
      %1055 = vbcast.lane.b32.xlu0 %v844, %s1054
      %v1056 = vpop.permute.xlu0 %1055
      %s1058 = sor.u32 256, 2
      %1059 = vbcast.lane.b32.xlu0 %v855, %s1058
      %v1060 = vpop.permute.xlu0 %1059
      %s1062 = sor.u32 256, 10
      %1063 = vbcast.lane.b32.xlu0 %v855, %s1062
      %v1064 = vpop.permute.xlu0 %1063
      %v1065 = vld [vmem:[%s2 + $0x5] sm:$0x1]
      %v1066 = vlaneseq
      %v1067 = vshrl.u32 %v1066, 7
      %v1068 = vsub.s32 0, %v1067
      %v1069 = vrot.slane %v1065, %v1068
      %v1070 = vmul.f32 %v1004, %v1069
      %v1071 = vmul.f32 %v1008, %v1069
      %v1072 = vmul.f32 %v1012, %v1069
      %v1073 = vmul.f32 %v1016, %v1069
      %v1074 = vmul.f32 %v1020, %v1069
      %v1075 = vmul.f32 %v1024, %v1069
      %v1076 = vmul.f32 %v1028, %v1069
      %v1077 = vmul.f32 %v1032, %v1069
      %v1078 = vmul.f32 %v1036, %v1069
      %v1079 = vmul.f32 %v1040, %v1069
      %v1080 = vmul.f32 %v1044, %v1069
      %v1081 = vmul.f32 %v1048, %v1069
      %v1082 = vmul.f32 %v1052, %v1069
      %v1083 = vmul.f32 %v1056, %v1069
      %v1084 = vmul.f32 %v1060, %v1069
      %v1085 = vmul.f32 %v1064, %v1069
      %v1086 = vadd.f32 %v985, %v1070
      %v1087 = vadd.f32 %v986, %v1071
      %v1088 = vadd.f32 %v987, %v1072
      %v1089 = vadd.f32 %v988, %v1073
      %v1090 = vadd.f32 %v989, %v1074
      %v1091 = vadd.f32 %v990, %v1075
      %v1092 = vadd.f32 %v991, %v1076
      %v1093 = vadd.f32 %v992, %v1077
      %v1094 = vadd.f32 %v993, %v1078
      %v1095 = vadd.f32 %v994, %v1079
      %v1096 = vadd.f32 %v995, %v1080
      %v1097 = vadd.f32 %v996, %v1081
      %v1098 = vadd.f32 %v997, %v1082
      %v1099 = vadd.f32 %v998, %v1083
      %v1100 = vadd.f32 %v999, %v1084
      %v1101 = vadd.f32 %v1000, %v1085
      %v1102 = vld [vmem:[%s314 + $0x2] sm:$0xff]
      %v1103 = vlaneseq
      %v1104 = vshrl.u32 %v1103, 7
      %v1105 = vsub.s32 0, %v1104
      %v1106 = vrot.slane %v1102, %v1105
      %1108 = vbcast.lane.b32.xlu0 %v1106, 256
      %v1109 = vpop.permute.xlu0 %1108
      %s1111 = sor.u32 256, 8
      %1112 = vbcast.lane.b32.xlu0 %v1106, %s1111
      %v1113 = vpop.permute.xlu0 %1112
      %v1114 = vlaneseq
      %v1115 = vshrl.u32 %v1114, 7
      %v1116 = vsub.s32 1, %v1115
      %v1117 = vrot.slane %v1102, %v1116
      %1119 = vbcast.lane.b32.xlu0 %v1117, 256
      %v1120 = vpop.permute.xlu0 %1119
      %s1122 = sor.u32 256, 8
      %1123 = vbcast.lane.b32.xlu0 %v1117, %s1122
      %v1124 = vpop.permute.xlu0 %1123
      %v1125 = vlaneseq
      %v1126 = vshrl.u32 %v1125, 7
      %v1127 = vsub.s32 2, %v1126
      %v1128 = vrot.slane %v1102, %v1127
      %1130 = vbcast.lane.b32.xlu0 %v1128, 256
      %v1131 = vpop.permute.xlu0 %1130
      %s1133 = sor.u32 256, 8
      %1134 = vbcast.lane.b32.xlu0 %v1128, %s1133
      %v1135 = vpop.permute.xlu0 %1134
      %v1136 = vlaneseq
      %v1137 = vshrl.u32 %v1136, 7
      %v1138 = vsub.s32 3, %v1137
      %v1139 = vrot.slane %v1102, %v1138
      %1141 = vbcast.lane.b32.xlu0 %v1139, 256
      %v1142 = vpop.permute.xlu0 %1141
      %s1144 = sor.u32 256, 8
      %1145 = vbcast.lane.b32.xlu0 %v1139, %s1144
      %v1146 = vpop.permute.xlu0 %1145
      %v1147 = vlaneseq
      %v1148 = vshrl.u32 %v1147, 7
      %v1149 = vsub.s32 4, %v1148
      %v1150 = vrot.slane %v1102, %v1149
      %1152 = vbcast.lane.b32.xlu0 %v1150, 256
      %v1153 = vpop.permute.xlu0 %1152
      %s1155 = sor.u32 256, 8
      %1156 = vbcast.lane.b32.xlu0 %v1150, %s1155
      %v1157 = vpop.permute.xlu0 %1156
      %v1158 = vlaneseq
      %v1159 = vshrl.u32 %v1158, 7
      %v1160 = vsub.s32 5, %v1159
      %v1161 = vrot.slane %v1102, %v1160
      %1163 = vbcast.lane.b32.xlu0 %v1161, 256
      %v1164 = vpop.permute.xlu0 %1163
      %s1166 = sor.u32 256, 8
      %1167 = vbcast.lane.b32.xlu0 %v1161, %s1166
      %v1168 = vpop.permute.xlu0 %1167
      %v1169 = vlaneseq
      %v1170 = vshrl.u32 %v1169, 7
      %v1171 = vsub.s32 6, %v1170
      %v1172 = vrot.slane %v1102, %v1171
      %1174 = vbcast.lane.b32.xlu0 %v1172, 256
      %v1175 = vpop.permute.xlu0 %1174
      %s1177 = sor.u32 256, 8
      %1178 = vbcast.lane.b32.xlu0 %v1172, %s1177
      %v1179 = vpop.permute.xlu0 %1178
      %v1180 = vlaneseq
      %v1181 = vshrl.u32 %v1180, 7
      %v1182 = vsub.s32 7, %v1181
      %v1183 = vrot.slane %v1102, %v1182
      %1185 = vbcast.lane.b32.xlu0 %v1183, 256
      %v1186 = vpop.permute.xlu0 %1185
      %s1188 = sor.u32 256, 8
      %1189 = vbcast.lane.b32.xlu0 %v1183, %s1188
      %v1190 = vpop.permute.xlu0 %1189
      %v1191 = vld [vmem:[%s2 + $0x6] sm:$0x1]
      %v1192 = vlaneseq
      %v1193 = vshrl.u32 %v1192, 7
      %v1194 = vsub.s32 0, %v1193
      %v1195 = vrot.slane %v1191, %v1194
      %v1196 = vmul.f32 %v1109, %v1195
      %v1197 = vmul.f32 %v1113, %v1195
      %v1198 = vmul.f32 %v1120, %v1195
      %v1199 = vmul.f32 %v1124, %v1195
      %v1200 = vmul.f32 %v1131, %v1195
      %v1201 = vmul.f32 %v1135, %v1195
      %v1202 = vmul.f32 %v1142, %v1195
      %v1203 = vmul.f32 %v1146, %v1195
      %v1204 = vmul.f32 %v1153, %v1195
      %v1205 = vmul.f32 %v1157, %v1195
      %v1206 = vmul.f32 %v1164, %v1195
      %v1207 = vmul.f32 %v1168, %v1195
      %v1208 = vmul.f32 %v1175, %v1195
      %v1209 = vmul.f32 %v1179, %v1195
      %v1210 = vmul.f32 %v1186, %v1195
      %v1211 = vmul.f32 %v1190, %v1195
      %v1212 = vadd.f32 %v1086, %v1196
      %v1213 = vadd.f32 %v1087, %v1197
      %v1214 = vadd.f32 %v1088, %v1198
      %v1215 = vadd.f32 %v1089, %v1199
      %v1216 = vadd.f32 %v1090, %v1200
      %v1217 = vadd.f32 %v1091, %v1201
      %v1218 = vadd.f32 %v1092, %v1202
      %v1219 = vadd.f32 %v1093, %v1203
      %v1220 = vadd.f32 %v1094, %v1204
      %v1221 = vadd.f32 %v1095, %v1205
      %v1222 = vadd.f32 %v1096, %v1206
      %v1223 = vadd.f32 %v1097, %v1207
      %v1224 = vadd.f32 %v1098, %v1208
      %v1225 = vadd.f32 %v1099, %v1209
      %v1226 = vadd.f32 %v1100, %v1210
      %v1227 = vadd.f32 %v1101, %v1211
      %s1229 = sor.u32 256, 1
      %1230 = vbcast.lane.b32.xlu0 %v1106, %s1229
      %v1231 = vpop.permute.xlu0 %1230
      %s1233 = sor.u32 256, 9
      %1234 = vbcast.lane.b32.xlu0 %v1106, %s1233
      %v1235 = vpop.permute.xlu0 %1234
      %s1237 = sor.u32 256, 1
      %1238 = vbcast.lane.b32.xlu0 %v1117, %s1237
      %v1239 = vpop.permute.xlu0 %1238
      %s1241 = sor.u32 256, 9
      %1242 = vbcast.lane.b32.xlu0 %v1117, %s1241
      %v1243 = vpop.permute.xlu0 %1242
      %s1245 = sor.u32 256, 1
      %1246 = vbcast.lane.b32.xlu0 %v1128, %s1245
      %v1247 = vpop.permute.xlu0 %1246
      %s1249 = sor.u32 256, 9
      %1250 = vbcast.lane.b32.xlu0 %v1128, %s1249
      %v1251 = vpop.permute.xlu0 %1250
      %s1253 = sor.u32 256, 1
      %1254 = vbcast.lane.b32.xlu0 %v1139, %s1253
      %v1255 = vpop.permute.xlu0 %1254
      %s1257 = sor.u32 256, 9
      %1258 = vbcast.lane.b32.xlu0 %v1139, %s1257
      %v1259 = vpop.permute.xlu0 %1258
      %s1261 = sor.u32 256, 1
      %1262 = vbcast.lane.b32.xlu0 %v1150, %s1261
      %v1263 = vpop.permute.xlu0 %1262
      %s1265 = sor.u32 256, 9
      %1266 = vbcast.lane.b32.xlu0 %v1150, %s1265
      %v1267 = vpop.permute.xlu0 %1266
      %s1269 = sor.u32 256, 1
      %1270 = vbcast.lane.b32.xlu0 %v1161, %s1269
      %v1271 = vpop.permute.xlu0 %1270
      %s1273 = sor.u32 256, 9
      %1274 = vbcast.lane.b32.xlu0 %v1161, %s1273
      %v1275 = vpop.permute.xlu0 %1274
      %s1277 = sor.u32 256, 1
      %1278 = vbcast.lane.b32.xlu0 %v1172, %s1277
      %v1279 = vpop.permute.xlu0 %1278
      %s1281 = sor.u32 256, 9
      %1282 = vbcast.lane.b32.xlu0 %v1172, %s1281
      %v1283 = vpop.permute.xlu0 %1282
      %s1285 = sor.u32 256, 1
      %1286 = vbcast.lane.b32.xlu0 %v1183, %s1285
      %v1287 = vpop.permute.xlu0 %1286
      %s1289 = sor.u32 256, 9
      %1290 = vbcast.lane.b32.xlu0 %v1183, %s1289
      %v1291 = vpop.permute.xlu0 %1290
      %v1292 = vld [vmem:[%s2 + $0x7] sm:$0x1]
      %v1293 = vlaneseq
      %v1294 = vshrl.u32 %v1293, 7
      %v1295 = vsub.s32 0, %v1294
      %v1296 = vrot.slane %v1292, %v1295
      %v1297 = vmul.f32 %v1231, %v1296
      %v1298 = vmul.f32 %v1235, %v1296
      %v1299 = vmul.f32 %v1239, %v1296
      %v1300 = vmul.f32 %v1243, %v1296
      %v1301 = vmul.f32 %v1247, %v1296
      %v1302 = vmul.f32 %v1251, %v1296
      %v1303 = vmul.f32 %v1255, %v1296
      %v1304 = vmul.f32 %v1259, %v1296
      %v1305 = vmul.f32 %v1263, %v1296
      %v1306 = vmul.f32 %v1267, %v1296
      %v1307 = vmul.f32 %v1271, %v1296
      %v1308 = vmul.f32 %v1275, %v1296
      %v1309 = vmul.f32 %v1279, %v1296
      %v1310 = vmul.f32 %v1283, %v1296
      %v1311 = vmul.f32 %v1287, %v1296
      %v1312 = vmul.f32 %v1291, %v1296
      %v1313 = vadd.f32 %v1212, %v1297
      %v1314 = vadd.f32 %v1213, %v1298
      %v1315 = vadd.f32 %v1214, %v1299
      %v1316 = vadd.f32 %v1215, %v1300
      %v1317 = vadd.f32 %v1216, %v1301
      %v1318 = vadd.f32 %v1217, %v1302
      %v1319 = vadd.f32 %v1218, %v1303
      %v1320 = vadd.f32 %v1219, %v1304
      %v1321 = vadd.f32 %v1220, %v1305
      %v1322 = vadd.f32 %v1221, %v1306
      %v1323 = vadd.f32 %v1222, %v1307
      %v1324 = vadd.f32 %v1223, %v1308
      %v1325 = vadd.f32 %v1224, %v1309
      %v1326 = vadd.f32 %v1225, %v1310
      %v1327 = vadd.f32 %v1226, %v1311
      %v1328 = vadd.f32 %v1227, %v1312
      %s1330 = sor.u32 256, 2
      %1331 = vbcast.lane.b32.xlu0 %v1106, %s1330
      %v1332 = vpop.permute.xlu0 %1331
      %s1334 = sor.u32 256, 10
      %1335 = vbcast.lane.b32.xlu0 %v1106, %s1334
      %v1336 = vpop.permute.xlu0 %1335
      %s1338 = sor.u32 256, 2
      %1339 = vbcast.lane.b32.xlu0 %v1117, %s1338
      %v1340 = vpop.permute.xlu0 %1339
      %s1342 = sor.u32 256, 10
      %1343 = vbcast.lane.b32.xlu0 %v1117, %s1342
      %v1344 = vpop.permute.xlu0 %1343
      %s1346 = sor.u32 256, 2
      %1347 = vbcast.lane.b32.xlu0 %v1128, %s1346
      %v1348 = vpop.permute.xlu0 %1347
      %s1350 = sor.u32 256, 10
      %1351 = vbcast.lane.b32.xlu0 %v1128, %s1350
      %v1352 = vpop.permute.xlu0 %1351
      %s1354 = sor.u32 256, 2
      %1355 = vbcast.lane.b32.xlu0 %v1139, %s1354
      %v1356 = vpop.permute.xlu0 %1355
      %s1358 = sor.u32 256, 10
      %1359 = vbcast.lane.b32.xlu0 %v1139, %s1358
      %v1360 = vpop.permute.xlu0 %1359
      %s1362 = sor.u32 256, 2
      %1363 = vbcast.lane.b32.xlu0 %v1150, %s1362
      %v1364 = vpop.permute.xlu0 %1363
      %s1366 = sor.u32 256, 10
      %1367 = vbcast.lane.b32.xlu0 %v1150, %s1366
      %v1368 = vpop.permute.xlu0 %1367
      %s1370 = sor.u32 256, 2
      %1371 = vbcast.lane.b32.xlu0 %v1161, %s1370
      %v1372 = vpop.permute.xlu0 %1371
      %s1374 = sor.u32 256, 10
      %1375 = vbcast.lane.b32.xlu0 %v1161, %s1374
      %v1376 = vpop.permute.xlu0 %1375
      %s1378 = sor.u32 256, 2
      %1379 = vbcast.lane.b32.xlu0 %v1172, %s1378
      %v1380 = vpop.permute.xlu0 %1379
      %s1382 = sor.u32 256, 10
      %1383 = vbcast.lane.b32.xlu0 %v1172, %s1382
      %v1384 = vpop.permute.xlu0 %1383
      %s1386 = sor.u32 256, 2
      %1387 = vbcast.lane.b32.xlu0 %v1183, %s1386
      %v1388 = vpop.permute.xlu0 %1387
      %s1390 = sor.u32 256, 10
      %1391 = vbcast.lane.b32.xlu0 %v1183, %s1390
      %v1392 = vpop.permute.xlu0 %1391
      %v1393 = vld [vmem:[%s2 + $0x8] sm:$0x1]
      %v1394 = vlaneseq
      %v1395 = vshrl.u32 %v1394, 7
      %v1396 = vsub.s32 0, %v1395
      %v1397 = vrot.slane %v1393, %v1396
      %v1398 = vmul.f32 %v1332, %v1397
      %v1399 = vmul.f32 %v1336, %v1397
      %v1400 = vmul.f32 %v1340, %v1397
      %v1401 = vmul.f32 %v1344, %v1397
      %v1402 = vmul.f32 %v1348, %v1397
      %v1403 = vmul.f32 %v1352, %v1397
      %v1404 = vmul.f32 %v1356, %v1397
      %v1405 = vmul.f32 %v1360, %v1397
      %v1406 = vmul.f32 %v1364, %v1397
      %v1407 = vmul.f32 %v1368, %v1397
      %v1408 = vmul.f32 %v1372, %v1397
      %v1409 = vmul.f32 %v1376, %v1397
      %v1410 = vmul.f32 %v1380, %v1397
      %v1411 = vmul.f32 %v1384, %v1397
      %v1412 = vmul.f32 %v1388, %v1397
      %v1413 = vmul.f32 %v1392, %v1397
      %v1414 = vadd.f32 %v1313, %v1398
      %v1415 = vadd.f32 %v1314, %v1399
      %v1416 = vadd.f32 %v1315, %v1400
      %v1417 = vadd.f32 %v1316, %v1401
      %v1418 = vadd.f32 %v1317, %v1402
      %v1419 = vadd.f32 %v1318, %v1403
      %v1420 = vadd.f32 %v1319, %v1404
      %v1421 = vadd.f32 %v1320, %v1405
      %v1422 = vadd.f32 %v1321, %v1406
      %v1423 = vadd.f32 %v1322, %v1407
      %v1424 = vadd.f32 %v1323, %v1408
      %v1425 = vadd.f32 %v1324, %v1409
      %v1426 = vadd.f32 %v1325, %v1410
      %v1427 = vadd.f32 %v1326, %v1411
      %v1428 = vadd.f32 %v1327, %v1412
      %v1429 = vadd.f32 %v1328, %v1413
      %v1430 = vld [vmem:[%s3] sm:$0x1]
      %v1432 = vlaneseq
      %v1433 = vshrl.u32 %v1432, 7
      %v1434 = vsub.s32 0, %v1433
      %v1435 = vrot.slane %v1430, %v1434
      %v1437 = vadd.f32 %v1414, %v1435
      %v1438 = vadd.f32 %v1415, %v1435
      %v1439 = vadd.f32 %v1416, %v1435
      %v1440 = vadd.f32 %v1417, %v1435
      %v1441 = vadd.f32 %v1418, %v1435
      %v1442 = vadd.f32 %v1419, %v1435
      %v1443 = vadd.f32 %v1420, %v1435
      %v1444 = vadd.f32 %v1421, %v1435
      %v1445 = vadd.f32 %v1422, %v1435
      %v1446 = vadd.f32 %v1423, %v1435
      %v1447 = vadd.f32 %v1424, %v1435
      %v1448 = vadd.f32 %v1425, %v1435
      %v1449 = vadd.f32 %v1426, %v1435
      %v1450 = vadd.f32 %v1427, %v1435
      %v1451 = vadd.f32 %v1428, %v1435
      %v1452 = vadd.f32 %v1429, %v1435
      %v1453 = vmax.f32 %v1437, 0.0
      %v1454 = vmax.f32 %v1438, 0.0
      %v1455 = vmax.f32 %v1439, 0.0
      %v1456 = vmax.f32 %v1440, 0.0
      %v1457 = vmax.f32 %v1441, 0.0
      %v1458 = vmax.f32 %v1442, 0.0
      %v1459 = vmax.f32 %v1443, 0.0
      %v1460 = vmax.f32 %v1444, 0.0
      %v1461 = vmax.f32 %v1445, 0.0
      %v1462 = vmax.f32 %v1446, 0.0
      %v1463 = vmax.f32 %v1447, 0.0
      %v1464 = vmax.f32 %v1448, 0.0
      %v1465 = vmax.f32 %v1449, 0.0
      %v1466 = vmax.f32 %v1450, 0.0
      %v1467 = vmax.f32 %v1451, 0.0
      %v1468 = vmax.f32 %v1452, 0.0
      %v1469 = vpack.c.bf16 %v1454, %v1453
      %v1470 = vpack.c.bf16 %v1456, %v1455
      %v1471 = vpack.c.bf16 %v1458, %v1457
      %v1472 = vpack.c.bf16 %v1460, %v1459
      %v1473 = vpack.c.bf16 %v1462, %v1461
      %v1474 = vpack.c.bf16 %v1464, %v1463
      %v1475 = vpack.c.bf16 %v1466, %v1465
      %v1476 = vpack.c.bf16 %v1468, %v1467
      %v1485 = vunpack.c.l.b16 %v1469
      %v1486 = vunpack.c.h.b16 %v1469
      %v1487 = vunpack.c.l.b16 %v1470
      %v1488 = vunpack.c.h.b16 %v1470
      %v1489 = vunpack.c.l.b16 %v1471
      %v1490 = vunpack.c.h.b16 %v1471
      %v1491 = vunpack.c.l.b16 %v1472
      %v1492 = vunpack.c.h.b16 %v1472
      %v1493 = vunpack.c.l.b16 %v1473
      %v1494 = vunpack.c.h.b16 %v1473
      %v1495 = vunpack.c.l.b16 %v1474
      %v1496 = vunpack.c.h.b16 %v1474
      %v1497 = vunpack.c.l.b16 %v1475
      %v1498 = vunpack.c.h.b16 %v1475
      %v1499 = vunpack.c.l.b16 %v1476
      %v1500 = vunpack.c.h.b16 %v1476
      %v1501 = vpack.c.b16 %v1485, %v1485
      %v1502 = vpack.c.b16 %v1486, %v1486
      %v1503 = vpack.c.b16 %v1487, %v1487
      %v1504 = vpack.c.b16 %v1488, %v1488
      %v1505 = vpack.c.b16 %v1489, %v1489
      %v1506 = vpack.c.b16 %v1490, %v1490
      %v1507 = vpack.c.b16 %v1491, %v1491
      %v1508 = vpack.c.b16 %v1492, %v1492
      %v1509 = vpack.c.b16 %v1493, %v1493
      %v1510 = vpack.c.b16 %v1494, %v1494
      %v1511 = vpack.c.b16 %v1495, %v1495
      %v1512 = vpack.c.b16 %v1496, %v1496
      %v1513 = vpack.c.b16 %v1497, %v1497
      %v1514 = vpack.c.b16 %v1498, %v1498
      %v1515 = vpack.c.b16 %v1499, %v1499
      %v1516 = vpack.c.b16 %v1500, %v1500
      %vm1517 = vsmask.f32 4368
      %vm1518 = vmor %vm334, %vm1517
      %v1520 = vshrl.u32 %v1501, 16
      %v1522 = vrot.slane %v1520, 7
      %v1523 = vshll.u32 %v1501, 16
      %v1525 = vor.u32 %v1522, %v1523
      %v1526 = vrot.slane %v1522, 4
      %v1528 = vshrl.u32 %v1502, 16
      %v1530 = vrot.slane %v1528, 7
      %v1531 = vshll.u32 %v1502, 16
      %v1533 = vor.u32 %v1530, %v1531
      %v1534 = vsel %vm1518, %v1526, %v1533
      %v1535 = vrot.slane %v1530, 4
      %v1537 = vshrl.u32 %v1503, 16
      %v1539 = vrot.slane %v1537, 7
      %v1540 = vshll.u32 %v1503, 16
      %v1542 = vor.u32 %v1539, %v1540
      %v1543 = vrot.slane %v1539, 4
      %v1545 = vshrl.u32 %v1504, 16
      %v1547 = vrot.slane %v1545, 7
      %v1548 = vshll.u32 %v1504, 16
      %v1550 = vor.u32 %v1547, %v1548
      %v1551 = vsel %vm1518, %v1543, %v1550
      %v1552 = vrot.slane %v1547, 4
      %v1554 = vshrl.u32 %v1505, 16
      %v1556 = vrot.slane %v1554, 7
      %v1557 = vshll.u32 %v1505, 16
      %v1559 = vor.u32 %v1556, %v1557
      %v1560 = vrot.slane %v1556, 4
      %v1562 = vshrl.u32 %v1506, 16
      %v1564 = vrot.slane %v1562, 7
      %v1565 = vshll.u32 %v1506, 16
      %v1567 = vor.u32 %v1564, %v1565
      %v1568 = vsel %vm1518, %v1560, %v1567
      %v1569 = vrot.slane %v1564, 4
      %v1571 = vshrl.u32 %v1507, 16
      %v1573 = vrot.slane %v1571, 7
      %v1574 = vshll.u32 %v1507, 16
      %v1576 = vor.u32 %v1573, %v1574
      %v1577 = vrot.slane %v1573, 4
      %v1579 = vshrl.u32 %v1508, 16
      %v1581 = vrot.slane %v1579, 7
      %v1582 = vshll.u32 %v1508, 16
      %v1584 = vor.u32 %v1581, %v1582
      %v1585 = vsel %vm1518, %v1577, %v1584
      %v1586 = vrot.slane %v1581, 4
      %v1588 = vshrl.u32 %v1509, 16
      %v1590 = vrot.slane %v1588, 7
      %v1591 = vshll.u32 %v1509, 16
      %v1593 = vor.u32 %v1590, %v1591
      %v1594 = vrot.slane %v1590, 4
      %v1596 = vshrl.u32 %v1510, 16
      %v1598 = vrot.slane %v1596, 7
      %v1599 = vshll.u32 %v1510, 16
      %v1601 = vor.u32 %v1598, %v1599
      %v1602 = vsel %vm1518, %v1594, %v1601
      %v1603 = vrot.slane %v1598, 4
      %v1605 = vshrl.u32 %v1511, 16
      %v1607 = vrot.slane %v1605, 7
      %v1608 = vshll.u32 %v1511, 16
      %v1610 = vor.u32 %v1607, %v1608
      %v1611 = vrot.slane %v1607, 4
      %v1613 = vshrl.u32 %v1512, 16
      %v1615 = vrot.slane %v1613, 7
      %v1616 = vshll.u32 %v1512, 16
      %v1618 = vor.u32 %v1615, %v1616
      %v1619 = vsel %vm1518, %v1611, %v1618
      %v1620 = vrot.slane %v1615, 4
      %v1622 = vshrl.u32 %v1513, 16
      %v1624 = vrot.slane %v1622, 7
      %v1625 = vshll.u32 %v1513, 16
      %v1627 = vor.u32 %v1624, %v1625
      %v1628 = vrot.slane %v1624, 4
      %v1630 = vshrl.u32 %v1514, 16
      %v1632 = vrot.slane %v1630, 7
      %v1633 = vshll.u32 %v1514, 16
      %v1635 = vor.u32 %v1632, %v1633
      %v1636 = vsel %vm1518, %v1628, %v1635
      %v1637 = vrot.slane %v1632, 4
      %v1639 = vshrl.u32 %v1515, 16
      %v1641 = vrot.slane %v1639, 7
      %v1642 = vshll.u32 %v1515, 16
      %v1644 = vor.u32 %v1641, %v1642
      %v1645 = vrot.slane %v1641, 4
      %v1647 = vshrl.u32 %v1516, 16
      %v1649 = vrot.slane %v1647, 7
      %v1650 = vshll.u32 %v1516, 16
      %v1652 = vor.u32 %v1649, %v1650
      %v1653 = vsel %vm1518, %v1645, %v1652
      %v1654 = vrot.slane %v1649, 4
      %s1679 = scalar_lea.vmem [#allocation2], 12
      %vm1680 = vcmask 519168
      %vm1681 = vmand %vm1680, %vm390
      %v1682 = vld [vmem:[%s1679] sm:$0xf]
      %v1683 = vsel %vm1681, %v1525, %v1682
      %1684 = vst [vmem:[%s1679] sm:$0xf] %v1683
      %1685 = vst.msk [vmem:[%s1679 + $0x4] sm:$0xf] %vm324, %v1534
      %v1686 = vld [vmem:[%s1679 + $0x8] sm:$0x1]
      %v1687 = vsel %vm335, %v1535, %v1686
      %1688 = vst [vmem:[%s1679 + $0x8] sm:$0x1] %v1687
      %v1689 = vld [vmem:[%s1679 + $0xc] sm:$0xf]
      %v1690 = vsel %vm1681, %v1542, %v1689
      %1691 = vst [vmem:[%s1679 + $0xc] sm:$0xf] %v1690
      %1692 = vst.msk [vmem:[%s1679 + $0x10] sm:$0xf] %vm324, %v1551
      %v1693 = vld [vmem:[%s1679 + $0x14] sm:$0x1]
      %v1694 = vsel %vm335, %v1552, %v1693
      %1695 = vst [vmem:[%s1679 + $0x14] sm:$0x1] %v1694
      %v1696 = vld [vmem:[%s1679 + $0x18] sm:$0xf]
      %v1697 = vsel %vm1681, %v1559, %v1696
      %1698 = vst [vmem:[%s1679 + $0x18] sm:$0xf] %v1697
      %1699 = vst.msk [vmem:[%s1679 + $0x1c] sm:$0xf] %vm324, %v1568
      %v1700 = vld [vmem:[%s1679 + $0x20] sm:$0x1]
      %v1701 = vsel %vm335, %v1569, %v1700
      %1702 = vst [vmem:[%s1679 + $0x20] sm:$0x1] %v1701
      %v1703 = vld [vmem:[%s1679 + $0x24] sm:$0xf]
      %v1704 = vsel %vm1681, %v1576, %v1703
      %1705 = vst [vmem:[%s1679 + $0x24] sm:$0xf] %v1704
      %1706 = vst.msk [vmem:[%s1679 + $0x28] sm:$0xf] %vm324, %v1585
      %v1707 = vld [vmem:[%s1679 + $0x2c] sm:$0x1]
      %v1708 = vsel %vm335, %v1586, %v1707
      %1709 = vst [vmem:[%s1679 + $0x2c] sm:$0x1] %v1708
      %v1710 = vld [vmem:[%s1679 + $0x30] sm:$0xf]
      %v1711 = vsel %vm1681, %v1593, %v1710
      %1712 = vst [vmem:[%s1679 + $0x30] sm:$0xf] %v1711
      %1713 = vst.msk [vmem:[%s1679 + $0x34] sm:$0xf] %vm324, %v1602
      %v1714 = vld [vmem:[%s1679 + $0x38] sm:$0x1]
      %v1715 = vsel %vm335, %v1603, %v1714
      %1716 = vst [vmem:[%s1679 + $0x38] sm:$0x1] %v1715
      %v1717 = vld [vmem:[%s1679 + $0x3c] sm:$0xf]
      %v1718 = vsel %vm1681, %v1610, %v1717
      %1719 = vst [vmem:[%s1679 + $0x3c] sm:$0xf] %v1718
      %1720 = vst.msk [vmem:[%s1679 + $0x40] sm:$0xf] %vm324, %v1619
      %v1721 = vld [vmem:[%s1679 + $0x44] sm:$0x1]
      %v1722 = vsel %vm335, %v1620, %v1721
      %1723 = vst [vmem:[%s1679 + $0x44] sm:$0x1] %v1722
      %v1724 = vld [vmem:[%s1679 + $0x48] sm:$0xf]
      %v1725 = vsel %vm1681, %v1627, %v1724
      %1726 = vst [vmem:[%s1679 + $0x48] sm:$0xf] %v1725
      %1727 = vst.msk [vmem:[%s1679 + $0x4c] sm:$0xf] %vm324, %v1636
      %v1728 = vld [vmem:[%s1679 + $0x50] sm:$0x1]
      %v1729 = vsel %vm335, %v1637, %v1728
      %1730 = vst [vmem:[%s1679 + $0x50] sm:$0x1] %v1729
      %v1731 = vld [vmem:[%s1679 + $0x54] sm:$0xf]
      %v1732 = vsel %vm1681, %v1644, %v1731
      %1733 = vst [vmem:[%s1679 + $0x54] sm:$0xf] %v1732
      %1734 = vst.msk [vmem:[%s1679 + $0x58] sm:$0xf] %vm324, %v1653
      %v1735 = vld [vmem:[%s1679 + $0x5c] sm:$0x1]
      %v1736 = vsel %vm335, %v1654, %v1735
      %1737 = vst [vmem:[%s1679 + $0x5c] sm:$0x1] %v1736
      %v1738 = vld [vmem:[%s314 + $0x8] sm:$0xff]
      %v1739 = vlaneseq
      %v1740 = vshrl.u32 %v1739, 7
      %v1741 = vsub.s32 0, %v1740
      %v1742 = vrot.slane %v1738, %v1741
      %1744 = vbcast.lane.b32.xlu0 %v1742, 256
      %v1745 = vpop.permute.xlu0 %1744
      %s1747 = sor.u32 256, 8
      %1748 = vbcast.lane.b32.xlu0 %v1742, %s1747
      %v1749 = vpop.permute.xlu0 %1748
      %v1750 = vlaneseq
      %v1751 = vshrl.u32 %v1750, 7
      %v1752 = vsub.s32 1, %v1751
      %v1753 = vrot.slane %v1738, %v1752
      %1755 = vbcast.lane.b32.xlu0 %v1753, 256
      %v1756 = vpop.permute.xlu0 %1755
      %s1758 = sor.u32 256, 8
      %1759 = vbcast.lane.b32.xlu0 %v1753, %s1758
      %v1760 = vpop.permute.xlu0 %1759
      %v1761 = vlaneseq
      %v1762 = vshrl.u32 %v1761, 7
      %v1763 = vsub.s32 2, %v1762
      %v1764 = vrot.slane %v1738, %v1763
      %1766 = vbcast.lane.b32.xlu0 %v1764, 256
      %v1767 = vpop.permute.xlu0 %1766
      %s1769 = sor.u32 256, 8
      %1770 = vbcast.lane.b32.xlu0 %v1764, %s1769
      %v1771 = vpop.permute.xlu0 %1770
      %v1772 = vlaneseq
      %v1773 = vshrl.u32 %v1772, 7
      %v1774 = vsub.s32 3, %v1773
      %v1775 = vrot.slane %v1738, %v1774
      %1777 = vbcast.lane.b32.xlu0 %v1775, 256
      %v1778 = vpop.permute.xlu0 %1777
      %s1780 = sor.u32 256, 8
      %1781 = vbcast.lane.b32.xlu0 %v1775, %s1780
      %v1782 = vpop.permute.xlu0 %1781
      %v1783 = vlaneseq
      %v1784 = vshrl.u32 %v1783, 7
      %v1785 = vsub.s32 4, %v1784
      %v1786 = vrot.slane %v1738, %v1785
      %1788 = vbcast.lane.b32.xlu0 %v1786, 256
      %v1789 = vpop.permute.xlu0 %1788
      %s1791 = sor.u32 256, 8
      %1792 = vbcast.lane.b32.xlu0 %v1786, %s1791
      %v1793 = vpop.permute.xlu0 %1792
      %v1794 = vlaneseq
      %v1795 = vshrl.u32 %v1794, 7
      %v1796 = vsub.s32 5, %v1795
      %v1797 = vrot.slane %v1738, %v1796
      %1799 = vbcast.lane.b32.xlu0 %v1797, 256
      %v1800 = vpop.permute.xlu0 %1799
      %s1802 = sor.u32 256, 8
      %1803 = vbcast.lane.b32.xlu0 %v1797, %s1802
      %v1804 = vpop.permute.xlu0 %1803
      %v1805 = vlaneseq
      %v1806 = vshrl.u32 %v1805, 7
      %v1807 = vsub.s32 6, %v1806
      %v1808 = vrot.slane %v1738, %v1807
      %1810 = vbcast.lane.b32.xlu0 %v1808, 256
      %v1811 = vpop.permute.xlu0 %1810
      %s1813 = sor.u32 256, 8
      %1814 = vbcast.lane.b32.xlu0 %v1808, %s1813
      %v1815 = vpop.permute.xlu0 %1814
      %v1816 = vlaneseq
      %v1817 = vshrl.u32 %v1816, 7
      %v1818 = vsub.s32 7, %v1817
      %v1819 = vrot.slane %v1738, %v1818
      %1821 = vbcast.lane.b32.xlu0 %v1819, 256
      %v1822 = vpop.permute.xlu0 %1821
      %s1824 = sor.u32 256, 8
      %1825 = vbcast.lane.b32.xlu0 %v1819, %s1824
      %v1826 = vpop.permute.xlu0 %1825
      %v1827 = vld [vmem:[%s2] sm:$0x1]
      %v1828 = vlaneseq
      %v1829 = vshrl.u32 %v1828, 7
      %v1830 = vsub.s32 0, %v1829
      %v1831 = vrot.slane %v1827, %v1830
      %v1832 = vmul.f32 %v1745, %v1831
      %v1833 = vmul.f32 %v1749, %v1831
      %v1834 = vmul.f32 %v1756, %v1831
      %v1835 = vmul.f32 %v1760, %v1831
      %v1836 = vmul.f32 %v1767, %v1831
      %v1837 = vmul.f32 %v1771, %v1831
      %v1838 = vmul.f32 %v1778, %v1831
      %v1839 = vmul.f32 %v1782, %v1831
      %v1840 = vmul.f32 %v1789, %v1831
      %v1841 = vmul.f32 %v1793, %v1831
      %v1842 = vmul.f32 %v1800, %v1831
      %v1843 = vmul.f32 %v1804, %v1831
      %v1844 = vmul.f32 %v1811, %v1831
      %v1845 = vmul.f32 %v1815, %v1831
      %v1846 = vmul.f32 %v1822, %v1831
      %v1847 = vmul.f32 %v1826, %v1831
      %v1848 = vadd.f32 %v1832, 0.0
      %v1849 = vadd.f32 %v1833, 0.0
      %v1850 = vadd.f32 %v1834, 0.0
      %v1851 = vadd.f32 %v1835, 0.0
      %v1852 = vadd.f32 %v1836, 0.0
      %v1853 = vadd.f32 %v1837, 0.0
      %v1854 = vadd.f32 %v1838, 0.0
      %v1855 = vadd.f32 %v1839, 0.0
      %v1856 = vadd.f32 %v1840, 0.0
      %v1857 = vadd.f32 %v1841, 0.0
      %v1858 = vadd.f32 %v1842, 0.0
      %v1859 = vadd.f32 %v1843, 0.0
      %v1860 = vadd.f32 %v1844, 0.0
      %v1861 = vadd.f32 %v1845, 0.0
      %v1862 = vadd.f32 %v1846, 0.0
      %v1863 = vadd.f32 %v1847, 0.0
      %s1865 = sor.u32 256, 1
      %1866 = vbcast.lane.b32.xlu0 %v1742, %s1865
      %v1867 = vpop.permute.xlu0 %1866
      %s1869 = sor.u32 256, 9
      %1870 = vbcast.lane.b32.xlu0 %v1742, %s1869
      %v1871 = vpop.permute.xlu0 %1870
      %s1873 = sor.u32 256, 1
      %1874 = vbcast.lane.b32.xlu0 %v1753, %s1873
      %v1875 = vpop.permute.xlu0 %1874
      %s1877 = sor.u32 256, 9
      %1878 = vbcast.lane.b32.xlu0 %v1753, %s1877
      %v1879 = vpop.permute.xlu0 %1878
      %s1881 = sor.u32 256, 1
      %1882 = vbcast.lane.b32.xlu0 %v1764, %s1881
      %v1883 = vpop.permute.xlu0 %1882
      %s1885 = sor.u32 256, 9
      %1886 = vbcast.lane.b32.xlu0 %v1764, %s1885
      %v1887 = vpop.permute.xlu0 %1886
      %s1889 = sor.u32 256, 1
      %1890 = vbcast.lane.b32.xlu0 %v1775, %s1889
      %v1891 = vpop.permute.xlu0 %1890
      %s1893 = sor.u32 256, 9
      %1894 = vbcast.lane.b32.xlu0 %v1775, %s1893
      %v1895 = vpop.permute.xlu0 %1894
      %s1897 = sor.u32 256, 1
      %1898 = vbcast.lane.b32.xlu0 %v1786, %s1897
      %v1899 = vpop.permute.xlu0 %1898
      %s1901 = sor.u32 256, 9
      %1902 = vbcast.lane.b32.xlu0 %v1786, %s1901
      %v1903 = vpop.permute.xlu0 %1902
      %s1905 = sor.u32 256, 1
      %1906 = vbcast.lane.b32.xlu0 %v1797, %s1905
      %v1907 = vpop.permute.xlu0 %1906
      %s1909 = sor.u32 256, 9
      %1910 = vbcast.lane.b32.xlu0 %v1797, %s1909
      %v1911 = vpop.permute.xlu0 %1910
      %s1913 = sor.u32 256, 1
      %1914 = vbcast.lane.b32.xlu0 %v1808, %s1913
      %v1915 = vpop.permute.xlu0 %1914
      %s1917 = sor.u32 256, 9
      %1918 = vbcast.lane.b32.xlu0 %v1808, %s1917
      %v1919 = vpop.permute.xlu0 %1918
      %s1921 = sor.u32 256, 1
      %1922 = vbcast.lane.b32.xlu0 %v1819, %s1921
      %v1923 = vpop.permute.xlu0 %1922
      %s1925 = sor.u32 256, 9
      %1926 = vbcast.lane.b32.xlu0 %v1819, %s1925
      %v1927 = vpop.permute.xlu0 %1926
      %v1928 = vld [vmem:[%s2 + $0x1] sm:$0x1]
      %v1929 = vlaneseq
      %v1930 = vshrl.u32 %v1929, 7
      %v1931 = vsub.s32 0, %v1930
      %v1932 = vrot.slane %v1928, %v1931
      %v1933 = vmul.f32 %v1867, %v1932
      %v1934 = vmul.f32 %v1871, %v1932
      %v1935 = vmul.f32 %v1875, %v1932
      %v1936 = vmul.f32 %v1879, %v1932
      %v1937 = vmul.f32 %v1883, %v1932
      %v1938 = vmul.f32 %v1887, %v1932
      %v1939 = vmul.f32 %v1891, %v1932
      %v1940 = vmul.f32 %v1895, %v1932
      %v1941 = vmul.f32 %v1899, %v1932
      %v1942 = vmul.f32 %v1903, %v1932
      %v1943 = vmul.f32 %v1907, %v1932
      %v1944 = vmul.f32 %v1911, %v1932
      %v1945 = vmul.f32 %v1915, %v1932
      %v1946 = vmul.f32 %v1919, %v1932
      %v1947 = vmul.f32 %v1923, %v1932
      %v1948 = vmul.f32 %v1927, %v1932
      %v1949 = vadd.f32 %v1848, %v1933
      %v1950 = vadd.f32 %v1849, %v1934
      %v1951 = vadd.f32 %v1850, %v1935
      %v1952 = vadd.f32 %v1851, %v1936
      %v1953 = vadd.f32 %v1852, %v1937
      %v1954 = vadd.f32 %v1853, %v1938
      %v1955 = vadd.f32 %v1854, %v1939
      %v1956 = vadd.f32 %v1855, %v1940
      %v1957 = vadd.f32 %v1856, %v1941
      %v1958 = vadd.f32 %v1857, %v1942
      %v1959 = vadd.f32 %v1858, %v1943
      %v1960 = vadd.f32 %v1859, %v1944
      %v1961 = vadd.f32 %v1860, %v1945
      %v1962 = vadd.f32 %v1861, %v1946
      %v1963 = vadd.f32 %v1862, %v1947
      %v1964 = vadd.f32 %v1863, %v1948
      %s1966 = sor.u32 256, 2
      %1967 = vbcast.lane.b32.xlu0 %v1742, %s1966
      %v1968 = vpop.permute.xlu0 %1967
      %s1970 = sor.u32 256, 10
      %1971 = vbcast.lane.b32.xlu0 %v1742, %s1970
      %v1972 = vpop.permute.xlu0 %1971
      %s1974 = sor.u32 256, 2
      %1975 = vbcast.lane.b32.xlu0 %v1753, %s1974
      %v1976 = vpop.permute.xlu0 %1975
      %s1978 = sor.u32 256, 10
      %1979 = vbcast.lane.b32.xlu0 %v1753, %s1978
      %v1980 = vpop.permute.xlu0 %1979
      %s1982 = sor.u32 256, 2
      %1983 = vbcast.lane.b32.xlu0 %v1764, %s1982
      %v1984 = vpop.permute.xlu0 %1983
      %s1986 = sor.u32 256, 10
      %1987 = vbcast.lane.b32.xlu0 %v1764, %s1986
      %v1988 = vpop.permute.xlu0 %1987
      %s1990 = sor.u32 256, 2
      %1991 = vbcast.lane.b32.xlu0 %v1775, %s1990
      %v1992 = vpop.permute.xlu0 %1991
      %s1994 = sor.u32 256, 10
      %1995 = vbcast.lane.b32.xlu0 %v1775, %s1994
      %v1996 = vpop.permute.xlu0 %1995
      %s1998 = sor.u32 256, 2
      %1999 = vbcast.lane.b32.xlu0 %v1786, %s1998
      %v2000 = vpop.permute.xlu0 %1999
      %s2002 = sor.u32 256, 10
      %2003 = vbcast.lane.b32.xlu0 %v1786, %s2002
      %v2004 = vpop.permute.xlu0 %2003
      %s2006 = sor.u32 256, 2
      %2007 = vbcast.lane.b32.xlu0 %v1797, %s2006
      %v2008 = vpop.permute.xlu0 %2007
      %s2010 = sor.u32 256, 10
      %2011 = vbcast.lane.b32.xlu0 %v1797, %s2010
      %v2012 = vpop.permute.xlu0 %2011
      %s2014 = sor.u32 256, 2
      %2015 = vbcast.lane.b32.xlu0 %v1808, %s2014
      %v2016 = vpop.permute.xlu0 %2015
      %s2018 = sor.u32 256, 10
      %2019 = vbcast.lane.b32.xlu0 %v1808, %s2018
      %v2020 = vpop.permute.xlu0 %2019
      %s2022 = sor.u32 256, 2
      %2023 = vbcast.lane.b32.xlu0 %v1819, %s2022
      %v2024 = vpop.permute.xlu0 %2023
      %s2026 = sor.u32 256, 10
      %2027 = vbcast.lane.b32.xlu0 %v1819, %s2026
      %v2028 = vpop.permute.xlu0 %2027
      %v2029 = vld [vmem:[%s2 + $0x2] sm:$0x1]
      %v2030 = vlaneseq
      %v2031 = vshrl.u32 %v2030, 7
      %v2032 = vsub.s32 0, %v2031
      %v2033 = vrot.slane %v2029, %v2032
      %v2034 = vmul.f32 %v1968, %v2033
      %v2035 = vmul.f32 %v1972, %v2033
      %v2036 = vmul.f32 %v1976, %v2033
      %v2037 = vmul.f32 %v1980, %v2033
      %v2038 = vmul.f32 %v1984, %v2033
      %v2039 = vmul.f32 %v1988, %v2033
      %v2040 = vmul.f32 %v1992, %v2033
      %v2041 = vmul.f32 %v1996, %v2033
      %v2042 = vmul.f32 %v2000, %v2033
      %v2043 = vmul.f32 %v2004, %v2033
      %v2044 = vmul.f32 %v2008, %v2033
      %v2045 = vmul.f32 %v2012, %v2033
      %v2046 = vmul.f32 %v2016, %v2033
      %v2047 = vmul.f32 %v2020, %v2033
      %v2048 = vmul.f32 %v2024, %v2033
      %v2049 = vmul.f32 %v2028, %v2033
      %v2050 = vadd.f32 %v1949, %v2034
      %v2051 = vadd.f32 %v1950, %v2035
      %v2052 = vadd.f32 %v1951, %v2036
      %v2053 = vadd.f32 %v1952, %v2037
      %v2054 = vadd.f32 %v1953, %v2038
      %v2055 = vadd.f32 %v1954, %v2039
      %v2056 = vadd.f32 %v1955, %v2040
      %v2057 = vadd.f32 %v1956, %v2041
      %v2058 = vadd.f32 %v1957, %v2042
      %v2059 = vadd.f32 %v1958, %v2043
      %v2060 = vadd.f32 %v1959, %v2044
      %v2061 = vadd.f32 %v1960, %v2045
      %v2062 = vadd.f32 %v1961, %v2046
      %v2063 = vadd.f32 %v1962, %v2047
      %v2064 = vadd.f32 %v1963, %v2048
      %v2065 = vadd.f32 %v1964, %v2049
      %v2066 = vld [vmem:[%s314 + $0x9] sm:$0xff]
      %v2067 = vlaneseq
      %v2068 = vshrl.u32 %v2067, 7
      %v2069 = vsub.s32 0, %v2068
      %v2070 = vrot.slane %v2066, %v2069
      %2072 = vbcast.lane.b32.xlu0 %v2070, 256
      %v2073 = vpop.permute.xlu0 %2072
      %s2075 = sor.u32 256, 8
      %2076 = vbcast.lane.b32.xlu0 %v2070, %s2075
      %v2077 = vpop.permute.xlu0 %2076
      %v2078 = vlaneseq
      %v2079 = vshrl.u32 %v2078, 7
      %v2080 = vsub.s32 1, %v2079
      %v2081 = vrot.slane %v2066, %v2080
      %2083 = vbcast.lane.b32.xlu0 %v2081, 256
      %v2084 = vpop.permute.xlu0 %2083
      %s2086 = sor.u32 256, 8
      %2087 = vbcast.lane.b32.xlu0 %v2081, %s2086
      %v2088 = vpop.permute.xlu0 %2087
      %v2089 = vlaneseq
      %v2090 = vshrl.u32 %v2089, 7
      %v2091 = vsub.s32 2, %v2090
      %v2092 = vrot.slane %v2066, %v2091
      %2094 = vbcast.lane.b32.xlu0 %v2092, 256
      %v2095 = vpop.permute.xlu0 %2094
      %s2097 = sor.u32 256, 8
      %2098 = vbcast.lane.b32.xlu0 %v2092, %s2097
      %v2099 = vpop.permute.xlu0 %2098
      %v2100 = vlaneseq
      %v2101 = vshrl.u32 %v2100, 7
      %v2102 = vsub.s32 3, %v2101
      %v2103 = vrot.slane %v2066, %v2102
      %2105 = vbcast.lane.b32.xlu0 %v2103, 256
      %v2106 = vpop.permute.xlu0 %2105
      %s2108 = sor.u32 256, 8
      %2109 = vbcast.lane.b32.xlu0 %v2103, %s2108
      %v2110 = vpop.permute.xlu0 %2109
      %v2111 = vlaneseq
      %v2112 = vshrl.u32 %v2111, 7
      %v2113 = vsub.s32 4, %v2112
      %v2114 = vrot.slane %v2066, %v2113
      %2116 = vbcast.lane.b32.xlu0 %v2114, 256
      %v2117 = vpop.permute.xlu0 %2116
      %s2119 = sor.u32 256, 8
      %2120 = vbcast.lane.b32.xlu0 %v2114, %s2119
      %v2121 = vpop.permute.xlu0 %2120
      %v2122 = vlaneseq
      %v2123 = vshrl.u32 %v2122, 7
      %v2124 = vsub.s32 5, %v2123
      %v2125 = vrot.slane %v2066, %v2124
      %2127 = vbcast.lane.b32.xlu0 %v2125, 256
      %v2128 = vpop.permute.xlu0 %2127
      %s2130 = sor.u32 256, 8
      %2131 = vbcast.lane.b32.xlu0 %v2125, %s2130
      %v2132 = vpop.permute.xlu0 %2131
      %v2133 = vlaneseq
      %v2134 = vshrl.u32 %v2133, 7
      %v2135 = vsub.s32 6, %v2134
      %v2136 = vrot.slane %v2066, %v2135
      %2138 = vbcast.lane.b32.xlu0 %v2136, 256
      %v2139 = vpop.permute.xlu0 %2138
      %s2141 = sor.u32 256, 8
      %2142 = vbcast.lane.b32.xlu0 %v2136, %s2141
      %v2143 = vpop.permute.xlu0 %2142
      %v2144 = vlaneseq
      %v2145 = vshrl.u32 %v2144, 7
      %v2146 = vsub.s32 7, %v2145
      %v2147 = vrot.slane %v2066, %v2146
      %2149 = vbcast.lane.b32.xlu0 %v2147, 256
      %v2150 = vpop.permute.xlu0 %2149
      %s2152 = sor.u32 256, 8
      %2153 = vbcast.lane.b32.xlu0 %v2147, %s2152
      %v2154 = vpop.permute.xlu0 %2153
      %v2155 = vld [vmem:[%s2 + $0x3] sm:$0x1]
      %v2156 = vlaneseq
      %v2157 = vshrl.u32 %v2156, 7
      %v2158 = vsub.s32 0, %v2157
      %v2159 = vrot.slane %v2155, %v2158
      %v2160 = vmul.f32 %v2073, %v2159
      %v2161 = vmul.f32 %v2077, %v2159
      %v2162 = vmul.f32 %v2084, %v2159
      %v2163 = vmul.f32 %v2088, %v2159
      %v2164 = vmul.f32 %v2095, %v2159
      %v2165 = vmul.f32 %v2099, %v2159
      %v2166 = vmul.f32 %v2106, %v2159
      %v2167 = vmul.f32 %v2110, %v2159
      %v2168 = vmul.f32 %v2117, %v2159
      %v2169 = vmul.f32 %v2121, %v2159
      %v2170 = vmul.f32 %v2128, %v2159
      %v2171 = vmul.f32 %v2132, %v2159
      %v2172 = vmul.f32 %v2139, %v2159
      %v2173 = vmul.f32 %v2143, %v2159
      %v2174 = vmul.f32 %v2150, %v2159
      %v2175 = vmul.f32 %v2154, %v2159
      %v2176 = vadd.f32 %v2050, %v2160
      %v2177 = vadd.f32 %v2051, %v2161
      %v2178 = vadd.f32 %v2052, %v2162
      %v2179 = vadd.f32 %v2053, %v2163
      %v2180 = vadd.f32 %v2054, %v2164
      %v2181 = vadd.f32 %v2055, %v2165
      %v2182 = vadd.f32 %v2056, %v2166
      %v2183 = vadd.f32 %v2057, %v2167
      %v2184 = vadd.f32 %v2058, %v2168
      %v2185 = vadd.f32 %v2059, %v2169
      %v2186 = vadd.f32 %v2060, %v2170
      %v2187 = vadd.f32 %v2061, %v2171
      %v2188 = vadd.f32 %v2062, %v2172
      %v2189 = vadd.f32 %v2063, %v2173
      %v2190 = vadd.f32 %v2064, %v2174
      %v2191 = vadd.f32 %v2065, %v2175
      %s2193 = sor.u32 256, 1
      %2194 = vbcast.lane.b32.xlu0 %v2070, %s2193
      %v2195 = vpop.permute.xlu0 %2194
      %s2197 = sor.u32 256, 9
      %2198 = vbcast.lane.b32.xlu0 %v2070, %s2197
      %v2199 = vpop.permute.xlu0 %2198
      %s2201 = sor.u32 256, 1
      %2202 = vbcast.lane.b32.xlu0 %v2081, %s2201
      %v2203 = vpop.permute.xlu0 %2202
      %s2205 = sor.u32 256, 9
      %2206 = vbcast.lane.b32.xlu0 %v2081, %s2205
      %v2207 = vpop.permute.xlu0 %2206
      %s2209 = sor.u32 256, 1
      %2210 = vbcast.lane.b32.xlu0 %v2092, %s2209
      %v2211 = vpop.permute.xlu0 %2210
      %s2213 = sor.u32 256, 9
      %2214 = vbcast.lane.b32.xlu0 %v2092, %s2213
      %v2215 = vpop.permute.xlu0 %2214
      %s2217 = sor.u32 256, 1
      %2218 = vbcast.lane.b32.xlu0 %v2103, %s2217
      %v2219 = vpop.permute.xlu0 %2218
      %s2221 = sor.u32 256, 9
      %2222 = vbcast.lane.b32.xlu0 %v2103, %s2221
      %v2223 = vpop.permute.xlu0 %2222
      %s2225 = sor.u32 256, 1
      %2226 = vbcast.lane.b32.xlu0 %v2114, %s2225
      %v2227 = vpop.permute.xlu0 %2226
      %s2229 = sor.u32 256, 9
      %2230 = vbcast.lane.b32.xlu0 %v2114, %s2229
      %v2231 = vpop.permute.xlu0 %2230
      %s2233 = sor.u32 256, 1
      %2234 = vbcast.lane.b32.xlu0 %v2125, %s2233
      %v2235 = vpop.permute.xlu0 %2234
      %s2237 = sor.u32 256, 9
      %2238 = vbcast.lane.b32.xlu0 %v2125, %s2237
      %v2239 = vpop.permute.xlu0 %2238
      %s2241 = sor.u32 256, 1
      %2242 = vbcast.lane.b32.xlu0 %v2136, %s2241
      %v2243 = vpop.permute.xlu0 %2242
      %s2245 = sor.u32 256, 9
      %2246 = vbcast.lane.b32.xlu0 %v2136, %s2245
      %v2247 = vpop.permute.xlu0 %2246
      %s2249 = sor.u32 256, 1
      %2250 = vbcast.lane.b32.xlu0 %v2147, %s2249
      %v2251 = vpop.permute.xlu0 %2250
      %s2253 = sor.u32 256, 9
      %2254 = vbcast.lane.b32.xlu0 %v2147, %s2253
      %v2255 = vpop.permute.xlu0 %2254
      %v2256 = vld [vmem:[%s2 + $0x4] sm:$0x1]
      %v2257 = vlaneseq
      %v2258 = vshrl.u32 %v2257, 7
      %v2259 = vsub.s32 0, %v2258
      %v2260 = vrot.slane %v2256, %v2259
      %v2261 = vmul.f32 %v2195, %v2260
      %v2262 = vmul.f32 %v2199, %v2260
      %v2263 = vmul.f32 %v2203, %v2260
      %v2264 = vmul.f32 %v2207, %v2260
      %v2265 = vmul.f32 %v2211, %v2260
      %v2266 = vmul.f32 %v2215, %v2260
      %v2267 = vmul.f32 %v2219, %v2260
      %v2268 = vmul.f32 %v2223, %v2260
      %v2269 = vmul.f32 %v2227, %v2260
      %v2270 = vmul.f32 %v2231, %v2260
      %v2271 = vmul.f32 %v2235, %v2260
      %v2272 = vmul.f32 %v2239, %v2260
      %v2273 = vmul.f32 %v2243, %v2260
      %v2274 = vmul.f32 %v2247, %v2260
      %v2275 = vmul.f32 %v2251, %v2260
      %v2276 = vmul.f32 %v2255, %v2260
      %v2277 = vadd.f32 %v2176, %v2261
      %v2278 = vadd.f32 %v2177, %v2262
      %v2279 = vadd.f32 %v2178, %v2263
      %v2280 = vadd.f32 %v2179, %v2264
      %v2281 = vadd.f32 %v2180, %v2265
      %v2282 = vadd.f32 %v2181, %v2266
      %v2283 = vadd.f32 %v2182, %v2267
      %v2284 = vadd.f32 %v2183, %v2268
      %v2285 = vadd.f32 %v2184, %v2269
      %v2286 = vadd.f32 %v2185, %v2270
      %v2287 = vadd.f32 %v2186, %v2271
      %v2288 = vadd.f32 %v2187, %v2272
      %v2289 = vadd.f32 %v2188, %v2273
      %v2290 = vadd.f32 %v2189, %v2274
      %v2291 = vadd.f32 %v2190, %v2275
      %v2292 = vadd.f32 %v2191, %v2276
      %s2294 = sor.u32 256, 2
      %2295 = vbcast.lane.b32.xlu0 %v2070, %s2294
      %v2296 = vpop.permute.xlu0 %2295
      %s2298 = sor.u32 256, 10
      %2299 = vbcast.lane.b32.xlu0 %v2070, %s2298
      %v2300 = vpop.permute.xlu0 %2299
      %s2302 = sor.u32 256, 2
      %2303 = vbcast.lane.b32.xlu0 %v2081, %s2302
      %v2304 = vpop.permute.xlu0 %2303
      %s2306 = sor.u32 256, 10
      %2307 = vbcast.lane.b32.xlu0 %v2081, %s2306
      %v2308 = vpop.permute.xlu0 %2307
      %s2310 = sor.u32 256, 2
      %2311 = vbcast.lane.b32.xlu0 %v2092, %s2310
      %v2312 = vpop.permute.xlu0 %2311
      %s2314 = sor.u32 256, 10
      %2315 = vbcast.lane.b32.xlu0 %v2092, %s2314
      %v2316 = vpop.permute.xlu0 %2315
      %s2318 = sor.u32 256, 2
      %2319 = vbcast.lane.b32.xlu0 %v2103, %s2318
      %v2320 = vpop.permute.xlu0 %2319
      %s2322 = sor.u32 256, 10
      %2323 = vbcast.lane.b32.xlu0 %v2103, %s2322
      %v2324 = vpop.permute.xlu0 %2323
      %s2326 = sor.u32 256, 2
      %2327 = vbcast.lane.b32.xlu0 %v2114, %s2326
      %v2328 = vpop.permute.xlu0 %2327
      %s2330 = sor.u32 256, 10
      %2331 = vbcast.lane.b32.xlu0 %v2114, %s2330
      %v2332 = vpop.permute.xlu0 %2331
      %s2334 = sor.u32 256, 2
      %2335 = vbcast.lane.b32.xlu0 %v2125, %s2334
      %v2336 = vpop.permute.xlu0 %2335
      %s2338 = sor.u32 256, 10
      %2339 = vbcast.lane.b32.xlu0 %v2125, %s2338
      %v2340 = vpop.permute.xlu0 %2339
      %s2342 = sor.u32 256, 2
      %2343 = vbcast.lane.b32.xlu0 %v2136, %s2342
      %v2344 = vpop.permute.xlu0 %2343
      %s2346 = sor.u32 256, 10
      %2347 = vbcast.lane.b32.xlu0 %v2136, %s2346
      %v2348 = vpop.permute.xlu0 %2347
      %s2350 = sor.u32 256, 2
      %2351 = vbcast.lane.b32.xlu0 %v2147, %s2350
      %v2352 = vpop.permute.xlu0 %2351
      %s2354 = sor.u32 256, 10
      %2355 = vbcast.lane.b32.xlu0 %v2147, %s2354
      %v2356 = vpop.permute.xlu0 %2355
      %v2357 = vld [vmem:[%s2 + $0x5] sm:$0x1]
      %v2358 = vlaneseq
      %v2359 = vshrl.u32 %v2358, 7
      %v2360 = vsub.s32 0, %v2359
      %v2361 = vrot.slane %v2357, %v2360
      %v2362 = vmul.f32 %v2296, %v2361
      %v2363 = vmul.f32 %v2300, %v2361
      %v2364 = vmul.f32 %v2304, %v2361
      %v2365 = vmul.f32 %v2308, %v2361
      %v2366 = vmul.f32 %v2312, %v2361
      %v2367 = vmul.f32 %v2316, %v2361
      %v2368 = vmul.f32 %v2320, %v2361
      %v2369 = vmul.f32 %v2324, %v2361
      %v2370 = vmul.f32 %v2328, %v2361
      %v2371 = vmul.f32 %v2332, %v2361
      %v2372 = vmul.f32 %v2336, %v2361
      %v2373 = vmul.f32 %v2340, %v2361
      %v2374 = vmul.f32 %v2344, %v2361
      %v2375 = vmul.f32 %v2348, %v2361
      %v2376 = vmul.f32 %v2352, %v2361
      %v2377 = vmul.f32 %v2356, %v2361
      %v2378 = vadd.f32 %v2277, %v2362
      %v2379 = vadd.f32 %v2278, %v2363
      %v2380 = vadd.f32 %v2279, %v2364
      %v2381 = vadd.f32 %v2280, %v2365
      %v2382 = vadd.f32 %v2281, %v2366
      %v2383 = vadd.f32 %v2282, %v2367
      %v2384 = vadd.f32 %v2283, %v2368
      %v2385 = vadd.f32 %v2284, %v2369
      %v2386 = vadd.f32 %v2285, %v2370
      %v2387 = vadd.f32 %v2286, %v2371
      %v2388 = vadd.f32 %v2287, %v2372
      %v2389 = vadd.f32 %v2288, %v2373
      %v2390 = vadd.f32 %v2289, %v2374
      %v2391 = vadd.f32 %v2290, %v2375
      %v2392 = vadd.f32 %v2291, %v2376
      %v2393 = vadd.f32 %v2292, %v2377
      %v2394 = vld [vmem:[%s314 + $0xa] sm:$0xff]
      %v2395 = vlaneseq
      %v2396 = vshrl.u32 %v2395, 7
      %v2397 = vsub.s32 0, %v2396
      %v2398 = vrot.slane %v2394, %v2397
      %2400 = vbcast.lane.b32.xlu0 %v2398, 256
      %v2401 = vpop.permute.xlu0 %2400
      %s2403 = sor.u32 256, 8
      %2404 = vbcast.lane.b32.xlu0 %v2398, %s2403
      %v2405 = vpop.permute.xlu0 %2404
      %v2406 = vlaneseq
      %v2407 = vshrl.u32 %v2406, 7
      %v2408 = vsub.s32 1, %v2407
      %v2409 = vrot.slane %v2394, %v2408
      %2411 = vbcast.lane.b32.xlu0 %v2409, 256
      %v2412 = vpop.permute.xlu0 %2411
      %s2414 = sor.u32 256, 8
      %2415 = vbcast.lane.b32.xlu0 %v2409, %s2414
      %v2416 = vpop.permute.xlu0 %2415
      %v2417 = vlaneseq
      %v2418 = vshrl.u32 %v2417, 7
      %v2419 = vsub.s32 2, %v2418
      %v2420 = vrot.slane %v2394, %v2419
      %2422 = vbcast.lane.b32.xlu0 %v2420, 256
      %v2423 = vpop.permute.xlu0 %2422
      %s2425 = sor.u32 256, 8
      %2426 = vbcast.lane.b32.xlu0 %v2420, %s2425
      %v2427 = vpop.permute.xlu0 %2426
      %v2428 = vlaneseq
      %v2429 = vshrl.u32 %v2428, 7
      %v2430 = vsub.s32 3, %v2429
      %v2431 = vrot.slane %v2394, %v2430
      %2433 = vbcast.lane.b32.xlu0 %v2431, 256
      %v2434 = vpop.permute.xlu0 %2433
      %s2436 = sor.u32 256, 8
      %2437 = vbcast.lane.b32.xlu0 %v2431, %s2436
      %v2438 = vpop.permute.xlu0 %2437
      %v2439 = vlaneseq
      %v2440 = vshrl.u32 %v2439, 7
      %v2441 = vsub.s32 4, %v2440
      %v2442 = vrot.slane %v2394, %v2441
      %2444 = vbcast.lane.b32.xlu0 %v2442, 256
      %v2445 = vpop.permute.xlu0 %2444
      %s2447 = sor.u32 256, 8
      %2448 = vbcast.lane.b32.xlu0 %v2442, %s2447
      %v2449 = vpop.permute.xlu0 %2448
      %v2450 = vlaneseq
      %v2451 = vshrl.u32 %v2450, 7
      %v2452 = vsub.s32 5, %v2451
      %v2453 = vrot.slane %v2394, %v2452
      %2455 = vbcast.lane.b32.xlu0 %v2453, 256
      %v2456 = vpop.permute.xlu0 %2455
      %s2458 = sor.u32 256, 8
      %2459 = vbcast.lane.b32.xlu0 %v2453, %s2458
      %v2460 = vpop.permute.xlu0 %2459
      %v2461 = vlaneseq
      %v2462 = vshrl.u32 %v2461, 7
      %v2463 = vsub.s32 6, %v2462
      %v2464 = vrot.slane %v2394, %v2463
      %2466 = vbcast.lane.b32.xlu0 %v2464, 256
      %v2467 = vpop.permute.xlu0 %2466
      %s2469 = sor.u32 256, 8
      %2470 = vbcast.lane.b32.xlu0 %v2464, %s2469
      %v2471 = vpop.permute.xlu0 %2470
      %v2472 = vlaneseq
      %v2473 = vshrl.u32 %v2472, 7
      %v2474 = vsub.s32 7, %v2473
      %v2475 = vrot.slane %v2394, %v2474
      %2477 = vbcast.lane.b32.xlu0 %v2475, 256
      %v2478 = vpop.permute.xlu0 %2477
      %s2480 = sor.u32 256, 8
      %2481 = vbcast.lane.b32.xlu0 %v2475, %s2480
      %v2482 = vpop.permute.xlu0 %2481
      %v2483 = vld [vmem:[%s2 + $0x6] sm:$0x1]
      %v2484 = vlaneseq
      %v2485 = vshrl.u32 %v2484, 7
      %v2486 = vsub.s32 0, %v2485
      %v2487 = vrot.slane %v2483, %v2486
      %v2488 = vmul.f32 %v2401, %v2487
      %v2489 = vmul.f32 %v2405, %v2487
      %v2490 = vmul.f32 %v2412, %v2487
      %v2491 = vmul.f32 %v2416, %v2487
      %v2492 = vmul.f32 %v2423, %v2487
      %v2493 = vmul.f32 %v2427, %v2487
      %v2494 = vmul.f32 %v2434, %v2487
      %v2495 = vmul.f32 %v2438, %v2487
      %v2496 = vmul.f32 %v2445, %v2487
      %v2497 = vmul.f32 %v2449, %v2487
      %v2498 = vmul.f32 %v2456, %v2487
      %v2499 = vmul.f32 %v2460, %v2487
      %v2500 = vmul.f32 %v2467, %v2487
      %v2501 = vmul.f32 %v2471, %v2487
      %v2502 = vmul.f32 %v2478, %v2487
      %v2503 = vmul.f32 %v2482, %v2487
      %v2504 = vadd.f32 %v2378, %v2488
      %v2505 = vadd.f32 %v2379, %v2489
      %v2506 = vadd.f32 %v2380, %v2490
      %v2507 = vadd.f32 %v2381, %v2491
      %v2508 = vadd.f32 %v2382, %v2492
      %v2509 = vadd.f32 %v2383, %v2493
      %v2510 = vadd.f32 %v2384, %v2494
      %v2511 = vadd.f32 %v2385, %v2495
      %v2512 = vadd.f32 %v2386, %v2496
      %v2513 = vadd.f32 %v2387, %v2497
      %v2514 = vadd.f32 %v2388, %v2498
      %v2515 = vadd.f32 %v2389, %v2499
      %v2516 = vadd.f32 %v2390, %v2500
      %v2517 = vadd.f32 %v2391, %v2501
      %v2518 = vadd.f32 %v2392, %v2502
      %v2519 = vadd.f32 %v2393, %v2503
      %s2521 = sor.u32 256, 1
      %2522 = vbcast.lane.b32.xlu0 %v2398, %s2521
      %v2523 = vpop.permute.xlu0 %2522
      %s2525 = sor.u32 256, 9
      %2526 = vbcast.lane.b32.xlu0 %v2398, %s2525
      %v2527 = vpop.permute.xlu0 %2526
      %s2529 = sor.u32 256, 1
      %2530 = vbcast.lane.b32.xlu0 %v2409, %s2529
      %v2531 = vpop.permute.xlu0 %2530
      %s2533 = sor.u32 256, 9
      %2534 = vbcast.lane.b32.xlu0 %v2409, %s2533
      %v2535 = vpop.permute.xlu0 %2534
      %s2537 = sor.u32 256, 1
      %2538 = vbcast.lane.b32.xlu0 %v2420, %s2537
      %v2539 = vpop.permute.xlu0 %2538
      %s2541 = sor.u32 256, 9
      %2542 = vbcast.lane.b32.xlu0 %v2420, %s2541
      %v2543 = vpop.permute.xlu0 %2542
      %s2545 = sor.u32 256, 1
      %2546 = vbcast.lane.b32.xlu0 %v2431, %s2545
      %v2547 = vpop.permute.xlu0 %2546
      %s2549 = sor.u32 256, 9
      %2550 = vbcast.lane.b32.xlu0 %v2431, %s2549
      %v2551 = vpop.permute.xlu0 %2550
      %s2553 = sor.u32 256, 1
      %2554 = vbcast.lane.b32.xlu0 %v2442, %s2553
      %v2555 = vpop.permute.xlu0 %2554
      %s2557 = sor.u32 256, 9
      %2558 = vbcast.lane.b32.xlu0 %v2442, %s2557
      %v2559 = vpop.permute.xlu0 %2558
      %s2561 = sor.u32 256, 1
      %2562 = vbcast.lane.b32.xlu0 %v2453, %s2561
      %v2563 = vpop.permute.xlu0 %2562
      %s2565 = sor.u32 256, 9
      %2566 = vbcast.lane.b32.xlu0 %v2453, %s2565
      %v2567 = vpop.permute.xlu0 %2566
      %s2569 = sor.u32 256, 1
      %2570 = vbcast.lane.b32.xlu0 %v2464, %s2569
      %v2571 = vpop.permute.xlu0 %2570
      %s2573 = sor.u32 256, 9
      %2574 = vbcast.lane.b32.xlu0 %v2464, %s2573
      %v2575 = vpop.permute.xlu0 %2574
      %s2577 = sor.u32 256, 1
      %2578 = vbcast.lane.b32.xlu0 %v2475, %s2577
      %v2579 = vpop.permute.xlu0 %2578
      %s2581 = sor.u32 256, 9
      %2582 = vbcast.lane.b32.xlu0 %v2475, %s2581
      %v2583 = vpop.permute.xlu0 %2582
      %v2584 = vld [vmem:[%s2 + $0x7] sm:$0x1]
      %v2585 = vlaneseq
      %v2586 = vshrl.u32 %v2585, 7
      %v2587 = vsub.s32 0, %v2586
      %v2588 = vrot.slane %v2584, %v2587
      %v2589 = vmul.f32 %v2523, %v2588
      %v2590 = vmul.f32 %v2527, %v2588
      %v2591 = vmul.f32 %v2531, %v2588
      %v2592 = vmul.f32 %v2535, %v2588
      %v2593 = vmul.f32 %v2539, %v2588
      %v2594 = vmul.f32 %v2543, %v2588
      %v2595 = vmul.f32 %v2547, %v2588
      %v2596 = vmul.f32 %v2551, %v2588
      %v2597 = vmul.f32 %v2555, %v2588
      %v2598 = vmul.f32 %v2559, %v2588
      %v2599 = vmul.f32 %v2563, %v2588
      %v2600 = vmul.f32 %v2567, %v2588
      %v2601 = vmul.f32 %v2571, %v2588
      %v2602 = vmul.f32 %v2575, %v2588
      %v2603 = vmul.f32 %v2579, %v2588
      %v2604 = vmul.f32 %v2583, %v2588
      %v2605 = vadd.f32 %v2504, %v2589
      %v2606 = vadd.f32 %v2505, %v2590
      %v2607 = vadd.f32 %v2506, %v2591
      %v2608 = vadd.f32 %v2507, %v2592
      %v2609 = vadd.f32 %v2508, %v2593
      %v2610 = vadd.f32 %v2509, %v2594
      %v2611 = vadd.f32 %v2510, %v2595
      %v2612 = vadd.f32 %v2511, %v2596
      %v2613 = vadd.f32 %v2512, %v2597
      %v2614 = vadd.f32 %v2513, %v2598
      %v2615 = vadd.f32 %v2514, %v2599
      %v2616 = vadd.f32 %v2515, %v2600
      %v2617 = vadd.f32 %v2516, %v2601
      %v2618 = vadd.f32 %v2517, %v2602
      %v2619 = vadd.f32 %v2518, %v2603
      %v2620 = vadd.f32 %v2519, %v2604
      %s2622 = sor.u32 256, 2
      %2623 = vbcast.lane.b32.xlu0 %v2398, %s2622
      %v2624 = vpop.permute.xlu0 %2623
      %s2626 = sor.u32 256, 10
      %2627 = vbcast.lane.b32.xlu0 %v2398, %s2626
      %v2628 = vpop.permute.xlu0 %2627
      %s2630 = sor.u32 256, 2
      %2631 = vbcast.lane.b32.xlu0 %v2409, %s2630
      %v2632 = vpop.permute.xlu0 %2631
      %s2634 = sor.u32 256, 10
      %2635 = vbcast.lane.b32.xlu0 %v2409, %s2634
      %v2636 = vpop.permute.xlu0 %2635
      %s2638 = sor.u32 256, 2
      %2639 = vbcast.lane.b32.xlu0 %v2420, %s2638
      %v2640 = vpop.permute.xlu0 %2639
      %s2642 = sor.u32 256, 10
      %2643 = vbcast.lane.b32.xlu0 %v2420, %s2642
      %v2644 = vpop.permute.xlu0 %2643
      %s2646 = sor.u32 256, 2
      %2647 = vbcast.lane.b32.xlu0 %v2431, %s2646
      %v2648 = vpop.permute.xlu0 %2647
      %s2650 = sor.u32 256, 10
      %2651 = vbcast.lane.b32.xlu0 %v2431, %s2650
      %v2652 = vpop.permute.xlu0 %2651
      %s2654 = sor.u32 256, 2
      %2655 = vbcast.lane.b32.xlu0 %v2442, %s2654
      %v2656 = vpop.permute.xlu0 %2655
      %s2658 = sor.u32 256, 10
      %2659 = vbcast.lane.b32.xlu0 %v2442, %s2658
      %v2660 = vpop.permute.xlu0 %2659
      %s2662 = sor.u32 256, 2
      %2663 = vbcast.lane.b32.xlu0 %v2453, %s2662
      %v2664 = vpop.permute.xlu0 %2663
      %s2666 = sor.u32 256, 10
      %2667 = vbcast.lane.b32.xlu0 %v2453, %s2666
      %v2668 = vpop.permute.xlu0 %2667
      %s2670 = sor.u32 256, 2
      %2671 = vbcast.lane.b32.xlu0 %v2464, %s2670
      %v2672 = vpop.permute.xlu0 %2671
      %s2674 = sor.u32 256, 10
      %2675 = vbcast.lane.b32.xlu0 %v2464, %s2674
      %v2676 = vpop.permute.xlu0 %2675
      %s2678 = sor.u32 256, 2
      %2679 = vbcast.lane.b32.xlu0 %v2475, %s2678
      %v2680 = vpop.permute.xlu0 %2679
      %s2682 = sor.u32 256, 10
      %2683 = vbcast.lane.b32.xlu0 %v2475, %s2682
      %v2684 = vpop.permute.xlu0 %2683
      %v2685 = vld [vmem:[%s2 + $0x8] sm:$0x1]
      %v2686 = vlaneseq
      %v2687 = vshrl.u32 %v2686, 7
      %v2688 = vsub.s32 0, %v2687
      %v2689 = vrot.slane %v2685, %v2688
      %v2690 = vmul.f32 %v2624, %v2689
      %v2691 = vmul.f32 %v2628, %v2689
      %v2692 = vmul.f32 %v2632, %v2689
      %v2693 = vmul.f32 %v2636, %v2689
      %v2694 = vmul.f32 %v2640, %v2689
      %v2695 = vmul.f32 %v2644, %v2689
      %v2696 = vmul.f32 %v2648, %v2689
      %v2697 = vmul.f32 %v2652, %v2689
      %v2698 = vmul.f32 %v2656, %v2689
      %v2699 = vmul.f32 %v2660, %v2689
      %v2700 = vmul.f32 %v2664, %v2689
      %v2701 = vmul.f32 %v2668, %v2689
      %v2702 = vmul.f32 %v2672, %v2689
      %v2703 = vmul.f32 %v2676, %v2689
      %v2704 = vmul.f32 %v2680, %v2689
      %v2705 = vmul.f32 %v2684, %v2689
      %v2706 = vadd.f32 %v2605, %v2690
      %v2707 = vadd.f32 %v2606, %v2691
      %v2708 = vadd.f32 %v2607, %v2692
      %v2709 = vadd.f32 %v2608, %v2693
      %v2710 = vadd.f32 %v2609, %v2694
      %v2711 = vadd.f32 %v2610, %v2695
      %v2712 = vadd.f32 %v2611, %v2696
      %v2713 = vadd.f32 %v2612, %v2697
      %v2714 = vadd.f32 %v2613, %v2698
      %v2715 = vadd.f32 %v2614, %v2699
      %v2716 = vadd.f32 %v2615, %v2700
      %v2717 = vadd.f32 %v2616, %v2701
      %v2718 = vadd.f32 %v2617, %v2702
      %v2719 = vadd.f32 %v2618, %v2703
      %v2720 = vadd.f32 %v2619, %v2704
      %v2721 = vadd.f32 %v2620, %v2705
      %v2722 = vld [vmem:[%s3] sm:$0x1]
      %v2724 = vlaneseq
      %v2725 = vshrl.u32 %v2724, 7
      %v2726 = vsub.s32 0, %v2725
      %v2727 = vrot.slane %v2722, %v2726
      %v2729 = vadd.f32 %v2706, %v2727
      %v2730 = vadd.f32 %v2707, %v2727
      %v2731 = vadd.f32 %v2708, %v2727
      %v2732 = vadd.f32 %v2709, %v2727
      %v2733 = vadd.f32 %v2710, %v2727
      %v2734 = vadd.f32 %v2711, %v2727
      %v2735 = vadd.f32 %v2712, %v2727
      %v2736 = vadd.f32 %v2713, %v2727
      %v2737 = vadd.f32 %v2714, %v2727
      %v2738 = vadd.f32 %v2715, %v2727
      %v2739 = vadd.f32 %v2716, %v2727
      %v2740 = vadd.f32 %v2717, %v2727
      %v2741 = vadd.f32 %v2718, %v2727
      %v2742 = vadd.f32 %v2719, %v2727
      %v2743 = vadd.f32 %v2720, %v2727
      %v2744 = vadd.f32 %v2721, %v2727
      %v2745 = vmax.f32 %v2729, 0.0
      %v2746 = vmax.f32 %v2730, 0.0
      %v2747 = vmax.f32 %v2731, 0.0
      %v2748 = vmax.f32 %v2732, 0.0
      %v2749 = vmax.f32 %v2733, 0.0
      %v2750 = vmax.f32 %v2734, 0.0
      %v2751 = vmax.f32 %v2735, 0.0
      %v2752 = vmax.f32 %v2736, 0.0
      %v2753 = vmax.f32 %v2737, 0.0
      %v2754 = vmax.f32 %v2738, 0.0
      %v2755 = vmax.f32 %v2739, 0.0
      %v2756 = vmax.f32 %v2740, 0.0
      %v2757 = vmax.f32 %v2741, 0.0
      %v2758 = vmax.f32 %v2742, 0.0
      %v2759 = vmax.f32 %v2743, 0.0
      %v2760 = vmax.f32 %v2744, 0.0
      %v2761 = vpack.c.bf16 %v2746, %v2745
      %v2762 = vpack.c.bf16 %v2748, %v2747
      %v2763 = vpack.c.bf16 %v2750, %v2749
      %v2764 = vpack.c.bf16 %v2752, %v2751
      %v2765 = vpack.c.bf16 %v2754, %v2753
      %v2766 = vpack.c.bf16 %v2756, %v2755
      %v2767 = vpack.c.bf16 %v2758, %v2757
      %v2768 = vpack.c.bf16 %v2760, %v2759
      %v2777 = vunpack.c.l.b16 %v2761
      %v2778 = vunpack.c.h.b16 %v2761
      %v2779 = vunpack.c.l.b16 %v2762
      %v2780 = vunpack.c.h.b16 %v2762
      %v2781 = vunpack.c.l.b16 %v2763
      %v2782 = vunpack.c.h.b16 %v2763
      %v2783 = vunpack.c.l.b16 %v2764
      %v2784 = vunpack.c.h.b16 %v2764
      %v2785 = vunpack.c.l.b16 %v2765
      %v2786 = vunpack.c.h.b16 %v2765
      %v2787 = vunpack.c.l.b16 %v2766
      %v2788 = vunpack.c.h.b16 %v2766
      %v2789 = vunpack.c.l.b16 %v2767
      %v2790 = vunpack.c.h.b16 %v2767
      %v2791 = vunpack.c.l.b16 %v2768
      %v2792 = vunpack.c.h.b16 %v2768
      %v2793 = vpack.c.b16 %v2777, %v2777
      %v2794 = vpack.c.b16 %v2778, %v2778
      %v2795 = vpack.c.b16 %v2779, %v2779
      %v2796 = vpack.c.b16 %v2780, %v2780
      %v2797 = vpack.c.b16 %v2781, %v2781
      %v2798 = vpack.c.b16 %v2782, %v2782
      %v2799 = vpack.c.b16 %v2783, %v2783
      %v2800 = vpack.c.b16 %v2784, %v2784
      %v2801 = vpack.c.b16 %v2785, %v2785
      %v2802 = vpack.c.b16 %v2786, %v2786
      %v2803 = vpack.c.b16 %v2787, %v2787
      %v2804 = vpack.c.b16 %v2788, %v2788
      %v2805 = vpack.c.b16 %v2789, %v2789
      %v2806 = vpack.c.b16 %v2790, %v2790
      %v2807 = vpack.c.b16 %v2791, %v2791
      %v2808 = vpack.c.b16 %v2792, %v2792
      %v2810 = vshrl.u32 %v2793, 16
      %v2812 = vrot.slane %v2810, 7
      %v2813 = vshll.u32 %v2793, 16
      %v2815 = vor.u32 %v2812, %v2813
      %v2816 = vrot.slane %v2812, 4
      %v2818 = vshrl.u32 %v2794, 16
      %v2820 = vrot.slane %v2818, 7
      %v2821 = vshll.u32 %v2794, 16
      %v2823 = vor.u32 %v2820, %v2821
      %v2824 = vsel %vm1518, %v2816, %v2823
      %v2825 = vrot.slane %v2820, 4
      %v2827 = vshrl.u32 %v2795, 16
      %v2829 = vrot.slane %v2827, 7
      %v2830 = vshll.u32 %v2795, 16
      %v2832 = vor.u32 %v2829, %v2830
      %v2833 = vrot.slane %v2829, 4
      %v2835 = vshrl.u32 %v2796, 16
      %v2837 = vrot.slane %v2835, 7
      %v2838 = vshll.u32 %v2796, 16
      %v2840 = vor.u32 %v2837, %v2838
      %v2841 = vsel %vm1518, %v2833, %v2840
      %v2842 = vrot.slane %v2837, 4
      %v2844 = vshrl.u32 %v2797, 16
      %v2846 = vrot.slane %v2844, 7
      %v2847 = vshll.u32 %v2797, 16
      %v2849 = vor.u32 %v2846, %v2847
      %v2850 = vrot.slane %v2846, 4
      %v2852 = vshrl.u32 %v2798, 16
      %v2854 = vrot.slane %v2852, 7
      %v2855 = vshll.u32 %v2798, 16
      %v2857 = vor.u32 %v2854, %v2855
      %v2858 = vsel %vm1518, %v2850, %v2857
      %v2859 = vrot.slane %v2854, 4
      %v2861 = vshrl.u32 %v2799, 16
      %v2863 = vrot.slane %v2861, 7
      %v2864 = vshll.u32 %v2799, 16
      %v2866 = vor.u32 %v2863, %v2864
      %v2867 = vrot.slane %v2863, 4
      %v2869 = vshrl.u32 %v2800, 16
      %v2871 = vrot.slane %v2869, 7
      %v2872 = vshll.u32 %v2800, 16
      %v2874 = vor.u32 %v2871, %v2872
      %v2875 = vsel %vm1518, %v2867, %v2874
      %v2876 = vrot.slane %v2871, 4
      %v2878 = vshrl.u32 %v2801, 16
      %v2880 = vrot.slane %v2878, 7
      %v2881 = vshll.u32 %v2801, 16
      %v2883 = vor.u32 %v2880, %v2881
      %v2884 = vrot.slane %v2880, 4
      %v2886 = vshrl.u32 %v2802, 16
      %v2888 = vrot.slane %v2886, 7
      %v2889 = vshll.u32 %v2802, 16
      %v2891 = vor.u32 %v2888, %v2889
      %v2892 = vsel %vm1518, %v2884, %v2891
      %v2893 = vrot.slane %v2888, 4
      %v2895 = vshrl.u32 %v2803, 16
      %v2897 = vrot.slane %v2895, 7
      %v2898 = vshll.u32 %v2803, 16
      %v2900 = vor.u32 %v2897, %v2898
      %v2901 = vrot.slane %v2897, 4
      %v2903 = vshrl.u32 %v2804, 16
      %v2905 = vrot.slane %v2903, 7
      %v2906 = vshll.u32 %v2804, 16
      %v2908 = vor.u32 %v2905, %v2906
      %v2909 = vsel %vm1518, %v2901, %v2908
      %v2910 = vrot.slane %v2905, 4
      %v2912 = vshrl.u32 %v2805, 16
      %v2914 = vrot.slane %v2912, 7
      %v2915 = vshll.u32 %v2805, 16
      %v2917 = vor.u32 %v2914, %v2915
      %v2918 = vrot.slane %v2914, 4
      %v2920 = vshrl.u32 %v2806, 16
      %v2922 = vrot.slane %v2920, 7
      %v2923 = vshll.u32 %v2806, 16
      %v2925 = vor.u32 %v2922, %v2923
      %v2926 = vsel %vm1518, %v2918, %v2925
      %v2927 = vrot.slane %v2922, 4
      %v2929 = vshrl.u32 %v2807, 16
      %v2931 = vrot.slane %v2929, 7
      %v2932 = vshll.u32 %v2807, 16
      %v2934 = vor.u32 %v2931, %v2932
      %v2935 = vrot.slane %v2931, 4
      %v2937 = vshrl.u32 %v2808, 16
      %v2939 = vrot.slane %v2937, 7
      %v2940 = vshll.u32 %v2808, 16
      %v2942 = vor.u32 %v2939, %v2940
      %v2943 = vsel %vm1518, %v2935, %v2942
      %v2944 = vrot.slane %v2939, 4
      %s2969 = scalar_lea.vmem [#allocation2], 108
      %v2970 = vld [vmem:[%s2969] sm:$0xf]
      %v2971 = vsel %vm1681, %v2815, %v2970
      %2972 = vst [vmem:[%s2969] sm:$0xf] %v2971
      %2973 = vst.msk [vmem:[%s2969 + $0x4] sm:$0xf] %vm324, %v2824
      %v2974 = vld [vmem:[%s2969 + $0x8] sm:$0x1]
      %v2975 = vsel %vm335, %v2825, %v2974
      %2976 = vst [vmem:[%s2969 + $0x8] sm:$0x1] %v2975
      %v2977 = vld [vmem:[%s2969 + $0xc] sm:$0xf]
      %v2978 = vsel %vm1681, %v2832, %v2977
      %2979 = vst [vmem:[%s2969 + $0xc] sm:$0xf] %v2978
      %2980 = vst.msk [vmem:[%s2969 + $0x10] sm:$0xf] %vm324, %v2841
      %v2981 = vld [vmem:[%s2969 + $0x14] sm:$0x1]
      %v2982 = vsel %vm335, %v2842, %v2981
      %2983 = vst [vmem:[%s2969 + $0x14] sm:$0x1] %v2982
      %v2984 = vld [vmem:[%s2969 + $0x18] sm:$0xf]
      %v2985 = vsel %vm1681, %v2849, %v2984
      %2986 = vst [vmem:[%s2969 + $0x18] sm:$0xf] %v2985
      %2987 = vst.msk [vmem:[%s2969 + $0x1c] sm:$0xf] %vm324, %v2858
      %v2988 = vld [vmem:[%s2969 + $0x20] sm:$0x1]
      %v2989 = vsel %vm335, %v2859, %v2988
      %2990 = vst [vmem:[%s2969 + $0x20] sm:$0x1] %v2989
      %v2991 = vld [vmem:[%s2969 + $0x24] sm:$0xf]
      %v2992 = vsel %vm1681, %v2866, %v2991
      %2993 = vst [vmem:[%s2969 + $0x24] sm:$0xf] %v2992
      %2994 = vst.msk [vmem:[%s2969 + $0x28] sm:$0xf] %vm324, %v2875
      %v2995 = vld [vmem:[%s2969 + $0x2c] sm:$0x1]
      %v2996 = vsel %vm335, %v2876, %v2995
      %2997 = vst [vmem:[%s2969 + $0x2c] sm:$0x1] %v2996
      %v2998 = vld [vmem:[%s2969 + $0x30] sm:$0xf]
      %v2999 = vsel %vm1681, %v2883, %v2998
      %3000 = vst [vmem:[%s2969 + $0x30] sm:$0xf] %v2999
      %3001 = vst.msk [vmem:[%s2969 + $0x34] sm:$0xf] %vm324, %v2892
      %v3002 = vld [vmem:[%s2969 + $0x38] sm:$0x1]
      %v3003 = vsel %vm335, %v2893, %v3002
      %3004 = vst [vmem:[%s2969 + $0x38] sm:$0x1] %v3003
      %v3005 = vld [vmem:[%s2969 + $0x3c] sm:$0xf]
      %v3006 = vsel %vm1681, %v2900, %v3005
      %3007 = vst [vmem:[%s2969 + $0x3c] sm:$0xf] %v3006
      %3008 = vst.msk [vmem:[%s2969 + $0x40] sm:$0xf] %vm324, %v2909
      %v3009 = vld [vmem:[%s2969 + $0x44] sm:$0x1]
      %v3010 = vsel %vm335, %v2910, %v3009
      %3011 = vst [vmem:[%s2969 + $0x44] sm:$0x1] %v3010
      %v3012 = vld [vmem:[%s2969 + $0x48] sm:$0xf]
      %v3013 = vsel %vm1681, %v2917, %v3012
      %3014 = vst [vmem:[%s2969 + $0x48] sm:$0xf] %v3013
      %3015 = vst.msk [vmem:[%s2969 + $0x4c] sm:$0xf] %vm324, %v2926
      %v3016 = vld [vmem:[%s2969 + $0x50] sm:$0x1]
      %v3017 = vsel %vm335, %v2927, %v3016
      %3018 = vst [vmem:[%s2969 + $0x50] sm:$0x1] %v3017
      %v3019 = vld [vmem:[%s2969 + $0x54] sm:$0xf]
      %v3020 = vsel %vm1681, %v2934, %v3019
      %3021 = vst [vmem:[%s2969 + $0x54] sm:$0xf] %v3020
      %3022 = vst.msk [vmem:[%s2969 + $0x58] sm:$0xf] %vm324, %v2943
      %v3023 = vld [vmem:[%s2969 + $0x5c] sm:$0x1]
      %v3024 = vsel %vm335, %v2944, %v3023
      %3025 = vst [vmem:[%s2969 + $0x5c] sm:$0x1] %v3024
      %v3026 = vld [vmem:[#allocation2] sm:$0xf]
      %v3027 = vld [vmem:[#allocation2 + $0x4] sm:$0xf]
      %v3028 = vld [vmem:[#allocation2 + $0xc] sm:$0xf]
      %v3029 = vld [vmem:[#allocation2 + $0x10] sm:$0xf]
      %v3030 = vld [vmem:[#allocation2 + $0x18] sm:$0xf]
      %v3031 = vld [vmem:[#allocation2 + $0x1c] sm:$0xf]
      %v3032 = vld [vmem:[#allocation2 + $0x24] sm:$0xf]
      %v3033 = vld [vmem:[#allocation2 + $0x28] sm:$0xf]
      %v3034 = vld [vmem:[#allocation2 + $0x30] sm:$0xf]
      %v3035 = vld [vmem:[#allocation2 + $0x34] sm:$0xf]
      %v3036 = vld [vmem:[#allocation2 + $0x3c] sm:$0xf]
      %v3037 = vld [vmem:[#allocation2 + $0x40] sm:$0xf]
      %v3038 = vld [vmem:[#allocation2 + $0x48] sm:$0xf]
      %v3039 = vld [vmem:[#allocation2 + $0x4c] sm:$0xf]
      %v3040 = vld [vmem:[#allocation2 + $0x54] sm:$0xf]
      %v3041 = vld [vmem:[#allocation2 + $0x58] sm:$0xf]
      %v3042 = vld [vmem:[#allocation2 + $0x60] sm:$0xf]
      %v3043 = vld [vmem:[#allocation2 + $0x64] sm:$0xf]
      %v3044 = vld [vmem:[#allocation2 + $0x6c] sm:$0xf]
      %v3045 = vld [vmem:[#allocation2 + $0x70] sm:$0xf]
      %v3046 = vld [vmem:[#allocation2 + $0x78] sm:$0xf]
      %v3047 = vld [vmem:[#allocation2 + $0x7c] sm:$0xf]
      %v3048 = vld [vmem:[#allocation2 + $0x84] sm:$0xf]
      %v3049 = vld [vmem:[#allocation2 + $0x88] sm:$0xf]
      %v3050 = vld [vmem:[#allocation2 + $0x90] sm:$0xf]
      %v3051 = vld [vmem:[#allocation2 + $0x94] sm:$0xf]
      %v3052 = vld [vmem:[#allocation2 + $0x9c] sm:$0xf]
      %v3053 = vld [vmem:[#allocation2 + $0xa0] sm:$0xf]
      %v3054 = vld [vmem:[#allocation2 + $0xa8] sm:$0xf]
      %v3055 = vld [vmem:[#allocation2 + $0xac] sm:$0xf]
      %v3056 = vld [vmem:[#allocation2 + $0xb4] sm:$0xf]
      %v3057 = vld [vmem:[#allocation2 + $0xb8] sm:$0xf]
      %v3058 = vld [vmem:[#allocation2 + $0x8] sm:$0x1]
      %v3059 = vld [vmem:[#allocation2 + $0x14] sm:$0x1]
      %v3060 = vld [vmem:[#allocation2 + $0x20] sm:$0x1]
      %v3061 = vld [vmem:[#allocation2 + $0x2c] sm:$0x1]
      %v3062 = vld [vmem:[#allocation2 + $0x38] sm:$0x1]
      %v3063 = vld [vmem:[#allocation2 + $0x44] sm:$0x1]
      %v3064 = vld [vmem:[#allocation2 + $0x50] sm:$0x1]
      %v3065 = vld [vmem:[#allocation2 + $0x5c] sm:$0x1]
      %v3066 = vld [vmem:[#allocation2 + $0x68] sm:$0x1]
      %v3067 = vld [vmem:[#allocation2 + $0x74] sm:$0x1]
      %v3068 = vld [vmem:[#allocation2 + $0x80] sm:$0x1]
      %v3069 = vld [vmem:[#allocation2 + $0x8c] sm:$0x1]
      %v3070 = vld [vmem:[#allocation2 + $0x98] sm:$0x1]
      %v3071 = vld [vmem:[#allocation2 + $0xa4] sm:$0x1]
      %v3072 = vld [vmem:[#allocation2 + $0xb0] sm:$0x1]
      %v3073 = vld [vmem:[#allocation2 + $0xbc] sm:$0x1]
      %vm3074 = vsmask.f32 3328
      %vm3075 = vsmask.f32 7440
      %vm3076 = vmor %vm3074, %vm3075
      %v3078 = vshrl.u32 %v3026, 16
      %v3080 = vrot.slane %v3078, 4
      %v3081 = vshll.u32 %v3026, 16
      %v3083 = vrot.slane %v3081, 5
      %v3084 = vor.u32 %v3080, %v3083
      %v3085 = vrot.slane %v3084, 4
      %v3087 = vshll.u32 %v3027, 16
      %v3089 = vrot.slane %v3087, 5
      %v3090 = vsel %vm3076, %v3085, %v3089
      %v3091 = vshrl.u32 %v3027, 16
      %v3093 = vrot.slane %v3091, 4
      %v3094 = vor.u32 %v3093, %v3089
      %v3095 = vrot.slane %v3094, 4
      %v3097 = vshll.u32 %v3058, 16
      %v3099 = vrot.slane %v3097, 5
      %v3100 = vsel %vm3076, %v3095, %v3099
      %v3102 = vshrl.u32 %v3028, 16
      %v3104 = vrot.slane %v3102, 4
      %v3105 = vshll.u32 %v3028, 16
      %v3107 = vrot.slane %v3105, 5
      %v3108 = vor.u32 %v3104, %v3107
      %v3109 = vrot.slane %v3108, 4
      %v3111 = vshll.u32 %v3029, 16
      %v3113 = vrot.slane %v3111, 5
      %v3114 = vsel %vm3076, %v3109, %v3113
      %v3115 = vshrl.u32 %v3029, 16
      %v3117 = vrot.slane %v3115, 4
      %v3118 = vor.u32 %v3117, %v3113
      %v3119 = vrot.slane %v3118, 4
      %v3121 = vshll.u32 %v3059, 16
      %v3123 = vrot.slane %v3121, 5
      %v3124 = vsel %vm3076, %v3119, %v3123
      %v3126 = vshrl.u32 %v3030, 16
      %v3128 = vrot.slane %v3126, 4
      %v3129 = vshll.u32 %v3030, 16
      %v3131 = vrot.slane %v3129, 5
      %v3132 = vor.u32 %v3128, %v3131
      %v3133 = vrot.slane %v3132, 4
      %v3135 = vshll.u32 %v3031, 16
      %v3137 = vrot.slane %v3135, 5
      %v3138 = vsel %vm3076, %v3133, %v3137
      %v3139 = vshrl.u32 %v3031, 16
      %v3141 = vrot.slane %v3139, 4
      %v3142 = vor.u32 %v3141, %v3137
      %v3143 = vrot.slane %v3142, 4
      %v3145 = vshll.u32 %v3060, 16
      %v3147 = vrot.slane %v3145, 5
      %v3148 = vsel %vm3076, %v3143, %v3147
      %v3150 = vshrl.u32 %v3032, 16
      %v3152 = vrot.slane %v3150, 4
      %v3153 = vshll.u32 %v3032, 16
      %v3155 = vrot.slane %v3153, 5
      %v3156 = vor.u32 %v3152, %v3155
      %v3157 = vrot.slane %v3156, 4
      %v3159 = vshll.u32 %v3033, 16
      %v3161 = vrot.slane %v3159, 5
      %v3162 = vsel %vm3076, %v3157, %v3161
      %v3163 = vshrl.u32 %v3033, 16
      %v3165 = vrot.slane %v3163, 4
      %v3166 = vor.u32 %v3165, %v3161
      %v3167 = vrot.slane %v3166, 4
      %v3169 = vshll.u32 %v3061, 16
      %v3171 = vrot.slane %v3169, 5
      %v3172 = vsel %vm3076, %v3167, %v3171
      %v3174 = vshrl.u32 %v3034, 16
      %v3176 = vrot.slane %v3174, 4
      %v3177 = vshll.u32 %v3034, 16
      %v3179 = vrot.slane %v3177, 5
      %v3180 = vor.u32 %v3176, %v3179
      %v3181 = vrot.slane %v3180, 4
      %v3183 = vshll.u32 %v3035, 16
      %v3185 = vrot.slane %v3183, 5
      %v3186 = vsel %vm3076, %v3181, %v3185
      %v3187 = vshrl.u32 %v3035, 16
      %v3189 = vrot.slane %v3187, 4
      %v3190 = vor.u32 %v3189, %v3185
      %v3191 = vrot.slane %v3190, 4
      %v3193 = vshll.u32 %v3062, 16
      %v3195 = vrot.slane %v3193, 5
      %v3196 = vsel %vm3076, %v3191, %v3195
      %v3198 = vshrl.u32 %v3036, 16
      %v3200 = vrot.slane %v3198, 4
      %v3201 = vshll.u32 %v3036, 16
      %v3203 = vrot.slane %v3201, 5
      %v3204 = vor.u32 %v3200, %v3203
      %v3205 = vrot.slane %v3204, 4
      %v3207 = vshll.u32 %v3037, 16
      %v3209 = vrot.slane %v3207, 5
      %v3210 = vsel %vm3076, %v3205, %v3209
      %v3211 = vshrl.u32 %v3037, 16
      %v3213 = vrot.slane %v3211, 4
      %v3214 = vor.u32 %v3213, %v3209
      %v3215 = vrot.slane %v3214, 4
      %v3217 = vshll.u32 %v3063, 16
      %v3219 = vrot.slane %v3217, 5
      %v3220 = vsel %vm3076, %v3215, %v3219
      %v3222 = vshrl.u32 %v3038, 16
      %v3224 = vrot.slane %v3222, 4
      %v3225 = vshll.u32 %v3038, 16
      %v3227 = vrot.slane %v3225, 5
      %v3228 = vor.u32 %v3224, %v3227
      %v3229 = vrot.slane %v3228, 4
      %v3231 = vshll.u32 %v3039, 16
      %v3233 = vrot.slane %v3231, 5
      %v3234 = vsel %vm3076, %v3229, %v3233
      %v3235 = vshrl.u32 %v3039, 16
      %v3237 = vrot.slane %v3235, 4
      %v3238 = vor.u32 %v3237, %v3233
      %v3239 = vrot.slane %v3238, 4
      %v3241 = vshll.u32 %v3064, 16
      %v3243 = vrot.slane %v3241, 5
      %v3244 = vsel %vm3076, %v3239, %v3243
      %v3246 = vshrl.u32 %v3040, 16
      %v3248 = vrot.slane %v3246, 4
      %v3249 = vshll.u32 %v3040, 16
      %v3251 = vrot.slane %v3249, 5
      %v3252 = vor.u32 %v3248, %v3251
      %v3253 = vrot.slane %v3252, 4
      %v3255 = vshll.u32 %v3041, 16
      %v3257 = vrot.slane %v3255, 5
      %v3258 = vsel %vm3076, %v3253, %v3257
      %v3259 = vshrl.u32 %v3041, 16
      %v3261 = vrot.slane %v3259, 4
      %v3262 = vor.u32 %v3261, %v3257
      %v3263 = vrot.slane %v3262, 4
      %v3265 = vshll.u32 %v3065, 16
      %v3267 = vrot.slane %v3265, 5
      %v3268 = vsel %vm3076, %v3263, %v3267
      %v3270 = vshrl.u32 %v3042, 16
      %v3272 = vrot.slane %v3270, 4
      %v3273 = vshll.u32 %v3042, 16
      %v3275 = vrot.slane %v3273, 5
      %v3276 = vor.u32 %v3272, %v3275
      %v3277 = vrot.slane %v3276, 4
      %v3279 = vshll.u32 %v3043, 16
      %v3281 = vrot.slane %v3279, 5
      %v3282 = vsel %vm3076, %v3277, %v3281
      %v3283 = vshrl.u32 %v3043, 16
      %v3285 = vrot.slane %v3283, 4
      %v3286 = vor.u32 %v3285, %v3281
      %v3287 = vrot.slane %v3286, 4
      %v3289 = vshll.u32 %v3066, 16
      %v3291 = vrot.slane %v3289, 5
      %v3292 = vsel %vm3076, %v3287, %v3291
      %v3294 = vshrl.u32 %v3044, 16
      %v3296 = vrot.slane %v3294, 4
      %v3297 = vshll.u32 %v3044, 16
      %v3299 = vrot.slane %v3297, 5
      %v3300 = vor.u32 %v3296, %v3299
      %v3301 = vrot.slane %v3300, 4
      %v3303 = vshll.u32 %v3045, 16
      %v3305 = vrot.slane %v3303, 5
      %v3306 = vsel %vm3076, %v3301, %v3305
      %v3307 = vshrl.u32 %v3045, 16
      %v3309 = vrot.slane %v3307, 4
      %v3310 = vor.u32 %v3309, %v3305
      %v3311 = vrot.slane %v3310, 4
      %v3313 = vshll.u32 %v3067, 16
      %v3315 = vrot.slane %v3313, 5
      %v3316 = vsel %vm3076, %v3311, %v3315
      %v3318 = vshrl.u32 %v3046, 16
      %v3320 = vrot.slane %v3318, 4
      %v3321 = vshll.u32 %v3046, 16
      %v3323 = vrot.slane %v3321, 5
      %v3324 = vor.u32 %v3320, %v3323
      %v3325 = vrot.slane %v3324, 4
      %v3327 = vshll.u32 %v3047, 16
      %v3329 = vrot.slane %v3327, 5
      %v3330 = vsel %vm3076, %v3325, %v3329
      %v3331 = vshrl.u32 %v3047, 16
      %v3333 = vrot.slane %v3331, 4
      %v3334 = vor.u32 %v3333, %v3329
      %v3335 = vrot.slane %v3334, 4
      %v3337 = vshll.u32 %v3068, 16
      %v3339 = vrot.slane %v3337, 5
      %v3340 = vsel %vm3076, %v3335, %v3339
      %v3342 = vshrl.u32 %v3048, 16
      %v3344 = vrot.slane %v3342, 4
      %v3345 = vshll.u32 %v3048, 16
      %v3347 = vrot.slane %v3345, 5
      %v3348 = vor.u32 %v3344, %v3347
      %v3349 = vrot.slane %v3348, 4
      %v3351 = vshll.u32 %v3049, 16
      %v3353 = vrot.slane %v3351, 5
      %v3354 = vsel %vm3076, %v3349, %v3353
      %v3355 = vshrl.u32 %v3049, 16
      %v3357 = vrot.slane %v3355, 4
      %v3358 = vor.u32 %v3357, %v3353
      %v3359 = vrot.slane %v3358, 4
      %v3361 = vshll.u32 %v3069, 16
      %v3363 = vrot.slane %v3361, 5
      %v3364 = vsel %vm3076, %v3359, %v3363
      %v3366 = vshrl.u32 %v3050, 16
      %v3368 = vrot.slane %v3366, 4
      %v3369 = vshll.u32 %v3050, 16
      %v3371 = vrot.slane %v3369, 5
      %v3372 = vor.u32 %v3368, %v3371
      %v3373 = vrot.slane %v3372, 4
      %v3375 = vshll.u32 %v3051, 16
      %v3377 = vrot.slane %v3375, 5
      %v3378 = vsel %vm3076, %v3373, %v3377
      %v3379 = vshrl.u32 %v3051, 16
      %v3381 = vrot.slane %v3379, 4
      %v3382 = vor.u32 %v3381, %v3377
      %v3383 = vrot.slane %v3382, 4
      %v3385 = vshll.u32 %v3070, 16
      %v3387 = vrot.slane %v3385, 5
      %v3388 = vsel %vm3076, %v3383, %v3387
      %v3390 = vshrl.u32 %v3052, 16
      %v3392 = vrot.slane %v3390, 4
      %v3393 = vshll.u32 %v3052, 16
      %v3395 = vrot.slane %v3393, 5
      %v3396 = vor.u32 %v3392, %v3395
      %v3397 = vrot.slane %v3396, 4
      %v3399 = vshll.u32 %v3053, 16
      %v3401 = vrot.slane %v3399, 5
      %v3402 = vsel %vm3076, %v3397, %v3401
      %v3403 = vshrl.u32 %v3053, 16
      %v3405 = vrot.slane %v3403, 4
      %v3406 = vor.u32 %v3405, %v3401
      %v3407 = vrot.slane %v3406, 4
      %v3409 = vshll.u32 %v3071, 16
      %v3411 = vrot.slane %v3409, 5
      %v3412 = vsel %vm3076, %v3407, %v3411
      %v3414 = vshrl.u32 %v3054, 16
      %v3416 = vrot.slane %v3414, 4
      %v3417 = vshll.u32 %v3054, 16
      %v3419 = vrot.slane %v3417, 5
      %v3420 = vor.u32 %v3416, %v3419
      %v3421 = vrot.slane %v3420, 4
      %v3423 = vshll.u32 %v3055, 16
      %v3425 = vrot.slane %v3423, 5
      %v3426 = vsel %vm3076, %v3421, %v3425
      %v3427 = vshrl.u32 %v3055, 16
      %v3429 = vrot.slane %v3427, 4
      %v3430 = vor.u32 %v3429, %v3425
      %v3431 = vrot.slane %v3430, 4
      %v3433 = vshll.u32 %v3072, 16
      %v3435 = vrot.slane %v3433, 5
      %v3436 = vsel %vm3076, %v3431, %v3435
      %v3438 = vshrl.u32 %v3056, 16
      %v3440 = vrot.slane %v3438, 4
      %v3441 = vshll.u32 %v3056, 16
      %v3443 = vrot.slane %v3441, 5
      %v3444 = vor.u32 %v3440, %v3443
      %v3445 = vrot.slane %v3444, 4
      %v3447 = vshll.u32 %v3057, 16
      %v3449 = vrot.slane %v3447, 5
      %v3450 = vsel %vm3076, %v3445, %v3449
      %v3451 = vshrl.u32 %v3057, 16
      %v3453 = vrot.slane %v3451, 4
      %v3454 = vor.u32 %v3453, %v3449
      %v3455 = vrot.slane %v3454, 4
      %v3457 = vshll.u32 %v3073, 16
      %v3459 = vrot.slane %v3457, 5
      %v3460 = vsel %vm3076, %v3455, %v3459
      %v3493 = vunpack.c.l.b16 %v3026
      %v3494 = vunpack.c.l.b16 %v3027
      %v3495 = vunpack.c.l.b16 %v3028
      %v3496 = vunpack.c.l.b16 %v3029
      %v3497 = vunpack.c.l.b16 %v3030
      %v3498 = vunpack.c.l.b16 %v3031
      %v3499 = vunpack.c.l.b16 %v3032
      %v3500 = vunpack.c.l.b16 %v3033
      %v3501 = vunpack.c.l.b16 %v3034
      %v3502 = vunpack.c.l.b16 %v3035
      %v3503 = vunpack.c.l.b16 %v3036
      %v3504 = vunpack.c.l.b16 %v3037
      %v3505 = vunpack.c.l.b16 %v3038
      %v3506 = vunpack.c.l.b16 %v3039
      %v3507 = vunpack.c.l.b16 %v3040
      %v3508 = vunpack.c.l.b16 %v3041
      %v3509 = vunpack.c.l.b16 %v3042
      %v3510 = vunpack.c.l.b16 %v3043
      %v3511 = vunpack.c.l.b16 %v3044
      %v3512 = vunpack.c.l.b16 %v3045
      %v3513 = vunpack.c.l.b16 %v3046
      %v3514 = vunpack.c.l.b16 %v3047
      %v3515 = vunpack.c.l.b16 %v3048
      %v3516 = vunpack.c.l.b16 %v3049
      %v3517 = vunpack.c.l.b16 %v3050
      %v3518 = vunpack.c.l.b16 %v3051
      %v3519 = vunpack.c.l.b16 %v3052
      %v3520 = vunpack.c.l.b16 %v3053
      %v3521 = vunpack.c.l.b16 %v3054
      %v3522 = vunpack.c.l.b16 %v3055
      %v3523 = vunpack.c.l.b16 %v3056
      %v3524 = vunpack.c.l.b16 %v3057
      %v3525 = vpack.c.b16 %v3494, %v3493
      %v3526 = vpack.c.b16 %v3496, %v3495
      %v3527 = vpack.c.b16 %v3498, %v3497
      %v3528 = vpack.c.b16 %v3500, %v3499
      %v3529 = vpack.c.b16 %v3502, %v3501
      %v3530 = vpack.c.b16 %v3504, %v3503
      %v3531 = vpack.c.b16 %v3506, %v3505
      %v3532 = vpack.c.b16 %v3508, %v3507
      %v3533 = vpack.c.b16 %v3510, %v3509
      %v3534 = vpack.c.b16 %v3512, %v3511
      %v3535 = vpack.c.b16 %v3514, %v3513
      %v3536 = vpack.c.b16 %v3516, %v3515
      %v3537 = vpack.c.b16 %v3518, %v3517
      %v3538 = vpack.c.b16 %v3520, %v3519
      %v3539 = vpack.c.b16 %v3522, %v3521
      %v3540 = vpack.c.b16 %v3524, %v3523
      %v3541 = vunpack.c.l.b16 %v3090
      %v3542 = vunpack.c.l.b16 %v3100
      %v3543 = vunpack.c.l.b16 %v3114
      %v3544 = vunpack.c.l.b16 %v3124
      %v3545 = vunpack.c.l.b16 %v3138
      %v3546 = vunpack.c.l.b16 %v3148
      %v3547 = vunpack.c.l.b16 %v3162
      %v3548 = vunpack.c.l.b16 %v3172
      %v3549 = vunpack.c.l.b16 %v3186
      %v3550 = vunpack.c.l.b16 %v3196
      %v3551 = vunpack.c.l.b16 %v3210
      %v3552 = vunpack.c.l.b16 %v3220
      %v3553 = vunpack.c.l.b16 %v3234
      %v3554 = vunpack.c.l.b16 %v3244
      %v3555 = vunpack.c.l.b16 %v3258
      %v3556 = vunpack.c.l.b16 %v3268
      %v3557 = vunpack.c.l.b16 %v3282
      %v3558 = vunpack.c.l.b16 %v3292
      %v3559 = vunpack.c.l.b16 %v3306
      %v3560 = vunpack.c.l.b16 %v3316
      %v3561 = vunpack.c.l.b16 %v3330
      %v3562 = vunpack.c.l.b16 %v3340
      %v3563 = vunpack.c.l.b16 %v3354
      %v3564 = vunpack.c.l.b16 %v3364
      %v3565 = vunpack.c.l.b16 %v3378
      %v3566 = vunpack.c.l.b16 %v3388
      %v3567 = vunpack.c.l.b16 %v3402
      %v3568 = vunpack.c.l.b16 %v3412
      %v3569 = vunpack.c.l.b16 %v3426
      %v3570 = vunpack.c.l.b16 %v3436
      %v3571 = vunpack.c.l.b16 %v3450
      %v3572 = vunpack.c.l.b16 %v3460
      %v3573 = vpack.c.b16 %v3542, %v3541
      %v3574 = vpack.c.b16 %v3544, %v3543
      %v3575 = vpack.c.b16 %v3546, %v3545
      %v3576 = vpack.c.b16 %v3548, %v3547
      %v3577 = vpack.c.b16 %v3550, %v3549
      %v3578 = vpack.c.b16 %v3552, %v3551
      %v3579 = vpack.c.b16 %v3554, %v3553
      %v3580 = vpack.c.b16 %v3556, %v3555
      %v3581 = vpack.c.b16 %v3558, %v3557
      %v3582 = vpack.c.b16 %v3560, %v3559
      %v3583 = vpack.c.b16 %v3562, %v3561
      %v3584 = vpack.c.b16 %v3564, %v3563
      %v3585 = vpack.c.b16 %v3566, %v3565
      %v3586 = vpack.c.b16 %v3568, %v3567
      %v3587 = vpack.c.b16 %v3570, %v3569
      %v3588 = vpack.c.b16 %v3572, %v3571
      %3589 = vrot.lane.b32.xlu0 %v3573, 64
      %v3590 = vpop.permute.xlu0 %3589
      %3591 = vrot.lane.b32.xlu0 %v3574, 64
      %v3592 = vpop.permute.xlu0 %3591
      %3593 = vrot.lane.b32.xlu0 %v3575, 64
      %v3594 = vpop.permute.xlu0 %3593
      %3595 = vrot.lane.b32.xlu0 %v3576, 64
      %v3596 = vpop.permute.xlu0 %3595
      %3597 = vrot.lane.b32.xlu0 %v3577, 64
      %v3598 = vpop.permute.xlu0 %3597
      %3599 = vrot.lane.b32.xlu0 %v3578, 64
      %v3600 = vpop.permute.xlu0 %3599
      %3601 = vrot.lane.b32.xlu0 %v3579, 64
      %v3602 = vpop.permute.xlu0 %3601
      %3603 = vrot.lane.b32.xlu0 %v3580, 64
      %v3604 = vpop.permute.xlu0 %3603
      %3605 = vrot.lane.b32.xlu0 %v3581, 64
      %v3606 = vpop.permute.xlu0 %3605
      %3607 = vrot.lane.b32.xlu0 %v3582, 64
      %v3608 = vpop.permute.xlu0 %3607
      %3609 = vrot.lane.b32.xlu0 %v3583, 64
      %v3610 = vpop.permute.xlu0 %3609
      %3611 = vrot.lane.b32.xlu0 %v3584, 64
      %v3612 = vpop.permute.xlu0 %3611
      %3613 = vrot.lane.b32.xlu0 %v3585, 64
      %v3614 = vpop.permute.xlu0 %3613
      %3615 = vrot.lane.b32.xlu0 %v3586, 64
      %v3616 = vpop.permute.xlu0 %3615
      %3617 = vrot.lane.b32.xlu0 %v3587, 64
      %v3618 = vpop.permute.xlu0 %3617
      %3619 = vrot.lane.b32.xlu0 %v3588, 64
      %v3620 = vpop.permute.xlu0 %3619
      %vm3621 = vcmask 523264
      %v3624 = vsel %vm3621, %v3525, %v3590
      %v3628 = vsel %vm3621, %v3526, %v3592
      %v3632 = vsel %vm3621, %v3527, %v3594
      %v3636 = vsel %vm3621, %v3528, %v3596
      %v3640 = vsel %vm3621, %v3529, %v3598
      %v3644 = vsel %vm3621, %v3530, %v3600
      %v3648 = vsel %vm3621, %v3531, %v3602
      %v3652 = vsel %vm3621, %v3532, %v3604
      %v3656 = vsel %vm3621, %v3533, %v3606
      %v3660 = vsel %vm3621, %v3534, %v3608
      %v3664 = vsel %vm3621, %v3535, %v3610
      %v3668 = vsel %vm3621, %v3536, %v3612
      %v3672 = vsel %vm3621, %v3537, %v3614
      %v3676 = vsel %vm3621, %v3538, %v3616
      %v3680 = vsel %vm3621, %v3539, %v3618
      %v3684 = vsel %vm3621, %v3540, %v3620
      %3686 = vst [vmem:[#allocation3] sm:$0xff] %v3624
      %3687 = vst [vmem:[#allocation3 + $0x28] sm:$0xff] %v3628
      %3688 = vst [vmem:[#allocation3 + $0x50] sm:$0xff] %v3632
      %3689 = vst [vmem:[#allocation3 + $0x78] sm:$0xff] %v3636
      %3690 = vst [vmem:[#allocation3 + $0xa0] sm:$0xff] %v3640
      %3691 = vst [vmem:[#allocation3 + $0xc8] sm:$0xff] %v3644
      %3692 = vst [vmem:[#allocation3 + $0xf0] sm:$0xff] %v3648
      %3693 = vst [vmem:[#allocation3 + $0x118] sm:$0xff] %v3652
      %3694 = vst [vmem:[#allocation3 + $0x140] sm:$0xff] %v3656
      %3695 = vst [vmem:[#allocation3 + $0x168] sm:$0xff] %v3660
      %3696 = vst [vmem:[#allocation3 + $0x190] sm:$0xff] %v3664
      %3697 = vst [vmem:[#allocation3 + $0x1b8] sm:$0xff] %v3668
      %3698 = vst [vmem:[#allocation3 + $0x1e0] sm:$0xff] %v3672
      %3699 = vst [vmem:[#allocation3 + $0x208] sm:$0xff] %v3676
      %3700 = vst [vmem:[#allocation3 + $0x230] sm:$0xff] %v3680
      %3701 = vst [vmem:[#allocation3 + $0x258] sm:$0xff] %v3684
      %v3702 = vld [vmem:[#allocation2] sm:$0xe]
      %v3703 = vld [vmem:[#allocation2 + $0x4] sm:$0xf]
      %v3704 = vld [vmem:[#allocation2 + $0x8] sm:$0x1]
      %v3705 = vld [vmem:[#allocation2 + $0xc] sm:$0xe]
      %v3706 = vld [vmem:[#allocation2 + $0x10] sm:$0xf]
      %v3707 = vld [vmem:[#allocation2 + $0x14] sm:$0x1]
      %v3708 = vld [vmem:[#allocation2 + $0x18] sm:$0xe]
      %v3709 = vld [vmem:[#allocation2 + $0x1c] sm:$0xf]
      %v3710 = vld [vmem:[#allocation2 + $0x20] sm:$0x1]
      %v3711 = vld [vmem:[#allocation2 + $0x24] sm:$0xe]
      %v3712 = vld [vmem:[#allocation2 + $0x28] sm:$0xf]
      %v3713 = vld [vmem:[#allocation2 + $0x2c] sm:$0x1]
      %v3714 = vld [vmem:[#allocation2 + $0x30] sm:$0xe]
      %v3715 = vld [vmem:[#allocation2 + $0x34] sm:$0xf]
      %v3716 = vld [vmem:[#allocation2 + $0x38] sm:$0x1]
      %v3717 = vld [vmem:[#allocation2 + $0x3c] sm:$0xe]
      %v3718 = vld [vmem:[#allocation2 + $0x40] sm:$0xf]
      %v3719 = vld [vmem:[#allocation2 + $0x44] sm:$0x1]
      %v3720 = vld [vmem:[#allocation2 + $0x48] sm:$0xe]
      %v3721 = vld [vmem:[#allocation2 + $0x4c] sm:$0xf]
      %v3722 = vld [vmem:[#allocation2 + $0x50] sm:$0x1]
      %v3723 = vld [vmem:[#allocation2 + $0x54] sm:$0xe]
      %v3724 = vld [vmem:[#allocation2 + $0x58] sm:$0xf]
      %v3725 = vld [vmem:[#allocation2 + $0x5c] sm:$0x1]
      %v3726 = vld [vmem:[#allocation2 + $0x60] sm:$0xe]
      %v3727 = vld [vmem:[#allocation2 + $0x64] sm:$0xf]
      %v3728 = vld [vmem:[#allocation2 + $0x68] sm:$0x1]
      %v3729 = vld [vmem:[#allocation2 + $0x6c] sm:$0xe]
      %v3730 = vld [vmem:[#allocation2 + $0x70] sm:$0xf]
      %v3731 = vld [vmem:[#allocation2 + $0x74] sm:$0x1]
      %v3732 = vld [vmem:[#allocation2 + $0x78] sm:$0xe]
      %v3733 = vld [vmem:[#allocation2 + $0x7c] sm:$0xf]
      %v3734 = vld [vmem:[#allocation2 + $0x80] sm:$0x1]
      %v3735 = vld [vmem:[#allocation2 + $0x84] sm:$0xe]
      %v3736 = vld [vmem:[#allocation2 + $0x88] sm:$0xf]
      %v3737 = vld [vmem:[#allocation2 + $0x8c] sm:$0x1]
      %v3738 = vld [vmem:[#allocation2 + $0x90] sm:$0xe]
      %v3739 = vld [vmem:[#allocation2 + $0x94] sm:$0xf]
      %v3740 = vld [vmem:[#allocation2 + $0x98] sm:$0x1]
      %v3741 = vld [vmem:[#allocation2 + $0x9c] sm:$0xe]
      %v3742 = vld [vmem:[#allocation2 + $0xa0] sm:$0xf]
      %v3743 = vld [vmem:[#allocation2 + $0xa4] sm:$0x1]
      %v3744 = vld [vmem:[#allocation2 + $0xa8] sm:$0xe]
      %v3745 = vld [vmem:[#allocation2 + $0xac] sm:$0xf]
      %v3746 = vld [vmem:[#allocation2 + $0xb0] sm:$0x1]
      %v3747 = vld [vmem:[#allocation2 + $0xb4] sm:$0xe]
      %v3748 = vld [vmem:[#allocation2 + $0xb8] sm:$0xf]
      %v3749 = vld [vmem:[#allocation2 + $0xbc] sm:$0x1]
      %vm3798 = vcmask 1042432
      %vm3799 = vcmask 1046532
      %vm3800 = vmor %vm3798, %vm3799
      %v3801 = vrot.slane %v3702, 5
      %v3802 = vrot.slane %v3801, 4
      %v3803 = vrot.slane %v3703, 5
      %v3804 = vsel %vm3800, %v3802, %v3803
      %v3805 = vrot.slane %v3803, 4
      %v3806 = vrot.slane %v3704, 5
      %v3807 = vsel %vm3800, %v3805, %v3806
      %v3808 = vrot.slane %v3705, 5
      %v3809 = vrot.slane %v3808, 4
      %v3810 = vrot.slane %v3706, 5
      %v3811 = vsel %vm3800, %v3809, %v3810
      %v3812 = vrot.slane %v3810, 4
      %v3813 = vrot.slane %v3707, 5
      %v3814 = vsel %vm3800, %v3812, %v3813
      %v3815 = vrot.slane %v3708, 5
      %v3816 = vrot.slane %v3815, 4
      %v3817 = vrot.slane %v3709, 5
      %v3818 = vsel %vm3800, %v3816, %v3817
      %v3819 = vrot.slane %v3817, 4
      %v3820 = vrot.slane %v3710, 5
      %v3821 = vsel %vm3800, %v3819, %v3820
      %v3822 = vrot.slane %v3711, 5
      %v3823 = vrot.slane %v3822, 4
      %v3824 = vrot.slane %v3712, 5
      %v3825 = vsel %vm3800, %v3823, %v3824
      %v3826 = vrot.slane %v3824, 4
      %v3827 = vrot.slane %v3713, 5
      %v3828 = vsel %vm3800, %v3826, %v3827
      %v3829 = vrot.slane %v3714, 5
      %v3830 = vrot.slane %v3829, 4
      %v3831 = vrot.slane %v3715, 5
      %v3832 = vsel %vm3800, %v3830, %v3831
      %v3833 = vrot.slane %v3831, 4
      %v3834 = vrot.slane %v3716, 5
      %v3835 = vsel %vm3800, %v3833, %v3834
      %v3836 = vrot.slane %v3717, 5
      %v3837 = vrot.slane %v3836, 4
      %v3838 = vrot.slane %v3718, 5
      %v3839 = vsel %vm3800, %v3837, %v3838
      %v3840 = vrot.slane %v3838, 4
      %v3841 = vrot.slane %v3719, 5
      %v3842 = vsel %vm3800, %v3840, %v3841
      %v3843 = vrot.slane %v3720, 5
      %v3844 = vrot.slane %v3843, 4
      %v3845 = vrot.slane %v3721, 5
      %v3846 = vsel %vm3800, %v3844, %v3845
      %v3847 = vrot.slane %v3845, 4
      %v3848 = vrot.slane %v3722, 5
      %v3849 = vsel %vm3800, %v3847, %v3848
      %v3850 = vrot.slane %v3723, 5
      %v3851 = vrot.slane %v3850, 4
      %v3852 = vrot.slane %v3724, 5
      %v3853 = vsel %vm3800, %v3851, %v3852
      %v3854 = vrot.slane %v3852, 4
      %v3855 = vrot.slane %v3725, 5
      %v3856 = vsel %vm3800, %v3854, %v3855
      %v3857 = vrot.slane %v3726, 5
      %v3858 = vrot.slane %v3857, 4
      %v3859 = vrot.slane %v3727, 5
      %v3860 = vsel %vm3800, %v3858, %v3859
      %v3861 = vrot.slane %v3859, 4
      %v3862 = vrot.slane %v3728, 5
      %v3863 = vsel %vm3800, %v3861, %v3862
      %v3864 = vrot.slane %v3729, 5
      %v3865 = vrot.slane %v3864, 4
      %v3866 = vrot.slane %v3730, 5
      %v3867 = vsel %vm3800, %v3865, %v3866
      %v3868 = vrot.slane %v3866, 4
      %v3869 = vrot.slane %v3731, 5
      %v3870 = vsel %vm3800, %v3868, %v3869
      %v3871 = vrot.slane %v3732, 5
      %v3872 = vrot.slane %v3871, 4
      %v3873 = vrot.slane %v3733, 5
      %v3874 = vsel %vm3800, %v3872, %v3873
      %v3875 = vrot.slane %v3873, 4
      %v3876 = vrot.slane %v3734, 5
      %v3877 = vsel %vm3800, %v3875, %v3876
      %v3878 = vrot.slane %v3735, 5
      %v3879 = vrot.slane %v3878, 4
      %v3880 = vrot.slane %v3736, 5
      %v3881 = vsel %vm3800, %v3879, %v3880
      %v3882 = vrot.slane %v3880, 4
      %v3883 = vrot.slane %v3737, 5
      %v3884 = vsel %vm3800, %v3882, %v3883
      %v3885 = vrot.slane %v3738, 5
      %v3886 = vrot.slane %v3885, 4
      %v3887 = vrot.slane %v3739, 5
      %v3888 = vsel %vm3800, %v3886, %v3887
      %v3889 = vrot.slane %v3887, 4
      %v3890 = vrot.slane %v3740, 5
      %v3891 = vsel %vm3800, %v3889, %v3890
      %v3892 = vrot.slane %v3741, 5
      %v3893 = vrot.slane %v3892, 4
      %v3894 = vrot.slane %v3742, 5
      %v3895 = vsel %vm3800, %v3893, %v3894
      %v3896 = vrot.slane %v3894, 4
      %v3897 = vrot.slane %v3743, 5
      %v3898 = vsel %vm3800, %v3896, %v3897
      %v3899 = vrot.slane %v3744, 5
      %v3900 = vrot.slane %v3899, 4
      %v3901 = vrot.slane %v3745, 5
      %v3902 = vsel %vm3800, %v3900, %v3901
      %v3903 = vrot.slane %v3901, 4
      %v3904 = vrot.slane %v3746, 5
      %v3905 = vsel %vm3800, %v3903, %v3904
      %v3906 = vrot.slane %v3747, 5
      %v3907 = vrot.slane %v3906, 4
      %v3908 = vrot.slane %v3748, 5
      %v3909 = vsel %vm3800, %v3907, %v3908
      %v3910 = vrot.slane %v3908, 4
      %v3911 = vrot.slane %v3749, 5
      %v3912 = vsel %vm3800, %v3910, %v3911
      %v3913 = vld [vmem:[%s1679] sm:$0xf]
      %v3914 = vld [vmem:[%s1679 + $0x4] sm:$0xf]
      %v3915 = vld [vmem:[%s1679 + $0xc] sm:$0xf]
      %v3916 = vld [vmem:[%s1679 + $0x10] sm:$0xf]
      %v3917 = vld [vmem:[%s1679 + $0x18] sm:$0xf]
      %v3918 = vld [vmem:[%s1679 + $0x1c] sm:$0xf]
      %v3919 = vld [vmem:[%s1679 + $0x24] sm:$0xf]
      %v3920 = vld [vmem:[%s1679 + $0x28] sm:$0xf]
      %v3921 = vld [vmem:[%s1679 + $0x30] sm:$0xf]
      %v3922 = vld [vmem:[%s1679 + $0x34] sm:$0xf]
      %v3923 = vld [vmem:[%s1679 + $0x3c] sm:$0xf]
      %v3924 = vld [vmem:[%s1679 + $0x40] sm:$0xf]
      %v3925 = vld [vmem:[%s1679 + $0x48] sm:$0xf]
      %v3926 = vld [vmem:[%s1679 + $0x4c] sm:$0xf]
      %v3927 = vld [vmem:[%s1679 + $0x54] sm:$0xf]
      %v3928 = vld [vmem:[%s1679 + $0x58] sm:$0xf]
      %v3929 = vld [vmem:[%s1679 + $0x60] sm:$0xf]
      %v3930 = vld [vmem:[%s1679 + $0x64] sm:$0xf]
      %v3931 = vld [vmem:[%s1679 + $0x6c] sm:$0xf]
      %v3932 = vld [vmem:[%s1679 + $0x70] sm:$0xf]
      %v3933 = vld [vmem:[%s1679 + $0x78] sm:$0xf]
      %v3934 = vld [vmem:[%s1679 + $0x7c] sm:$0xf]
      %v3935 = vld [vmem:[%s1679 + $0x84] sm:$0xf]
      %v3936 = vld [vmem:[%s1679 + $0x88] sm:$0xf]
      %v3937 = vld [vmem:[%s1679 + $0x90] sm:$0xf]
      %v3938 = vld [vmem:[%s1679 + $0x94] sm:$0xf]
      %v3939 = vld [vmem:[%s1679 + $0x9c] sm:$0xf]
      %v3940 = vld [vmem:[%s1679 + $0xa0] sm:$0xf]
      %v3941 = vld [vmem:[%s1679 + $0xa8] sm:$0xf]
      %v3942 = vld [vmem:[%s1679 + $0xac] sm:$0xf]
      %v3943 = vld [vmem:[%s1679 + $0xb4] sm:$0xf]
      %v3944 = vld [vmem:[%s1679 + $0xb8] sm:$0xf]
      %v3945 = vunpack.c.l.b16 %v3804
      %v3946 = vunpack.c.l.b16 %v3807
      %v3947 = vunpack.c.l.b16 %v3811
      %v3948 = vunpack.c.l.b16 %v3814
      %v3949 = vunpack.c.l.b16 %v3818
      %v3950 = vunpack.c.l.b16 %v3821
      %v3951 = vunpack.c.l.b16 %v3825
      %v3952 = vunpack.c.l.b16 %v3828
      %v3953 = vunpack.c.l.b16 %v3832
      %v3954 = vunpack.c.l.b16 %v3835
      %v3955 = vunpack.c.l.b16 %v3839
      %v3956 = vunpack.c.l.b16 %v3842
      %v3957 = vunpack.c.l.b16 %v3846
      %v3958 = vunpack.c.l.b16 %v3849
      %v3959 = vunpack.c.l.b16 %v3853
      %v3960 = vunpack.c.l.b16 %v3856
      %v3961 = vunpack.c.l.b16 %v3860
      %v3962 = vunpack.c.l.b16 %v3863
      %v3963 = vunpack.c.l.b16 %v3867
      %v3964 = vunpack.c.l.b16 %v3870
      %v3965 = vunpack.c.l.b16 %v3874
      %v3966 = vunpack.c.l.b16 %v3877
      %v3967 = vunpack.c.l.b16 %v3881
      %v3968 = vunpack.c.l.b16 %v3884
      %v3969 = vunpack.c.l.b16 %v3888
      %v3970 = vunpack.c.l.b16 %v3891
      %v3971 = vunpack.c.l.b16 %v3895
      %v3972 = vunpack.c.l.b16 %v3898
      %v3973 = vunpack.c.l.b16 %v3902
      %v3974 = vunpack.c.l.b16 %v3905
      %v3975 = vunpack.c.l.b16 %v3909
      %v3976 = vunpack.c.l.b16 %v3912
      %v3977 = vpack.c.b16 %v3946, %v3945
      %v3978 = vpack.c.b16 %v3948, %v3947
      %v3979 = vpack.c.b16 %v3950, %v3949
      %v3980 = vpack.c.b16 %v3952, %v3951
      %v3981 = vpack.c.b16 %v3954, %v3953
      %v3982 = vpack.c.b16 %v3956, %v3955
      %v3983 = vpack.c.b16 %v3958, %v3957
      %v3984 = vpack.c.b16 %v3960, %v3959
      %v3985 = vpack.c.b16 %v3962, %v3961
      %v3986 = vpack.c.b16 %v3964, %v3963
      %v3987 = vpack.c.b16 %v3966, %v3965
      %v3988 = vpack.c.b16 %v3968, %v3967
      %v3989 = vpack.c.b16 %v3970, %v3969
      %v3990 = vpack.c.b16 %v3972, %v3971
      %v3991 = vpack.c.b16 %v3974, %v3973
      %v3992 = vpack.c.b16 %v3976, %v3975
      %v4025 = vunpack.c.l.b16 %v3913
      %v4026 = vunpack.c.l.b16 %v3914
      %v4027 = vunpack.c.l.b16 %v3915
      %v4028 = vunpack.c.l.b16 %v3916
      %v4029 = vunpack.c.l.b16 %v3917
      %v4030 = vunpack.c.l.b16 %v3918
      %v4031 = vunpack.c.l.b16 %v3919
      %v4032 = vunpack.c.l.b16 %v3920
      %v4033 = vunpack.c.l.b16 %v3921
      %v4034 = vunpack.c.l.b16 %v3922
      %v4035 = vunpack.c.l.b16 %v3923
      %v4036 = vunpack.c.l.b16 %v3924
      %v4037 = vunpack.c.l.b16 %v3925
      %v4038 = vunpack.c.l.b16 %v3926
      %v4039 = vunpack.c.l.b16 %v3927
      %v4040 = vunpack.c.l.b16 %v3928
      %v4041 = vunpack.c.l.b16 %v3929
      %v4042 = vunpack.c.l.b16 %v3930
      %v4043 = vunpack.c.l.b16 %v3931
      %v4044 = vunpack.c.l.b16 %v3932
      %v4045 = vunpack.c.l.b16 %v3933
      %v4046 = vunpack.c.l.b16 %v3934
      %v4047 = vunpack.c.l.b16 %v3935
      %v4048 = vunpack.c.l.b16 %v3936
      %v4049 = vunpack.c.l.b16 %v3937
      %v4050 = vunpack.c.l.b16 %v3938
      %v4051 = vunpack.c.l.b16 %v3939
      %v4052 = vunpack.c.l.b16 %v3940
      %v4053 = vunpack.c.l.b16 %v3941
      %v4054 = vunpack.c.l.b16 %v3942
      %v4055 = vunpack.c.l.b16 %v3943
      %v4056 = vunpack.c.l.b16 %v3944
      %v4057 = vpack.c.b16 %v4026, %v4025
      %v4058 = vpack.c.b16 %v4028, %v4027
      %v4059 = vpack.c.b16 %v4030, %v4029
      %v4060 = vpack.c.b16 %v4032, %v4031
      %v4061 = vpack.c.b16 %v4034, %v4033
      %v4062 = vpack.c.b16 %v4036, %v4035
      %v4063 = vpack.c.b16 %v4038, %v4037
      %v4064 = vpack.c.b16 %v4040, %v4039
      %v4065 = vpack.c.b16 %v4042, %v4041
      %v4066 = vpack.c.b16 %v4044, %v4043
      %v4067 = vpack.c.b16 %v4046, %v4045
      %v4068 = vpack.c.b16 %v4048, %v4047
      %v4069 = vpack.c.b16 %v4050, %v4049
      %v4070 = vpack.c.b16 %v4052, %v4051
      %v4071 = vpack.c.b16 %v4054, %v4053
      %v4072 = vpack.c.b16 %v4056, %v4055
      %4073 = vrot.lane.b32.xlu0 %v4057, 64
      %v4074 = vpop.permute.xlu0 %4073
      %4075 = vrot.lane.b32.xlu0 %v4058, 64
      %v4076 = vpop.permute.xlu0 %4075
      %4077 = vrot.lane.b32.xlu0 %v4059, 64
      %v4078 = vpop.permute.xlu0 %4077
      %4079 = vrot.lane.b32.xlu0 %v4060, 64
      %v4080 = vpop.permute.xlu0 %4079
      %4081 = vrot.lane.b32.xlu0 %v4061, 64
      %v4082 = vpop.permute.xlu0 %4081
      %4083 = vrot.lane.b32.xlu0 %v4062, 64
      %v4084 = vpop.permute.xlu0 %4083
      %4085 = vrot.lane.b32.xlu0 %v4063, 64
      %v4086 = vpop.permute.xlu0 %4085
      %4087 = vrot.lane.b32.xlu0 %v4064, 64
      %v4088 = vpop.permute.xlu0 %4087
      %4089 = vrot.lane.b32.xlu0 %v4065, 64
      %v4090 = vpop.permute.xlu0 %4089
      %4091 = vrot.lane.b32.xlu0 %v4066, 64
      %v4092 = vpop.permute.xlu0 %4091
      %4093 = vrot.lane.b32.xlu0 %v4067, 64
      %v4094 = vpop.permute.xlu0 %4093
      %4095 = vrot.lane.b32.xlu0 %v4068, 64
      %v4096 = vpop.permute.xlu0 %4095
      %4097 = vrot.lane.b32.xlu0 %v4069, 64
      %v4098 = vpop.permute.xlu0 %4097
      %4099 = vrot.lane.b32.xlu0 %v4070, 64
      %v4100 = vpop.permute.xlu0 %4099
      %4101 = vrot.lane.b32.xlu0 %v4071, 64
      %v4102 = vpop.permute.xlu0 %4101
      %4103 = vrot.lane.b32.xlu0 %v4072, 64
      %v4104 = vpop.permute.xlu0 %4103
      %v4107 = vsel %vm3621, %v3977, %v4074
      %v4111 = vsel %vm3621, %v3978, %v4076
      %v4115 = vsel %vm3621, %v3979, %v4078
      %v4119 = vsel %vm3621, %v3980, %v4080
      %v4123 = vsel %vm3621, %v3981, %v4082
      %v4127 = vsel %vm3621, %v3982, %v4084
      %v4131 = vsel %vm3621, %v3983, %v4086
      %v4135 = vsel %vm3621, %v3984, %v4088
      %v4139 = vsel %vm3621, %v3985, %v4090
      %v4143 = vsel %vm3621, %v3986, %v4092
      %v4147 = vsel %vm3621, %v3987, %v4094
      %v4151 = vsel %vm3621, %v3988, %v4096
      %v4155 = vsel %vm3621, %v3989, %v4098
      %v4159 = vsel %vm3621, %v3990, %v4100
      %v4163 = vsel %vm3621, %v3991, %v4102
      %v4167 = vsel %vm3621, %v3992, %v4104
      %4169 = vst [vmem:[#allocation3 + $0x8] sm:$0xff] %v4107
      %4170 = vst [vmem:[#allocation3 + $0x30] sm:$0xff] %v4111
      %4171 = vst [vmem:[#allocation3 + $0x58] sm:$0xff] %v4115
      %4172 = vst [vmem:[#allocation3 + $0x80] sm:$0xff] %v4119
      %4173 = vst [vmem:[#allocation3 + $0xa8] sm:$0xff] %v4123
      %4174 = vst [vmem:[#allocation3 + $0xd0] sm:$0xff] %v4127
      %4175 = vst [vmem:[#allocation3 + $0xf8] sm:$0xff] %v4131
      %4176 = vst [vmem:[#allocation3 + $0x120] sm:$0xff] %v4135
      %4177 = vst [vmem:[#allocation3 + $0x148] sm:$0xff] %v4139
      %4178 = vst [vmem:[#allocation3 + $0x170] sm:$0xff] %v4143
      %4179 = vst [vmem:[#allocation3 + $0x198] sm:$0xff] %v4147
      %4180 = vst [vmem:[#allocation3 + $0x1c0] sm:$0xff] %v4151
      %4181 = vst [vmem:[#allocation3 + $0x1e8] sm:$0xff] %v4155
      %4182 = vst [vmem:[#allocation3 + $0x210] sm:$0xff] %v4159
      %4183 = vst [vmem:[#allocation3 + $0x238] sm:$0xff] %v4163
      %4184 = vst [vmem:[#allocation3 + $0x260] sm:$0xff] %v4167
      %v4185 = vld [vmem:[%s1679] sm:$0xf]
      %v4186 = vld [vmem:[%s1679 + $0x4] sm:$0xf]
      %v4187 = vld [vmem:[%s1679 + $0x8] sm:$0x1]
      %v4188 = vld [vmem:[%s1679 + $0xc] sm:$0xf]
      %v4189 = vld [vmem:[%s1679 + $0x10] sm:$0xf]
      %v4190 = vld [vmem:[%s1679 + $0x14] sm:$0x1]
      %v4191 = vld [vmem:[%s1679 + $0x18] sm:$0xf]
      %v4192 = vld [vmem:[%s1679 + $0x1c] sm:$0xf]
      %v4193 = vld [vmem:[%s1679 + $0x20] sm:$0x1]
      %v4194 = vld [vmem:[%s1679 + $0x24] sm:$0xf]
      %v4195 = vld [vmem:[%s1679 + $0x28] sm:$0xf]
      %v4196 = vld [vmem:[%s1679 + $0x2c] sm:$0x1]
      %v4197 = vld [vmem:[%s1679 + $0x30] sm:$0xf]
      %v4198 = vld [vmem:[%s1679 + $0x34] sm:$0xf]
      %v4199 = vld [vmem:[%s1679 + $0x38] sm:$0x1]
      %v4200 = vld [vmem:[%s1679 + $0x3c] sm:$0xf]
      %v4201 = vld [vmem:[%s1679 + $0x40] sm:$0xf]
      %v4202 = vld [vmem:[%s1679 + $0x44] sm:$0x1]
      %v4203 = vld [vmem:[%s1679 + $0x48] sm:$0xf]
      %v4204 = vld [vmem:[%s1679 + $0x4c] sm:$0xf]
      %v4205 = vld [vmem:[%s1679 + $0x50] sm:$0x1]
      %v4206 = vld [vmem:[%s1679 + $0x54] sm:$0xf]
      %v4207 = vld [vmem:[%s1679 + $0x58] sm:$0xf]
      %v4208 = vld [vmem:[%s1679 + $0x5c] sm:$0x1]
      %v4209 = vld [vmem:[%s1679 + $0x60] sm:$0xf]
      %v4210 = vld [vmem:[%s1679 + $0x64] sm:$0xf]
      %v4211 = vld [vmem:[%s1679 + $0x68] sm:$0x1]
      %v4212 = vld [vmem:[%s1679 + $0x6c] sm:$0xf]
      %v4213 = vld [vmem:[%s1679 + $0x70] sm:$0xf]
      %v4214 = vld [vmem:[%s1679 + $0x74] sm:$0x1]
      %v4215 = vld [vmem:[%s1679 + $0x78] sm:$0xf]
      %v4216 = vld [vmem:[%s1679 + $0x7c] sm:$0xf]
      %v4217 = vld [vmem:[%s1679 + $0x80] sm:$0x1]
      %v4218 = vld [vmem:[%s1679 + $0x84] sm:$0xf]
      %v4219 = vld [vmem:[%s1679 + $0x88] sm:$0xf]
      %v4220 = vld [vmem:[%s1679 + $0x8c] sm:$0x1]
      %v4221 = vld [vmem:[%s1679 + $0x90] sm:$0xf]
      %v4222 = vld [vmem:[%s1679 + $0x94] sm:$0xf]
      %v4223 = vld [vmem:[%s1679 + $0x98] sm:$0x1]
      %v4224 = vld [vmem:[%s1679 + $0x9c] sm:$0xf]
      %v4225 = vld [vmem:[%s1679 + $0xa0] sm:$0xf]
      %v4226 = vld [vmem:[%s1679 + $0xa4] sm:$0x1]
      %v4227 = vld [vmem:[%s1679 + $0xa8] sm:$0xf]
      %v4228 = vld [vmem:[%s1679 + $0xac] sm:$0xf]
      %v4229 = vld [vmem:[%s1679 + $0xb0] sm:$0x1]
      %v4230 = vld [vmem:[%s1679 + $0xb4] sm:$0xf]
      %v4231 = vld [vmem:[%s1679 + $0xb8] sm:$0xf]
      %v4232 = vld [vmem:[%s1679 + $0xbc] sm:$0x1]
      %v4234 = vshrl.u32 %v4185, 16
      %v4236 = vrot.slane %v4234, 4
      %v4237 = vshll.u32 %v4185, 16
      %v4239 = vrot.slane %v4237, 5
      %v4240 = vor.u32 %v4236, %v4239
      %v4241 = vrot.slane %v4240, 4
      %v4243 = vshll.u32 %v4186, 16
      %v4245 = vrot.slane %v4243, 5
      %v4246 = vsel %vm3076, %v4241, %v4245
      %v4247 = vshrl.u32 %v4186, 16
      %v4249 = vrot.slane %v4247, 4
      %v4250 = vor.u32 %v4249, %v4245
      %v4251 = vrot.slane %v4250, 4
      %v4253 = vshll.u32 %v4187, 16
      %v4255 = vrot.slane %v4253, 5
      %v4256 = vsel %vm3076, %v4251, %v4255
      %v4258 = vshrl.u32 %v4188, 16
      %v4260 = vrot.slane %v4258, 4
      %v4261 = vshll.u32 %v4188, 16
      %v4263 = vrot.slane %v4261, 5
      %v4264 = vor.u32 %v4260, %v4263
      %v4265 = vrot.slane %v4264, 4
      %v4267 = vshll.u32 %v4189, 16
      %v4269 = vrot.slane %v4267, 5
      %v4270 = vsel %vm3076, %v4265, %v4269
      %v4271 = vshrl.u32 %v4189, 16
      %v4273 = vrot.slane %v4271, 4
      %v4274 = vor.u32 %v4273, %v4269
      %v4275 = vrot.slane %v4274, 4
      %v4277 = vshll.u32 %v4190, 16
      %v4279 = vrot.slane %v4277, 5
      %v4280 = vsel %vm3076, %v4275, %v4279
      %v4282 = vshrl.u32 %v4191, 16
      %v4284 = vrot.slane %v4282, 4
      %v4285 = vshll.u32 %v4191, 16
      %v4287 = vrot.slane %v4285, 5
      %v4288 = vor.u32 %v4284, %v4287
      %v4289 = vrot.slane %v4288, 4
      %v4291 = vshll.u32 %v4192, 16
      %v4293 = vrot.slane %v4291, 5
      %v4294 = vsel %vm3076, %v4289, %v4293
      %v4295 = vshrl.u32 %v4192, 16
      %v4297 = vrot.slane %v4295, 4
      %v4298 = vor.u32 %v4297, %v4293
      %v4299 = vrot.slane %v4298, 4
      %v4301 = vshll.u32 %v4193, 16
      %v4303 = vrot.slane %v4301, 5
      %v4304 = vsel %vm3076, %v4299, %v4303
      %v4306 = vshrl.u32 %v4194, 16
      %v4308 = vrot.slane %v4306, 4
      %v4309 = vshll.u32 %v4194, 16
      %v4311 = vrot.slane %v4309, 5
      %v4312 = vor.u32 %v4308, %v4311
      %v4313 = vrot.slane %v4312, 4
      %v4315 = vshll.u32 %v4195, 16
      %v4317 = vrot.slane %v4315, 5
      %v4318 = vsel %vm3076, %v4313, %v4317
      %v4319 = vshrl.u32 %v4195, 16
      %v4321 = vrot.slane %v4319, 4
      %v4322 = vor.u32 %v4321, %v4317
      %v4323 = vrot.slane %v4322, 4
      %v4325 = vshll.u32 %v4196, 16
      %v4327 = vrot.slane %v4325, 5
      %v4328 = vsel %vm3076, %v4323, %v4327
      %v4330 = vshrl.u32 %v4197, 16
      %v4332 = vrot.slane %v4330, 4
      %v4333 = vshll.u32 %v4197, 16
      %v4335 = vrot.slane %v4333, 5
      %v4336 = vor.u32 %v4332, %v4335
      %v4337 = vrot.slane %v4336, 4
      %v4339 = vshll.u32 %v4198, 16
      %v4341 = vrot.slane %v4339, 5
      %v4342 = vsel %vm3076, %v4337, %v4341
      %v4343 = vshrl.u32 %v4198, 16
      %v4345 = vrot.slane %v4343, 4
      %v4346 = vor.u32 %v4345, %v4341
      %v4347 = vrot.slane %v4346, 4
      %v4349 = vshll.u32 %v4199, 16
      %v4351 = vrot.slane %v4349, 5
      %v4352 = vsel %vm3076, %v4347, %v4351
      %v4354 = vshrl.u32 %v4200, 16
      %v4356 = vrot.slane %v4354, 4
      %v4357 = vshll.u32 %v4200, 16
      %v4359 = vrot.slane %v4357, 5
      %v4360 = vor.u32 %v4356, %v4359
      %v4361 = vrot.slane %v4360, 4
      %v4363 = vshll.u32 %v4201, 16
      %v4365 = vrot.slane %v4363, 5
      %v4366 = vsel %vm3076, %v4361, %v4365
      %v4367 = vshrl.u32 %v4201, 16
      %v4369 = vrot.slane %v4367, 4
      %v4370 = vor.u32 %v4369, %v4365
      %v4371 = vrot.slane %v4370, 4
      %v4373 = vshll.u32 %v4202, 16
      %v4375 = vrot.slane %v4373, 5
      %v4376 = vsel %vm3076, %v4371, %v4375
      %v4378 = vshrl.u32 %v4203, 16
      %v4380 = vrot.slane %v4378, 4
      %v4381 = vshll.u32 %v4203, 16
      %v4383 = vrot.slane %v4381, 5
      %v4384 = vor.u32 %v4380, %v4383
      %v4385 = vrot.slane %v4384, 4
      %v4387 = vshll.u32 %v4204, 16
      %v4389 = vrot.slane %v4387, 5
      %v4390 = vsel %vm3076, %v4385, %v4389
      %v4391 = vshrl.u32 %v4204, 16
      %v4393 = vrot.slane %v4391, 4
      %v4394 = vor.u32 %v4393, %v4389
      %v4395 = vrot.slane %v4394, 4
      %v4397 = vshll.u32 %v4205, 16
      %v4399 = vrot.slane %v4397, 5
      %v4400 = vsel %vm3076, %v4395, %v4399
      %v4402 = vshrl.u32 %v4206, 16
      %v4404 = vrot.slane %v4402, 4
      %v4405 = vshll.u32 %v4206, 16
      %v4407 = vrot.slane %v4405, 5
      %v4408 = vor.u32 %v4404, %v4407
      %v4409 = vrot.slane %v4408, 4
      %v4411 = vshll.u32 %v4207, 16
      %v4413 = vrot.slane %v4411, 5
      %v4414 = vsel %vm3076, %v4409, %v4413
      %v4415 = vshrl.u32 %v4207, 16
      %v4417 = vrot.slane %v4415, 4
      %v4418 = vor.u32 %v4417, %v4413
      %v4419 = vrot.slane %v4418, 4
      %v4421 = vshll.u32 %v4208, 16
      %v4423 = vrot.slane %v4421, 5
      %v4424 = vsel %vm3076, %v4419, %v4423
      %v4426 = vshrl.u32 %v4209, 16
      %v4428 = vrot.slane %v4426, 4
      %v4429 = vshll.u32 %v4209, 16
      %v4431 = vrot.slane %v4429, 5
      %v4432 = vor.u32 %v4428, %v4431
      %v4433 = vrot.slane %v4432, 4
      %v4435 = vshll.u32 %v4210, 16
      %v4437 = vrot.slane %v4435, 5
      %v4438 = vsel %vm3076, %v4433, %v4437
      %v4439 = vshrl.u32 %v4210, 16
      %v4441 = vrot.slane %v4439, 4
      %v4442 = vor.u32 %v4441, %v4437
      %v4443 = vrot.slane %v4442, 4
      %v4445 = vshll.u32 %v4211, 16
      %v4447 = vrot.slane %v4445, 5
      %v4448 = vsel %vm3076, %v4443, %v4447
      %v4450 = vshrl.u32 %v4212, 16
      %v4452 = vrot.slane %v4450, 4
      %v4453 = vshll.u32 %v4212, 16
      %v4455 = vrot.slane %v4453, 5
      %v4456 = vor.u32 %v4452, %v4455
      %v4457 = vrot.slane %v4456, 4
      %v4459 = vshll.u32 %v4213, 16
      %v4461 = vrot.slane %v4459, 5
      %v4462 = vsel %vm3076, %v4457, %v4461
      %v4463 = vshrl.u32 %v4213, 16
      %v4465 = vrot.slane %v4463, 4
      %v4466 = vor.u32 %v4465, %v4461
      %v4467 = vrot.slane %v4466, 4
      %v4469 = vshll.u32 %v4214, 16
      %v4471 = vrot.slane %v4469, 5
      %v4472 = vsel %vm3076, %v4467, %v4471
      %v4474 = vshrl.u32 %v4215, 16
      %v4476 = vrot.slane %v4474, 4
      %v4477 = vshll.u32 %v4215, 16
      %v4479 = vrot.slane %v4477, 5
      %v4480 = vor.u32 %v4476, %v4479
      %v4481 = vrot.slane %v4480, 4
      %v4483 = vshll.u32 %v4216, 16
      %v4485 = vrot.slane %v4483, 5
      %v4486 = vsel %vm3076, %v4481, %v4485
      %v4487 = vshrl.u32 %v4216, 16
      %v4489 = vrot.slane %v4487, 4
      %v4490 = vor.u32 %v4489, %v4485
      %v4491 = vrot.slane %v4490, 4
      %v4493 = vshll.u32 %v4217, 16
      %v4495 = vrot.slane %v4493, 5
      %v4496 = vsel %vm3076, %v4491, %v4495
      %v4498 = vshrl.u32 %v4218, 16
      %v4500 = vrot.slane %v4498, 4
      %v4501 = vshll.u32 %v4218, 16
      %v4503 = vrot.slane %v4501, 5
      %v4504 = vor.u32 %v4500, %v4503
      %v4505 = vrot.slane %v4504, 4
      %v4507 = vshll.u32 %v4219, 16
      %v4509 = vrot.slane %v4507, 5
      %v4510 = vsel %vm3076, %v4505, %v4509
      %v4511 = vshrl.u32 %v4219, 16
      %v4513 = vrot.slane %v4511, 4
      %v4514 = vor.u32 %v4513, %v4509
      %v4515 = vrot.slane %v4514, 4
      %v4517 = vshll.u32 %v4220, 16
      %v4519 = vrot.slane %v4517, 5
      %v4520 = vsel %vm3076, %v4515, %v4519
      %v4522 = vshrl.u32 %v4221, 16
      %v4524 = vrot.slane %v4522, 4
      %v4525 = vshll.u32 %v4221, 16
      %v4527 = vrot.slane %v4525, 5
      %v4528 = vor.u32 %v4524, %v4527
      %v4529 = vrot.slane %v4528, 4
      %v4531 = vshll.u32 %v4222, 16
      %v4533 = vrot.slane %v4531, 5
      %v4534 = vsel %vm3076, %v4529, %v4533
      %v4535 = vshrl.u32 %v4222, 16
      %v4537 = vrot.slane %v4535, 4
      %v4538 = vor.u32 %v4537, %v4533
      %v4539 = vrot.slane %v4538, 4
      %v4541 = vshll.u32 %v4223, 16
      %v4543 = vrot.slane %v4541, 5
      %v4544 = vsel %vm3076, %v4539, %v4543
      %v4546 = vshrl.u32 %v4224, 16
      %v4548 = vrot.slane %v4546, 4
      %v4549 = vshll.u32 %v4224, 16
      %v4551 = vrot.slane %v4549, 5
      %v4552 = vor.u32 %v4548, %v4551
      %v4553 = vrot.slane %v4552, 4
      %v4555 = vshll.u32 %v4225, 16
      %v4557 = vrot.slane %v4555, 5
      %v4558 = vsel %vm3076, %v4553, %v4557
      %v4559 = vshrl.u32 %v4225, 16
      %v4561 = vrot.slane %v4559, 4
      %v4562 = vor.u32 %v4561, %v4557
      %v4563 = vrot.slane %v4562, 4
      %v4565 = vshll.u32 %v4226, 16
      %v4567 = vrot.slane %v4565, 5
      %v4568 = vsel %vm3076, %v4563, %v4567
      %v4570 = vshrl.u32 %v4227, 16
      %v4572 = vrot.slane %v4570, 4
      %v4573 = vshll.u32 %v4227, 16
      %v4575 = vrot.slane %v4573, 5
      %v4576 = vor.u32 %v4572, %v4575
      %v4577 = vrot.slane %v4576, 4
      %v4579 = vshll.u32 %v4228, 16
      %v4581 = vrot.slane %v4579, 5
      %v4582 = vsel %vm3076, %v4577, %v4581
      %v4583 = vshrl.u32 %v4228, 16
      %v4585 = vrot.slane %v4583, 4
      %v4586 = vor.u32 %v4585, %v4581
      %v4587 = vrot.slane %v4586, 4
      %v4589 = vshll.u32 %v4229, 16
      %v4591 = vrot.slane %v4589, 5
      %v4592 = vsel %vm3076, %v4587, %v4591
      %v4594 = vshrl.u32 %v4230, 16
      %v4596 = vrot.slane %v4594, 4
      %v4597 = vshll.u32 %v4230, 16
      %v4599 = vrot.slane %v4597, 5
      %v4600 = vor.u32 %v4596, %v4599
      %v4601 = vrot.slane %v4600, 4
      %v4603 = vshll.u32 %v4231, 16
      %v4605 = vrot.slane %v4603, 5
      %v4606 = vsel %vm3076, %v4601, %v4605
      %v4607 = vshrl.u32 %v4231, 16
      %v4609 = vrot.slane %v4607, 4
      %v4610 = vor.u32 %v4609, %v4605
      %v4611 = vrot.slane %v4610, 4
      %v4613 = vshll.u32 %v4232, 16
      %v4615 = vrot.slane %v4613, 5
      %v4616 = vsel %vm3076, %v4611, %v4615
      %v4617 = vld [vmem:[%s1679] sm:$0xe]
      %v4618 = vld [vmem:[%s1679 + $0xc] sm:$0xe]
      %v4619 = vld [vmem:[%s1679 + $0x18] sm:$0xe]
      %v4620 = vld [vmem:[%s1679 + $0x24] sm:$0xe]
      %v4621 = vld [vmem:[%s1679 + $0x30] sm:$0xe]
      %v4622 = vld [vmem:[%s1679 + $0x3c] sm:$0xe]
      %v4623 = vld [vmem:[%s1679 + $0x48] sm:$0xe]
      %v4624 = vld [vmem:[%s1679 + $0x54] sm:$0xe]
      %v4625 = vld [vmem:[%s1679 + $0x60] sm:$0xe]
      %v4626 = vld [vmem:[%s1679 + $0x6c] sm:$0xe]
      %v4627 = vld [vmem:[%s1679 + $0x78] sm:$0xe]
      %v4628 = vld [vmem:[%s1679 + $0x84] sm:$0xe]
      %v4629 = vld [vmem:[%s1679 + $0x90] sm:$0xe]
      %v4630 = vld [vmem:[%s1679 + $0x9c] sm:$0xe]
      %v4631 = vld [vmem:[%s1679 + $0xa8] sm:$0xe]
      %v4632 = vld [vmem:[%s1679 + $0xb4] sm:$0xe]
      %v4681 = vrot.slane %v4617, 5
      %v4682 = vrot.slane %v4681, 4
      %v4683 = vrot.slane %v4186, 5
      %v4684 = vsel %vm3800, %v4682, %v4683
      %v4685 = vrot.slane %v4683, 4
      %v4686 = vrot.slane %v4187, 5
      %v4687 = vsel %vm3800, %v4685, %v4686
      %v4688 = vrot.slane %v4618, 5
      %v4689 = vrot.slane %v4688, 4
      %v4690 = vrot.slane %v4189, 5
      %v4691 = vsel %vm3800, %v4689, %v4690
      %v4692 = vrot.slane %v4690, 4
      %v4693 = vrot.slane %v4190, 5
      %v4694 = vsel %vm3800, %v4692, %v4693
      %v4695 = vrot.slane %v4619, 5
      %v4696 = vrot.slane %v4695, 4
      %v4697 = vrot.slane %v4192, 5
      %v4698 = vsel %vm3800, %v4696, %v4697
      %v4699 = vrot.slane %v4697, 4
      %v4700 = vrot.slane %v4193, 5
      %v4701 = vsel %vm3800, %v4699, %v4700
      %v4702 = vrot.slane %v4620, 5
      %v4703 = vrot.slane %v4702, 4
      %v4704 = vrot.slane %v4195, 5
      %v4705 = vsel %vm3800, %v4703, %v4704
      %v4706 = vrot.slane %v4704, 4
      %v4707 = vrot.slane %v4196, 5
      %v4708 = vsel %vm3800, %v4706, %v4707
      %v4709 = vrot.slane %v4621, 5
      %v4710 = vrot.slane %v4709, 4
      %v4711 = vrot.slane %v4198, 5
      %v4712 = vsel %vm3800, %v4710, %v4711
      %v4713 = vrot.slane %v4711, 4
      %v4714 = vrot.slane %v4199, 5
      %v4715 = vsel %vm3800, %v4713, %v4714
      %v4716 = vrot.slane %v4622, 5
      %v4717 = vrot.slane %v4716, 4
      %v4718 = vrot.slane %v4201, 5
      %v4719 = vsel %vm3800, %v4717, %v4718
      %v4720 = vrot.slane %v4718, 4
      %v4721 = vrot.slane %v4202, 5
      %v4722 = vsel %vm3800, %v4720, %v4721
      %v4723 = vrot.slane %v4623, 5
      %v4724 = vrot.slane %v4723, 4
      %v4725 = vrot.slane %v4204, 5
      %v4726 = vsel %vm3800, %v4724, %v4725
      %v4727 = vrot.slane %v4725, 4
      %v4728 = vrot.slane %v4205, 5
      %v4729 = vsel %vm3800, %v4727, %v4728
      %v4730 = vrot.slane %v4624, 5
      %v4731 = vrot.slane %v4730, 4
      %v4732 = vrot.slane %v4207, 5
      %v4733 = vsel %vm3800, %v4731, %v4732
      %v4734 = vrot.slane %v4732, 4
      %v4735 = vrot.slane %v4208, 5
      %v4736 = vsel %vm3800, %v4734, %v4735
      %v4737 = vrot.slane %v4625, 5
      %v4738 = vrot.slane %v4737, 4
      %v4739 = vrot.slane %v4210, 5
      %v4740 = vsel %vm3800, %v4738, %v4739
      %v4741 = vrot.slane %v4739, 4
      %v4742 = vrot.slane %v4211, 5
      %v4743 = vsel %vm3800, %v4741, %v4742
      %v4744 = vrot.slane %v4626, 5
      %v4745 = vrot.slane %v4744, 4
      %v4746 = vrot.slane %v4213, 5
      %v4747 = vsel %vm3800, %v4745, %v4746
      %v4748 = vrot.slane %v4746, 4
      %v4749 = vrot.slane %v4214, 5
      %v4750 = vsel %vm3800, %v4748, %v4749
      %v4751 = vrot.slane %v4627, 5
      %v4752 = vrot.slane %v4751, 4
      %v4753 = vrot.slane %v4216, 5
      %v4754 = vsel %vm3800, %v4752, %v4753
      %v4755 = vrot.slane %v4753, 4
      %v4756 = vrot.slane %v4217, 5
      %v4757 = vsel %vm3800, %v4755, %v4756
      %v4758 = vrot.slane %v4628, 5
      %v4759 = vrot.slane %v4758, 4
      %v4760 = vrot.slane %v4219, 5
      %v4761 = vsel %vm3800, %v4759, %v4760
      %v4762 = vrot.slane %v4760, 4
      %v4763 = vrot.slane %v4220, 5
      %v4764 = vsel %vm3800, %v4762, %v4763
      %v4765 = vrot.slane %v4629, 5
      %v4766 = vrot.slane %v4765, 4
      %v4767 = vrot.slane %v4222, 5
      %v4768 = vsel %vm3800, %v4766, %v4767
      %v4769 = vrot.slane %v4767, 4
      %v4770 = vrot.slane %v4223, 5
      %v4771 = vsel %vm3800, %v4769, %v4770
      %v4772 = vrot.slane %v4630, 5
      %v4773 = vrot.slane %v4772, 4
      %v4774 = vrot.slane %v4225, 5
      %v4775 = vsel %vm3800, %v4773, %v4774
      %v4776 = vrot.slane %v4774, 4
      %v4777 = vrot.slane %v4226, 5
      %v4778 = vsel %vm3800, %v4776, %v4777
      %v4779 = vrot.slane %v4631, 5
      %v4780 = vrot.slane %v4779, 4
      %v4781 = vrot.slane %v4228, 5
      %v4782 = vsel %vm3800, %v4780, %v4781
      %v4783 = vrot.slane %v4781, 4
      %v4784 = vrot.slane %v4229, 5
      %v4785 = vsel %vm3800, %v4783, %v4784
      %v4786 = vrot.slane %v4632, 5
      %v4787 = vrot.slane %v4786, 4
      %v4788 = vrot.slane %v4231, 5
      %v4789 = vsel %vm3800, %v4787, %v4788
      %v4790 = vrot.slane %v4788, 4
      %v4791 = vrot.slane %v4232, 5
      %v4792 = vsel %vm3800, %v4790, %v4791
      %v4793 = vunpack.c.l.b16 %v4246
      %v4794 = vunpack.c.l.b16 %v4256
      %v4795 = vunpack.c.l.b16 %v4270
      %v4796 = vunpack.c.l.b16 %v4280
      %v4797 = vunpack.c.l.b16 %v4294
      %v4798 = vunpack.c.l.b16 %v4304
      %v4799 = vunpack.c.l.b16 %v4318
      %v4800 = vunpack.c.l.b16 %v4328
      %v4801 = vunpack.c.l.b16 %v4342
      %v4802 = vunpack.c.l.b16 %v4352
      %v4803 = vunpack.c.l.b16 %v4366
      %v4804 = vunpack.c.l.b16 %v4376
      %v4805 = vunpack.c.l.b16 %v4390
      %v4806 = vunpack.c.l.b16 %v4400
      %v4807 = vunpack.c.l.b16 %v4414
      %v4808 = vunpack.c.l.b16 %v4424
      %v4809 = vunpack.c.l.b16 %v4438
      %v4810 = vunpack.c.l.b16 %v4448
      %v4811 = vunpack.c.l.b16 %v4462
      %v4812 = vunpack.c.l.b16 %v4472
      %v4813 = vunpack.c.l.b16 %v4486
      %v4814 = vunpack.c.l.b16 %v4496
      %v4815 = vunpack.c.l.b16 %v4510
      %v4816 = vunpack.c.l.b16 %v4520
      %v4817 = vunpack.c.l.b16 %v4534
      %v4818 = vunpack.c.l.b16 %v4544
      %v4819 = vunpack.c.l.b16 %v4558
      %v4820 = vunpack.c.l.b16 %v4568
      %v4821 = vunpack.c.l.b16 %v4582
      %v4822 = vunpack.c.l.b16 %v4592
      %v4823 = vunpack.c.l.b16 %v4606
      %v4824 = vunpack.c.l.b16 %v4616
      %v4825 = vpack.c.b16 %v4794, %v4793
      %v4826 = vpack.c.b16 %v4796, %v4795
      %v4827 = vpack.c.b16 %v4798, %v4797
      %v4828 = vpack.c.b16 %v4800, %v4799
      %v4829 = vpack.c.b16 %v4802, %v4801
      %v4830 = vpack.c.b16 %v4804, %v4803
      %v4831 = vpack.c.b16 %v4806, %v4805
      %v4832 = vpack.c.b16 %v4808, %v4807
      %v4833 = vpack.c.b16 %v4810, %v4809
      %v4834 = vpack.c.b16 %v4812, %v4811
      %v4835 = vpack.c.b16 %v4814, %v4813
      %v4836 = vpack.c.b16 %v4816, %v4815
      %v4837 = vpack.c.b16 %v4818, %v4817
      %v4838 = vpack.c.b16 %v4820, %v4819
      %v4839 = vpack.c.b16 %v4822, %v4821
      %v4840 = vpack.c.b16 %v4824, %v4823
      %v4841 = vunpack.c.l.b16 %v4684
      %v4842 = vunpack.c.l.b16 %v4687
      %v4843 = vunpack.c.l.b16 %v4691
      %v4844 = vunpack.c.l.b16 %v4694
      %v4845 = vunpack.c.l.b16 %v4698
      %v4846 = vunpack.c.l.b16 %v4701
      %v4847 = vunpack.c.l.b16 %v4705
      %v4848 = vunpack.c.l.b16 %v4708
      %v4849 = vunpack.c.l.b16 %v4712
      %v4850 = vunpack.c.l.b16 %v4715
      %v4851 = vunpack.c.l.b16 %v4719
      %v4852 = vunpack.c.l.b16 %v4722
      %v4853 = vunpack.c.l.b16 %v4726
      %v4854 = vunpack.c.l.b16 %v4729
      %v4855 = vunpack.c.l.b16 %v4733
      %v4856 = vunpack.c.l.b16 %v4736
      %v4857 = vunpack.c.l.b16 %v4740
      %v4858 = vunpack.c.l.b16 %v4743
      %v4859 = vunpack.c.l.b16 %v4747
      %v4860 = vunpack.c.l.b16 %v4750
      %v4861 = vunpack.c.l.b16 %v4754
      %v4862 = vunpack.c.l.b16 %v4757
      %v4863 = vunpack.c.l.b16 %v4761
      %v4864 = vunpack.c.l.b16 %v4764
      %v4865 = vunpack.c.l.b16 %v4768
      %v4866 = vunpack.c.l.b16 %v4771
      %v4867 = vunpack.c.l.b16 %v4775
      %v4868 = vunpack.c.l.b16 %v4778
      %v4869 = vunpack.c.l.b16 %v4782
      %v4870 = vunpack.c.l.b16 %v4785
      %v4871 = vunpack.c.l.b16 %v4789
      %v4872 = vunpack.c.l.b16 %v4792
      %v4873 = vpack.c.b16 %v4842, %v4841
      %v4874 = vpack.c.b16 %v4844, %v4843
      %v4875 = vpack.c.b16 %v4846, %v4845
      %v4876 = vpack.c.b16 %v4848, %v4847
      %v4877 = vpack.c.b16 %v4850, %v4849
      %v4878 = vpack.c.b16 %v4852, %v4851
      %v4879 = vpack.c.b16 %v4854, %v4853
      %v4880 = vpack.c.b16 %v4856, %v4855
      %v4881 = vpack.c.b16 %v4858, %v4857
      %v4882 = vpack.c.b16 %v4860, %v4859
      %v4883 = vpack.c.b16 %v4862, %v4861
      %v4884 = vpack.c.b16 %v4864, %v4863
      %v4885 = vpack.c.b16 %v4866, %v4865
      %v4886 = vpack.c.b16 %v4868, %v4867
      %v4887 = vpack.c.b16 %v4870, %v4869
      %v4888 = vpack.c.b16 %v4872, %v4871
      %4889 = vrot.lane.b32.xlu0 %v4873, 64
      %v4890 = vpop.permute.xlu0 %4889
      %4891 = vrot.lane.b32.xlu0 %v4874, 64
      %v4892 = vpop.permute.xlu0 %4891
      %4893 = vrot.lane.b32.xlu0 %v4875, 64
      %v4894 = vpop.permute.xlu0 %4893
      %4895 = vrot.lane.b32.xlu0 %v4876, 64
      %v4896 = vpop.permute.xlu0 %4895
      %4897 = vrot.lane.b32.xlu0 %v4877, 64
      %v4898 = vpop.permute.xlu0 %4897
      %4899 = vrot.lane.b32.xlu0 %v4878, 64
      %v4900 = vpop.permute.xlu0 %4899
      %4901 = vrot.lane.b32.xlu0 %v4879, 64
      %v4902 = vpop.permute.xlu0 %4901
      %4903 = vrot.lane.b32.xlu0 %v4880, 64
      %v4904 = vpop.permute.xlu0 %4903
      %4905 = vrot.lane.b32.xlu0 %v4881, 64
      %v4906 = vpop.permute.xlu0 %4905
      %4907 = vrot.lane.b32.xlu0 %v4882, 64
      %v4908 = vpop.permute.xlu0 %4907
      %4909 = vrot.lane.b32.xlu0 %v4883, 64
      %v4910 = vpop.permute.xlu0 %4909
      %4911 = vrot.lane.b32.xlu0 %v4884, 64
      %v4912 = vpop.permute.xlu0 %4911
      %4913 = vrot.lane.b32.xlu0 %v4885, 64
      %v4914 = vpop.permute.xlu0 %4913
      %4915 = vrot.lane.b32.xlu0 %v4886, 64
      %v4916 = vpop.permute.xlu0 %4915
      %4917 = vrot.lane.b32.xlu0 %v4887, 64
      %v4918 = vpop.permute.xlu0 %4917
      %4919 = vrot.lane.b32.xlu0 %v4888, 64
      %v4920 = vpop.permute.xlu0 %4919
      %v4923 = vsel %vm3621, %v4825, %v4890
      %v4927 = vsel %vm3621, %v4826, %v4892
      %v4931 = vsel %vm3621, %v4827, %v4894
      %v4935 = vsel %vm3621, %v4828, %v4896
      %v4939 = vsel %vm3621, %v4829, %v4898
      %v4943 = vsel %vm3621, %v4830, %v4900
      %v4947 = vsel %vm3621, %v4831, %v4902
      %v4951 = vsel %vm3621, %v4832, %v4904
      %v4955 = vsel %vm3621, %v4833, %v4906
      %v4959 = vsel %vm3621, %v4834, %v4908
      %v4963 = vsel %vm3621, %v4835, %v4910
      %v4967 = vsel %vm3621, %v4836, %v4912
      %v4971 = vsel %vm3621, %v4837, %v4914
      %v4975 = vsel %vm3621, %v4838, %v4916
      %v4979 = vsel %vm3621, %v4839, %v4918
      %v4983 = vsel %vm3621, %v4840, %v4920
      %4985 = vst [vmem:[#allocation3 + $0x10] sm:$0xff] %v4923
      %4986 = vst [vmem:[#allocation3 + $0x38] sm:$0xff] %v4927
      %4987 = vst [vmem:[#allocation3 + $0x60] sm:$0xff] %v4931
      %4988 = vst [vmem:[#allocation3 + $0x88] sm:$0xff] %v4935
      %4989 = vst [vmem:[#allocation3 + $0xb0] sm:$0xff] %v4939
      %4990 = vst [vmem:[#allocation3 + $0xd8] sm:$0xff] %v4943
      %4991 = vst [vmem:[#allocation3 + $0x100] sm:$0xff] %v4947
      %4992 = vst [vmem:[#allocation3 + $0x128] sm:$0xff] %v4951
      %4993 = vst [vmem:[#allocation3 + $0x150] sm:$0xff] %v4955
      %4994 = vst [vmem:[#allocation3 + $0x178] sm:$0xff] %v4959
      %4995 = vst [vmem:[#allocation3 + $0x1a0] sm:$0xff] %v4963
      %4996 = vst [vmem:[#allocation3 + $0x1c8] sm:$0xff] %v4967
      %4997 = vst [vmem:[#allocation3 + $0x1f0] sm:$0xff] %v4971
      %4998 = vst [vmem:[#allocation3 + $0x218] sm:$0xff] %v4975
      %4999 = vst [vmem:[#allocation3 + $0x240] sm:$0xff] %v4979
      %5000 = vst [vmem:[#allocation3 + $0x268] sm:$0xff] %v4983
      %s5001 = scalar_lea.vmem [#allocation2], 24
      %v5002 = vld [vmem:[%s5001] sm:$0xf]
      %v5003 = vld [vmem:[%s5001 + $0x4] sm:$0xf]
      %v5004 = vld [vmem:[%s5001 + $0xc] sm:$0xf]
      %v5005 = vld [vmem:[%s5001 + $0x10] sm:$0xf]
      %v5006 = vld [vmem:[%s5001 + $0x18] sm:$0xf]
      %v5007 = vld [vmem:[%s5001 + $0x1c] sm:$0xf]
      %v5008 = vld [vmem:[%s5001 + $0x24] sm:$0xf]
      %v5009 = vld [vmem:[%s5001 + $0x28] sm:$0xf]
      %v5010 = vld [vmem:[%s5001 + $0x30] sm:$0xf]
      %v5011 = vld [vmem:[%s5001 + $0x34] sm:$0xf]
      %v5012 = vld [vmem:[%s5001 + $0x3c] sm:$0xf]
      %v5013 = vld [vmem:[%s5001 + $0x40] sm:$0xf]
      %v5014 = vld [vmem:[%s5001 + $0x48] sm:$0xf]
      %v5015 = vld [vmem:[%s5001 + $0x4c] sm:$0xf]
      %v5016 = vld [vmem:[%s5001 + $0x54] sm:$0xf]
      %v5017 = vld [vmem:[%s5001 + $0x58] sm:$0xf]
      %v5018 = vld [vmem:[%s5001 + $0x60] sm:$0xf]
      %v5019 = vld [vmem:[%s5001 + $0x64] sm:$0xf]
      %v5020 = vld [vmem:[%s5001 + $0x6c] sm:$0xf]
      %v5021 = vld [vmem:[%s5001 + $0x70] sm:$0xf]
      %v5022 = vld [vmem:[%s5001 + $0x78] sm:$0xf]
      %v5023 = vld [vmem:[%s5001 + $0x7c] sm:$0xf]
      %v5024 = vld [vmem:[%s5001 + $0x84] sm:$0xf]
      %v5025 = vld [vmem:[%s5001 + $0x88] sm:$0xf]
      %v5026 = vld [vmem:[%s5001 + $0x90] sm:$0xf]
      %v5027 = vld [vmem:[%s5001 + $0x94] sm:$0xf]
      %v5028 = vld [vmem:[%s5001 + $0x9c] sm:$0xf]
      %v5029 = vld [vmem:[%s5001 + $0xa0] sm:$0xf]
      %v5030 = vld [vmem:[%s5001 + $0xa8] sm:$0xf]
      %v5031 = vld [vmem:[%s5001 + $0xac] sm:$0xf]
      %v5032 = vld [vmem:[%s5001 + $0xb4] sm:$0xf]
      %v5033 = vld [vmem:[%s5001 + $0xb8] sm:$0xf]
      %v5034 = vld [vmem:[%s5001 + $0x8] sm:$0x1]
      %v5035 = vld [vmem:[%s5001 + $0x14] sm:$0x1]
      %v5036 = vld [vmem:[%s5001 + $0x20] sm:$0x1]
      %v5037 = vld [vmem:[%s5001 + $0x2c] sm:$0x1]
      %v5038 = vld [vmem:[%s5001 + $0x38] sm:$0x1]
      %v5039 = vld [vmem:[%s5001 + $0x44] sm:$0x1]
      %v5040 = vld [vmem:[%s5001 + $0x50] sm:$0x1]
      %v5041 = vld [vmem:[%s5001 + $0x5c] sm:$0x1]
      %v5042 = vld [vmem:[%s5001 + $0x68] sm:$0x1]
      %v5043 = vld [vmem:[%s5001 + $0x74] sm:$0x1]
      %v5044 = vld [vmem:[%s5001 + $0x80] sm:$0x1]
      %v5045 = vld [vmem:[%s5001 + $0x8c] sm:$0x1]
      %v5046 = vld [vmem:[%s5001 + $0x98] sm:$0x1]
      %v5047 = vld [vmem:[%s5001 + $0xa4] sm:$0x1]
      %v5048 = vld [vmem:[%s5001 + $0xb0] sm:$0x1]
      %v5049 = vld [vmem:[%s5001 + $0xbc] sm:$0x1]
      %v5051 = vshrl.u32 %v5002, 16
      %v5053 = vrot.slane %v5051, 4
      %v5054 = vshll.u32 %v5002, 16
      %v5056 = vrot.slane %v5054, 5
      %v5057 = vor.u32 %v5053, %v5056
      %v5058 = vrot.slane %v5057, 4
      %v5060 = vshll.u32 %v5003, 16
      %v5062 = vrot.slane %v5060, 5
      %v5063 = vsel %vm3076, %v5058, %v5062
      %v5064 = vshrl.u32 %v5003, 16
      %v5066 = vrot.slane %v5064, 4
      %v5067 = vor.u32 %v5066, %v5062
      %v5068 = vrot.slane %v5067, 4
      %v5070 = vshll.u32 %v5034, 16
      %v5072 = vrot.slane %v5070, 5
      %v5073 = vsel %vm3076, %v5068, %v5072
      %v5075 = vshrl.u32 %v5004, 16
      %v5077 = vrot.slane %v5075, 4
      %v5078 = vshll.u32 %v5004, 16
      %v5080 = vrot.slane %v5078, 5
      %v5081 = vor.u32 %v5077, %v5080
      %v5082 = vrot.slane %v5081, 4
      %v5084 = vshll.u32 %v5005, 16
      %v5086 = vrot.slane %v5084, 5
      %v5087 = vsel %vm3076, %v5082, %v5086
      %v5088 = vshrl.u32 %v5005, 16
      %v5090 = vrot.slane %v5088, 4
      %v5091 = vor.u32 %v5090, %v5086
      %v5092 = vrot.slane %v5091, 4
      %v5094 = vshll.u32 %v5035, 16
      %v5096 = vrot.slane %v5094, 5
      %v5097 = vsel %vm3076, %v5092, %v5096
      %v5099 = vshrl.u32 %v5006, 16
      %v5101 = vrot.slane %v5099, 4
      %v5102 = vshll.u32 %v5006, 16
      %v5104 = vrot.slane %v5102, 5
      %v5105 = vor.u32 %v5101, %v5104
      %v5106 = vrot.slane %v5105, 4
      %v5108 = vshll.u32 %v5007, 16
      %v5110 = vrot.slane %v5108, 5
      %v5111 = vsel %vm3076, %v5106, %v5110
      %v5112 = vshrl.u32 %v5007, 16
      %v5114 = vrot.slane %v5112, 4
      %v5115 = vor.u32 %v5114, %v5110
      %v5116 = vrot.slane %v5115, 4
      %v5118 = vshll.u32 %v5036, 16
      %v5120 = vrot.slane %v5118, 5
      %v5121 = vsel %vm3076, %v5116, %v5120
      %v5123 = vshrl.u32 %v5008, 16
      %v5125 = vrot.slane %v5123, 4
      %v5126 = vshll.u32 %v5008, 16
      %v5128 = vrot.slane %v5126, 5
      %v5129 = vor.u32 %v5125, %v5128
      %v5130 = vrot.slane %v5129, 4
      %v5132 = vshll.u32 %v5009, 16
      %v5134 = vrot.slane %v5132, 5
      %v5135 = vsel %vm3076, %v5130, %v5134
      %v5136 = vshrl.u32 %v5009, 16
      %v5138 = vrot.slane %v5136, 4
      %v5139 = vor.u32 %v5138, %v5134
      %v5140 = vrot.slane %v5139, 4
      %v5142 = vshll.u32 %v5037, 16
      %v5144 = vrot.slane %v5142, 5
      %v5145 = vsel %vm3076, %v5140, %v5144
      %v5147 = vshrl.u32 %v5010, 16
      %v5149 = vrot.slane %v5147, 4
      %v5150 = vshll.u32 %v5010, 16
      %v5152 = vrot.slane %v5150, 5
      %v5153 = vor.u32 %v5149, %v5152
      %v5154 = vrot.slane %v5153, 4
      %v5156 = vshll.u32 %v5011, 16
      %v5158 = vrot.slane %v5156, 5
      %v5159 = vsel %vm3076, %v5154, %v5158
      %v5160 = vshrl.u32 %v5011, 16
      %v5162 = vrot.slane %v5160, 4
      %v5163 = vor.u32 %v5162, %v5158
      %v5164 = vrot.slane %v5163, 4
      %v5166 = vshll.u32 %v5038, 16
      %v5168 = vrot.slane %v5166, 5
      %v5169 = vsel %vm3076, %v5164, %v5168
      %v5171 = vshrl.u32 %v5012, 16
      %v5173 = vrot.slane %v5171, 4
      %v5174 = vshll.u32 %v5012, 16
      %v5176 = vrot.slane %v5174, 5
      %v5177 = vor.u32 %v5173, %v5176
      %v5178 = vrot.slane %v5177, 4
      %v5180 = vshll.u32 %v5013, 16
      %v5182 = vrot.slane %v5180, 5
      %v5183 = vsel %vm3076, %v5178, %v5182
      %v5184 = vshrl.u32 %v5013, 16
      %v5186 = vrot.slane %v5184, 4
      %v5187 = vor.u32 %v5186, %v5182
      %v5188 = vrot.slane %v5187, 4
      %v5190 = vshll.u32 %v5039, 16
      %v5192 = vrot.slane %v5190, 5
      %v5193 = vsel %vm3076, %v5188, %v5192
      %v5195 = vshrl.u32 %v5014, 16
      %v5197 = vrot.slane %v5195, 4
      %v5198 = vshll.u32 %v5014, 16
      %v5200 = vrot.slane %v5198, 5
      %v5201 = vor.u32 %v5197, %v5200
      %v5202 = vrot.slane %v5201, 4
      %v5204 = vshll.u32 %v5015, 16
      %v5206 = vrot.slane %v5204, 5
      %v5207 = vsel %vm3076, %v5202, %v5206
      %v5208 = vshrl.u32 %v5015, 16
      %v5210 = vrot.slane %v5208, 4
      %v5211 = vor.u32 %v5210, %v5206
      %v5212 = vrot.slane %v5211, 4
      %v5214 = vshll.u32 %v5040, 16
      %v5216 = vrot.slane %v5214, 5
      %v5217 = vsel %vm3076, %v5212, %v5216
      %v5219 = vshrl.u32 %v5016, 16
      %v5221 = vrot.slane %v5219, 4
      %v5222 = vshll.u32 %v5016, 16
      %v5224 = vrot.slane %v5222, 5
      %v5225 = vor.u32 %v5221, %v5224
      %v5226 = vrot.slane %v5225, 4
      %v5228 = vshll.u32 %v5017, 16
      %v5230 = vrot.slane %v5228, 5
      %v5231 = vsel %vm3076, %v5226, %v5230
      %v5232 = vshrl.u32 %v5017, 16
      %v5234 = vrot.slane %v5232, 4
      %v5235 = vor.u32 %v5234, %v5230
      %v5236 = vrot.slane %v5235, 4
      %v5238 = vshll.u32 %v5041, 16
      %v5240 = vrot.slane %v5238, 5
      %v5241 = vsel %vm3076, %v5236, %v5240
      %v5243 = vshrl.u32 %v5018, 16
      %v5245 = vrot.slane %v5243, 4
      %v5246 = vshll.u32 %v5018, 16
      %v5248 = vrot.slane %v5246, 5
      %v5249 = vor.u32 %v5245, %v5248
      %v5250 = vrot.slane %v5249, 4
      %v5252 = vshll.u32 %v5019, 16
      %v5254 = vrot.slane %v5252, 5
      %v5255 = vsel %vm3076, %v5250, %v5254
      %v5256 = vshrl.u32 %v5019, 16
      %v5258 = vrot.slane %v5256, 4
      %v5259 = vor.u32 %v5258, %v5254
      %v5260 = vrot.slane %v5259, 4
      %v5262 = vshll.u32 %v5042, 16
      %v5264 = vrot.slane %v5262, 5
      %v5265 = vsel %vm3076, %v5260, %v5264
      %v5267 = vshrl.u32 %v5020, 16
      %v5269 = vrot.slane %v5267, 4
      %v5270 = vshll.u32 %v5020, 16
      %v5272 = vrot.slane %v5270, 5
      %v5273 = vor.u32 %v5269, %v5272
      %v5274 = vrot.slane %v5273, 4
      %v5276 = vshll.u32 %v5021, 16
      %v5278 = vrot.slane %v5276, 5
      %v5279 = vsel %vm3076, %v5274, %v5278
      %v5280 = vshrl.u32 %v5021, 16
      %v5282 = vrot.slane %v5280, 4
      %v5283 = vor.u32 %v5282, %v5278
      %v5284 = vrot.slane %v5283, 4
      %v5286 = vshll.u32 %v5043, 16
      %v5288 = vrot.slane %v5286, 5
      %v5289 = vsel %vm3076, %v5284, %v5288
      %v5291 = vshrl.u32 %v5022, 16
      %v5293 = vrot.slane %v5291, 4
      %v5294 = vshll.u32 %v5022, 16
      %v5296 = vrot.slane %v5294, 5
      %v5297 = vor.u32 %v5293, %v5296
      %v5298 = vrot.slane %v5297, 4
      %v5300 = vshll.u32 %v5023, 16
      %v5302 = vrot.slane %v5300, 5
      %v5303 = vsel %vm3076, %v5298, %v5302
      %v5304 = vshrl.u32 %v5023, 16
      %v5306 = vrot.slane %v5304, 4
      %v5307 = vor.u32 %v5306, %v5302
      %v5308 = vrot.slane %v5307, 4
      %v5310 = vshll.u32 %v5044, 16
      %v5312 = vrot.slane %v5310, 5
      %v5313 = vsel %vm3076, %v5308, %v5312
      %v5315 = vshrl.u32 %v5024, 16
      %v5317 = vrot.slane %v5315, 4
      %v5318 = vshll.u32 %v5024, 16
      %v5320 = vrot.slane %v5318, 5
      %v5321 = vor.u32 %v5317, %v5320
      %v5322 = vrot.slane %v5321, 4
      %v5324 = vshll.u32 %v5025, 16
      %v5326 = vrot.slane %v5324, 5
      %v5327 = vsel %vm3076, %v5322, %v5326
      %v5328 = vshrl.u32 %v5025, 16
      %v5330 = vrot.slane %v5328, 4
      %v5331 = vor.u32 %v5330, %v5326
      %v5332 = vrot.slane %v5331, 4
      %v5334 = vshll.u32 %v5045, 16
      %v5336 = vrot.slane %v5334, 5
      %v5337 = vsel %vm3076, %v5332, %v5336
      %v5339 = vshrl.u32 %v5026, 16
      %v5341 = vrot.slane %v5339, 4
      %v5342 = vshll.u32 %v5026, 16
      %v5344 = vrot.slane %v5342, 5
      %v5345 = vor.u32 %v5341, %v5344
      %v5346 = vrot.slane %v5345, 4
      %v5348 = vshll.u32 %v5027, 16
      %v5350 = vrot.slane %v5348, 5
      %v5351 = vsel %vm3076, %v5346, %v5350
      %v5352 = vshrl.u32 %v5027, 16
      %v5354 = vrot.slane %v5352, 4
      %v5355 = vor.u32 %v5354, %v5350
      %v5356 = vrot.slane %v5355, 4
      %v5358 = vshll.u32 %v5046, 16
      %v5360 = vrot.slane %v5358, 5
      %v5361 = vsel %vm3076, %v5356, %v5360
      %v5363 = vshrl.u32 %v5028, 16
      %v5365 = vrot.slane %v5363, 4
      %v5366 = vshll.u32 %v5028, 16
      %v5368 = vrot.slane %v5366, 5
      %v5369 = vor.u32 %v5365, %v5368
      %v5370 = vrot.slane %v5369, 4
      %v5372 = vshll.u32 %v5029, 16
      %v5374 = vrot.slane %v5372, 5
      %v5375 = vsel %vm3076, %v5370, %v5374
      %v5376 = vshrl.u32 %v5029, 16
      %v5378 = vrot.slane %v5376, 4
      %v5379 = vor.u32 %v5378, %v5374
      %v5380 = vrot.slane %v5379, 4
      %v5382 = vshll.u32 %v5047, 16
      %v5384 = vrot.slane %v5382, 5
      %v5385 = vsel %vm3076, %v5380, %v5384
      %v5387 = vshrl.u32 %v5030, 16
      %v5389 = vrot.slane %v5387, 4
      %v5390 = vshll.u32 %v5030, 16
      %v5392 = vrot.slane %v5390, 5
      %v5393 = vor.u32 %v5389, %v5392
      %v5394 = vrot.slane %v5393, 4
      %v5396 = vshll.u32 %v5031, 16
      %v5398 = vrot.slane %v5396, 5
      %v5399 = vsel %vm3076, %v5394, %v5398
      %v5400 = vshrl.u32 %v5031, 16
      %v5402 = vrot.slane %v5400, 4
      %v5403 = vor.u32 %v5402, %v5398
      %v5404 = vrot.slane %v5403, 4
      %v5406 = vshll.u32 %v5048, 16
      %v5408 = vrot.slane %v5406, 5
      %v5409 = vsel %vm3076, %v5404, %v5408
      %v5411 = vshrl.u32 %v5032, 16
      %v5413 = vrot.slane %v5411, 4
      %v5414 = vshll.u32 %v5032, 16
      %v5416 = vrot.slane %v5414, 5
      %v5417 = vor.u32 %v5413, %v5416
      %v5418 = vrot.slane %v5417, 4
      %v5420 = vshll.u32 %v5033, 16
      %v5422 = vrot.slane %v5420, 5
      %v5423 = vsel %vm3076, %v5418, %v5422
      %v5424 = vshrl.u32 %v5033, 16
      %v5426 = vrot.slane %v5424, 4
      %v5427 = vor.u32 %v5426, %v5422
      %v5428 = vrot.slane %v5427, 4
      %v5430 = vshll.u32 %v5049, 16
      %v5432 = vrot.slane %v5430, 5
      %v5433 = vsel %vm3076, %v5428, %v5432
      %v5466 = vunpack.c.l.b16 %v5002
      %v5467 = vunpack.c.l.b16 %v5003
      %v5468 = vunpack.c.l.b16 %v5004
      %v5469 = vunpack.c.l.b16 %v5005
      %v5470 = vunpack.c.l.b16 %v5006
      %v5471 = vunpack.c.l.b16 %v5007
      %v5472 = vunpack.c.l.b16 %v5008
      %v5473 = vunpack.c.l.b16 %v5009
      %v5474 = vunpack.c.l.b16 %v5010
      %v5475 = vunpack.c.l.b16 %v5011
      %v5476 = vunpack.c.l.b16 %v5012
      %v5477 = vunpack.c.l.b16 %v5013
      %v5478 = vunpack.c.l.b16 %v5014
      %v5479 = vunpack.c.l.b16 %v5015
      %v5480 = vunpack.c.l.b16 %v5016
      %v5481 = vunpack.c.l.b16 %v5017
      %v5482 = vunpack.c.l.b16 %v5018
      %v5483 = vunpack.c.l.b16 %v5019
      %v5484 = vunpack.c.l.b16 %v5020
      %v5485 = vunpack.c.l.b16 %v5021
      %v5486 = vunpack.c.l.b16 %v5022
      %v5487 = vunpack.c.l.b16 %v5023
      %v5488 = vunpack.c.l.b16 %v5024
      %v5489 = vunpack.c.l.b16 %v5025
      %v5490 = vunpack.c.l.b16 %v5026
      %v5491 = vunpack.c.l.b16 %v5027
      %v5492 = vunpack.c.l.b16 %v5028
      %v5493 = vunpack.c.l.b16 %v5029
      %v5494 = vunpack.c.l.b16 %v5030
      %v5495 = vunpack.c.l.b16 %v5031
      %v5496 = vunpack.c.l.b16 %v5032
      %v5497 = vunpack.c.l.b16 %v5033
      %v5498 = vpack.c.b16 %v5467, %v5466
      %v5499 = vpack.c.b16 %v5469, %v5468
      %v5500 = vpack.c.b16 %v5471, %v5470
      %v5501 = vpack.c.b16 %v5473, %v5472
      %v5502 = vpack.c.b16 %v5475, %v5474
      %v5503 = vpack.c.b16 %v5477, %v5476
      %v5504 = vpack.c.b16 %v5479, %v5478
      %v5505 = vpack.c.b16 %v5481, %v5480
      %v5506 = vpack.c.b16 %v5483, %v5482
      %v5507 = vpack.c.b16 %v5485, %v5484
      %v5508 = vpack.c.b16 %v5487, %v5486
      %v5509 = vpack.c.b16 %v5489, %v5488
      %v5510 = vpack.c.b16 %v5491, %v5490
      %v5511 = vpack.c.b16 %v5493, %v5492
      %v5512 = vpack.c.b16 %v5495, %v5494
      %v5513 = vpack.c.b16 %v5497, %v5496
      %v5514 = vunpack.c.l.b16 %v5063
      %v5515 = vunpack.c.l.b16 %v5073
      %v5516 = vunpack.c.l.b16 %v5087
      %v5517 = vunpack.c.l.b16 %v5097
      %v5518 = vunpack.c.l.b16 %v5111
      %v5519 = vunpack.c.l.b16 %v5121
      %v5520 = vunpack.c.l.b16 %v5135
      %v5521 = vunpack.c.l.b16 %v5145
      %v5522 = vunpack.c.l.b16 %v5159
      %v5523 = vunpack.c.l.b16 %v5169
      %v5524 = vunpack.c.l.b16 %v5183
      %v5525 = vunpack.c.l.b16 %v5193
      %v5526 = vunpack.c.l.b16 %v5207
      %v5527 = vunpack.c.l.b16 %v5217
      %v5528 = vunpack.c.l.b16 %v5231
      %v5529 = vunpack.c.l.b16 %v5241
      %v5530 = vunpack.c.l.b16 %v5255
      %v5531 = vunpack.c.l.b16 %v5265
      %v5532 = vunpack.c.l.b16 %v5279
      %v5533 = vunpack.c.l.b16 %v5289
      %v5534 = vunpack.c.l.b16 %v5303
      %v5535 = vunpack.c.l.b16 %v5313
      %v5536 = vunpack.c.l.b16 %v5327
      %v5537 = vunpack.c.l.b16 %v5337
      %v5538 = vunpack.c.l.b16 %v5351
      %v5539 = vunpack.c.l.b16 %v5361
      %v5540 = vunpack.c.l.b16 %v5375
      %v5541 = vunpack.c.l.b16 %v5385
      %v5542 = vunpack.c.l.b16 %v5399
      %v5543 = vunpack.c.l.b16 %v5409
      %v5544 = vunpack.c.l.b16 %v5423
      %v5545 = vunpack.c.l.b16 %v5433
      %v5546 = vpack.c.b16 %v5515, %v5514
      %v5547 = vpack.c.b16 %v5517, %v5516
      %v5548 = vpack.c.b16 %v5519, %v5518
      %v5549 = vpack.c.b16 %v5521, %v5520
      %v5550 = vpack.c.b16 %v5523, %v5522
      %v5551 = vpack.c.b16 %v5525, %v5524
      %v5552 = vpack.c.b16 %v5527, %v5526
      %v5553 = vpack.c.b16 %v5529, %v5528
      %v5554 = vpack.c.b16 %v5531, %v5530
      %v5555 = vpack.c.b16 %v5533, %v5532
      %v5556 = vpack.c.b16 %v5535, %v5534
      %v5557 = vpack.c.b16 %v5537, %v5536
      %v5558 = vpack.c.b16 %v5539, %v5538
      %v5559 = vpack.c.b16 %v5541, %v5540
      %v5560 = vpack.c.b16 %v5543, %v5542
      %v5561 = vpack.c.b16 %v5545, %v5544
      %5562 = vrot.lane.b32.xlu0 %v5546, 64
      %v5563 = vpop.permute.xlu0 %5562
      %5564 = vrot.lane.b32.xlu0 %v5547, 64
      %v5565 = vpop.permute.xlu0 %5564
      %5566 = vrot.lane.b32.xlu0 %v5548, 64
      %v5567 = vpop.permute.xlu0 %5566
      %5568 = vrot.lane.b32.xlu0 %v5549, 64
      %v5569 = vpop.permute.xlu0 %5568
      %5570 = vrot.lane.b32.xlu0 %v5550, 64
      %v5571 = vpop.permute.xlu0 %5570
      %5572 = vrot.lane.b32.xlu0 %v5551, 64
      %v5573 = vpop.permute.xlu0 %5572
      %5574 = vrot.lane.b32.xlu0 %v5552, 64
      %v5575 = vpop.permute.xlu0 %5574
      %5576 = vrot.lane.b32.xlu0 %v5553, 64
      %v5577 = vpop.permute.xlu0 %5576
      %5578 = vrot.lane.b32.xlu0 %v5554, 64
      %v5579 = vpop.permute.xlu0 %5578
      %5580 = vrot.lane.b32.xlu0 %v5555, 64
      %v5581 = vpop.permute.xlu0 %5580
      %5582 = vrot.lane.b32.xlu0 %v5556, 64
      %v5583 = vpop.permute.xlu0 %5582
      %5584 = vrot.lane.b32.xlu0 %v5557, 64
      %v5585 = vpop.permute.xlu0 %5584
      %5586 = vrot.lane.b32.xlu0 %v5558, 64
      %v5587 = vpop.permute.xlu0 %5586
      %5588 = vrot.lane.b32.xlu0 %v5559, 64
      %v5589 = vpop.permute.xlu0 %5588
      %5590 = vrot.lane.b32.xlu0 %v5560, 64
      %v5591 = vpop.permute.xlu0 %5590
      %5592 = vrot.lane.b32.xlu0 %v5561, 64
      %v5593 = vpop.permute.xlu0 %5592
      %v5596 = vsel %vm3621, %v5498, %v5563
      %v5600 = vsel %vm3621, %v5499, %v5565
      %v5604 = vsel %vm3621, %v5500, %v5567
      %v5608 = vsel %vm3621, %v5501, %v5569
      %v5612 = vsel %vm3621, %v5502, %v5571
      %v5616 = vsel %vm3621, %v5503, %v5573
      %v5620 = vsel %vm3621, %v5504, %v5575
      %v5624 = vsel %vm3621, %v5505, %v5577
      %v5628 = vsel %vm3621, %v5506, %v5579
      %v5632 = vsel %vm3621, %v5507, %v5581
      %v5636 = vsel %vm3621, %v5508, %v5583
      %v5640 = vsel %vm3621, %v5509, %v5585
      %v5644 = vsel %vm3621, %v5510, %v5587
      %v5648 = vsel %vm3621, %v5511, %v5589
      %v5652 = vsel %vm3621, %v5512, %v5591
      %v5656 = vsel %vm3621, %v5513, %v5593
      %5658 = vst [vmem:[#allocation3 + $0x18] sm:$0xff] %v5596
      %5659 = vst [vmem:[#allocation3 + $0x40] sm:$0xff] %v5600
      %5660 = vst [vmem:[#allocation3 + $0x68] sm:$0xff] %v5604
      %5661 = vst [vmem:[#allocation3 + $0x90] sm:$0xff] %v5608
      %5662 = vst [vmem:[#allocation3 + $0xb8] sm:$0xff] %v5612
      %5663 = vst [vmem:[#allocation3 + $0xe0] sm:$0xff] %v5616
      %5664 = vst [vmem:[#allocation3 + $0x108] sm:$0xff] %v5620
      %5665 = vst [vmem:[#allocation3 + $0x130] sm:$0xff] %v5624
      %5666 = vst [vmem:[#allocation3 + $0x158] sm:$0xff] %v5628
      %5667 = vst [vmem:[#allocation3 + $0x180] sm:$0xff] %v5632
      %5668 = vst [vmem:[#allocation3 + $0x1a8] sm:$0xff] %v5636
      %5669 = vst [vmem:[#allocation3 + $0x1d0] sm:$0xff] %v5640
      %5670 = vst [vmem:[#allocation3 + $0x1f8] sm:$0xff] %v5644
      %5671 = vst [vmem:[#allocation3 + $0x220] sm:$0xff] %v5648
      %5672 = vst [vmem:[#allocation3 + $0x248] sm:$0xff] %v5652
      %5673 = vst [vmem:[#allocation3 + $0x270] sm:$0xff] %v5656
      %v5674 = vld [vmem:[%s5001] sm:$0xe]
      %v5675 = vld [vmem:[%s5001 + $0x4] sm:$0xf]
      %v5676 = vld [vmem:[%s5001 + $0x8] sm:$0x1]
      %v5677 = vld [vmem:[%s5001 + $0xc] sm:$0xe]
      %v5678 = vld [vmem:[%s5001 + $0x10] sm:$0xf]
      %v5679 = vld [vmem:[%s5001 + $0x14] sm:$0x1]
      %v5680 = vld [vmem:[%s5001 + $0x18] sm:$0xe]
      %v5681 = vld [vmem:[%s5001 + $0x1c] sm:$0xf]
      %v5682 = vld [vmem:[%s5001 + $0x20] sm:$0x1]
      %v5683 = vld [vmem:[%s5001 + $0x24] sm:$0xe]
      %v5684 = vld [vmem:[%s5001 + $0x28] sm:$0xf]
      %v5685 = vld [vmem:[%s5001 + $0x2c] sm:$0x1]
      %v5686 = vld [vmem:[%s5001 + $0x30] sm:$0xe]
      %v5687 = vld [vmem:[%s5001 + $0x34] sm:$0xf]
      %v5688 = vld [vmem:[%s5001 + $0x38] sm:$0x1]
      %v5689 = vld [vmem:[%s5001 + $0x3c] sm:$0xe]
      %v5690 = vld [vmem:[%s5001 + $0x40] sm:$0xf]
      %v5691 = vld [vmem:[%s5001 + $0x44] sm:$0x1]
      %v5692 = vld [vmem:[%s5001 + $0x48] sm:$0xe]
      %v5693 = vld [vmem:[%s5001 + $0x4c] sm:$0xf]
      %v5694 = vld [vmem:[%s5001 + $0x50] sm:$0x1]
      %v5695 = vld [vmem:[%s5001 + $0x54] sm:$0xe]
      %v5696 = vld [vmem:[%s5001 + $0x58] sm:$0xf]
      %v5697 = vld [vmem:[%s5001 + $0x5c] sm:$0x1]
      %v5698 = vld [vmem:[%s5001 + $0x60] sm:$0xe]
      %v5699 = vld [vmem:[%s5001 + $0x64] sm:$0xf]
      %v5700 = vld [vmem:[%s5001 + $0x68] sm:$0x1]
      %v5701 = vld [vmem:[%s5001 + $0x6c] sm:$0xe]
      %v5702 = vld [vmem:[%s5001 + $0x70] sm:$0xf]
      %v5703 = vld [vmem:[%s5001 + $0x74] sm:$0x1]
      %v5704 = vld [vmem:[%s5001 + $0x78] sm:$0xe]
      %v5705 = vld [vmem:[%s5001 + $0x7c] sm:$0xf]
      %v5706 = vld [vmem:[%s5001 + $0x80] sm:$0x1]
      %v5707 = vld [vmem:[%s5001 + $0x84] sm:$0xe]
      %v5708 = vld [vmem:[%s5001 + $0x88] sm:$0xf]
      %v5709 = vld [vmem:[%s5001 + $0x8c] sm:$0x1]
      %v5710 = vld [vmem:[%s5001 + $0x90] sm:$0xe]
      %v5711 = vld [vmem:[%s5001 + $0x94] sm:$0xf]
      %v5712 = vld [vmem:[%s5001 + $0x98] sm:$0x1]
      %v5713 = vld [vmem:[%s5001 + $0x9c] sm:$0xe]
      %v5714 = vld [vmem:[%s5001 + $0xa0] sm:$0xf]
      %v5715 = vld [vmem:[%s5001 + $0xa4] sm:$0x1]
      %v5716 = vld [vmem:[%s5001 + $0xa8] sm:$0xe]
      %v5717 = vld [vmem:[%s5001 + $0xac] sm:$0xf]
      %v5718 = vld [vmem:[%s5001 + $0xb0] sm:$0x1]
      %v5719 = vld [vmem:[%s5001 + $0xb4] sm:$0xe]
      %v5720 = vld [vmem:[%s5001 + $0xb8] sm:$0xf]
      %v5721 = vld [vmem:[%s5001 + $0xbc] sm:$0x1]
      %v5770 = vrot.slane %v5674, 5
      %v5771 = vrot.slane %v5770, 4
      %v5772 = vrot.slane %v5675, 5
      %v5773 = vsel %vm3800, %v5771, %v5772
      %v5774 = vrot.slane %v5772, 4
      %v5775 = vrot.slane %v5676, 5
      %v5776 = vsel %vm3800, %v5774, %v5775
      %v5777 = vrot.slane %v5677, 5
      %v5778 = vrot.slane %v5777, 4
      %v5779 = vrot.slane %v5678, 5
      %v5780 = vsel %vm3800, %v5778, %v5779
      %v5781 = vrot.slane %v5779, 4
      %v5782 = vrot.slane %v5679, 5
      %v5783 = vsel %vm3800, %v5781, %v5782
      %v5784 = vrot.slane %v5680, 5
      %v5785 = vrot.slane %v5784, 4
      %v5786 = vrot.slane %v5681, 5
      %v5787 = vsel %vm3800, %v5785, %v5786
      %v5788 = vrot.slane %v5786, 4
      %v5789 = vrot.slane %v5682, 5
      %v5790 = vsel %vm3800, %v5788, %v5789
      %v5791 = vrot.slane %v5683, 5
      %v5792 = vrot.slane %v5791, 4
      %v5793 = vrot.slane %v5684, 5
      %v5794 = vsel %vm3800, %v5792, %v5793
      %v5795 = vrot.slane %v5793, 4
      %v5796 = vrot.slane %v5685, 5
      %v5797 = vsel %vm3800, %v5795, %v5796
      %v5798 = vrot.slane %v5686, 5
      %v5799 = vrot.slane %v5798, 4
      %v5800 = vrot.slane %v5687, 5
      %v5801 = vsel %vm3800, %v5799, %v5800
      %v5802 = vrot.slane %v5800, 4
      %v5803 = vrot.slane %v5688, 5
      %v5804 = vsel %vm3800, %v5802, %v5803
      %v5805 = vrot.slane %v5689, 5
      %v5806 = vrot.slane %v5805, 4
      %v5807 = vrot.slane %v5690, 5
      %v5808 = vsel %vm3800, %v5806, %v5807
      %v5809 = vrot.slane %v5807, 4
      %v5810 = vrot.slane %v5691, 5
      %v5811 = vsel %vm3800, %v5809, %v5810
      %v5812 = vrot.slane %v5692, 5
      %v5813 = vrot.slane %v5812, 4
      %v5814 = vrot.slane %v5693, 5
      %v5815 = vsel %vm3800, %v5813, %v5814
      %v5816 = vrot.slane %v5814, 4
      %v5817 = vrot.slane %v5694, 5
      %v5818 = vsel %vm3800, %v5816, %v5817
      %v5819 = vrot.slane %v5695, 5
      %v5820 = vrot.slane %v5819, 4
      %v5821 = vrot.slane %v5696, 5
      %v5822 = vsel %vm3800, %v5820, %v5821
      %v5823 = vrot.slane %v5821, 4
      %v5824 = vrot.slane %v5697, 5
      %v5825 = vsel %vm3800, %v5823, %v5824
      %v5826 = vrot.slane %v5698, 5
      %v5827 = vrot.slane %v5826, 4
      %v5828 = vrot.slane %v5699, 5
      %v5829 = vsel %vm3800, %v5827, %v5828
      %v5830 = vrot.slane %v5828, 4
      %v5831 = vrot.slane %v5700, 5
      %v5832 = vsel %vm3800, %v5830, %v5831
      %v5833 = vrot.slane %v5701, 5
      %v5834 = vrot.slane %v5833, 4
      %v5835 = vrot.slane %v5702, 5
      %v5836 = vsel %vm3800, %v5834, %v5835
      %v5837 = vrot.slane %v5835, 4
      %v5838 = vrot.slane %v5703, 5
      %v5839 = vsel %vm3800, %v5837, %v5838
      %v5840 = vrot.slane %v5704, 5
      %v5841 = vrot.slane %v5840, 4
      %v5842 = vrot.slane %v5705, 5
      %v5843 = vsel %vm3800, %v5841, %v5842
      %v5844 = vrot.slane %v5842, 4
      %v5845 = vrot.slane %v5706, 5
      %v5846 = vsel %vm3800, %v5844, %v5845
      %v5847 = vrot.slane %v5707, 5
      %v5848 = vrot.slane %v5847, 4
      %v5849 = vrot.slane %v5708, 5
      %v5850 = vsel %vm3800, %v5848, %v5849
      %v5851 = vrot.slane %v5849, 4
      %v5852 = vrot.slane %v5709, 5
      %v5853 = vsel %vm3800, %v5851, %v5852
      %v5854 = vrot.slane %v5710, 5
      %v5855 = vrot.slane %v5854, 4
      %v5856 = vrot.slane %v5711, 5
      %v5857 = vsel %vm3800, %v5855, %v5856
      %v5858 = vrot.slane %v5856, 4
      %v5859 = vrot.slane %v5712, 5
      %v5860 = vsel %vm3800, %v5858, %v5859
      %v5861 = vrot.slane %v5713, 5
      %v5862 = vrot.slane %v5861, 4
      %v5863 = vrot.slane %v5714, 5
      %v5864 = vsel %vm3800, %v5862, %v5863
      %v5865 = vrot.slane %v5863, 4
      %v5866 = vrot.slane %v5715, 5
      %v5867 = vsel %vm3800, %v5865, %v5866
      %v5868 = vrot.slane %v5716, 5
      %v5869 = vrot.slane %v5868, 4
      %v5870 = vrot.slane %v5717, 5
      %v5871 = vsel %vm3800, %v5869, %v5870
      %v5872 = vrot.slane %v5870, 4
      %v5873 = vrot.slane %v5718, 5
      %v5874 = vsel %vm3800, %v5872, %v5873
      %v5875 = vrot.slane %v5719, 5
      %v5876 = vrot.slane %v5875, 4
      %v5877 = vrot.slane %v5720, 5
      %v5878 = vsel %vm3800, %v5876, %v5877
      %v5879 = vrot.slane %v5877, 4
      %v5880 = vrot.slane %v5721, 5
      %v5881 = vsel %vm3800, %v5879, %v5880
      %v5882 = vunpack.c.l.b16 %v5773
      %v5883 = vunpack.c.l.b16 %v5776
      %v5884 = vunpack.c.l.b16 %v5780
      %v5885 = vunpack.c.l.b16 %v5783
      %v5886 = vunpack.c.l.b16 %v5787
      %v5887 = vunpack.c.l.b16 %v5790
      %v5888 = vunpack.c.l.b16 %v5794
      %v5889 = vunpack.c.l.b16 %v5797
      %v5890 = vunpack.c.l.b16 %v5801
      %v5891 = vunpack.c.l.b16 %v5804
      %v5892 = vunpack.c.l.b16 %v5808
      %v5893 = vunpack.c.l.b16 %v5811
      %v5894 = vunpack.c.l.b16 %v5815
      %v5895 = vunpack.c.l.b16 %v5818
      %v5896 = vunpack.c.l.b16 %v5822
      %v5897 = vunpack.c.l.b16 %v5825
      %v5898 = vunpack.c.l.b16 %v5829
      %v5899 = vunpack.c.l.b16 %v5832
      %v5900 = vunpack.c.l.b16 %v5836
      %v5901 = vunpack.c.l.b16 %v5839
      %v5902 = vunpack.c.l.b16 %v5843
      %v5903 = vunpack.c.l.b16 %v5846
      %v5904 = vunpack.c.l.b16 %v5850
      %v5905 = vunpack.c.l.b16 %v5853
      %v5906 = vunpack.c.l.b16 %v5857
      %v5907 = vunpack.c.l.b16 %v5860
      %v5908 = vunpack.c.l.b16 %v5864
      %v5909 = vunpack.c.l.b16 %v5867
      %v5910 = vunpack.c.l.b16 %v5871
      %v5911 = vunpack.c.l.b16 %v5874
      %v5912 = vunpack.c.l.b16 %v5878
      %v5913 = vunpack.c.l.b16 %v5881
      %v5914 = vpack.c.b16 %v5883, %v5882
      %v5915 = vpack.c.b16 %v5885, %v5884
      %v5916 = vpack.c.b16 %v5887, %v5886
      %v5917 = vpack.c.b16 %v5889, %v5888
      %v5918 = vpack.c.b16 %v5891, %v5890
      %v5919 = vpack.c.b16 %v5893, %v5892
      %v5920 = vpack.c.b16 %v5895, %v5894
      %v5921 = vpack.c.b16 %v5897, %v5896
      %v5922 = vpack.c.b16 %v5899, %v5898
      %v5923 = vpack.c.b16 %v5901, %v5900
      %v5924 = vpack.c.b16 %v5903, %v5902
      %v5925 = vpack.c.b16 %v5905, %v5904
      %v5926 = vpack.c.b16 %v5907, %v5906
      %v5927 = vpack.c.b16 %v5909, %v5908
      %v5928 = vpack.c.b16 %v5911, %v5910
      %v5929 = vpack.c.b16 %v5913, %v5912
      %v5932 = vsel %vm3621, %v5914, 0
      %v5935 = vsel %vm3621, %v5915, 0
      %v5938 = vsel %vm3621, %v5916, 0
      %v5941 = vsel %vm3621, %v5917, 0
      %v5944 = vsel %vm3621, %v5918, 0
      %v5947 = vsel %vm3621, %v5919, 0
      %v5950 = vsel %vm3621, %v5920, 0
      %v5953 = vsel %vm3621, %v5921, 0
      %v5956 = vsel %vm3621, %v5922, 0
      %v5959 = vsel %vm3621, %v5923, 0
      %v5962 = vsel %vm3621, %v5924, 0
      %v5965 = vsel %vm3621, %v5925, 0
      %v5968 = vsel %vm3621, %v5926, 0
      %v5971 = vsel %vm3621, %v5927, 0
      %v5974 = vsel %vm3621, %v5928, 0
      %v5977 = vsel %vm3621, %v5929, 0
      %5979 = vst [vmem:[#allocation3 + $0x20] sm:$0xff] %v5932
      %5980 = vst [vmem:[#allocation3 + $0x48] sm:$0xff] %v5935
      %5981 = vst [vmem:[#allocation3 + $0x70] sm:$0xff] %v5938
      %5982 = vst [vmem:[#allocation3 + $0x98] sm:$0xff] %v5941
      %5983 = vst [vmem:[#allocation3 + $0xc0] sm:$0xff] %v5944
      %5984 = vst [vmem:[#allocation3 + $0xe8] sm:$0xff] %v5947
      %5985 = vst [vmem:[#allocation3 + $0x110] sm:$0xff] %v5950
      %5986 = vst [vmem:[#allocation3 + $0x138] sm:$0xff] %v5953
      %5987 = vst [vmem:[#allocation3 + $0x160] sm:$0xff] %v5956
      %5988 = vst [vmem:[#allocation3 + $0x188] sm:$0xff] %v5959
      %5989 = vst [vmem:[#allocation3 + $0x1b0] sm:$0xff] %v5962
      %5990 = vst [vmem:[#allocation3 + $0x1d8] sm:$0xff] %v5965
      %5991 = vst [vmem:[#allocation3 + $0x200] sm:$0xff] %v5968
      %5992 = vst [vmem:[#allocation3 + $0x228] sm:$0xff] %v5971
      %5993 = vst [vmem:[#allocation3 + $0x250] sm:$0xff] %v5974
      %5994 = vst [vmem:[#allocation3 + $0x278] sm:$0xff] %v5977
      %v5995 = vld [vmem:[#allocation3] sm:$0xff]
      %v5996 = vld [vmem:[#allocation3 + $0x8] sm:$0xff]
      %v5997 = vld [vmem:[#allocation3 + $0x10] sm:$0xff]
      %v5998 = vld [vmem:[#allocation3 + $0x18] sm:$0xff]
      %v5999 = vld [vmem:[#allocation3 + $0x20] sm:$0xff]
      %v6000 = vld [vmem:[#allocation3 + $0x28] sm:$0xff]
      %v6001 = vld [vmem:[#allocation3 + $0x30] sm:$0xff]
      %v6002 = vld [vmem:[#allocation3 + $0x38] sm:$0xff]
      %v6003 = vld [vmem:[#allocation3 + $0x40] sm:$0xff]
      %v6004 = vld [vmem:[#allocation3 + $0x48] sm:$0xff]
      %v6005 = vld [vmem:[#allocation3 + $0x50] sm:$0xff]
      %v6006 = vld [vmem:[#allocation3 + $0x58] sm:$0xff]
      %v6007 = vld [vmem:[#allocation3 + $0x60] sm:$0xff]
      %v6008 = vld [vmem:[#allocation3 + $0x68] sm:$0xff]
      %v6009 = vld [vmem:[#allocation3 + $0x70] sm:$0xff]
      %v6010 = vld [vmem:[#allocation3 + $0x78] sm:$0xff]
      %v6011 = vld [vmem:[#allocation3 + $0x80] sm:$0xff]
      %v6012 = vld [vmem:[#allocation3 + $0x88] sm:$0xff]
      %v6013 = vld [vmem:[#allocation3 + $0x90] sm:$0xff]
      %v6014 = vld [vmem:[#allocation3 + $0x98] sm:$0xff]
      %v6015 = vld [vmem:[#allocation3 + $0xa0] sm:$0xff]
      %v6016 = vld [vmem:[#allocation3 + $0xa8] sm:$0xff]
      %v6017 = vld [vmem:[#allocation3 + $0xb0] sm:$0xff]
      %v6018 = vld [vmem:[#allocation3 + $0xb8] sm:$0xff]
      %v6019 = vld [vmem:[#allocation3 + $0xc0] sm:$0xff]
      %v6020 = vld [vmem:[#allocation3 + $0xc8] sm:$0xff]
      %v6021 = vld [vmem:[#allocation3 + $0xd0] sm:$0xff]
      %v6022 = vld [vmem:[#allocation3 + $0xd8] sm:$0xff]
      %v6023 = vld [vmem:[#allocation3 + $0xe0] sm:$0xff]
      %v6024 = vld [vmem:[#allocation3 + $0xe8] sm:$0xff]
      %v6025 = vld [vmem:[#allocation3 + $0xf0] sm:$0xff]
      %v6026 = vld [vmem:[#allocation3 + $0xf8] sm:$0xff]
      %v6027 = vld [vmem:[#allocation3 + $0x100] sm:$0xff]
      %v6028 = vld [vmem:[#allocation3 + $0x108] sm:$0xff]
      %v6029 = vld [vmem:[#allocation3 + $0x110] sm:$0xff]
      %v6030 = vld [vmem:[#allocation3 + $0x118] sm:$0xff]
      %v6031 = vld [vmem:[#allocation3 + $0x120] sm:$0xff]
      %v6032 = vld [vmem:[#allocation3 + $0x128] sm:$0xff]
      %v6033 = vld [vmem:[#allocation3 + $0x130] sm:$0xff]
      %v6034 = vld [vmem:[#allocation3 + $0x138] sm:$0xff]
      %v6035 = vld [vmem:[#allocation3 + $0x140] sm:$0xff]
      %v6036 = vld [vmem:[#allocation3 + $0x148] sm:$0xff]
      %v6037 = vld [vmem:[#allocation3 + $0x150] sm:$0xff]
      %v6038 = vld [vmem:[#allocation3 + $0x158] sm:$0xff]
      %v6039 = vld [vmem:[#allocation3 + $0x160] sm:$0xff]
      %v6040 = vld [vmem:[#allocation3 + $0x168] sm:$0xff]
      %v6041 = vld [vmem:[#allocation3 + $0x170] sm:$0xff]
      %v6042 = vld [vmem:[#allocation3 + $0x178] sm:$0xff]
      %v6043 = vld [vmem:[#allocation3 + $0x180] sm:$0xff]
      %v6044 = vld [vmem:[#allocation3 + $0x188] sm:$0xff]
      %v6045 = vld [vmem:[#allocation3 + $0x190] sm:$0xff]
      %v6046 = vld [vmem:[#allocation3 + $0x198] sm:$0xff]
      %v6047 = vld [vmem:[#allocation3 + $0x1a0] sm:$0xff]
      %v6048 = vld [vmem:[#allocation3 + $0x1a8] sm:$0xff]
      %v6049 = vld [vmem:[#allocation3 + $0x1b0] sm:$0xff]
      %v6050 = vld [vmem:[#allocation3 + $0x1b8] sm:$0xff]
      %v6051 = vld [vmem:[#allocation3 + $0x1c0] sm:$0xff]
      %v6052 = vld [vmem:[#allocation3 + $0x1c8] sm:$0xff]
      %v6053 = vld [vmem:[#allocation3 + $0x1d0] sm:$0xff]
      %v6054 = vld [vmem:[#allocation3 + $0x1d8] sm:$0xff]
      %v6055 = vld [vmem:[#allocation3 + $0x1e0] sm:$0xff]
      %v6056 = vld [vmem:[#allocation3 + $0x1e8] sm:$0xff]
      %v6057 = vld [vmem:[#allocation3 + $0x1f0] sm:$0xff]
      %v6058 = vld [vmem:[#allocation3 + $0x1f8] sm:$0xff]
      %v6059 = vld [vmem:[#allocation3 + $0x200] sm:$0xff]
      %v6060 = vld [vmem:[#allocation3 + $0x208] sm:$0xff]
      %v6061 = vld [vmem:[#allocation3 + $0x210] sm:$0xff]
      %v6062 = vld [vmem:[#allocation3 + $0x218] sm:$0xff]
      %v6063 = vld [vmem:[#allocation3 + $0x220] sm:$0xff]
      %v6064 = vld [vmem:[#allocation3 + $0x228] sm:$0xff]
      %v6065 = vld [vmem:[#allocation3 + $0x230] sm:$0xff]
      %v6066 = vld [vmem:[#allocation3 + $0x238] sm:$0xff]
      %v6067 = vld [vmem:[#allocation3 + $0x240] sm:$0xff]
      %v6068 = vld [vmem:[#allocation3 + $0x248] sm:$0xff]
      %v6069 = vld [vmem:[#allocation3 + $0x250] sm:$0xff]
      %v6070 = vld [vmem:[#allocation3 + $0x258] sm:$0xff]
      %v6071 = vld [vmem:[#allocation3 + $0x260] sm:$0xff]
      %v6072 = vld [vmem:[#allocation3 + $0x268] sm:$0xff]
      %v6073 = vld [vmem:[#allocation3 + $0x270] sm:$0xff]
      %v6074 = vld [vmem:[#allocation3 + $0x278] sm:$0xff]
      %v6075 = vld [vmem:[%s4] sm:$0xf]
      %v6076 = vld [vmem:[%s4 + $0x4] sm:$0xf]
      %v6077 = vld [vmem:[%s4 + $0x8] sm:$0xf]
      %v6078 = vld [vmem:[%s4 + $0xc] sm:$0xf]
      %v6079 = vld [vmem:[%s4 + $0x10] sm:$0xf]
      %v6080 = vld [vmem:[%s4 + $0x14] sm:$0xf]
      %v6081 = vld [vmem:[%s4 + $0x18] sm:$0xf]
      %v6082 = vld [vmem:[%s4 + $0x1c] sm:$0xf]
      %v6083 = vld [vmem:[%s4 + $0x20] sm:$0xf]
      %v6084 = vld [vmem:[%s4 + $0x24] sm:$0xf]
      %v6085 = vld [vmem:[%s4 + $0x28] sm:$0xf]
      %v6086 = vld [vmem:[%s4 + $0x2c] sm:$0xf]
      %v6087 = vld [vmem:[%s4 + $0x30] sm:$0xf]
      %v6088 = vld [vmem:[%s4 + $0x34] sm:$0xf]
      %v6089 = vld [vmem:[%s4 + $0x38] sm:$0xf]
      %v6090 = vld [vmem:[%s4 + $0x3c] sm:$0xf]
      %v6091 = vld [vmem:[%s4 + $0x40] sm:$0xf]
      %v6092 = vld [vmem:[%s4 + $0x44] sm:$0xf]
      %v6093 = vld [vmem:[%s4 + $0x48] sm:$0xf]
      %v6094 = vld [vmem:[%s4 + $0x4c] sm:$0xf]
      %v6095 = vld [vmem:[%s4 + $0x50] sm:$0xf]
      %v6096 = vld [vmem:[%s4 + $0x54] sm:$0xf]
      %v6097 = vld [vmem:[%s4 + $0x58] sm:$0xf]
      %v6098 = vld [vmem:[%s4 + $0x5c] sm:$0xf]
      %v6099 = vld [vmem:[%s4 + $0x60] sm:$0xf]
      %v6100 = vld [vmem:[%s4 + $0x64] sm:$0xf]
      %v6101 = vld [vmem:[%s4 + $0x68] sm:$0xf]
      %v6102 = vld [vmem:[%s4 + $0x6c] sm:$0xf]
      %v6103 = vld [vmem:[%s4 + $0x70] sm:$0xf]
      %v6104 = vld [vmem:[%s4 + $0x74] sm:$0xf]
      %v6105 = vld [vmem:[%s4 + $0x78] sm:$0xf]
      %v6106 = vld [vmem:[%s4 + $0x7c] sm:$0xf]
      %v6107 = vld [vmem:[%s4 + $0x80] sm:$0xf]
      %v6108 = vld [vmem:[%s4 + $0x84] sm:$0xf]
      %v6109 = vld [vmem:[%s4 + $0x88] sm:$0xf]
      %v6110 = vld [vmem:[%s4 + $0x8c] sm:$0xf]
      %v6111 = vld [vmem:[%s4 + $0x90] sm:$0xf]
      %v6112 = vld [vmem:[%s4 + $0x94] sm:$0xf]
      %v6113 = vld [vmem:[%s4 + $0x98] sm:$0xf]
      %v6114 = vld [vmem:[%s4 + $0x9c] sm:$0xf]
      %v6115 = vld [vmem:[%s4 + $0xa0] sm:$0xf]
      %v6116 = vld [vmem:[%s4 + $0xa4] sm:$0xf]
      %v6117 = vld [vmem:[%s4 + $0xa8] sm:$0xf]
      %v6118 = vld [vmem:[%s4 + $0xac] sm:$0xf]
      %v6119 = vld [vmem:[%s4 + $0xb0] sm:$0xf]
      %v6120 = vld [vmem:[%s4 + $0xb4] sm:$0xf]
      %v6121 = vld [vmem:[%s4 + $0xb8] sm:$0xf]
      %v6122 = vld [vmem:[%s4 + $0xbc] sm:$0xf]
      %v6123 = vld [vmem:[%s4 + $0xc0] sm:$0xf]
      %v6124 = vld [vmem:[%s4 + $0xc4] sm:$0xf]
      %v6125 = vld [vmem:[%s4 + $0xc8] sm:$0xf]
      %v6126 = vld [vmem:[%s4 + $0xcc] sm:$0xf]
      %v6127 = vld [vmem:[%s4 + $0xd0] sm:$0xf]
      %v6128 = vld [vmem:[%s4 + $0xd4] sm:$0xf]
      %v6129 = vld [vmem:[%s4 + $0xd8] sm:$0xf]
      %v6130 = vld [vmem:[%s4 + $0xdc] sm:$0xf]
      %v6131 = vld [vmem:[%s4 + $0xe0] sm:$0xf]
      %v6132 = vld [vmem:[%s4 + $0xe4] sm:$0xf]
      %v6133 = vld [vmem:[%s4 + $0xe8] sm:$0xf]
      %v6134 = vld [vmem:[%s4 + $0xec] sm:$0xf]
      %v6135 = vld [vmem:[%s4 + $0xf0] sm:$0xf]
      %v6136 = vld [vmem:[%s4 + $0xf4] sm:$0xf]
      %v6137 = vld [vmem:[%s4 + $0xf8] sm:$0xf]
      %v6138 = vld [vmem:[%s4 + $0xfc] sm:$0xf]
      %v6139 = vld [vmem:[%s4 + $0x100] sm:$0xf]
      %v6140 = vld [vmem:[%s4 + $0x104] sm:$0xf]
      %v6141 = vld [vmem:[%s4 + $0x108] sm:$0xf]
      %v6142 = vld [vmem:[%s4 + $0x10c] sm:$0xf]
      %v6143 = vld [vmem:[%s4 + $0x110] sm:$0xf]
      %v6144 = vld [vmem:[%s4 + $0x114] sm:$0xf]
      %v6145 = vld [vmem:[%s4 + $0x118] sm:$0xf]
      %v6146 = vld [vmem:[%s4 + $0x11c] sm:$0xf]
      %v6147 = vld [vmem:[%s4 + $0x120] sm:$0xf]
      %v6148 = vld [vmem:[%s4 + $0x124] sm:$0xf]
      %v6149 = vld [vmem:[%s4 + $0x128] sm:$0xf]
      %v6150 = vld [vmem:[%s4 + $0x12c] sm:$0xf]
      %v6151 = vld [vmem:[%s4 + $0x130] sm:$0xf]
      %v6152 = vld [vmem:[%s4 + $0x134] sm:$0xf]
      %v6153 = vld [vmem:[%s4 + $0x138] sm:$0xf]
      %v6154 = vld [vmem:[%s4 + $0x13c] sm:$0xf]
      %v6155 = vld [vmem:[%s5] sm:$0x1]
      %v6157 = vlaneseq
      %v6158 = vshrl.u32 %v6157, 7
      %v6159 = vsub.s32 0, %v6158
      %v6160 = vrot.slane %v6155, %v6159
      %v6242 = vunpack.c.l.b16 %v6075
      %v6243 = vunpack.c.l.b16 %v6076
      %v6244 = vunpack.c.l.b16 %v6077
      %v6245 = vunpack.c.l.b16 %v6078
      %v6246 = vunpack.c.l.b16 %v6079
      %v6247 = vunpack.c.l.b16 %v6080
      %v6248 = vunpack.c.l.b16 %v6081
      %v6249 = vunpack.c.l.b16 %v6082
      %v6250 = vunpack.c.l.b16 %v6083
      %v6251 = vunpack.c.l.b16 %v6084
      %v6252 = vunpack.c.l.b16 %v6085
      %v6253 = vunpack.c.l.b16 %v6086
      %v6254 = vunpack.c.l.b16 %v6087
      %v6255 = vunpack.c.l.b16 %v6088
      %v6256 = vunpack.c.l.b16 %v6089
      %v6257 = vunpack.c.l.b16 %v6090
      %v6258 = vunpack.c.l.b16 %v6091
      %v6259 = vunpack.c.l.b16 %v6092
      %v6260 = vunpack.c.l.b16 %v6093
      %v6261 = vunpack.c.l.b16 %v6094
      %v6262 = vunpack.c.l.b16 %v6095
      %v6263 = vunpack.c.l.b16 %v6096
      %v6264 = vunpack.c.l.b16 %v6097
      %v6265 = vunpack.c.l.b16 %v6098
      %v6266 = vunpack.c.l.b16 %v6099
      %v6267 = vunpack.c.l.b16 %v6100
      %v6268 = vunpack.c.l.b16 %v6101
      %v6269 = vunpack.c.l.b16 %v6102
      %v6270 = vunpack.c.l.b16 %v6103
      %v6271 = vunpack.c.l.b16 %v6104
      %v6272 = vunpack.c.l.b16 %v6105
      %v6273 = vunpack.c.l.b16 %v6106
      %v6274 = vunpack.c.l.b16 %v6107
      %v6275 = vunpack.c.l.b16 %v6108
      %v6276 = vunpack.c.l.b16 %v6109
      %v6277 = vunpack.c.l.b16 %v6110
      %v6278 = vunpack.c.l.b16 %v6111
      %v6279 = vunpack.c.l.b16 %v6112
      %v6280 = vunpack.c.l.b16 %v6113
      %v6281 = vunpack.c.l.b16 %v6114
      %v6282 = vunpack.c.l.b16 %v6115
      %v6283 = vunpack.c.l.b16 %v6116
      %v6284 = vunpack.c.l.b16 %v6117
      %v6285 = vunpack.c.l.b16 %v6118
      %v6286 = vunpack.c.l.b16 %v6119
      %v6287 = vunpack.c.l.b16 %v6120
      %v6288 = vunpack.c.l.b16 %v6121
      %v6289 = vunpack.c.l.b16 %v6122
      %v6290 = vunpack.c.l.b16 %v6123
      %v6291 = vunpack.c.l.b16 %v6124
      %v6292 = vunpack.c.l.b16 %v6125
      %v6293 = vunpack.c.l.b16 %v6126
      %v6294 = vunpack.c.l.b16 %v6127
      %v6295 = vunpack.c.l.b16 %v6128
      %v6296 = vunpack.c.l.b16 %v6129
      %v6297 = vunpack.c.l.b16 %v6130
      %v6298 = vunpack.c.l.b16 %v6131
      %v6299 = vunpack.c.l.b16 %v6132
      %v6300 = vunpack.c.l.b16 %v6133
      %v6301 = vunpack.c.l.b16 %v6134
      %v6302 = vunpack.c.l.b16 %v6135
      %v6303 = vunpack.c.l.b16 %v6136
      %v6304 = vunpack.c.l.b16 %v6137
      %v6305 = vunpack.c.l.b16 %v6138
      %v6306 = vunpack.c.l.b16 %v6139
      %v6307 = vunpack.c.l.b16 %v6140
      %v6308 = vunpack.c.l.b16 %v6141
      %v6309 = vunpack.c.l.b16 %v6142
      %v6310 = vunpack.c.l.b16 %v6143
      %v6311 = vunpack.c.l.b16 %v6144
      %v6312 = vunpack.c.l.b16 %v6145
      %v6313 = vunpack.c.l.b16 %v6146
      %v6314 = vunpack.c.l.b16 %v6147
      %v6315 = vunpack.c.l.b16 %v6148
      %v6316 = vunpack.c.l.b16 %v6149
      %v6317 = vunpack.c.l.b16 %v6150
      %v6318 = vunpack.c.l.b16 %v6151
      %v6319 = vunpack.c.l.b16 %v6152
      %v6320 = vunpack.c.l.b16 %v6153
      %v6321 = vunpack.c.l.b16 %v6154
      %v6322 = vpack.c.b16 %v6243, %v6242
      %v6323 = vpack.c.b16 %v6245, %v6244
      %v6324 = vpack.c.b16 %v6247, %v6246
      %v6325 = vpack.c.b16 %v6249, %v6248
      %v6326 = vpack.c.b16 %v6251, %v6250
      %v6327 = vpack.c.b16 %v6253, %v6252
      %v6328 = vpack.c.b16 %v6255, %v6254
      %v6329 = vpack.c.b16 %v6257, %v6256
      %v6330 = vpack.c.b16 %v6259, %v6258
      %v6331 = vpack.c.b16 %v6261, %v6260
      %v6332 = vpack.c.b16 %v6263, %v6262
      %v6333 = vpack.c.b16 %v6265, %v6264
      %v6334 = vpack.c.b16 %v6267, %v6266
      %v6335 = vpack.c.b16 %v6269, %v6268
      %v6336 = vpack.c.b16 %v6271, %v6270
      %v6337 = vpack.c.b16 %v6273, %v6272
      %v6338 = vpack.c.b16 %v6275, %v6274
      %v6339 = vpack.c.b16 %v6277, %v6276
      %v6340 = vpack.c.b16 %v6279, %v6278
      %v6341 = vpack.c.b16 %v6281, %v6280
      %v6342 = vpack.c.b16 %v6283, %v6282
      %v6343 = vpack.c.b16 %v6285, %v6284
      %v6344 = vpack.c.b16 %v6287, %v6286
      %v6345 = vpack.c.b16 %v6289, %v6288
      %v6346 = vpack.c.b16 %v6291, %v6290
      %v6347 = vpack.c.b16 %v6293, %v6292
      %v6348 = vpack.c.b16 %v6295, %v6294
      %v6349 = vpack.c.b16 %v6297, %v6296
      %v6350 = vpack.c.b16 %v6299, %v6298
      %v6351 = vpack.c.b16 %v6301, %v6300
      %v6352 = vpack.c.b16 %v6303, %v6302
      %v6353 = vpack.c.b16 %v6305, %v6304
      %v6354 = vpack.c.b16 %v6307, %v6306
      %v6355 = vpack.c.b16 %v6309, %v6308
      %v6356 = vpack.c.b16 %v6311, %v6310
      %v6357 = vpack.c.b16 %v6313, %v6312
      %v6358 = vpack.c.b16 %v6315, %v6314
      %v6359 = vpack.c.b16 %v6317, %v6316
      %v6360 = vpack.c.b16 %v6319, %v6318
      %v6361 = vpack.c.b16 %v6321, %v6320
      %6402 = vmatprep.subr.bf16.mxu0 0
      %6403 = vmatpush1.bf16.msra.mxu0 %v6322
      %6404 = vmatprep.subr.bf16.mxu0 0
      %6405 = vmatpush1.bf16.msra.mxu0 %v6323
      %6406 = vmatprep.subr.bf16.mxu0 0
      %6407 = vmatpush1.bf16.msra.mxu0 %v6324
      %6408 = vmatprep.subr.bf16.mxu0 0
      %6409 = vmatpush1.bf16.msra.mxu0 %v6325
      %6410 = vmatprep.subr.bf16.mxu0 0
      %6411 = vmatpush1.bf16.msra.mxu0 %v6326
      %6412 = vmatprep.subr.bf16.mxu0 0
      %6413 = vmatpush1.bf16.msra.mxu0 %v6327
      %6414 = vmatprep.subr.bf16.mxu0 0
      %6415 = vmatpush1.bf16.msra.mxu0 %v6328
      %6416 = vmatprep.subr.bf16.mxu0 0
      %6417 = vmatpush1.bf16.msra.mxu0 %v6329
      %6418 = vmatprep.subr.bf16.mxu0 0
      %6419 = vmatpush1.bf16.msra.mxu0 %v6330
      %6420 = vmatprep.subr.bf16.mxu0 0
      %6421 = vmatpush1.bf16.msra.mxu0 %v6331
      %6422 = vmatprep.subr.bf16.mxu0 0
      %6423 = vmatpush1.bf16.msra.mxu0 %v6332
      %6424 = vmatprep.subr.bf16.mxu0 0
      %6425 = vmatpush1.bf16.msra.mxu0 %v6333
      %6426 = vmatprep.subr.bf16.mxu0 0
      %6427 = vmatpush1.bf16.msra.mxu0 %v6334
      %6428 = vmatprep.subr.bf16.mxu0 0
      %6429 = vmatpush1.bf16.msra.mxu0 %v6335
      %6430 = vmatprep.subr.bf16.mxu0 0
      %6431 = vmatpush1.bf16.msra.mxu0 %v6336
      %6432 = vmatprep.subr.bf16.mxu0 0
      %6433 = vmatpush1.bf16.msra.mxu0 %v6337
      %6434 = vmatprep.mubr.bf16.mxu0 %v5996
      %6435 = vmatmul.mubr.bf16.gmra.mrb[0].mxu0 %v5995
      %v6436 = vpop.f32.mrb[0].mxu0
      %v6437 = vadd.f32 %v6160, %v6436
      %v6438 = vpop.f32.mrb[0].mxu0
      %v6439 = vpop.f32.mrb[0].mxu0
      %v6440 = vadd.f32 %v6160, %v6439
      %v6441 = vpop.f32.mrb[0].mxu0
      %6442 = vmatprep.mubr.bf16.mxu0 %v6001
      %6443 = vmatmul.mubr.bf16.gmra.mrb[0].mxu0 %v6000
      %v6444 = vpop.f32.mrb[0].mxu0
      %v6445 = vadd.f32 %v6160, %v6444
      %v6446 = vpop.f32.mrb[0].mxu0
      %v6447 = vpop.f32.mrb[0].mxu0
      %v6448 = vadd.f32 %v6160, %v6447
      %v6449 = vpop.f32.mrb[0].mxu0
      %6450 = vmatprep.mubr.bf16.mxu0 %v6006
      %6451 = vmatmul.mubr.bf16.gmra.mrb[0].mxu0 %v6005
      %v6452 = vpop.f32.mrb[0].mxu0
      %v6453 = vadd.f32 %v6160, %v6452
      %v6454 = vpop.f32.mrb[0].mxu0
      %v6455 = vpop.f32.mrb[0].mxu0
      %v6456 = vadd.f32 %v6160, %v6455
      %v6457 = vpop.f32.mrb[0].mxu0
      %6458 = vmatprep.mubr.bf16.mxu0 %v6011
      %6459 = vmatmul.mubr.bf16.gmra.mrb[0].mxu0 %v6010
      %v6460 = vpop.f32.mrb[0].mxu0
      %v6461 = vadd.f32 %v6160, %v6460
      %v6462 = vpop.f32.mrb[0].mxu0
      %v6463 = vpop.f32.mrb[0].mxu0
      %v6464 = vadd.f32 %v6160, %v6463
      %v6465 = vpop.f32.mrb[0].mxu0
      %6466 = vmatprep.mubr.bf16.mxu0 %v6016
      %6467 = vmatmul.mubr.bf16.gmra.mrb[0].mxu0 %v6015
      %v6468 = vpop.f32.mrb[0].mxu0
      %v6469 = vadd.f32 %v6160, %v6468
      %v6470 = vpop.f32.mrb[0].mxu0
      %v6471 = vpop.f32.mrb[0].mxu0
      %v6472 = vadd.f32 %v6160, %v6471
      %v6473 = vpop.f32.mrb[0].mxu0
      %6474 = vmatprep.mubr.bf16.mxu0 %v6021
      %6475 = vmatmul.mubr.bf16.gmra.mrb[0].mxu0 %v6020
      %v6476 = vpop.f32.mrb[0].mxu0
      %v6477 = vadd.f32 %v6160, %v6476
      %v6478 = vpop.f32.mrb[0].mxu0
      %v6479 = vpop.f32.mrb[0].mxu0
      %v6480 = vadd.f32 %v6160, %v6479
      %v6481 = vpop.f32.mrb[0].mxu0
      %6482 = vmatprep.mubr.bf16.mxu0 %v6026
      %6483 = vmatmul.mubr.bf16.gmra.mrb[0].mxu0 %v6025
      %v6484 = vpop.f32.mrb[0].mxu0
      %v6485 = vadd.f32 %v6160, %v6484
      %v6486 = vpop.f32.mrb[0].mxu0
      %v6487 = vpop.f32.mrb[0].mxu0
      %v6488 = vadd.f32 %v6160, %v6487
      %v6489 = vpop.f32.mrb[0].mxu0
      %6490 = vmatprep.mubr.bf16.mxu0 %v6031
      %6491 = vmatmul.mubr.bf16.gmra.mrb[0].mxu0 %v6030
      %v6492 = vpop.f32.mrb[0].mxu0
      %v6493 = vadd.f32 %v6160, %v6492
      %v6494 = vpop.f32.mrb[0].mxu0
      %v6495 = vpop.f32.mrb[0].mxu0
      %v6496 = vadd.f32 %v6160, %v6495
      %v6497 = vpop.f32.mrb[0].mxu0
      %6498 = vmatprep.mubr.bf16.mxu0 %v6036
      %6499 = vmatmul.mubr.bf16.gmra.mrb[0].mxu0 %v6035
      %v6500 = vpop.f32.mrb[0].mxu0
      %v6501 = vadd.f32 %v6160, %v6500
      %v6502 = vpop.f32.mrb[0].mxu0
      %v6503 = vpop.f32.mrb[0].mxu0
      %v6504 = vadd.f32 %v6160, %v6503
      %v6505 = vpop.f32.mrb[0].mxu0
      %6506 = vmatprep.mubr.bf16.mxu0 %v6041
      %6507 = vmatmul.mubr.bf16.gmra.mrb[0].mxu0 %v6040
      %v6508 = vpop.f32.mrb[0].mxu0
      %v6509 = vadd.f32 %v6160, %v6508
      %v6510 = vpop.f32.mrb[0].mxu0
      %v6511 = vpop.f32.mrb[0].mxu0
      %v6512 = vadd.f32 %v6160, %v6511
      %v6513 = vpop.f32.mrb[0].mxu0
      %6514 = vmatprep.mubr.bf16.mxu0 %v6046
      %6515 = vmatmul.mubr.bf16.gmra.mrb[0].mxu0 %v6045
      %v6516 = vpop.f32.mrb[0].mxu0
      %v6517 = vadd.f32 %v6160, %v6516
      %v6518 = vpop.f32.mrb[0].mxu0
      %v6519 = vpop.f32.mrb[0].mxu0
      %v6520 = vadd.f32 %v6160, %v6519
      %v6521 = vpop.f32.mrb[0].mxu0
      %6522 = vmatprep.mubr.bf16.mxu0 %v6051
      %6523 = vmatmul.mubr.bf16.gmra.mrb[0].mxu0 %v6050
      %v6524 = vpop.f32.mrb[0].mxu0
      %v6525 = vadd.f32 %v6160, %v6524
      %v6526 = vpop.f32.mrb[0].mxu0
      %v6527 = vpop.f32.mrb[0].mxu0
      %v6528 = vadd.f32 %v6160, %v6527
      %v6529 = vpop.f32.mrb[0].mxu0
      %6530 = vmatprep.mubr.bf16.mxu0 %v6056
      %6531 = vmatmul.mubr.bf16.gmra.mrb[0].mxu0 %v6055
      %v6532 = vpop.f32.mrb[0].mxu0
      %v6533 = vadd.f32 %v6160, %v6532
      %v6534 = vpop.f32.mrb[0].mxu0
      %v6535 = vpop.f32.mrb[0].mxu0
      %v6536 = vadd.f32 %v6160, %v6535
      %v6537 = vpop.f32.mrb[0].mxu0
      %6538 = vmatprep.mubr.bf16.mxu0 %v6061
      %6539 = vmatmul.mubr.bf16.gmra.mrb[0].mxu0 %v6060
      %v6540 = vpop.f32.mrb[0].mxu0
      %v6541 = vadd.f32 %v6160, %v6540
      %v6542 = vpop.f32.mrb[0].mxu0
      %v6543 = vpop.f32.mrb[0].mxu0
      %v6544 = vadd.f32 %v6160, %v6543
      %v6545 = vpop.f32.mrb[0].mxu0
      %6546 = vmatprep.mubr.bf16.mxu0 %v6066
      %6547 = vmatmul.mubr.bf16.gmra.mrb[0].mxu0 %v6065
      %v6548 = vpop.f32.mrb[0].mxu0
      %v6549 = vadd.f32 %v6160, %v6548
      %v6550 = vpop.f32.mrb[0].mxu0
      %v6551 = vpop.f32.mrb[0].mxu0
      %v6552 = vadd.f32 %v6160, %v6551
      %v6553 = vpop.f32.mrb[0].mxu0
      %6554 = vmatprep.mubr.bf16.mxu0 %v6071
      %6555 = vmatmul.mubr.bf16.gmra.mrb[0].mxu0 %v6070
      %v6556 = vpop.f32.mrb[0].mxu0
      %v6557 = vadd.f32 %v6160, %v6556
      %v6558 = vpop.f32.mrb[0].mxu0
      %v6559 = vpop.f32.mrb[0].mxu0
      %v6560 = vadd.f32 %v6160, %v6559
      %v6561 = vpop.f32.mrb[0].mxu0
      %6562 = vdwg.mxu0
      %6563 = vmatprep.subr.bf16.mxu0 0
      %6564 = vmatpush1.bf16.msra.mxu0 %v6338
      %6565 = vmatprep.subr.bf16.mxu0 0
      %6566 = vmatpush1.bf16.msra.mxu0 %v6339
      %6567 = vmatprep.subr.bf16.mxu0 0
      %6568 = vmatpush1.bf16.msra.mxu0 %v6340
      %6569 = vmatprep.subr.bf16.mxu0 0
      %6570 = vmatpush1.bf16.msra.mxu0 %v6341
      %6571 = vmatprep.subr.bf16.mxu0 0
      %6572 = vmatpush1.bf16.msra.mxu0 %v6342
      %6573 = vmatprep.subr.bf16.mxu0 0
      %6574 = vmatpush1.bf16.msra.mxu0 %v6343
      %6575 = vmatprep.subr.bf16.mxu0 0
      %6576 = vmatpush1.bf16.msra.mxu0 %v6344
      %6577 = vmatprep.subr.bf16.mxu0 0
      %6578 = vmatpush1.bf16.msra.mxu0 %v6345
      %6579 = vmatprep.subr.bf16.mxu0 0
      %6580 = vmatpush1.bf16.msra.mxu0 %v6346
      %6581 = vmatprep.subr.bf16.mxu0 0
      %6582 = vmatpush1.bf16.msra.mxu0 %v6347
      %6583 = vmatprep.subr.bf16.mxu0 0
      %6584 = vmatpush1.bf16.msra.mxu0 %v6348
      %6585 = vmatprep.subr.bf16.mxu0 0
      %6586 = vmatpush1.bf16.msra.mxu0 %v6349
      %6587 = vmatprep.subr.bf16.mxu0 0
      %6588 = vmatpush1.bf16.msra.mxu0 %v6350
      %6589 = vmatprep.subr.bf16.mxu0 0
      %6590 = vmatpush1.bf16.msra.mxu0 %v6351
      %6591 = vmatprep.subr.bf16.mxu0 0
      %6592 = vmatpush1.bf16.msra.mxu0 %v6352
      %6593 = vmatprep.subr.bf16.mxu0 0
      %6594 = vmatpush1.bf16.msra.mxu0 %v6353
      %6595 = vmatprep.mubr.bf16.mxu0 %v5998
      %6596 = vmatmul.mubr.bf16.gmra.mrb[0].mxu0 %v5997
      %v6597 = vpop.f32.mrb[0].mxu0
      %v6598 = vadd.f32 %v6437, %v6597
      %v6599 = vpop.f32.mrb[0].mxu0
      %v6600 = vpop.f32.mrb[0].mxu0
      %v6601 = vadd.f32 %v6440, %v6600
      %v6602 = vpop.f32.mrb[0].mxu0
      %6603 = vmatprep.mubr.bf16.mxu0 %v6003
      %6604 = vmatmul.mubr.bf16.gmra.mrb[0].mxu0 %v6002
      %v6605 = vpop.f32.mrb[0].mxu0
      %v6606 = vadd.f32 %v6445, %v6605
      %v6607 = vpop.f32.mrb[0].mxu0
      %v6608 = vpop.f32.mrb[0].mxu0
      %v6609 = vadd.f32 %v6448, %v6608
      %v6610 = vpop.f32.mrb[0].mxu0
      %6611 = vmatprep.mubr.bf16.mxu0 %v6008
      %6612 = vmatmul.mubr.bf16.gmra.mrb[0].mxu0 %v6007
      %v6613 = vpop.f32.mrb[0].mxu0
      %v6614 = vadd.f32 %v6453, %v6613
      %v6615 = vpop.f32.mrb[0].mxu0
      %v6616 = vpop.f32.mrb[0].mxu0
      %v6617 = vadd.f32 %v6456, %v6616
      %v6618 = vpop.f32.mrb[0].mxu0
      %6619 = vmatprep.mubr.bf16.mxu0 %v6013
      %6620 = vmatmul.mubr.bf16.gmra.mrb[0].mxu0 %v6012
      %v6621 = vpop.f32.mrb[0].mxu0
      %v6622 = vadd.f32 %v6461, %v6621
      %v6623 = vpop.f32.mrb[0].mxu0
      %v6624 = vpop.f32.mrb[0].mxu0
      %v6625 = vadd.f32 %v6464, %v6624
      %v6626 = vpop.f32.mrb[0].mxu0
      %6627 = vmatprep.mubr.bf16.mxu0 %v6018
      %6628 = vmatmul.mubr.bf16.gmra.mrb[0].mxu0 %v6017
      %v6629 = vpop.f32.mrb[0].mxu0
      %v6630 = vadd.f32 %v6469, %v6629
      %v6631 = vpop.f32.mrb[0].mxu0
      %v6632 = vpop.f32.mrb[0].mxu0
      %v6633 = vadd.f32 %v6472, %v6632
      %v6634 = vpop.f32.mrb[0].mxu0
      %6635 = vmatprep.mubr.bf16.mxu0 %v6023
      %6636 = vmatmul.mubr.bf16.gmra.mrb[0].mxu0 %v6022
      %v6637 = vpop.f32.mrb[0].mxu0
      %v6638 = vadd.f32 %v6477, %v6637
      %v6639 = vpop.f32.mrb[0].mxu0
      %v6640 = vpop.f32.mrb[0].mxu0
      %v6641 = vadd.f32 %v6480, %v6640
      %v6642 = vpop.f32.mrb[0].mxu0
      %6643 = vmatprep.mubr.bf16.mxu0 %v6028
      %6644 = vmatmul.mubr.bf16.gmra.mrb[0].mxu0 %v6027
      %v6645 = vpop.f32.mrb[0].mxu0
      %v6646 = vadd.f32 %v6485, %v6645
      %v6647 = vpop.f32.mrb[0].mxu0
      %v6648 = vpop.f32.mrb[0].mxu0
      %v6649 = vadd.f32 %v6488, %v6648
      %v6650 = vpop.f32.mrb[0].mxu0
      %6651 = vmatprep.mubr.bf16.mxu0 %v6033
      %6652 = vmatmul.mubr.bf16.gmra.mrb[0].mxu0 %v6032
      %v6653 = vpop.f32.mrb[0].mxu0
      %v6654 = vadd.f32 %v6493, %v6653
      %v6655 = vpop.f32.mrb[0].mxu0
      %v6656 = vpop.f32.mrb[0].mxu0
      %v6657 = vadd.f32 %v6496, %v6656
      %v6658 = vpop.f32.mrb[0].mxu0
      %6659 = vmatprep.mubr.bf16.mxu0 %v6038
      %6660 = vmatmul.mubr.bf16.gmra.mrb[0].mxu0 %v6037
      %v6661 = vpop.f32.mrb[0].mxu0
      %v6662 = vadd.f32 %v6501, %v6661
      %v6663 = vpop.f32.mrb[0].mxu0
      %v6664 = vpop.f32.mrb[0].mxu0
      %v6665 = vadd.f32 %v6504, %v6664
      %v6666 = vpop.f32.mrb[0].mxu0
      %6667 = vmatprep.mubr.bf16.mxu0 %v6043
      %6668 = vmatmul.mubr.bf16.gmra.mrb[0].mxu0 %v6042
      %v6669 = vpop.f32.mrb[0].mxu0
      %v6670 = vadd.f32 %v6509, %v6669
      %v6671 = vpop.f32.mrb[0].mxu0
      %v6672 = vpop.f32.mrb[0].mxu0
      %v6673 = vadd.f32 %v6512, %v6672
      %v6674 = vpop.f32.mrb[0].mxu0
      %6675 = vmatprep.mubr.bf16.mxu0 %v6048
      %6676 = vmatmul.mubr.bf16.gmra.mrb[0].mxu0 %v6047
      %v6677 = vpop.f32.mrb[0].mxu0
      %v6678 = vadd.f32 %v6517, %v6677
      %v6679 = vpop.f32.mrb[0].mxu0
      %v6680 = vpop.f32.mrb[0].mxu0
      %v6681 = vadd.f32 %v6520, %v6680
      %v6682 = vpop.f32.mrb[0].mxu0
      %6683 = vmatprep.mubr.bf16.mxu0 %v6053
      %6684 = vmatmul.mubr.bf16.gmra.mrb[0].mxu0 %v6052
      %v6685 = vpop.f32.mrb[0].mxu0
      %v6686 = vadd.f32 %v6525, %v6685
      %v6687 = vpop.f32.mrb[0].mxu0
      %v6688 = vpop.f32.mrb[0].mxu0
      %v6689 = vadd.f32 %v6528, %v6688
      %v6690 = vpop.f32.mrb[0].mxu0
      %6691 = vmatprep.mubr.bf16.mxu0 %v6058
      %6692 = vmatmul.mubr.bf16.gmra.mrb[0].mxu0 %v6057
      %v6693 = vpop.f32.mrb[0].mxu0
      %v6694 = vadd.f32 %v6533, %v6693
      %v6695 = vpop.f32.mrb[0].mxu0
      %v6696 = vpop.f32.mrb[0].mxu0
      %v6697 = vadd.f32 %v6536, %v6696
      %v6698 = vpop.f32.mrb[0].mxu0
      %6699 = vmatprep.mubr.bf16.mxu0 %v6063
      %6700 = vmatmul.mubr.bf16.gmra.mrb[0].mxu0 %v6062
      %v6701 = vpop.f32.mrb[0].mxu0
      %v6702 = vadd.f32 %v6541, %v6701
      %v6703 = vpop.f32.mrb[0].mxu0
      %v6704 = vpop.f32.mrb[0].mxu0
      %v6705 = vadd.f32 %v6544, %v6704
      %v6706 = vpop.f32.mrb[0].mxu0
      %6707 = vmatprep.mubr.bf16.mxu0 %v6068
      %6708 = vmatmul.mubr.bf16.gmra.mrb[0].mxu0 %v6067
      %v6709 = vpop.f32.mrb[0].mxu0
      %v6710 = vadd.f32 %v6549, %v6709
      %v6711 = vpop.f32.mrb[0].mxu0
      %v6712 = vpop.f32.mrb[0].mxu0
      %v6713 = vadd.f32 %v6552, %v6712
      %v6714 = vpop.f32.mrb[0].mxu0
      %6715 = vmatprep.mubr.bf16.mxu0 %v6073
      %6716 = vmatmul.mubr.bf16.gmra.mrb[0].mxu0 %v6072
      %v6717 = vpop.f32.mrb[0].mxu0
      %v6718 = vadd.f32 %v6557, %v6717
      %v6719 = vpop.f32.mrb[0].mxu0
      %v6720 = vpop.f32.mrb[0].mxu0
      %v6721 = vadd.f32 %v6560, %v6720
      %v6722 = vpop.f32.mrb[0].mxu0
      %6723 = vdwg.mxu0
      %6724 = vmatprep.subr.bf16.mxu0 0
      %6725 = vmatpush1.bf16.msra.mxu0 %v6354
      %6726 = vmatprep.subr.bf16.mxu0 0
      %6727 = vmatpush1.bf16.msra.mxu0 %v6355
      %6728 = vmatprep.subr.bf16.mxu0 0
      %6729 = vmatpush1.bf16.msra.mxu0 %v6356
      %6730 = vmatprep.subr.bf16.mxu0 0
      %6731 = vmatpush1.bf16.msra.mxu0 %v6357
      %6732 = vmatprep.subr.bf16.mxu0 0
      %6733 = vmatpush1.bf16.msra.mxu0 %v6358
      %6734 = vmatprep.subr.bf16.mxu0 0
      %6735 = vmatpush1.bf16.msra.mxu0 %v6359
      %6736 = vmatprep.subr.bf16.mxu0 0
      %6737 = vmatpush1.bf16.msra.mxu0 %v6360
      %6738 = vmatprep.subr.bf16.mxu0 0
      %6739 = vmatpush1.bf16.msra.mxu0 %v6361
      %6740 = vmatprep.subr.bf16.mxu0 0
      %6741 = vmatpush1.bf16.msra.mxu0 0
      %6742 = vmatprep.subr.bf16.mxu0 0
      %6743 = vmatpush1.bf16.msra.mxu0 0
      %6744 = vmatprep.subr.bf16.mxu0 0
      %6745 = vmatpush1.bf16.msra.mxu0 0
      %6746 = vmatprep.subr.bf16.mxu0 0
      %6747 = vmatpush1.bf16.msra.mxu0 0
      %6748 = vmatprep.subr.bf16.mxu0 0
      %6749 = vmatpush1.bf16.msra.mxu0 0
      %6750 = vmatprep.subr.bf16.mxu0 0
      %6751 = vmatpush1.bf16.msra.mxu0 0
      %6752 = vmatprep.subr.bf16.mxu0 0
      %6753 = vmatpush1.bf16.msra.mxu0 0
      %6754 = vmatprep.subr.bf16.mxu0 0
      %6755 = vmatpush1.bf16.msra.mxu0 0
      %6756 = vmatprep.mubr.bf16.mxu0 0
      %6757 = vmatmul.mubr.bf16.gmra.mrb[0].mxu0 %v5999
      %v6758 = vpop.f32.mrb[0].mxu0
      %v6759 = vadd.f32 %v6598, %v6758
      %v6760 = vpop.f32.mrb[0].mxu0
      %v6761 = vpop.f32.mrb[0].mxu0
      %v6762 = vadd.f32 %v6601, %v6761
      %v6763 = vpop.f32.mrb[0].mxu0
      %6764 = vmatprep.mubr.bf16.mxu0 0
      %6765 = vmatmul.mubr.bf16.gmra.mrb[0].mxu0 %v6004
      %v6766 = vpop.f32.mrb[0].mxu0
      %v6767 = vadd.f32 %v6606, %v6766
      %v6768 = vpop.f32.mrb[0].mxu0
      %v6769 = vpop.f32.mrb[0].mxu0
      %v6770 = vadd.f32 %v6609, %v6769
      %v6771 = vpop.f32.mrb[0].mxu0
      %6772 = vmatprep.mubr.bf16.mxu0 0
      %6773 = vmatmul.mubr.bf16.gmra.mrb[0].mxu0 %v6009
      %v6774 = vpop.f32.mrb[0].mxu0
      %v6775 = vadd.f32 %v6614, %v6774
      %v6776 = vpop.f32.mrb[0].mxu0
      %v6777 = vpop.f32.mrb[0].mxu0
      %v6778 = vadd.f32 %v6617, %v6777
      %v6779 = vpop.f32.mrb[0].mxu0
      %6780 = vmatprep.mubr.bf16.mxu0 0
      %6781 = vmatmul.mubr.bf16.gmra.mrb[0].mxu0 %v6014
      %v6782 = vpop.f32.mrb[0].mxu0
      %v6783 = vadd.f32 %v6622, %v6782
      %v6784 = vpop.f32.mrb[0].mxu0
      %v6785 = vpop.f32.mrb[0].mxu0
      %v6786 = vadd.f32 %v6625, %v6785
      %v6787 = vpop.f32.mrb[0].mxu0
      %6788 = vmatprep.mubr.bf16.mxu0 0
      %6789 = vmatmul.mubr.bf16.gmra.mrb[0].mxu0 %v6019
      %v6790 = vpop.f32.mrb[0].mxu0
      %v6791 = vadd.f32 %v6630, %v6790
      %v6792 = vpop.f32.mrb[0].mxu0
      %v6793 = vpop.f32.mrb[0].mxu0
      %v6794 = vadd.f32 %v6633, %v6793
      %v6795 = vpop.f32.mrb[0].mxu0
      %6796 = vmatprep.mubr.bf16.mxu0 0
      %6797 = vmatmul.mubr.bf16.gmra.mrb[0].mxu0 %v6024
      %v6798 = vpop.f32.mrb[0].mxu0
      %v6799 = vadd.f32 %v6638, %v6798
      %v6800 = vpop.f32.mrb[0].mxu0
      %v6801 = vpop.f32.mrb[0].mxu0
      %v6802 = vadd.f32 %v6641, %v6801
      %v6803 = vpop.f32.mrb[0].mxu0
      %6804 = vmatprep.mubr.bf16.mxu0 0
      %6805 = vmatmul.mubr.bf16.gmra.mrb[0].mxu0 %v6029
      %v6806 = vpop.f32.mrb[0].mxu0
      %v6807 = vadd.f32 %v6646, %v6806
      %v6808 = vpop.f32.mrb[0].mxu0
      %v6809 = vpop.f32.mrb[0].mxu0
      %v6810 = vadd.f32 %v6649, %v6809
      %v6811 = vpop.f32.mrb[0].mxu0
      %6812 = vmatprep.mubr.bf16.mxu0 0
      %6813 = vmatmul.mubr.bf16.gmra.mrb[0].mxu0 %v6034
      %v6814 = vpop.f32.mrb[0].mxu0
      %v6815 = vadd.f32 %v6654, %v6814
      %v6816 = vpop.f32.mrb[0].mxu0
      %v6817 = vpop.f32.mrb[0].mxu0
      %v6818 = vadd.f32 %v6657, %v6817
      %v6819 = vpop.f32.mrb[0].mxu0
      %6820 = vmatprep.mubr.bf16.mxu0 0
      %6821 = vmatmul.mubr.bf16.gmra.mrb[0].mxu0 %v6039
      %v6822 = vpop.f32.mrb[0].mxu0
      %v6823 = vadd.f32 %v6662, %v6822
      %v6824 = vpop.f32.mrb[0].mxu0
      %v6825 = vpop.f32.mrb[0].mxu0
      %v6826 = vadd.f32 %v6665, %v6825
      %v6827 = vpop.f32.mrb[0].mxu0
      %6828 = vmatprep.mubr.bf16.mxu0 0
      %6829 = vmatmul.mubr.bf16.gmra.mrb[0].mxu0 %v6044
      %v6830 = vpop.f32.mrb[0].mxu0
      %v6831 = vadd.f32 %v6670, %v6830
      %v6832 = vpop.f32.mrb[0].mxu0
      %v6833 = vpop.f32.mrb[0].mxu0
      %v6834 = vadd.f32 %v6673, %v6833
      %v6835 = vpop.f32.mrb[0].mxu0
      %6836 = vmatprep.mubr.bf16.mxu0 0
      %6837 = vmatmul.mubr.bf16.gmra.mrb[0].mxu0 %v6049
      %v6838 = vpop.f32.mrb[0].mxu0
      %v6839 = vadd.f32 %v6678, %v6838
      %v6840 = vpop.f32.mrb[0].mxu0
      %v6841 = vpop.f32.mrb[0].mxu0
      %v6842 = vadd.f32 %v6681, %v6841
      %v6843 = vpop.f32.mrb[0].mxu0
      %6844 = vmatprep.mubr.bf16.mxu0 0
      %6845 = vmatmul.mubr.bf16.gmra.mrb[0].mxu0 %v6054
      %v6846 = vpop.f32.mrb[0].mxu0
      %v6847 = vadd.f32 %v6686, %v6846
      %v6848 = vpop.f32.mrb[0].mxu0
      %v6849 = vpop.f32.mrb[0].mxu0
      %v6850 = vadd.f32 %v6689, %v6849
      %v6851 = vpop.f32.mrb[0].mxu0
      %6852 = vmatprep.mubr.bf16.mxu0 0
      %6853 = vmatmul.mubr.bf16.gmra.mrb[0].mxu0 %v6059
      %v6854 = vpop.f32.mrb[0].mxu0
      %v6855 = vadd.f32 %v6694, %v6854
      %v6856 = vpop.f32.mrb[0].mxu0
      %v6857 = vpop.f32.mrb[0].mxu0
      %v6858 = vadd.f32 %v6697, %v6857
      %v6859 = vpop.f32.mrb[0].mxu0
      %6860 = vmatprep.mubr.bf16.mxu0 0
      %6861 = vmatmul.mubr.bf16.gmra.mrb[0].mxu0 %v6064
      %v6862 = vpop.f32.mrb[0].mxu0
      %v6863 = vadd.f32 %v6702, %v6862
      %v6864 = vpop.f32.mrb[0].mxu0
      %v6865 = vpop.f32.mrb[0].mxu0
      %v6866 = vadd.f32 %v6705, %v6865
      %v6867 = vpop.f32.mrb[0].mxu0
      %6868 = vmatprep.mubr.bf16.mxu0 0
      %6869 = vmatmul.mubr.bf16.gmra.mrb[0].mxu0 %v6069
      %v6870 = vpop.f32.mrb[0].mxu0
      %v6871 = vadd.f32 %v6710, %v6870
      %v6872 = vpop.f32.mrb[0].mxu0
      %v6873 = vpop.f32.mrb[0].mxu0
      %v6874 = vadd.f32 %v6713, %v6873
      %v6875 = vpop.f32.mrb[0].mxu0
      %6876 = vmatprep.mubr.bf16.mxu0 0
      %6877 = vmatmul.mubr.bf16.gmra.mrb[0].mxu0 %v6074
      %v6878 = vpop.f32.mrb[0].mxu0
      %v6879 = vadd.f32 %v6718, %v6878
      %v6880 = vpop.f32.mrb[0].mxu0
      %v6881 = vpop.f32.mrb[0].mxu0
      %v6882 = vadd.f32 %v6721, %v6881
      %v6883 = vpop.f32.mrb[0].mxu0
      %6884 = vdwg.mxu0
      %v6885 = vmax.f32 %v6759, 0.0
      %v6886 = vmax.f32 %v6762, 0.0
      %v6887 = vmax.f32 %v6767, 0.0
      %v6888 = vmax.f32 %v6770, 0.0
      %v6889 = vmax.f32 %v6775, 0.0
      %v6890 = vmax.f32 %v6778, 0.0
      %v6891 = vmax.f32 %v6783, 0.0
      %v6892 = vmax.f32 %v6786, 0.0
      %v6893 = vmax.f32 %v6791, 0.0
      %v6894 = vmax.f32 %v6794, 0.0
      %v6895 = vmax.f32 %v6799, 0.0
      %v6896 = vmax.f32 %v6802, 0.0
      %v6897 = vmax.f32 %v6807, 0.0
      %v6898 = vmax.f32 %v6810, 0.0
      %v6899 = vmax.f32 %v6815, 0.0
      %v6900 = vmax.f32 %v6818, 0.0
      %v6901 = vmax.f32 %v6823, 0.0
      %v6902 = vmax.f32 %v6826, 0.0
      %v6903 = vmax.f32 %v6831, 0.0
      %v6904 = vmax.f32 %v6834, 0.0
      %v6905 = vmax.f32 %v6839, 0.0
      %v6906 = vmax.f32 %v6842, 0.0
      %v6907 = vmax.f32 %v6847, 0.0
      %v6908 = vmax.f32 %v6850, 0.0
      %v6909 = vmax.f32 %v6855, 0.0
      %v6910 = vmax.f32 %v6858, 0.0
      %v6911 = vmax.f32 %v6863, 0.0
      %v6912 = vmax.f32 %v6866, 0.0
      %v6913 = vmax.f32 %v6871, 0.0
      %v6914 = vmax.f32 %v6874, 0.0
      %v6915 = vmax.f32 %v6879, 0.0
      %v6916 = vmax.f32 %v6882, 0.0
      %v6917 = vpack.c.bf16 %v6886, %v6885
      %v6918 = vpack.c.bf16 %v6888, %v6887
      %v6919 = vpack.c.bf16 %v6890, %v6889
      %v6920 = vpack.c.bf16 %v6892, %v6891
      %v6921 = vpack.c.bf16 %v6894, %v6893
      %v6922 = vpack.c.bf16 %v6896, %v6895
      %v6923 = vpack.c.bf16 %v6898, %v6897
      %v6924 = vpack.c.bf16 %v6900, %v6899
      %v6925 = vpack.c.bf16 %v6902, %v6901
      %v6926 = vpack.c.bf16 %v6904, %v6903
      %v6927 = vpack.c.bf16 %v6906, %v6905
      %v6928 = vpack.c.bf16 %v6908, %v6907
      %v6929 = vpack.c.bf16 %v6910, %v6909
      %v6930 = vpack.c.bf16 %v6912, %v6911
      %v6931 = vpack.c.bf16 %v6914, %v6913
      %v6932 = vpack.c.bf16 %v6916, %v6915
      %v6949 = vunpack.c.l.b16 %v6917
      %v6950 = vunpack.c.h.b16 %v6917
      %v6951 = vunpack.c.l.b16 %v6918
      %v6952 = vunpack.c.h.b16 %v6918
      %v6953 = vunpack.c.l.b16 %v6919
      %v6954 = vunpack.c.h.b16 %v6919
      %v6955 = vunpack.c.l.b16 %v6920
      %v6956 = vunpack.c.h.b16 %v6920
      %v6957 = vunpack.c.l.b16 %v6921
      %v6958 = vunpack.c.h.b16 %v6921
      %v6959 = vunpack.c.l.b16 %v6922
      %v6960 = vunpack.c.h.b16 %v6922
      %v6961 = vunpack.c.l.b16 %v6923
      %v6962 = vunpack.c.h.b16 %v6923
      %v6963 = vunpack.c.l.b16 %v6924
      %v6964 = vunpack.c.h.b16 %v6924
      %v6965 = vunpack.c.l.b16 %v6925
      %v6966 = vunpack.c.h.b16 %v6925
      %v6967 = vunpack.c.l.b16 %v6926
      %v6968 = vunpack.c.h.b16 %v6926
      %v6969 = vunpack.c.l.b16 %v6927
      %v6970 = vunpack.c.h.b16 %v6927
      %v6971 = vunpack.c.l.b16 %v6928
      %v6972 = vunpack.c.h.b16 %v6928
      %v6973 = vunpack.c.l.b16 %v6929
      %v6974 = vunpack.c.h.b16 %v6929
      %v6975 = vunpack.c.l.b16 %v6930
      %v6976 = vunpack.c.h.b16 %v6930
      %v6977 = vunpack.c.l.b16 %v6931
      %v6978 = vunpack.c.h.b16 %v6931
      %v6979 = vunpack.c.l.b16 %v6932
      %v6980 = vunpack.c.h.b16 %v6932
      %v6981 = vpack.c.b16 %v6949, %v6949
      %v6982 = vpack.c.b16 %v6950, %v6950
      %v6983 = vpack.c.b16 %v6951, %v6951
      %v6984 = vpack.c.b16 %v6952, %v6952
      %v6985 = vpack.c.b16 %v6953, %v6953
      %v6986 = vpack.c.b16 %v6954, %v6954
      %v6987 = vpack.c.b16 %v6955, %v6955
      %v6988 = vpack.c.b16 %v6956, %v6956
      %v6989 = vpack.c.b16 %v6957, %v6957
      %v6990 = vpack.c.b16 %v6958, %v6958
      %v6991 = vpack.c.b16 %v6959, %v6959
      %v6992 = vpack.c.b16 %v6960, %v6960
      %v6993 = vpack.c.b16 %v6961, %v6961
      %v6994 = vpack.c.b16 %v6962, %v6962
      %v6995 = vpack.c.b16 %v6963, %v6963
      %v6996 = vpack.c.b16 %v6964, %v6964
      %v6997 = vpack.c.b16 %v6965, %v6965
      %v6998 = vpack.c.b16 %v6966, %v6966
      %v6999 = vpack.c.b16 %v6967, %v6967
      %v7000 = vpack.c.b16 %v6968, %v6968
      %v7001 = vpack.c.b16 %v6969, %v6969
      %v7002 = vpack.c.b16 %v6970, %v6970
      %v7003 = vpack.c.b16 %v6971, %v6971
      %v7004 = vpack.c.b16 %v6972, %v6972
      %v7005 = vpack.c.b16 %v6973, %v6973
      %v7006 = vpack.c.b16 %v6974, %v6974
      %v7007 = vpack.c.b16 %v6975, %v6975
      %v7008 = vpack.c.b16 %v6976, %v6976
      %v7009 = vpack.c.b16 %v6977, %v6977
      %v7010 = vpack.c.b16 %v6978, %v6978
      %v7011 = vpack.c.b16 %v6979, %v6979
      %v7012 = vpack.c.b16 %v6980, %v6980
      %v7014 = vshrl.u32 %v6981, 16
      %v7016 = vrot.slane %v7014, 7
      %v7017 = vshll.u32 %v6981, 16
      %v7019 = vor.u32 %v7016, %v7017
      %v7020 = vrot.slane %v7016, 4
      %v7022 = vshrl.u32 %v6982, 16
      %v7024 = vrot.slane %v7022, 7
      %v7025 = vshll.u32 %v6982, 16
      %v7027 = vor.u32 %v7024, %v7025
      %v7028 = vsel %vm1518, %v7020, %v7027
      %v7029 = vrot.slane %v7024, 4
      %v7031 = vshrl.u32 %v6983, 16
      %v7033 = vrot.slane %v7031, 7
      %v7034 = vshll.u32 %v6983, 16
      %v7036 = vor.u32 %v7033, %v7034
      %v7037 = vrot.slane %v7033, 4
      %v7039 = vshrl.u32 %v6984, 16
      %v7041 = vrot.slane %v7039, 7
      %v7042 = vshll.u32 %v6984, 16
      %v7044 = vor.u32 %v7041, %v7042
      %v7045 = vsel %vm1518, %v7037, %v7044
      %v7046 = vrot.slane %v7041, 4
      %v7048 = vshrl.u32 %v6985, 16
      %v7050 = vrot.slane %v7048, 7
      %v7051 = vshll.u32 %v6985, 16
      %v7053 = vor.u32 %v7050, %v7051
      %v7054 = vrot.slane %v7050, 4
      %v7056 = vshrl.u32 %v6986, 16
      %v7058 = vrot.slane %v7056, 7
      %v7059 = vshll.u32 %v6986, 16
      %v7061 = vor.u32 %v7058, %v7059
      %v7062 = vsel %vm1518, %v7054, %v7061
      %v7063 = vrot.slane %v7058, 4
      %v7065 = vshrl.u32 %v6987, 16
      %v7067 = vrot.slane %v7065, 7
      %v7068 = vshll.u32 %v6987, 16
      %v7070 = vor.u32 %v7067, %v7068
      %v7071 = vrot.slane %v7067, 4
      %v7073 = vshrl.u32 %v6988, 16
      %v7075 = vrot.slane %v7073, 7
      %v7076 = vshll.u32 %v6988, 16
      %v7078 = vor.u32 %v7075, %v7076
      %v7079 = vsel %vm1518, %v7071, %v7078
      %v7080 = vrot.slane %v7075, 4
      %v7082 = vshrl.u32 %v6989, 16
      %v7084 = vrot.slane %v7082, 7
      %v7085 = vshll.u32 %v6989, 16
      %v7087 = vor.u32 %v7084, %v7085
      %v7088 = vrot.slane %v7084, 4
      %v7090 = vshrl.u32 %v6990, 16
      %v7092 = vrot.slane %v7090, 7
      %v7093 = vshll.u32 %v6990, 16
      %v7095 = vor.u32 %v7092, %v7093
      %v7096 = vsel %vm1518, %v7088, %v7095
      %v7097 = vrot.slane %v7092, 4
      %v7099 = vshrl.u32 %v6991, 16
      %v7101 = vrot.slane %v7099, 7
      %v7102 = vshll.u32 %v6991, 16
      %v7104 = vor.u32 %v7101, %v7102
      %v7105 = vrot.slane %v7101, 4
      %v7107 = vshrl.u32 %v6992, 16
      %v7109 = vrot.slane %v7107, 7
      %v7110 = vshll.u32 %v6992, 16
      %v7112 = vor.u32 %v7109, %v7110
      %v7113 = vsel %vm1518, %v7105, %v7112
      %v7114 = vrot.slane %v7109, 4
      %v7116 = vshrl.u32 %v6993, 16
      %v7118 = vrot.slane %v7116, 7
      %v7119 = vshll.u32 %v6993, 16
      %v7121 = vor.u32 %v7118, %v7119
      %v7122 = vrot.slane %v7118, 4
      %v7124 = vshrl.u32 %v6994, 16
      %v7126 = vrot.slane %v7124, 7
      %v7127 = vshll.u32 %v6994, 16
      %v7129 = vor.u32 %v7126, %v7127
      %v7130 = vsel %vm1518, %v7122, %v7129
      %v7131 = vrot.slane %v7126, 4
      %v7133 = vshrl.u32 %v6995, 16
      %v7135 = vrot.slane %v7133, 7
      %v7136 = vshll.u32 %v6995, 16
      %v7138 = vor.u32 %v7135, %v7136
      %v7139 = vrot.slane %v7135, 4
      %v7141 = vshrl.u32 %v6996, 16
      %v7143 = vrot.slane %v7141, 7
      %v7144 = vshll.u32 %v6996, 16
      %v7146 = vor.u32 %v7143, %v7144
      %v7147 = vsel %vm1518, %v7139, %v7146
      %v7148 = vrot.slane %v7143, 4
      %v7150 = vshrl.u32 %v6997, 16
      %v7152 = vrot.slane %v7150, 7
      %v7153 = vshll.u32 %v6997, 16
      %v7155 = vor.u32 %v7152, %v7153
      %v7156 = vrot.slane %v7152, 4
      %v7158 = vshrl.u32 %v6998, 16
      %v7160 = vrot.slane %v7158, 7
      %v7161 = vshll.u32 %v6998, 16
      %v7163 = vor.u32 %v7160, %v7161
      %v7164 = vsel %vm1518, %v7156, %v7163
      %v7165 = vrot.slane %v7160, 4
      %v7167 = vshrl.u32 %v6999, 16
      %v7169 = vrot.slane %v7167, 7
      %v7170 = vshll.u32 %v6999, 16
      %v7172 = vor.u32 %v7169, %v7170
      %v7173 = vrot.slane %v7169, 4
      %v7175 = vshrl.u32 %v7000, 16
      %v7177 = vrot.slane %v7175, 7
      %v7178 = vshll.u32 %v7000, 16
      %v7180 = vor.u32 %v7177, %v7178
      %v7181 = vsel %vm1518, %v7173, %v7180
      %v7182 = vrot.slane %v7177, 4
      %v7184 = vshrl.u32 %v7001, 16
      %v7186 = vrot.slane %v7184, 7
      %v7187 = vshll.u32 %v7001, 16
      %v7189 = vor.u32 %v7186, %v7187
      %v7190 = vrot.slane %v7186, 4
      %v7192 = vshrl.u32 %v7002, 16
      %v7194 = vrot.slane %v7192, 7
      %v7195 = vshll.u32 %v7002, 16
      %v7197 = vor.u32 %v7194, %v7195
      %v7198 = vsel %vm1518, %v7190, %v7197
      %v7199 = vrot.slane %v7194, 4
      %v7201 = vshrl.u32 %v7003, 16
      %v7203 = vrot.slane %v7201, 7
      %v7204 = vshll.u32 %v7003, 16
      %v7206 = vor.u32 %v7203, %v7204
      %v7207 = vrot.slane %v7203, 4
      %v7209 = vshrl.u32 %v7004, 16
      %v7211 = vrot.slane %v7209, 7
      %v7212 = vshll.u32 %v7004, 16
      %v7214 = vor.u32 %v7211, %v7212
      %v7215 = vsel %vm1518, %v7207, %v7214
      %v7216 = vrot.slane %v7211, 4
      %v7218 = vshrl.u32 %v7005, 16
      %v7220 = vrot.slane %v7218, 7
      %v7221 = vshll.u32 %v7005, 16
      %v7223 = vor.u32 %v7220, %v7221
      %v7224 = vrot.slane %v7220, 4
      %v7226 = vshrl.u32 %v7006, 16
      %v7228 = vrot.slane %v7226, 7
      %v7229 = vshll.u32 %v7006, 16
      %v7231 = vor.u32 %v7228, %v7229
      %v7232 = vsel %vm1518, %v7224, %v7231
      %v7233 = vrot.slane %v7228, 4
      %v7235 = vshrl.u32 %v7007, 16
      %v7237 = vrot.slane %v7235, 7
      %v7238 = vshll.u32 %v7007, 16
      %v7240 = vor.u32 %v7237, %v7238
      %v7241 = vrot.slane %v7237, 4
      %v7243 = vshrl.u32 %v7008, 16
      %v7245 = vrot.slane %v7243, 7
      %v7246 = vshll.u32 %v7008, 16
      %v7248 = vor.u32 %v7245, %v7246
      %v7249 = vsel %vm1518, %v7241, %v7248
      %v7250 = vrot.slane %v7245, 4
      %v7252 = vshrl.u32 %v7009, 16
      %v7254 = vrot.slane %v7252, 7
      %v7255 = vshll.u32 %v7009, 16
      %v7257 = vor.u32 %v7254, %v7255
      %v7258 = vrot.slane %v7254, 4
      %v7260 = vshrl.u32 %v7010, 16
      %v7262 = vrot.slane %v7260, 7
      %v7263 = vshll.u32 %v7010, 16
      %v7265 = vor.u32 %v7262, %v7263
      %v7266 = vsel %vm1518, %v7258, %v7265
      %v7267 = vrot.slane %v7262, 4
      %v7269 = vshrl.u32 %v7011, 16
      %v7271 = vrot.slane %v7269, 7
      %v7272 = vshll.u32 %v7011, 16
      %v7274 = vor.u32 %v7271, %v7272
      %v7275 = vrot.slane %v7271, 4
      %v7277 = vshrl.u32 %v7012, 16
      %v7279 = vrot.slane %v7277, 7
      %v7280 = vshll.u32 %v7012, 16
      %v7282 = vor.u32 %v7279, %v7280
      %v7283 = vsel %vm1518, %v7275, %v7282
      %v7284 = vrot.slane %v7279, 4
      %v7333 = vld [vmem:[%s1679] sm:$0xf]
      %v7334 = vsel %vm1681, %v7019, %v7333
      %7335 = vst [vmem:[%s1679] sm:$0xf] %v7334
      %7336 = vst.msk [vmem:[%s1679 + $0x4] sm:$0xf] %vm324, %v7028
      %v7337 = vld [vmem:[%s1679 + $0x8] sm:$0x1]
      %v7338 = vsel %vm335, %v7029, %v7337
      %7339 = vst [vmem:[%s1679 + $0x8] sm:$0x1] %v7338
      %v7340 = vld [vmem:[%s1679 + $0xc] sm:$0xf]
      %v7341 = vsel %vm1681, %v7036, %v7340
      %7342 = vst [vmem:[%s1679 + $0xc] sm:$0xf] %v7341
      %7343 = vst.msk [vmem:[%s1679 + $0x10] sm:$0xf] %vm324, %v7045
      %v7344 = vld [vmem:[%s1679 + $0x14] sm:$0x1]
      %v7345 = vsel %vm335, %v7046, %v7344
      %7346 = vst [vmem:[%s1679 + $0x14] sm:$0x1] %v7345
      %v7347 = vld [vmem:[%s1679 + $0x18] sm:$0xf]
      %v7348 = vsel %vm1681, %v7053, %v7347
      %7349 = vst [vmem:[%s1679 + $0x18] sm:$0xf] %v7348
      %7350 = vst.msk [vmem:[%s1679 + $0x1c] sm:$0xf] %vm324, %v7062
      %v7351 = vld [vmem:[%s1679 + $0x20] sm:$0x1]
      %v7352 = vsel %vm335, %v7063, %v7351
      %7353 = vst [vmem:[%s1679 + $0x20] sm:$0x1] %v7352
      %v7354 = vld [vmem:[%s1679 + $0x24] sm:$0xf]
      %v7355 = vsel %vm1681, %v7070, %v7354
      %7356 = vst [vmem:[%s1679 + $0x24] sm:$0xf] %v7355
      %7357 = vst.msk [vmem:[%s1679 + $0x28] sm:$0xf] %vm324, %v7079
      %v7358 = vld [vmem:[%s1679 + $0x2c] sm:$0x1]
      %v7359 = vsel %vm335, %v7080, %v7358
      %7360 = vst [vmem:[%s1679 + $0x2c] sm:$0x1] %v7359
      %v7361 = vld [vmem:[%s1679 + $0x30] sm:$0xf]
      %v7362 = vsel %vm1681, %v7087, %v7361
      %7363 = vst [vmem:[%s1679 + $0x30] sm:$0xf] %v7362
      %7364 = vst.msk [vmem:[%s1679 + $0x34] sm:$0xf] %vm324, %v7096
      %v7365 = vld [vmem:[%s1679 + $0x38] sm:$0x1]
      %v7366 = vsel %vm335, %v7097, %v7365
      %7367 = vst [vmem:[%s1679 + $0x38] sm:$0x1] %v7366
      %v7368 = vld [vmem:[%s1679 + $0x3c] sm:$0xf]
      %v7369 = vsel %vm1681, %v7104, %v7368
      %7370 = vst [vmem:[%s1679 + $0x3c] sm:$0xf] %v7369
      %7371 = vst.msk [vmem:[%s1679 + $0x40] sm:$0xf] %vm324, %v7113
      %v7372 = vld [vmem:[%s1679 + $0x44] sm:$0x1]
      %v7373 = vsel %vm335, %v7114, %v7372
      %7374 = vst [vmem:[%s1679 + $0x44] sm:$0x1] %v7373
      %v7375 = vld [vmem:[%s1679 + $0x48] sm:$0xf]
      %v7376 = vsel %vm1681, %v7121, %v7375
      %7377 = vst [vmem:[%s1679 + $0x48] sm:$0xf] %v7376
      %7378 = vst.msk [vmem:[%s1679 + $0x4c] sm:$0xf] %vm324, %v7130
      %v7379 = vld [vmem:[%s1679 + $0x50] sm:$0x1]
      %v7380 = vsel %vm335, %v7131, %v7379
      %7381 = vst [vmem:[%s1679 + $0x50] sm:$0x1] %v7380
      %v7382 = vld [vmem:[%s1679 + $0x54] sm:$0xf]
      %v7383 = vsel %vm1681, %v7138, %v7382
      %7384 = vst [vmem:[%s1679 + $0x54] sm:$0xf] %v7383
      %7385 = vst.msk [vmem:[%s1679 + $0x58] sm:$0xf] %vm324, %v7147
      %v7386 = vld [vmem:[%s1679 + $0x5c] sm:$0x1]
      %v7387 = vsel %vm335, %v7148, %v7386
      %7388 = vst [vmem:[%s1679 + $0x5c] sm:$0x1] %v7387
      %v7389 = vld [vmem:[%s1679 + $0x60] sm:$0xf]
      %v7390 = vsel %vm1681, %v7155, %v7389
      %7391 = vst [vmem:[%s1679 + $0x60] sm:$0xf] %v7390
      %7392 = vst.msk [vmem:[%s1679 + $0x64] sm:$0xf] %vm324, %v7164
      %v7393 = vld [vmem:[%s1679 + $0x68] sm:$0x1]
      %v7394 = vsel %vm335, %v7165, %v7393
      %7395 = vst [vmem:[%s1679 + $0x68] sm:$0x1] %v7394
      %v7396 = vld [vmem:[%s1679 + $0x6c] sm:$0xf]
      %v7397 = vsel %vm1681, %v7172, %v7396
      %7398 = vst [vmem:[%s1679 + $0x6c] sm:$0xf] %v7397
      %7399 = vst.msk [vmem:[%s1679 + $0x70] sm:$0xf] %vm324, %v7181
      %v7400 = vld [vmem:[%s1679 + $0x74] sm:$0x1]
      %v7401 = vsel %vm335, %v7182, %v7400
      %7402 = vst [vmem:[%s1679 + $0x74] sm:$0x1] %v7401
      %v7403 = vld [vmem:[%s1679 + $0x78] sm:$0xf]
      %v7404 = vsel %vm1681, %v7189, %v7403
      %7405 = vst [vmem:[%s1679 + $0x78] sm:$0xf] %v7404
      %7406 = vst.msk [vmem:[%s1679 + $0x7c] sm:$0xf] %vm324, %v7198
      %v7407 = vld [vmem:[%s1679 + $0x80] sm:$0x1]
      %v7408 = vsel %vm335, %v7199, %v7407
      %7409 = vst [vmem:[%s1679 + $0x80] sm:$0x1] %v7408
      %v7410 = vld [vmem:[%s1679 + $0x84] sm:$0xf]
      %v7411 = vsel %vm1681, %v7206, %v7410
      %7412 = vst [vmem:[%s1679 + $0x84] sm:$0xf] %v7411
      %7413 = vst.msk [vmem:[%s1679 + $0x88] sm:$0xf] %vm324, %v7215
      %v7414 = vld [vmem:[%s1679 + $0x8c] sm:$0x1]
      %v7415 = vsel %vm335, %v7216, %v7414
      %7416 = vst [vmem:[%s1679 + $0x8c] sm:$0x1] %v7415
      %v7417 = vld [vmem:[%s1679 + $0x90] sm:$0xf]
      %v7418 = vsel %vm1681, %v7223, %v7417
      %7419 = vst [vmem:[%s1679 + $0x90] sm:$0xf] %v7418
      %7420 = vst.msk [vmem:[%s1679 + $0x94] sm:$0xf] %vm324, %v7232
      %v7421 = vld [vmem:[%s1679 + $0x98] sm:$0x1]
      %v7422 = vsel %vm335, %v7233, %v7421
      %7423 = vst [vmem:[%s1679 + $0x98] sm:$0x1] %v7422
      %v7424 = vld [vmem:[%s1679 + $0x9c] sm:$0xf]
      %v7425 = vsel %vm1681, %v7240, %v7424
      %7426 = vst [vmem:[%s1679 + $0x9c] sm:$0xf] %v7425
      %7427 = vst.msk [vmem:[%s1679 + $0xa0] sm:$0xf] %vm324, %v7249
      %v7428 = vld [vmem:[%s1679 + $0xa4] sm:$0x1]
      %v7429 = vsel %vm335, %v7250, %v7428
      %7430 = vst [vmem:[%s1679 + $0xa4] sm:$0x1] %v7429
      %v7431 = vld [vmem:[%s1679 + $0xa8] sm:$0xf]
      %v7432 = vsel %vm1681, %v7257, %v7431
      %7433 = vst [vmem:[%s1679 + $0xa8] sm:$0xf] %v7432
      %7434 = vst.msk [vmem:[%s1679 + $0xac] sm:$0xf] %vm324, %v7266
      %v7435 = vld [vmem:[%s1679 + $0xb0] sm:$0x1]
      %v7436 = vsel %vm335, %v7267, %v7435
      %7437 = vst [vmem:[%s1679 + $0xb0] sm:$0x1] %v7436
      %v7438 = vld [vmem:[%s1679 + $0xb4] sm:$0xf]
      %v7439 = vsel %vm1681, %v7274, %v7438
      %7440 = vst [vmem:[%s1679 + $0xb4] sm:$0xf] %v7439
      %7441 = vst.msk [vmem:[%s1679 + $0xb8] sm:$0xf] %vm324, %v7283
      %v7442 = vld [vmem:[%s1679 + $0xbc] sm:$0x1]
      %v7443 = vsel %vm335, %v7284, %v7442
      %7444 = vst [vmem:[%s1679 + $0xbc] sm:$0x1] %v7443
      %v7445 = vld [vmem:[#allocation2] sm:$0xf]
      %v7446 = vld [vmem:[#allocation2 + $0x4] sm:$0xf]
      %v7447 = vld [vmem:[#allocation2 + $0xc] sm:$0xf]
      %v7448 = vld [vmem:[#allocation2 + $0x10] sm:$0xf]
      %v7449 = vld [vmem:[#allocation2 + $0x18] sm:$0xf]
      %v7450 = vld [vmem:[#allocation2 + $0x1c] sm:$0xf]
      %v7451 = vld [vmem:[#allocation2 + $0x24] sm:$0xf]
      %v7452 = vld [vmem:[#allocation2 + $0x28] sm:$0xf]
      %v7453 = vld [vmem:[#allocation2 + $0x30] sm:$0xf]
      %v7454 = vld [vmem:[#allocation2 + $0x34] sm:$0xf]
      %v7455 = vld [vmem:[#allocation2 + $0x3c] sm:$0xf]
      %v7456 = vld [vmem:[#allocation2 + $0x40] sm:$0xf]
      %v7457 = vld [vmem:[#allocation2 + $0x48] sm:$0xf]
      %v7458 = vld [vmem:[#allocation2 + $0x4c] sm:$0xf]
      %v7459 = vld [vmem:[#allocation2 + $0x54] sm:$0xf]
      %v7460 = vld [vmem:[#allocation2 + $0x58] sm:$0xf]
      %v7461 = vunpack.c.l.bf16 %v7445
      %v7462 = vunpack.c.l.bf16 %v7446
      %v7463 = vunpack.c.l.bf16 %v7447
      %v7464 = vunpack.c.l.bf16 %v7448
      %v7465 = vunpack.c.l.bf16 %v7449
      %v7466 = vunpack.c.l.bf16 %v7450
      %v7467 = vunpack.c.l.bf16 %v7451
      %v7468 = vunpack.c.l.bf16 %v7452
      %v7469 = vunpack.c.l.bf16 %v7453
      %v7470 = vunpack.c.l.bf16 %v7454
      %v7471 = vunpack.c.l.bf16 %v7455
      %v7472 = vunpack.c.l.bf16 %v7456
      %v7473 = vunpack.c.l.bf16 %v7457
      %v7474 = vunpack.c.l.bf16 %v7458
      %v7475 = vunpack.c.l.bf16 %v7459
      %v7476 = vunpack.c.l.bf16 %v7460
      %v7477 = vld [vmem:[%s6] sm:$0x1]
      %v7478 = vlaneseq
      %v7479 = vshrl.u32 %v7478, 7
      %v7480 = vsub.s32 0, %v7479
      %v7481 = vrot.slane %v7477, %v7480
      %v7482 = vmul.f32 %v7461, %v7481
      %v7483 = vmul.f32 %v7462, %v7481
      %v7484 = vmul.f32 %v7463, %v7481
      %v7485 = vmul.f32 %v7464, %v7481
      %v7486 = vmul.f32 %v7465, %v7481
      %v7487 = vmul.f32 %v7466, %v7481
      %v7488 = vmul.f32 %v7467, %v7481
      %v7489 = vmul.f32 %v7468, %v7481
      %v7490 = vmul.f32 %v7469, %v7481
      %v7491 = vmul.f32 %v7470, %v7481
      %v7492 = vmul.f32 %v7471, %v7481
      %v7493 = vmul.f32 %v7472, %v7481
      %v7494 = vmul.f32 %v7473, %v7481
      %v7495 = vmul.f32 %v7474, %v7481
      %v7496 = vmul.f32 %v7475, %v7481
      %v7497 = vmul.f32 %v7476, %v7481
      %v7498 = vadd.f32 %v7482, 0.0
      %v7499 = vadd.f32 %v7483, 0.0
      %v7500 = vadd.f32 %v7484, 0.0
      %v7501 = vadd.f32 %v7485, 0.0
      %v7502 = vadd.f32 %v7486, 0.0
      %v7503 = vadd.f32 %v7487, 0.0
      %v7504 = vadd.f32 %v7488, 0.0
      %v7505 = vadd.f32 %v7489, 0.0
      %v7506 = vadd.f32 %v7490, 0.0
      %v7507 = vadd.f32 %v7491, 0.0
      %v7508 = vadd.f32 %v7492, 0.0
      %v7509 = vadd.f32 %v7493, 0.0
      %v7510 = vadd.f32 %v7494, 0.0
      %v7511 = vadd.f32 %v7495, 0.0
      %v7512 = vadd.f32 %v7496, 0.0
      %v7513 = vadd.f32 %v7497, 0.0
      %v7514 = vld [vmem:[#allocation2 + $0x8] sm:$0x1]
      %v7515 = vld [vmem:[#allocation2 + $0x14] sm:$0x1]
      %v7516 = vld [vmem:[#allocation2 + $0x20] sm:$0x1]
      %v7517 = vld [vmem:[#allocation2 + $0x2c] sm:$0x1]
      %v7518 = vld [vmem:[#allocation2 + $0x38] sm:$0x1]
      %v7519 = vld [vmem:[#allocation2 + $0x44] sm:$0x1]
      %v7520 = vld [vmem:[#allocation2 + $0x50] sm:$0x1]
      %v7521 = vld [vmem:[#allocation2 + $0x5c] sm:$0x1]
      %v7522 = vunpack.c.l.bf16 %v7514
      %v7523 = vunpack.c.l.bf16 %v7515
      %v7524 = vunpack.c.l.bf16 %v7516
      %v7525 = vunpack.c.l.bf16 %v7517
      %v7526 = vunpack.c.l.bf16 %v7518
      %v7527 = vunpack.c.l.bf16 %v7519
      %v7528 = vunpack.c.l.bf16 %v7520
      %v7529 = vunpack.c.l.bf16 %v7521
      %v7530 = vld [vmem:[%s6 + $0x1] sm:$0x1]
      %v7531 = vlaneseq
      %v7532 = vshrl.u32 %v7531, 7
      %v7533 = vsub.s32 0, %v7532
      %v7534 = vrot.slane %v7530, %v7533
      %v7535 = vmul.f32 %v7461, %v7534
      %v7536 = vmul.f32 %v7462, %v7534
      %v7537 = vmul.f32 %v7522, %v7534
      %v7538 = vmul.f32 %v7463, %v7534
      %v7539 = vmul.f32 %v7464, %v7534
      %v7540 = vmul.f32 %v7523, %v7534
      %v7541 = vmul.f32 %v7465, %v7534
      %v7542 = vmul.f32 %v7466, %v7534
      %v7543 = vmul.f32 %v7524, %v7534
      %v7544 = vmul.f32 %v7467, %v7534
      %v7545 = vmul.f32 %v7468, %v7534
      %v7546 = vmul.f32 %v7525, %v7534
      %v7547 = vmul.f32 %v7469, %v7534
      %v7548 = vmul.f32 %v7470, %v7534
      %v7549 = vmul.f32 %v7526, %v7534
      %v7550 = vmul.f32 %v7471, %v7534
      %v7551 = vmul.f32 %v7472, %v7534
      %v7552 = vmul.f32 %v7527, %v7534
      %v7553 = vmul.f32 %v7473, %v7534
      %v7554 = vmul.f32 %v7474, %v7534
      %v7555 = vmul.f32 %v7528, %v7534
      %v7556 = vmul.f32 %v7475, %v7534
      %v7557 = vmul.f32 %v7476, %v7534
      %v7558 = vmul.f32 %v7529, %v7534
      %vm7583 = vcmask 1046528
      %v7584 = vrot.slane %v7535, 1
      %v7585 = vrot.slane %v7536, 1
      %v7586 = vsel %vm7583, %v7584, %v7585
      %v7587 = vrot.slane %v7537, 1
      %v7588 = vsel %vm7583, %v7585, %v7587
      %v7589 = vrot.slane %v7538, 1
      %v7590 = vrot.slane %v7539, 1
      %v7591 = vsel %vm7583, %v7589, %v7590
      %v7592 = vrot.slane %v7540, 1
      %v7593 = vsel %vm7583, %v7590, %v7592
      %v7594 = vrot.slane %v7541, 1
      %v7595 = vrot.slane %v7542, 1
      %v7596 = vsel %vm7583, %v7594, %v7595
      %v7597 = vrot.slane %v7543, 1
      %v7598 = vsel %vm7583, %v7595, %v7597
      %v7599 = vrot.slane %v7544, 1
      %v7600 = vrot.slane %v7545, 1
      %v7601 = vsel %vm7583, %v7599, %v7600
      %v7602 = vrot.slane %v7546, 1
      %v7603 = vsel %vm7583, %v7600, %v7602
      %v7604 = vrot.slane %v7547, 1
      %v7605 = vrot.slane %v7548, 1
      %v7606 = vsel %vm7583, %v7604, %v7605
      %v7607 = vrot.slane %v7549, 1
      %v7608 = vsel %vm7583, %v7605, %v7607
      %v7609 = vrot.slane %v7550, 1
      %v7610 = vrot.slane %v7551, 1
      %v7611 = vsel %vm7583, %v7609, %v7610
      %v7612 = vrot.slane %v7552, 1
      %v7613 = vsel %vm7583, %v7610, %v7612
      %v7614 = vrot.slane %v7553, 1
      %v7615 = vrot.slane %v7554, 1
      %v7616 = vsel %vm7583, %v7614, %v7615
      %v7617 = vrot.slane %v7555, 1
      %v7618 = vsel %vm7583, %v7615, %v7617
      %v7619 = vrot.slane %v7556, 1
      %v7620 = vrot.slane %v7557, 1
      %v7621 = vsel %vm7583, %v7619, %v7620
      %v7622 = vrot.slane %v7558, 1
      %v7623 = vsel %vm7583, %v7620, %v7622
      %v7640 = vadd.f32 %v7498, %v7586
      %v7641 = vadd.f32 %v7499, %v7588
      %v7642 = vadd.f32 %v7500, %v7591
      %v7643 = vadd.f32 %v7501, %v7593
      %v7644 = vadd.f32 %v7502, %v7596
      %v7645 = vadd.f32 %v7503, %v7598
      %v7646 = vadd.f32 %v7504, %v7601
      %v7647 = vadd.f32 %v7505, %v7603
      %v7648 = vadd.f32 %v7506, %v7606
      %v7649 = vadd.f32 %v7507, %v7608
      %v7650 = vadd.f32 %v7508, %v7611
      %v7651 = vadd.f32 %v7509, %v7613
      %v7652 = vadd.f32 %v7510, %v7616
      %v7653 = vadd.f32 %v7511, %v7618
      %v7654 = vadd.f32 %v7512, %v7621
      %v7655 = vadd.f32 %v7513, %v7623
      %v7656 = vld [vmem:[#allocation2] sm:$0xe]
      %v7657 = vld [vmem:[#allocation2 + $0xc] sm:$0xe]
      %v7658 = vld [vmem:[#allocation2 + $0x18] sm:$0xe]
      %v7659 = vld [vmem:[#allocation2 + $0x24] sm:$0xe]
      %v7660 = vld [vmem:[#allocation2 + $0x30] sm:$0xe]
      %v7661 = vld [vmem:[#allocation2 + $0x3c] sm:$0xe]
      %v7662 = vld [vmem:[#allocation2 + $0x48] sm:$0xe]
      %v7663 = vld [vmem:[#allocation2 + $0x54] sm:$0xe]
      %v7664 = vunpack.c.l.bf16 %v7656
      %v7665 = vunpack.c.l.bf16 %v7657
      %v7666 = vunpack.c.l.bf16 %v7658
      %v7667 = vunpack.c.l.bf16 %v7659
      %v7668 = vunpack.c.l.bf16 %v7660
      %v7669 = vunpack.c.l.bf16 %v7661
      %v7670 = vunpack.c.l.bf16 %v7662
      %v7671 = vunpack.c.l.bf16 %v7663
      %v7672 = vld [vmem:[%s6 + $0x2] sm:$0x1]
      %v7673 = vlaneseq
      %v7674 = vshrl.u32 %v7673, 7
      %v7675 = vsub.s32 0, %v7674
      %v7676 = vrot.slane %v7672, %v7675
      %v7677 = vmul.f32 %v7664, %v7676
      %v7678 = vmul.f32 %v7462, %v7676
      %v7679 = vmul.f32 %v7522, %v7676
      %v7680 = vmul.f32 %v7665, %v7676
      %v7681 = vmul.f32 %v7464, %v7676
      %v7682 = vmul.f32 %v7523, %v7676
      %v7683 = vmul.f32 %v7666, %v7676
      %v7684 = vmul.f32 %v7466, %v7676
      %v7685 = vmul.f32 %v7524, %v7676
      %v7686 = vmul.f32 %v7667, %v7676
      %v7687 = vmul.f32 %v7468, %v7676
      %v7688 = vmul.f32 %v7525, %v7676
      %v7689 = vmul.f32 %v7668, %v7676
      %v7690 = vmul.f32 %v7470, %v7676
      %v7691 = vmul.f32 %v7526, %v7676
      %v7692 = vmul.f32 %v7669, %v7676
      %v7693 = vmul.f32 %v7472, %v7676
      %v7694 = vmul.f32 %v7527, %v7676
      %v7695 = vmul.f32 %v7670, %v7676
      %v7696 = vmul.f32 %v7474, %v7676
      %v7697 = vmul.f32 %v7528, %v7676
      %v7698 = vmul.f32 %v7671, %v7676
      %v7699 = vmul.f32 %v7476, %v7676
      %v7700 = vmul.f32 %v7529, %v7676
      %vm7725 = vcmask 1045504
      %v7726 = vrot.slane %v7677, 2
      %v7727 = vrot.slane %v7678, 2
      %v7728 = vsel %vm7725, %v7726, %v7727
      %v7729 = vrot.slane %v7679, 2
      %v7730 = vsel %vm7725, %v7727, %v7729
      %v7731 = vrot.slane %v7680, 2
      %v7732 = vrot.slane %v7681, 2
      %v7733 = vsel %vm7725, %v7731, %v7732
      %v7734 = vrot.slane %v7682, 2
      %v7735 = vsel %vm7725, %v7732, %v7734
      %v7736 = vrot.slane %v7683, 2
      %v7737 = vrot.slane %v7684, 2
      %v7738 = vsel %vm7725, %v7736, %v7737
      %v7739 = vrot.slane %v7685, 2
      %v7740 = vsel %vm7725, %v7737, %v7739
      %v7741 = vrot.slane %v7686, 2
      %v7742 = vrot.slane %v7687, 2
      %v7743 = vsel %vm7725, %v7741, %v7742
      %v7744 = vrot.slane %v7688, 2
      %v7745 = vsel %vm7725, %v7742, %v7744
      %v7746 = vrot.slane %v7689, 2
      %v7747 = vrot.slane %v7690, 2
      %v7748 = vsel %vm7725, %v7746, %v7747
      %v7749 = vrot.slane %v7691, 2
      %v7750 = vsel %vm7725, %v7747, %v7749
      %v7751 = vrot.slane %v7692, 2
      %v7752 = vrot.slane %v7693, 2
      %v7753 = vsel %vm7725, %v7751, %v7752
      %v7754 = vrot.slane %v7694, 2
      %v7755 = vsel %vm7725, %v7752, %v7754
      %v7756 = vrot.slane %v7695, 2
      %v7757 = vrot.slane %v7696, 2
      %v7758 = vsel %vm7725, %v7756, %v7757
      %v7759 = vrot.slane %v7697, 2
      %v7760 = vsel %vm7725, %v7757, %v7759
      %v7761 = vrot.slane %v7698, 2
      %v7762 = vrot.slane %v7699, 2
      %v7763 = vsel %vm7725, %v7761, %v7762
      %v7764 = vrot.slane %v7700, 2
      %v7765 = vsel %vm7725, %v7762, %v7764
      %v7782 = vadd.f32 %v7640, %v7728
      %v7783 = vadd.f32 %v7641, %v7730
      %v7784 = vadd.f32 %v7642, %v7733
      %v7785 = vadd.f32 %v7643, %v7735
      %v7786 = vadd.f32 %v7644, %v7738
      %v7787 = vadd.f32 %v7645, %v7740
      %v7788 = vadd.f32 %v7646, %v7743
      %v7789 = vadd.f32 %v7647, %v7745
      %v7790 = vadd.f32 %v7648, %v7748
      %v7791 = vadd.f32 %v7649, %v7750
      %v7792 = vadd.f32 %v7650, %v7753
      %v7793 = vadd.f32 %v7651, %v7755
      %v7794 = vadd.f32 %v7652, %v7758
      %v7795 = vadd.f32 %v7653, %v7760
      %v7796 = vadd.f32 %v7654, %v7763
      %v7797 = vadd.f32 %v7655, %v7765
      %v7798 = vld [vmem:[%s1679] sm:$0xf]
      %v7799 = vld [vmem:[%s1679 + $0x4] sm:$0xf]
      %v7800 = vld [vmem:[%s1679 + $0xc] sm:$0xf]
      %v7801 = vld [vmem:[%s1679 + $0x10] sm:$0xf]
      %v7802 = vld [vmem:[%s1679 + $0x18] sm:$0xf]
      %v7803 = vld [vmem:[%s1679 + $0x1c] sm:$0xf]
      %v7804 = vld [vmem:[%s1679 + $0x24] sm:$0xf]
      %v7805 = vld [vmem:[%s1679 + $0x28] sm:$0xf]
      %v7806 = vld [vmem:[%s1679 + $0x30] sm:$0xf]
      %v7807 = vld [vmem:[%s1679 + $0x34] sm:$0xf]
      %v7808 = vld [vmem:[%s1679 + $0x3c] sm:$0xf]
      %v7809 = vld [vmem:[%s1679 + $0x40] sm:$0xf]
      %v7810 = vld [vmem:[%s1679 + $0x48] sm:$0xf]
      %v7811 = vld [vmem:[%s1679 + $0x4c] sm:$0xf]
      %v7812 = vld [vmem:[%s1679 + $0x54] sm:$0xf]
      %v7813 = vld [vmem:[%s1679 + $0x58] sm:$0xf]
      %v7814 = vunpack.c.l.bf16 %v7798
      %v7815 = vunpack.c.l.bf16 %v7799
      %v7816 = vunpack.c.l.bf16 %v7800
      %v7817 = vunpack.c.l.bf16 %v7801
      %v7818 = vunpack.c.l.bf16 %v7802
      %v7819 = vunpack.c.l.bf16 %v7803
      %v7820 = vunpack.c.l.bf16 %v7804
      %v7821 = vunpack.c.l.bf16 %v7805
      %v7822 = vunpack.c.l.bf16 %v7806
      %v7823 = vunpack.c.l.bf16 %v7807
      %v7824 = vunpack.c.l.bf16 %v7808
      %v7825 = vunpack.c.l.bf16 %v7809
      %v7826 = vunpack.c.l.bf16 %v7810
      %v7827 = vunpack.c.l.bf16 %v7811
      %v7828 = vunpack.c.l.bf16 %v7812
      %v7829 = vunpack.c.l.bf16 %v7813
      %v7830 = vld [vmem:[%s6 + $0x3] sm:$0x1]
      %v7831 = vlaneseq
      %v7832 = vshrl.u32 %v7831, 7
      %v7833 = vsub.s32 0, %v7832
      %v7834 = vrot.slane %v7830, %v7833
      %v7835 = vmul.f32 %v7814, %v7834
      %v7836 = vmul.f32 %v7815, %v7834
      %v7837 = vmul.f32 %v7816, %v7834
      %v7838 = vmul.f32 %v7817, %v7834
      %v7839 = vmul.f32 %v7818, %v7834
      %v7840 = vmul.f32 %v7819, %v7834
      %v7841 = vmul.f32 %v7820, %v7834
      %v7842 = vmul.f32 %v7821, %v7834
      %v7843 = vmul.f32 %v7822, %v7834
      %v7844 = vmul.f32 %v7823, %v7834
      %v7845 = vmul.f32 %v7824, %v7834
      %v7846 = vmul.f32 %v7825, %v7834
      %v7847 = vmul.f32 %v7826, %v7834
      %v7848 = vmul.f32 %v7827, %v7834
      %v7849 = vmul.f32 %v7828, %v7834
      %v7850 = vmul.f32 %v7829, %v7834
      %v7851 = vadd.f32 %v7782, %v7835
      %v7852 = vadd.f32 %v7783, %v7836
      %v7853 = vadd.f32 %v7784, %v7837
      %v7854 = vadd.f32 %v7785, %v7838
      %v7855 = vadd.f32 %v7786, %v7839
      %v7856 = vadd.f32 %v7787, %v7840
      %v7857 = vadd.f32 %v7788, %v7841
      %v7858 = vadd.f32 %v7789, %v7842
      %v7859 = vadd.f32 %v7790, %v7843
      %v7860 = vadd.f32 %v7791, %v7844
      %v7861 = vadd.f32 %v7792, %v7845
      %v7862 = vadd.f32 %v7793, %v7846
      %v7863 = vadd.f32 %v7794, %v7847
      %v7864 = vadd.f32 %v7795, %v7848
      %v7865 = vadd.f32 %v7796, %v7849
      %v7866 = vadd.f32 %v7797, %v7850
      %v7867 = vld [vmem:[%s1679 + $0x8] sm:$0x1]
      %v7868 = vld [vmem:[%s1679 + $0x14] sm:$0x1]
      %v7869 = vld [vmem:[%s1679 + $0x20] sm:$0x1]
      %v7870 = vld [vmem:[%s1679 + $0x2c] sm:$0x1]
      %v7871 = vld [vmem:[%s1679 + $0x38] sm:$0x1]
      %v7872 = vld [vmem:[%s1679 + $0x44] sm:$0x1]
      %v7873 = vld [vmem:[%s1679 + $0x50] sm:$0x1]
      %v7874 = vld [vmem:[%s1679 + $0x5c] sm:$0x1]
      %v7875 = vunpack.c.l.bf16 %v7867
      %v7876 = vunpack.c.l.bf16 %v7868
      %v7877 = vunpack.c.l.bf16 %v7869
      %v7878 = vunpack.c.l.bf16 %v7870
      %v7879 = vunpack.c.l.bf16 %v7871
      %v7880 = vunpack.c.l.bf16 %v7872
      %v7881 = vunpack.c.l.bf16 %v7873
      %v7882 = vunpack.c.l.bf16 %v7874
      %v7883 = vld [vmem:[%s6 + $0x4] sm:$0x1]
      %v7884 = vlaneseq
      %v7885 = vshrl.u32 %v7884, 7
      %v7886 = vsub.s32 0, %v7885
      %v7887 = vrot.slane %v7883, %v7886
      %v7888 = vmul.f32 %v7814, %v7887
      %v7889 = vmul.f32 %v7815, %v7887
      %v7890 = vmul.f32 %v7875, %v7887
      %v7891 = vmul.f32 %v7816, %v7887
      %v7892 = vmul.f32 %v7817, %v7887
      %v7893 = vmul.f32 %v7876, %v7887
      %v7894 = vmul.f32 %v7818, %v7887
      %v7895 = vmul.f32 %v7819, %v7887
      %v7896 = vmul.f32 %v7877, %v7887
      %v7897 = vmul.f32 %v7820, %v7887
      %v7898 = vmul.f32 %v7821, %v7887
      %v7899 = vmul.f32 %v7878, %v7887
      %v7900 = vmul.f32 %v7822, %v7887
      %v7901 = vmul.f32 %v7823, %v7887
      %v7902 = vmul.f32 %v7879, %v7887
      %v7903 = vmul.f32 %v7824, %v7887
      %v7904 = vmul.f32 %v7825, %v7887
      %v7905 = vmul.f32 %v7880, %v7887
      %v7906 = vmul.f32 %v7826, %v7887
      %v7907 = vmul.f32 %v7827, %v7887
      %v7908 = vmul.f32 %v7881, %v7887
      %v7909 = vmul.f32 %v7828, %v7887
      %v7910 = vmul.f32 %v7829, %v7887
      %v7911 = vmul.f32 %v7882, %v7887
      %v7936 = vrot.slane %v7888, 1
      %v7937 = vrot.slane %v7889, 1
      %v7938 = vsel %vm7583, %v7936, %v7937
      %v7939 = vrot.slane %v7890, 1
      %v7940 = vsel %vm7583, %v7937, %v7939
      %v7941 = vrot.slane %v7891, 1
      %v7942 = vrot.slane %v7892, 1
      %v7943 = vsel %vm7583, %v7941, %v7942
      %v7944 = vrot.slane %v7893, 1
      %v7945 = vsel %vm7583, %v7942, %v7944
      %v7946 = vrot.slane %v7894, 1
      %v7947 = vrot.slane %v7895, 1
      %v7948 = vsel %vm7583, %v7946, %v7947
      %v7949 = vrot.slane %v7896, 1
      %v7950 = vsel %vm7583, %v7947, %v7949
      %v7951 = vrot.slane %v7897, 1
      %v7952 = vrot.slane %v7898, 1
      %v7953 = vsel %vm7583, %v7951, %v7952
      %v7954 = vrot.slane %v7899, 1
      %v7955 = vsel %vm7583, %v7952, %v7954
      %v7956 = vrot.slane %v7900, 1
      %v7957 = vrot.slane %v7901, 1
      %v7958 = vsel %vm7583, %v7956, %v7957
      %v7959 = vrot.slane %v7902, 1
      %v7960 = vsel %vm7583, %v7957, %v7959
      %v7961 = vrot.slane %v7903, 1
      %v7962 = vrot.slane %v7904, 1
      %v7963 = vsel %vm7583, %v7961, %v7962
      %v7964 = vrot.slane %v7905, 1
      %v7965 = vsel %vm7583, %v7962, %v7964
      %v7966 = vrot.slane %v7906, 1
      %v7967 = vrot.slane %v7907, 1
      %v7968 = vsel %vm7583, %v7966, %v7967
      %v7969 = vrot.slane %v7908, 1
      %v7970 = vsel %vm7583, %v7967, %v7969
      %v7971 = vrot.slane %v7909, 1
      %v7972 = vrot.slane %v7910, 1
      %v7973 = vsel %vm7583, %v7971, %v7972
      %v7974 = vrot.slane %v7911, 1
      %v7975 = vsel %vm7583, %v7972, %v7974
      %v7992 = vadd.f32 %v7851, %v7938
      %v7993 = vadd.f32 %v7852, %v7940
      %v7994 = vadd.f32 %v7853, %v7943
      %v7995 = vadd.f32 %v7854, %v7945
      %v7996 = vadd.f32 %v7855, %v7948
      %v7997 = vadd.f32 %v7856, %v7950
      %v7998 = vadd.f32 %v7857, %v7953
      %v7999 = vadd.f32 %v7858, %v7955
      %v8000 = vadd.f32 %v7859, %v7958
      %v8001 = vadd.f32 %v7860, %v7960
      %v8002 = vadd.f32 %v7861, %v7963
      %v8003 = vadd.f32 %v7862, %v7965
      %v8004 = vadd.f32 %v7863, %v7968
      %v8005 = vadd.f32 %v7864, %v7970
      %v8006 = vadd.f32 %v7865, %v7973
      %v8007 = vadd.f32 %v7866, %v7975
      %v8008 = vld [vmem:[%s1679] sm:$0xe]
      %v8009 = vld [vmem:[%s1679 + $0xc] sm:$0xe]
      %v8010 = vld [vmem:[%s1679 + $0x18] sm:$0xe]
      %v8011 = vld [vmem:[%s1679 + $0x24] sm:$0xe]
      %v8012 = vld [vmem:[%s1679 + $0x30] sm:$0xe]
      %v8013 = vld [vmem:[%s1679 + $0x3c] sm:$0xe]
      %v8014 = vld [vmem:[%s1679 + $0x48] sm:$0xe]
      %v8015 = vld [vmem:[%s1679 + $0x54] sm:$0xe]
      %v8016 = vunpack.c.l.bf16 %v8008
      %v8017 = vunpack.c.l.bf16 %v8009
      %v8018 = vunpack.c.l.bf16 %v8010
      %v8019 = vunpack.c.l.bf16 %v8011
      %v8020 = vunpack.c.l.bf16 %v8012
      %v8021 = vunpack.c.l.bf16 %v8013
      %v8022 = vunpack.c.l.bf16 %v8014
      %v8023 = vunpack.c.l.bf16 %v8015
      %v8024 = vld [vmem:[%s6 + $0x5] sm:$0x1]
      %v8025 = vlaneseq
      %v8026 = vshrl.u32 %v8025, 7
      %v8027 = vsub.s32 0, %v8026
      %v8028 = vrot.slane %v8024, %v8027
      %v8029 = vmul.f32 %v8016, %v8028
      %v8030 = vmul.f32 %v7815, %v8028
      %v8031 = vmul.f32 %v7875, %v8028
      %v8032 = vmul.f32 %v8017, %v8028
      %v8033 = vmul.f32 %v7817, %v8028
      %v8034 = vmul.f32 %v7876, %v8028
      %v8035 = vmul.f32 %v8018, %v8028
      %v8036 = vmul.f32 %v7819, %v8028
      %v8037 = vmul.f32 %v7877, %v8028
      %v8038 = vmul.f32 %v8019, %v8028
      %v8039 = vmul.f32 %v7821, %v8028
      %v8040 = vmul.f32 %v7878, %v8028
      %v8041 = vmul.f32 %v8020, %v8028
      %v8042 = vmul.f32 %v7823, %v8028
      %v8043 = vmul.f32 %v7879, %v8028
      %v8044 = vmul.f32 %v8021, %v8028
      %v8045 = vmul.f32 %v7825, %v8028
      %v8046 = vmul.f32 %v7880, %v8028
      %v8047 = vmul.f32 %v8022, %v8028
      %v8048 = vmul.f32 %v7827, %v8028
      %v8049 = vmul.f32 %v7881, %v8028
      %v8050 = vmul.f32 %v8023, %v8028
      %v8051 = vmul.f32 %v7829, %v8028
      %v8052 = vmul.f32 %v7882, %v8028
      %v8077 = vrot.slane %v8029, 2
      %v8078 = vrot.slane %v8030, 2
      %v8079 = vsel %vm7725, %v8077, %v8078
      %v8080 = vrot.slane %v8031, 2
      %v8081 = vsel %vm7725, %v8078, %v8080
      %v8082 = vrot.slane %v8032, 2
      %v8083 = vrot.slane %v8033, 2
      %v8084 = vsel %vm7725, %v8082, %v8083
      %v8085 = vrot.slane %v8034, 2
      %v8086 = vsel %vm7725, %v8083, %v8085
      %v8087 = vrot.slane %v8035, 2
      %v8088 = vrot.slane %v8036, 2
      %v8089 = vsel %vm7725, %v8087, %v8088
      %v8090 = vrot.slane %v8037, 2
      %v8091 = vsel %vm7725, %v8088, %v8090
      %v8092 = vrot.slane %v8038, 2
      %v8093 = vrot.slane %v8039, 2
      %v8094 = vsel %vm7725, %v8092, %v8093
      %v8095 = vrot.slane %v8040, 2
      %v8096 = vsel %vm7725, %v8093, %v8095
      %v8097 = vrot.slane %v8041, 2
      %v8098 = vrot.slane %v8042, 2
      %v8099 = vsel %vm7725, %v8097, %v8098
      %v8100 = vrot.slane %v8043, 2
      %v8101 = vsel %vm7725, %v8098, %v8100
      %v8102 = vrot.slane %v8044, 2
      %v8103 = vrot.slane %v8045, 2
      %v8104 = vsel %vm7725, %v8102, %v8103
      %v8105 = vrot.slane %v8046, 2
      %v8106 = vsel %vm7725, %v8103, %v8105
      %v8107 = vrot.slane %v8047, 2
      %v8108 = vrot.slane %v8048, 2
      %v8109 = vsel %vm7725, %v8107, %v8108
      %v8110 = vrot.slane %v8049, 2
      %v8111 = vsel %vm7725, %v8108, %v8110
      %v8112 = vrot.slane %v8050, 2
      %v8113 = vrot.slane %v8051, 2
      %v8114 = vsel %vm7725, %v8112, %v8113
      %v8115 = vrot.slane %v8052, 2
      %v8116 = vsel %vm7725, %v8113, %v8115
      %v8133 = vadd.f32 %v7992, %v8079
      %v8134 = vadd.f32 %v7993, %v8081
      %v8135 = vadd.f32 %v7994, %v8084
      %v8136 = vadd.f32 %v7995, %v8086
      %v8137 = vadd.f32 %v7996, %v8089
      %v8138 = vadd.f32 %v7997, %v8091
      %v8139 = vadd.f32 %v7998, %v8094
      %v8140 = vadd.f32 %v7999, %v8096
      %v8141 = vadd.f32 %v8000, %v8099
      %v8142 = vadd.f32 %v8001, %v8101
      %v8143 = vadd.f32 %v8002, %v8104
      %v8144 = vadd.f32 %v8003, %v8106
      %v8145 = vadd.f32 %v8004, %v8109
      %v8146 = vadd.f32 %v8005, %v8111
      %v8147 = vadd.f32 %v8006, %v8114
      %v8148 = vadd.f32 %v8007, %v8116
      %v8149 = vld [vmem:[%s5001] sm:$0xf]
      %v8150 = vld [vmem:[%s5001 + $0x4] sm:$0xf]
      %v8151 = vld [vmem:[%s5001 + $0xc] sm:$0xf]
      %v8152 = vld [vmem:[%s5001 + $0x10] sm:$0xf]
      %v8153 = vld [vmem:[%s5001 + $0x18] sm:$0xf]
      %v8154 = vld [vmem:[%s5001 + $0x1c] sm:$0xf]
      %v8155 = vld [vmem:[%s5001 + $0x24] sm:$0xf]
      %v8156 = vld [vmem:[%s5001 + $0x28] sm:$0xf]
      %v8157 = vld [vmem:[%s5001 + $0x30] sm:$0xf]
      %v8158 = vld [vmem:[%s5001 + $0x34] sm:$0xf]
      %v8159 = vld [vmem:[%s5001 + $0x3c] sm:$0xf]
      %v8160 = vld [vmem:[%s5001 + $0x40] sm:$0xf]
      %v8161 = vld [vmem:[%s5001 + $0x48] sm:$0xf]
      %v8162 = vld [vmem:[%s5001 + $0x4c] sm:$0xf]
      %v8163 = vld [vmem:[%s5001 + $0x54] sm:$0xf]
      %v8164 = vld [vmem:[%s5001 + $0x58] sm:$0xf]
      %v8165 = vunpack.c.l.bf16 %v8149
      %v8166 = vunpack.c.l.bf16 %v8150
      %v8167 = vunpack.c.l.bf16 %v8151
      %v8168 = vunpack.c.l.bf16 %v8152
      %v8169 = vunpack.c.l.bf16 %v8153
      %v8170 = vunpack.c.l.bf16 %v8154
      %v8171 = vunpack.c.l.bf16 %v8155
      %v8172 = vunpack.c.l.bf16 %v8156
      %v8173 = vunpack.c.l.bf16 %v8157
      %v8174 = vunpack.c.l.bf16 %v8158
      %v8175 = vunpack.c.l.bf16 %v8159
      %v8176 = vunpack.c.l.bf16 %v8160
      %v8177 = vunpack.c.l.bf16 %v8161
      %v8178 = vunpack.c.l.bf16 %v8162
      %v8179 = vunpack.c.l.bf16 %v8163
      %v8180 = vunpack.c.l.bf16 %v8164
      %v8181 = vld [vmem:[%s6 + $0x6] sm:$0x1]
      %v8182 = vlaneseq
      %v8183 = vshrl.u32 %v8182, 7
      %v8184 = vsub.s32 0, %v8183
      %v8185 = vrot.slane %v8181, %v8184
      %v8186 = vmul.f32 %v8165, %v8185
      %v8187 = vmul.f32 %v8166, %v8185
      %v8188 = vmul.f32 %v8167, %v8185
      %v8189 = vmul.f32 %v8168, %v8185
      %v8190 = vmul.f32 %v8169, %v8185
      %v8191 = vmul.f32 %v8170, %v8185
      %v8192 = vmul.f32 %v8171, %v8185
      %v8193 = vmul.f32 %v8172, %v8185
      %v8194 = vmul.f32 %v8173, %v8185
      %v8195 = vmul.f32 %v8174, %v8185
      %v8196 = vmul.f32 %v8175, %v8185
      %v8197 = vmul.f32 %v8176, %v8185
      %v8198 = vmul.f32 %v8177, %v8185
      %v8199 = vmul.f32 %v8178, %v8185
      %v8200 = vmul.f32 %v8179, %v8185
      %v8201 = vmul.f32 %v8180, %v8185
      %v8202 = vadd.f32 %v8133, %v8186
      %v8203 = vadd.f32 %v8134, %v8187
      %v8204 = vadd.f32 %v8135, %v8188
      %v8205 = vadd.f32 %v8136, %v8189
      %v8206 = vadd.f32 %v8137, %v8190
      %v8207 = vadd.f32 %v8138, %v8191
      %v8208 = vadd.f32 %v8139, %v8192
      %v8209 = vadd.f32 %v8140, %v8193
      %v8210 = vadd.f32 %v8141, %v8194
      %v8211 = vadd.f32 %v8142, %v8195
      %v8212 = vadd.f32 %v8143, %v8196
      %v8213 = vadd.f32 %v8144, %v8197
      %v8214 = vadd.f32 %v8145, %v8198
      %v8215 = vadd.f32 %v8146, %v8199
      %v8216 = vadd.f32 %v8147, %v8200
      %v8217 = vadd.f32 %v8148, %v8201
      %v8218 = vld [vmem:[%s5001 + $0x8] sm:$0x1]
      %v8219 = vld [vmem:[%s5001 + $0x14] sm:$0x1]
      %v8220 = vld [vmem:[%s5001 + $0x20] sm:$0x1]
      %v8221 = vld [vmem:[%s5001 + $0x2c] sm:$0x1]
      %v8222 = vld [vmem:[%s5001 + $0x38] sm:$0x1]
      %v8223 = vld [vmem:[%s5001 + $0x44] sm:$0x1]
      %v8224 = vld [vmem:[%s5001 + $0x50] sm:$0x1]
      %v8225 = vld [vmem:[%s5001 + $0x5c] sm:$0x1]
      %v8226 = vunpack.c.l.bf16 %v8218
      %v8227 = vunpack.c.l.bf16 %v8219
      %v8228 = vunpack.c.l.bf16 %v8220
      %v8229 = vunpack.c.l.bf16 %v8221
      %v8230 = vunpack.c.l.bf16 %v8222
      %v8231 = vunpack.c.l.bf16 %v8223
      %v8232 = vunpack.c.l.bf16 %v8224
      %v8233 = vunpack.c.l.bf16 %v8225
      %v8234 = vld [vmem:[%s6 + $0x7] sm:$0x1]
      %v8235 = vlaneseq
      %v8236 = vshrl.u32 %v8235, 7
      %v8237 = vsub.s32 0, %v8236
      %v8238 = vrot.slane %v8234, %v8237
      %v8239 = vmul.f32 %v8165, %v8238
      %v8240 = vmul.f32 %v8166, %v8238
      %v8241 = vmul.f32 %v8226, %v8238
      %v8242 = vmul.f32 %v8167, %v8238
      %v8243 = vmul.f32 %v8168, %v8238
      %v8244 = vmul.f32 %v8227, %v8238
      %v8245 = vmul.f32 %v8169, %v8238
      %v8246 = vmul.f32 %v8170, %v8238
      %v8247 = vmul.f32 %v8228, %v8238
      %v8248 = vmul.f32 %v8171, %v8238
      %v8249 = vmul.f32 %v8172, %v8238
      %v8250 = vmul.f32 %v8229, %v8238
      %v8251 = vmul.f32 %v8173, %v8238
      %v8252 = vmul.f32 %v8174, %v8238
      %v8253 = vmul.f32 %v8230, %v8238
      %v8254 = vmul.f32 %v8175, %v8238
      %v8255 = vmul.f32 %v8176, %v8238
      %v8256 = vmul.f32 %v8231, %v8238
      %v8257 = vmul.f32 %v8177, %v8238
      %v8258 = vmul.f32 %v8178, %v8238
      %v8259 = vmul.f32 %v8232, %v8238
      %v8260 = vmul.f32 %v8179, %v8238
      %v8261 = vmul.f32 %v8180, %v8238
      %v8262 = vmul.f32 %v8233, %v8238
      %v8287 = vrot.slane %v8239, 1
      %v8288 = vrot.slane %v8240, 1
      %v8289 = vsel %vm7583, %v8287, %v8288
      %v8290 = vrot.slane %v8241, 1
      %v8291 = vsel %vm7583, %v8288, %v8290
      %v8292 = vrot.slane %v8242, 1
      %v8293 = vrot.slane %v8243, 1
      %v8294 = vsel %vm7583, %v8292, %v8293
      %v8295 = vrot.slane %v8244, 1
      %v8296 = vsel %vm7583, %v8293, %v8295
      %v8297 = vrot.slane %v8245, 1
      %v8298 = vrot.slane %v8246, 1
      %v8299 = vsel %vm7583, %v8297, %v8298
      %v8300 = vrot.slane %v8247, 1
      %v8301 = vsel %vm7583, %v8298, %v8300
      %v8302 = vrot.slane %v8248, 1
      %v8303 = vrot.slane %v8249, 1
      %v8304 = vsel %vm7583, %v8302, %v8303
      %v8305 = vrot.slane %v8250, 1
      %v8306 = vsel %vm7583, %v8303, %v8305
      %v8307 = vrot.slane %v8251, 1
      %v8308 = vrot.slane %v8252, 1
      %v8309 = vsel %vm7583, %v8307, %v8308
      %v8310 = vrot.slane %v8253, 1
      %v8311 = vsel %vm7583, %v8308, %v8310
      %v8312 = vrot.slane %v8254, 1
      %v8313 = vrot.slane %v8255, 1
      %v8314 = vsel %vm7583, %v8312, %v8313
      %v8315 = vrot.slane %v8256, 1
      %v8316 = vsel %vm7583, %v8313, %v8315
      %v8317 = vrot.slane %v8257, 1
      %v8318 = vrot.slane %v8258, 1
      %v8319 = vsel %vm7583, %v8317, %v8318
      %v8320 = vrot.slane %v8259, 1
      %v8321 = vsel %vm7583, %v8318, %v8320
      %v8322 = vrot.slane %v8260, 1
      %v8323 = vrot.slane %v8261, 1
      %v8324 = vsel %vm7583, %v8322, %v8323
      %v8325 = vrot.slane %v8262, 1
      %v8326 = vsel %vm7583, %v8323, %v8325
      %v8343 = vadd.f32 %v8202, %v8289
      %v8344 = vadd.f32 %v8203, %v8291
      %v8345 = vadd.f32 %v8204, %v8294
      %v8346 = vadd.f32 %v8205, %v8296
      %v8347 = vadd.f32 %v8206, %v8299
      %v8348 = vadd.f32 %v8207, %v8301
      %v8349 = vadd.f32 %v8208, %v8304
      %v8350 = vadd.f32 %v8209, %v8306
      %v8351 = vadd.f32 %v8210, %v8309
      %v8352 = vadd.f32 %v8211, %v8311
      %v8353 = vadd.f32 %v8212, %v8314
      %v8354 = vadd.f32 %v8213, %v8316
      %v8355 = vadd.f32 %v8214, %v8319
      %v8356 = vadd.f32 %v8215, %v8321
      %v8357 = vadd.f32 %v8216, %v8324
      %v8358 = vadd.f32 %v8217, %v8326
      %v8359 = vld [vmem:[%s5001] sm:$0xe]
      %v8360 = vld [vmem:[%s5001 + $0xc] sm:$0xe]
      %v8361 = vld [vmem:[%s5001 + $0x18] sm:$0xe]
      %v8362 = vld [vmem:[%s5001 + $0x24] sm:$0xe]
      %v8363 = vld [vmem:[%s5001 + $0x30] sm:$0xe]
      %v8364 = vld [vmem:[%s5001 + $0x3c] sm:$0xe]
      %v8365 = vld [vmem:[%s5001 + $0x48] sm:$0xe]
      %v8366 = vld [vmem:[%s5001 + $0x54] sm:$0xe]
      %v8367 = vunpack.c.l.bf16 %v8359
      %v8368 = vunpack.c.l.bf16 %v8360
      %v8369 = vunpack.c.l.bf16 %v8361
      %v8370 = vunpack.c.l.bf16 %v8362
      %v8371 = vunpack.c.l.bf16 %v8363
      %v8372 = vunpack.c.l.bf16 %v8364
      %v8373 = vunpack.c.l.bf16 %v8365
      %v8374 = vunpack.c.l.bf16 %v8366
      %v8375 = vld [vmem:[%s6 + $0x8] sm:$0x1]
      %v8376 = vlaneseq
      %v8377 = vshrl.u32 %v8376, 7
      %v8378 = vsub.s32 0, %v8377
      %v8379 = vrot.slane %v8375, %v8378
      %v8380 = vmul.f32 %v8367, %v8379
      %v8381 = vmul.f32 %v8166, %v8379
      %v8382 = vmul.f32 %v8226, %v8379
      %v8383 = vmul.f32 %v8368, %v8379
      %v8384 = vmul.f32 %v8168, %v8379
      %v8385 = vmul.f32 %v8227, %v8379
      %v8386 = vmul.f32 %v8369, %v8379
      %v8387 = vmul.f32 %v8170, %v8379
      %v8388 = vmul.f32 %v8228, %v8379
      %v8389 = vmul.f32 %v8370, %v8379
      %v8390 = vmul.f32 %v8172, %v8379
      %v8391 = vmul.f32 %v8229, %v8379
      %v8392 = vmul.f32 %v8371, %v8379
      %v8393 = vmul.f32 %v8174, %v8379
      %v8394 = vmul.f32 %v8230, %v8379
      %v8395 = vmul.f32 %v8372, %v8379
      %v8396 = vmul.f32 %v8176, %v8379
      %v8397 = vmul.f32 %v8231, %v8379
      %v8398 = vmul.f32 %v8373, %v8379
      %v8399 = vmul.f32 %v8178, %v8379
      %v8400 = vmul.f32 %v8232, %v8379
      %v8401 = vmul.f32 %v8374, %v8379
      %v8402 = vmul.f32 %v8180, %v8379
      %v8403 = vmul.f32 %v8233, %v8379
      %v8428 = vrot.slane %v8380, 2
      %v8429 = vrot.slane %v8381, 2
      %v8430 = vsel %vm7725, %v8428, %v8429
      %v8431 = vrot.slane %v8382, 2
      %v8432 = vsel %vm7725, %v8429, %v8431
      %v8433 = vrot.slane %v8383, 2
      %v8434 = vrot.slane %v8384, 2
      %v8435 = vsel %vm7725, %v8433, %v8434
      %v8436 = vrot.slane %v8385, 2
      %v8437 = vsel %vm7725, %v8434, %v8436
      %v8438 = vrot.slane %v8386, 2
      %v8439 = vrot.slane %v8387, 2
      %v8440 = vsel %vm7725, %v8438, %v8439
      %v8441 = vrot.slane %v8388, 2
      %v8442 = vsel %vm7725, %v8439, %v8441
      %v8443 = vrot.slane %v8389, 2
      %v8444 = vrot.slane %v8390, 2
      %v8445 = vsel %vm7725, %v8443, %v8444
      %v8446 = vrot.slane %v8391, 2
      %v8447 = vsel %vm7725, %v8444, %v8446
      %v8448 = vrot.slane %v8392, 2
      %v8449 = vrot.slane %v8393, 2
      %v8450 = vsel %vm7725, %v8448, %v8449
      %v8451 = vrot.slane %v8394, 2
      %v8452 = vsel %vm7725, %v8449, %v8451
      %v8453 = vrot.slane %v8395, 2
      %v8454 = vrot.slane %v8396, 2
      %v8455 = vsel %vm7725, %v8453, %v8454
      %v8456 = vrot.slane %v8397, 2
      %v8457 = vsel %vm7725, %v8454, %v8456
      %v8458 = vrot.slane %v8398, 2
      %v8459 = vrot.slane %v8399, 2
      %v8460 = vsel %vm7725, %v8458, %v8459
      %v8461 = vrot.slane %v8400, 2
      %v8462 = vsel %vm7725, %v8459, %v8461
      %v8463 = vrot.slane %v8401, 2
      %v8464 = vrot.slane %v8402, 2
      %v8465 = vsel %vm7725, %v8463, %v8464
      %v8466 = vrot.slane %v8403, 2
      %v8467 = vsel %vm7725, %v8464, %v8466
      %v8484 = vadd.f32 %v8343, %v8430
      %v8485 = vadd.f32 %v8344, %v8432
      %v8486 = vadd.f32 %v8345, %v8435
      %v8487 = vadd.f32 %v8346, %v8437
      %v8488 = vadd.f32 %v8347, %v8440
      %v8489 = vadd.f32 %v8348, %v8442
      %v8490 = vadd.f32 %v8349, %v8445
      %v8491 = vadd.f32 %v8350, %v8447
      %v8492 = vadd.f32 %v8351, %v8450
      %v8493 = vadd.f32 %v8352, %v8452
      %v8494 = vadd.f32 %v8353, %v8455
      %v8495 = vadd.f32 %v8354, %v8457
      %v8496 = vadd.f32 %v8355, %v8460
      %v8497 = vadd.f32 %v8356, %v8462
      %v8498 = vadd.f32 %v8357, %v8465
      %v8499 = vadd.f32 %v8358, %v8467
      %v8500 = vsel %vm3621, %v8484, 0.0
      %8501 = vadd.xlane.f32.xlu0 %v8500
      %v8502 = vpop.xlane.xlu0 %8501
      %v8503 = vsel %vm3621, %v8485, 0.0
      %8504 = vadd.xlane.f32.xlu0 %v8503
      %v8505 = vpop.xlane.xlu0 %8504
      %v8506 = vsel %vm3621, %v8486, 0.0
      %8507 = vadd.xlane.f32.xlu0 %v8506
      %v8508 = vpop.xlane.xlu0 %8507
      %v8509 = vsel %vm3621, %v8487, 0.0
      %8510 = vadd.xlane.f32.xlu0 %v8509
      %v8511 = vpop.xlane.xlu0 %8510
      %v8512 = vsel %vm3621, %v8488, 0.0
      %8513 = vadd.xlane.f32.xlu0 %v8512
      %v8514 = vpop.xlane.xlu0 %8513
      %v8515 = vsel %vm3621, %v8489, 0.0
      %8516 = vadd.xlane.f32.xlu0 %v8515
      %v8517 = vpop.xlane.xlu0 %8516
      %v8518 = vsel %vm3621, %v8490, 0.0
      %8519 = vadd.xlane.f32.xlu0 %v8518
      %v8520 = vpop.xlane.xlu0 %8519
      %v8521 = vsel %vm3621, %v8491, 0.0
      %8522 = vadd.xlane.f32.xlu0 %v8521
      %v8523 = vpop.xlane.xlu0 %8522
      %v8524 = vsel %vm3621, %v8492, 0.0
      %8525 = vadd.xlane.f32.xlu0 %v8524
      %v8526 = vpop.xlane.xlu0 %8525
      %v8527 = vsel %vm3621, %v8493, 0.0
      %8528 = vadd.xlane.f32.xlu0 %v8527
      %v8529 = vpop.xlane.xlu0 %8528
      %v8530 = vsel %vm3621, %v8494, 0.0
      %8531 = vadd.xlane.f32.xlu0 %v8530
      %v8532 = vpop.xlane.xlu0 %8531
      %v8533 = vsel %vm3621, %v8495, 0.0
      %8534 = vadd.xlane.f32.xlu0 %v8533
      %v8535 = vpop.xlane.xlu0 %8534
      %v8536 = vsel %vm3621, %v8496, 0.0
      %8537 = vadd.xlane.f32.xlu0 %v8536
      %v8538 = vpop.xlane.xlu0 %8537
      %v8539 = vsel %vm3621, %v8497, 0.0
      %8540 = vadd.xlane.f32.xlu0 %v8539
      %v8541 = vpop.xlane.xlu0 %8540
      %v8542 = vsel %vm3621, %v8498, 0.0
      %8543 = vadd.xlane.f32.xlu0 %v8542
      %v8544 = vpop.xlane.xlu0 %8543
      %v8545 = vsel %vm3621, %v8499, 0.0
      %8546 = vadd.xlane.f32.xlu0 %v8545
      %v8547 = vpop.xlane.xlu0 %8546
      %v8564 = vlaneseq
      %v8565 = vand.u32 %v8564, 127
      %v8566 = vlaneseq
      %v8567 = vshrl.u32 %v8566, 7
      %v8568 = vsub.s32 %v8565, %v8567
      %v8569 = vrot.slane %v8502, %v8568
      %v8570 = vadd.s32 %v8565, 4294967288
      %v8571 = vlaneseq
      %v8572 = vshrl.u32 %v8571, 7
      %v8573 = vsub.s32 %v8570, %v8572
      %v8574 = vrot.slane %v8505, %v8573
      %vm8575 = vcmask 130112
      %v8576 = vsel %vm8575, %v8574, %v8569
      %v8577 = vlaneseq
      %v8578 = vshrl.u32 %v8577, 7
      %v8579 = vsub.s32 %v8565, %v8578
      %v8580 = vrot.slane %v8508, %v8579
      %v8581 = vlaneseq
      %v8582 = vshrl.u32 %v8581, 7
      %v8583 = vsub.s32 %v8570, %v8582
      %v8584 = vrot.slane %v8511, %v8583
      %v8585 = vsel %vm8575, %v8584, %v8580
      %v8586 = vlaneseq
      %v8587 = vshrl.u32 %v8586, 7
      %v8588 = vsub.s32 %v8565, %v8587
      %v8589 = vrot.slane %v8514, %v8588
      %v8590 = vlaneseq
      %v8591 = vshrl.u32 %v8590, 7
      %v8592 = vsub.s32 %v8570, %v8591
      %v8593 = vrot.slane %v8517, %v8592
      %v8594 = vsel %vm8575, %v8593, %v8589
      %v8595 = vlaneseq
      %v8596 = vshrl.u32 %v8595, 7
      %v8597 = vsub.s32 %v8565, %v8596
      %v8598 = vrot.slane %v8520, %v8597
      %v8599 = vlaneseq
      %v8600 = vshrl.u32 %v8599, 7
      %v8601 = vsub.s32 %v8570, %v8600
      %v8602 = vrot.slane %v8523, %v8601
      %v8603 = vsel %vm8575, %v8602, %v8598
      %v8604 = vlaneseq
      %v8605 = vshrl.u32 %v8604, 7
      %v8606 = vsub.s32 %v8565, %v8605
      %v8607 = vrot.slane %v8526, %v8606
      %v8608 = vlaneseq
      %v8609 = vshrl.u32 %v8608, 7
      %v8610 = vsub.s32 %v8570, %v8609
      %v8611 = vrot.slane %v8529, %v8610
      %v8612 = vsel %vm8575, %v8611, %v8607
      %v8613 = vlaneseq
      %v8614 = vshrl.u32 %v8613, 7
      %v8615 = vsub.s32 %v8565, %v8614
      %v8616 = vrot.slane %v8532, %v8615
      %v8617 = vlaneseq
      %v8618 = vshrl.u32 %v8617, 7
      %v8619 = vsub.s32 %v8570, %v8618
      %v8620 = vrot.slane %v8535, %v8619
      %v8621 = vsel %vm8575, %v8620, %v8616
      %v8622 = vlaneseq
      %v8623 = vshrl.u32 %v8622, 7
      %v8624 = vsub.s32 %v8565, %v8623
      %v8625 = vrot.slane %v8538, %v8624
      %v8626 = vlaneseq
      %v8627 = vshrl.u32 %v8626, 7
      %v8628 = vsub.s32 %v8570, %v8627
      %v8629 = vrot.slane %v8541, %v8628
      %v8630 = vsel %vm8575, %v8629, %v8625
      %v8631 = vlaneseq
      %v8632 = vshrl.u32 %v8631, 7
      %v8633 = vsub.s32 %v8565, %v8632
      %v8634 = vrot.slane %v8544, %v8633
      %v8635 = vlaneseq
      %v8636 = vshrl.u32 %v8635, 7
      %v8637 = vsub.s32 %v8570, %v8636
      %v8638 = vrot.slane %v8547, %v8637
      %v8639 = vsel %vm8575, %v8638, %v8634
      %vm8640 = vcmask 1041409
      %v8641 = vsel %vm8640, %v8585, %v8576
      %vm8642 = vcmask 1042434
      %v8643 = vsel %vm8642, %v8594, %v8641
      %vm8644 = vcmask 1043459
      %v8645 = vsel %vm8644, %v8603, %v8643
      %vm8646 = vcmask 1044484
      %v8647 = vsel %vm8646, %v8612, %v8645
      %vm8648 = vcmask 1045509
      %v8649 = vsel %vm8648, %v8621, %v8647
      %vm8650 = vcmask 1046534
      %v8651 = vsel %vm8650, %v8630, %v8649
      %vm8652 = vcmask 1047559
      %v8653 = vsel %vm8652, %v8639, %v8651
      %v8655 = vcombine.high %v8653, 0.0
      %v8657 = vunpack.c.l.s4 1983009808
      %v8658 = vunpack.c.0.s8 %v8657
      %v8659 = vlaneseq
      %v8660 = vshrl.u32 %v8659, 7
      %v8661 = vsub.s32 %v8658, %v8660
      %v8662 = vrot.slane %v8653, %v8661
      %v8664 = vunpack.c.l.s4 1983009808
      %v8665 = vunpack.c.0.s8 %v8664
      %v8666 = vlaneseq
      %v8667 = vshrl.u32 %v8666, 7
      %v8668 = vsub.s32 %v8665, %v8667
      %v8669 = vrot.slane %v8655, %v8668
      %v8670 = vcombine.high %v8662, 0.0
      %v8672 = vunpack.c.l.s4 1934713408
      %v8673 = vunpack.c.0.s8 %v8672
      %v8674 = vlaneseq
      %v8675 = vshrl.u32 %v8674, 7
      %v8676 = vsub.s32 %v8673, %v8675
      %v8677 = vrot.slane %v8662, %v8676
      %v8679 = vunpack.c.l.s4 1934713408
      %v8680 = vunpack.c.0.s8 %v8679
      %v8681 = vlaneseq
      %v8682 = vshrl.u32 %v8681, 7
      %v8683 = vsub.s32 %v8680, %v8682
      %v8684 = vrot.slane %v8670, %v8683
      %v8685 = vcombine.high %v8669, 0.0
      %v8687 = vunpack.c.l.s4 1934713408
      %v8688 = vunpack.c.0.s8 %v8687
      %v8689 = vlaneseq
      %v8690 = vshrl.u32 %v8689, 7
      %v8691 = vsub.s32 %v8688, %v8690
      %v8692 = vrot.slane %v8669, %v8691
      %v8694 = vunpack.c.l.s4 1934713408
      %v8695 = vunpack.c.0.s8 %v8694
      %v8696 = vlaneseq
      %v8697 = vshrl.u32 %v8696, 7
      %v8698 = vsub.s32 %v8695, %v8697
      %v8699 = vrot.slane %v8685, %v8698
      %v8700 = vcombine.high %v8677, 0.0
      %v8701 = vcombine.high %v8684, 0.0
      %v8702 = vcombine.high %v8692, 0.0
      %v8703 = vcombine.high %v8699, 0.0
      %8705 = vrot.lane.b32.xlu0 %v8700, 16
      %v8706 = vpop.permute.xlu0 %8705
      %8709 = vrot.lane.b32.xlu0 %v8684, 32
      %v8710 = vpop.permute.xlu0 %8709
      %8713 = vrot.lane.b32.xlu0 %v8701, 48
      %v8714 = vpop.permute.xlu0 %8713
      %8717 = vrot.lane.b32.xlu0 %v8692, 64
      %v8718 = vpop.permute.xlu0 %8717
      %8721 = vrot.lane.b32.xlu0 %v8702, 80
      %v8722 = vpop.permute.xlu0 %8721
      %8725 = vrot.lane.b32.xlu0 %v8699, 96
      %v8726 = vpop.permute.xlu0 %8725
      %8729 = vrot.lane.b32.xlu0 %v8703, 112
      %v8730 = vpop.permute.xlu0 %8729
      %vm8732 = vcmask 130048
      %v8733 = vsel %vm8732, %v8677, %v8706
      %vm8734 = vcmask 261120
      %v8735 = vsel %vm8734, %v8733, %v8710
      %vm8736 = vcmask 392192
      %v8737 = vsel %vm8736, %v8735, %v8714
      %v8738 = vsel %vm3621, %v8737, %v8718
      %vm8739 = vcmask 654336
      %v8740 = vsel %vm8739, %v8738, %v8722
      %vm8741 = vcmask 785408
      %v8742 = vsel %vm8741, %v8740, %v8726
      %vm8743 = vcmask 916480
      %v8744 = vsel %vm8743, %v8742, %v8730
      %v8745 = vld [vmem:[#allocation4] sm:$0x1]
      %8747 = vset.pattern.permute.xlu0 0
      %8748 = vperm.xlu0 %8747, %v8745
      %v8749 = vpop.permute.xlu0 %8748
      %v8751 = vlaneseq
      %v8752 = vshrl.u32 %v8751, 7
      %v8753 = vsub.s32 0, %v8752
      %v8754 = vrot.slane %v8749, %v8753
      %v8755 = vadd.f32 %v8744, %v8754
      %v8756 = vld [vmem:[%s318] sm:$0x1]
      %v8757 = vadd.f32 %v8755, %v8756
      %v8758 = vlaneseq
      %vm8759 = vcmp.ge.s32.totalorder %v8758, 0
      %vm8760 = vcmp.lt.s32.totalorder %v8758, 128
      %vm8761 = vmand %vm8759, %vm8760
      %8762 = vst.msk [vmem:[%s322] sm:$0x1] %vm8761, %v8757
      %s8763 = scalar_lea.vmem [#allocation2], 96
      %v8764 = vld [vmem:[%s8763] sm:$0xf]
      %v8765 = vld [vmem:[%s8763 + $0x4] sm:$0xf]
      %v8766 = vld [vmem:[%s8763 + $0xc] sm:$0xf]
      %v8767 = vld [vmem:[%s8763 + $0x10] sm:$0xf]
      %v8768 = vld [vmem:[%s8763 + $0x18] sm:$0xf]
      %v8769 = vld [vmem:[%s8763 + $0x1c] sm:$0xf]
      %v8770 = vld [vmem:[%s8763 + $0x24] sm:$0xf]
      %v8771 = vld [vmem:[%s8763 + $0x28] sm:$0xf]
      %v8772 = vld [vmem:[%s8763 + $0x30] sm:$0xf]
      %v8773 = vld [vmem:[%s8763 + $0x34] sm:$0xf]
      %v8774 = vld [vmem:[%s8763 + $0x3c] sm:$0xf]
      %v8775 = vld [vmem:[%s8763 + $0x40] sm:$0xf]
      %v8776 = vld [vmem:[%s8763 + $0x48] sm:$0xf]
      %v8777 = vld [vmem:[%s8763 + $0x4c] sm:$0xf]
      %v8778 = vld [vmem:[%s8763 + $0x54] sm:$0xf]
      %v8779 = vld [vmem:[%s8763 + $0x58] sm:$0xf]
      %v8780 = vunpack.c.l.bf16 %v8764
      %v8781 = vunpack.c.l.bf16 %v8765
      %v8782 = vunpack.c.l.bf16 %v8766
      %v8783 = vunpack.c.l.bf16 %v8767
      %v8784 = vunpack.c.l.bf16 %v8768
      %v8785 = vunpack.c.l.bf16 %v8769
      %v8786 = vunpack.c.l.bf16 %v8770
      %v8787 = vunpack.c.l.bf16 %v8771
      %v8788 = vunpack.c.l.bf16 %v8772
      %v8789 = vunpack.c.l.bf16 %v8773
      %v8790 = vunpack.c.l.bf16 %v8774
      %v8791 = vunpack.c.l.bf16 %v8775
      %v8792 = vunpack.c.l.bf16 %v8776
      %v8793 = vunpack.c.l.bf16 %v8777
      %v8794 = vunpack.c.l.bf16 %v8778
      %v8795 = vunpack.c.l.bf16 %v8779
      %v8796 = vld [vmem:[%s6] sm:$0x1]
      %v8797 = vlaneseq
      %v8798 = vshrl.u32 %v8797, 7
      %v8799 = vsub.s32 0, %v8798
      %v8800 = vrot.slane %v8796, %v8799
      %v8801 = vmul.f32 %v8780, %v8800
      %v8802 = vmul.f32 %v8781, %v8800
      %v8803 = vmul.f32 %v8782, %v8800
      %v8804 = vmul.f32 %v8783, %v8800
      %v8805 = vmul.f32 %v8784, %v8800
      %v8806 = vmul.f32 %v8785, %v8800
      %v8807 = vmul.f32 %v8786, %v8800
      %v8808 = vmul.f32 %v8787, %v8800
      %v8809 = vmul.f32 %v8788, %v8800
      %v8810 = vmul.f32 %v8789, %v8800
      %v8811 = vmul.f32 %v8790, %v8800
      %v8812 = vmul.f32 %v8791, %v8800
      %v8813 = vmul.f32 %v8792, %v8800
      %v8814 = vmul.f32 %v8793, %v8800
      %v8815 = vmul.f32 %v8794, %v8800
      %v8816 = vmul.f32 %v8795, %v8800
      %v8817 = vadd.f32 %v8801, 0.0
      %v8818 = vadd.f32 %v8802, 0.0
      %v8819 = vadd.f32 %v8803, 0.0
      %v8820 = vadd.f32 %v8804, 0.0
      %v8821 = vadd.f32 %v8805, 0.0
      %v8822 = vadd.f32 %v8806, 0.0
      %v8823 = vadd.f32 %v8807, 0.0
      %v8824 = vadd.f32 %v8808, 0.0
      %v8825 = vadd.f32 %v8809, 0.0
      %v8826 = vadd.f32 %v8810, 0.0
      %v8827 = vadd.f32 %v8811, 0.0
      %v8828 = vadd.f32 %v8812, 0.0
      %v8829 = vadd.f32 %v8813, 0.0
      %v8830 = vadd.f32 %v8814, 0.0
      %v8831 = vadd.f32 %v8815, 0.0
      %v8832 = vadd.f32 %v8816, 0.0
      %v8833 = vld [vmem:[%s8763 + $0x8] sm:$0x1]
      %v8834 = vld [vmem:[%s8763 + $0x14] sm:$0x1]
      %v8835 = vld [vmem:[%s8763 + $0x20] sm:$0x1]
      %v8836 = vld [vmem:[%s8763 + $0x2c] sm:$0x1]
      %v8837 = vld [vmem:[%s8763 + $0x38] sm:$0x1]
      %v8838 = vld [vmem:[%s8763 + $0x44] sm:$0x1]
      %v8839 = vld [vmem:[%s8763 + $0x50] sm:$0x1]
      %v8840 = vld [vmem:[%s8763 + $0x5c] sm:$0x1]
      %v8841 = vunpack.c.l.bf16 %v8833
      %v8842 = vunpack.c.l.bf16 %v8834
      %v8843 = vunpack.c.l.bf16 %v8835
      %v8844 = vunpack.c.l.bf16 %v8836
      %v8845 = vunpack.c.l.bf16 %v8837
      %v8846 = vunpack.c.l.bf16 %v8838
      %v8847 = vunpack.c.l.bf16 %v8839
      %v8848 = vunpack.c.l.bf16 %v8840
      %v8849 = vld [vmem:[%s6 + $0x1] sm:$0x1]
      %v8850 = vlaneseq
      %v8851 = vshrl.u32 %v8850, 7
      %v8852 = vsub.s32 0, %v8851
      %v8853 = vrot.slane %v8849, %v8852
      %v8854 = vmul.f32 %v8780, %v8853
      %v8855 = vmul.f32 %v8781, %v8853
      %v8856 = vmul.f32 %v8841, %v8853
      %v8857 = vmul.f32 %v8782, %v8853
      %v8858 = vmul.f32 %v8783, %v8853
      %v8859 = vmul.f32 %v8842, %v8853
      %v8860 = vmul.f32 %v8784, %v8853
      %v8861 = vmul.f32 %v8785, %v8853
      %v8862 = vmul.f32 %v8843, %v8853
      %v8863 = vmul.f32 %v8786, %v8853
      %v8864 = vmul.f32 %v8787, %v8853
      %v8865 = vmul.f32 %v8844, %v8853
      %v8866 = vmul.f32 %v8788, %v8853
      %v8867 = vmul.f32 %v8789, %v8853
      %v8868 = vmul.f32 %v8845, %v8853
      %v8869 = vmul.f32 %v8790, %v8853
      %v8870 = vmul.f32 %v8791, %v8853
      %v8871 = vmul.f32 %v8846, %v8853
      %v8872 = vmul.f32 %v8792, %v8853
      %v8873 = vmul.f32 %v8793, %v8853
      %v8874 = vmul.f32 %v8847, %v8853
      %v8875 = vmul.f32 %v8794, %v8853
      %v8876 = vmul.f32 %v8795, %v8853
      %v8877 = vmul.f32 %v8848, %v8853
      %v8902 = vrot.slane %v8854, 1
      %v8903 = vrot.slane %v8855, 1
      %v8904 = vsel %vm7583, %v8902, %v8903
      %v8905 = vrot.slane %v8856, 1
      %v8906 = vsel %vm7583, %v8903, %v8905
      %v8907 = vrot.slane %v8857, 1
      %v8908 = vrot.slane %v8858, 1
      %v8909 = vsel %vm7583, %v8907, %v8908
      %v8910 = vrot.slane %v8859, 1
      %v8911 = vsel %vm7583, %v8908, %v8910
      %v8912 = vrot.slane %v8860, 1
      %v8913 = vrot.slane %v8861, 1
      %v8914 = vsel %vm7583, %v8912, %v8913
      %v8915 = vrot.slane %v8862, 1
      %v8916 = vsel %vm7583, %v8913, %v8915
      %v8917 = vrot.slane %v8863, 1
      %v8918 = vrot.slane %v8864, 1
      %v8919 = vsel %vm7583, %v8917, %v8918
      %v8920 = vrot.slane %v8865, 1
      %v8921 = vsel %vm7583, %v8918, %v8920
      %v8922 = vrot.slane %v8866, 1
      %v8923 = vrot.slane %v8867, 1
      %v8924 = vsel %vm7583, %v8922, %v8923
      %v8925 = vrot.slane %v8868, 1
      %v8926 = vsel %vm7583, %v8923, %v8925
      %v8927 = vrot.slane %v8869, 1
      %v8928 = vrot.slane %v8870, 1
      %v8929 = vsel %vm7583, %v8927, %v8928
      %v8930 = vrot.slane %v8871, 1
      %v8931 = vsel %vm7583, %v8928, %v8930
      %v8932 = vrot.slane %v8872, 1
      %v8933 = vrot.slane %v8873, 1
      %v8934 = vsel %vm7583, %v8932, %v8933
      %v8935 = vrot.slane %v8874, 1
      %v8936 = vsel %vm7583, %v8933, %v8935
      %v8937 = vrot.slane %v8875, 1
      %v8938 = vrot.slane %v8876, 1
      %v8939 = vsel %vm7583, %v8937, %v8938
      %v8940 = vrot.slane %v8877, 1
      %v8941 = vsel %vm7583, %v8938, %v8940
      %v8958 = vadd.f32 %v8817, %v8904
      %v8959 = vadd.f32 %v8818, %v8906
      %v8960 = vadd.f32 %v8819, %v8909
      %v8961 = vadd.f32 %v8820, %v8911
      %v8962 = vadd.f32 %v8821, %v8914
      %v8963 = vadd.f32 %v8822, %v8916
      %v8964 = vadd.f32 %v8823, %v8919
      %v8965 = vadd.f32 %v8824, %v8921
      %v8966 = vadd.f32 %v8825, %v8924
      %v8967 = vadd.f32 %v8826, %v8926
      %v8968 = vadd.f32 %v8827, %v8929
      %v8969 = vadd.f32 %v8828, %v8931
      %v8970 = vadd.f32 %v8829, %v8934
      %v8971 = vadd.f32 %v8830, %v8936
      %v8972 = vadd.f32 %v8831, %v8939
      %v8973 = vadd.f32 %v8832, %v8941
      %v8974 = vld [vmem:[%s8763] sm:$0xe]
      %v8975 = vld [vmem:[%s8763 + $0xc] sm:$0xe]
      %v8976 = vld [vmem:[%s8763 + $0x18] sm:$0xe]
      %v8977 = vld [vmem:[%s8763 + $0x24] sm:$0xe]
      %v8978 = vld [vmem:[%s8763 + $0x30] sm:$0xe]
      %v8979 = vld [vmem:[%s8763 + $0x3c] sm:$0xe]
      %v8980 = vld [vmem:[%s8763 + $0x48] sm:$0xe]
      %v8981 = vld [vmem:[%s8763 + $0x54] sm:$0xe]
      %v8982 = vunpack.c.l.bf16 %v8974
      %v8983 = vunpack.c.l.bf16 %v8975
      %v8984 = vunpack.c.l.bf16 %v8976
      %v8985 = vunpack.c.l.bf16 %v8977
      %v8986 = vunpack.c.l.bf16 %v8978
      %v8987 = vunpack.c.l.bf16 %v8979
      %v8988 = vunpack.c.l.bf16 %v8980
      %v8989 = vunpack.c.l.bf16 %v8981
      %v8990 = vld [vmem:[%s6 + $0x2] sm:$0x1]
      %v8991 = vlaneseq
      %v8992 = vshrl.u32 %v8991, 7
      %v8993 = vsub.s32 0, %v8992
      %v8994 = vrot.slane %v8990, %v8993
      %v8995 = vmul.f32 %v8982, %v8994
      %v8996 = vmul.f32 %v8781, %v8994
      %v8997 = vmul.f32 %v8841, %v8994
      %v8998 = vmul.f32 %v8983, %v8994
      %v8999 = vmul.f32 %v8783, %v8994
      %v9000 = vmul.f32 %v8842, %v8994
      %v9001 = vmul.f32 %v8984, %v8994
      %v9002 = vmul.f32 %v8785, %v8994
      %v9003 = vmul.f32 %v8843, %v8994
      %v9004 = vmul.f32 %v8985, %v8994
      %v9005 = vmul.f32 %v8787, %v8994
      %v9006 = vmul.f32 %v8844, %v8994
      %v9007 = vmul.f32 %v8986, %v8994
      %v9008 = vmul.f32 %v8789, %v8994
      %v9009 = vmul.f32 %v8845, %v8994
      %v9010 = vmul.f32 %v8987, %v8994
      %v9011 = vmul.f32 %v8791, %v8994
      %v9012 = vmul.f32 %v8846, %v8994
      %v9013 = vmul.f32 %v8988, %v8994
      %v9014 = vmul.f32 %v8793, %v8994
      %v9015 = vmul.f32 %v8847, %v8994
      %v9016 = vmul.f32 %v8989, %v8994
      %v9017 = vmul.f32 %v8795, %v8994
      %v9018 = vmul.f32 %v8848, %v8994
      %v9043 = vrot.slane %v8995, 2
      %v9044 = vrot.slane %v8996, 2
      %v9045 = vsel %vm7725, %v9043, %v9044
      %v9046 = vrot.slane %v8997, 2
      %v9047 = vsel %vm7725, %v9044, %v9046
      %v9048 = vrot.slane %v8998, 2
      %v9049 = vrot.slane %v8999, 2
      %v9050 = vsel %vm7725, %v9048, %v9049
      %v9051 = vrot.slane %v9000, 2
      %v9052 = vsel %vm7725, %v9049, %v9051
      %v9053 = vrot.slane %v9001, 2
      %v9054 = vrot.slane %v9002, 2
      %v9055 = vsel %vm7725, %v9053, %v9054
      %v9056 = vrot.slane %v9003, 2
      %v9057 = vsel %vm7725, %v9054, %v9056
      %v9058 = vrot.slane %v9004, 2
      %v9059 = vrot.slane %v9005, 2
      %v9060 = vsel %vm7725, %v9058, %v9059
      %v9061 = vrot.slane %v9006, 2
      %v9062 = vsel %vm7725, %v9059, %v9061
      %v9063 = vrot.slane %v9007, 2
      %v9064 = vrot.slane %v9008, 2
      %v9065 = vsel %vm7725, %v9063, %v9064
      %v9066 = vrot.slane %v9009, 2
      %v9067 = vsel %vm7725, %v9064, %v9066
      %v9068 = vrot.slane %v9010, 2
      %v9069 = vrot.slane %v9011, 2
      %v9070 = vsel %vm7725, %v9068, %v9069
      %v9071 = vrot.slane %v9012, 2
      %v9072 = vsel %vm7725, %v9069, %v9071
      %v9073 = vrot.slane %v9013, 2
      %v9074 = vrot.slane %v9014, 2
      %v9075 = vsel %vm7725, %v9073, %v9074
      %v9076 = vrot.slane %v9015, 2
      %v9077 = vsel %vm7725, %v9074, %v9076
      %v9078 = vrot.slane %v9016, 2
      %v9079 = vrot.slane %v9017, 2
      %v9080 = vsel %vm7725, %v9078, %v9079
      %v9081 = vrot.slane %v9018, 2
      %v9082 = vsel %vm7725, %v9079, %v9081
      %v9099 = vadd.f32 %v8958, %v9045
      %v9100 = vadd.f32 %v8959, %v9047
      %v9101 = vadd.f32 %v8960, %v9050
      %v9102 = vadd.f32 %v8961, %v9052
      %v9103 = vadd.f32 %v8962, %v9055
      %v9104 = vadd.f32 %v8963, %v9057
      %v9105 = vadd.f32 %v8964, %v9060
      %v9106 = vadd.f32 %v8965, %v9062
      %v9107 = vadd.f32 %v8966, %v9065
      %v9108 = vadd.f32 %v8967, %v9067
      %v9109 = vadd.f32 %v8968, %v9070
      %v9110 = vadd.f32 %v8969, %v9072
      %v9111 = vadd.f32 %v8970, %v9075
      %v9112 = vadd.f32 %v8971, %v9077
      %v9113 = vadd.f32 %v8972, %v9080
      %v9114 = vadd.f32 %v8973, %v9082
      %v9115 = vld [vmem:[%s2969] sm:$0xf]
      %v9116 = vld [vmem:[%s2969 + $0x4] sm:$0xf]
      %v9117 = vld [vmem:[%s2969 + $0xc] sm:$0xf]
      %v9118 = vld [vmem:[%s2969 + $0x10] sm:$0xf]
      %v9119 = vld [vmem:[%s2969 + $0x18] sm:$0xf]
      %v9120 = vld [vmem:[%s2969 + $0x1c] sm:$0xf]
      %v9121 = vld [vmem:[%s2969 + $0x24] sm:$0xf]
      %v9122 = vld [vmem:[%s2969 + $0x28] sm:$0xf]
      %v9123 = vld [vmem:[%s2969 + $0x30] sm:$0xf]
      %v9124 = vld [vmem:[%s2969 + $0x34] sm:$0xf]
      %v9125 = vld [vmem:[%s2969 + $0x3c] sm:$0xf]
      %v9126 = vld [vmem:[%s2969 + $0x40] sm:$0xf]
      %v9127 = vld [vmem:[%s2969 + $0x48] sm:$0xf]
      %v9128 = vld [vmem:[%s2969 + $0x4c] sm:$0xf]
      %v9129 = vld [vmem:[%s2969 + $0x54] sm:$0xf]
      %v9130 = vld [vmem:[%s2969 + $0x58] sm:$0xf]
      %v9131 = vunpack.c.l.bf16 %v9115
      %v9132 = vunpack.c.l.bf16 %v9116
      %v9133 = vunpack.c.l.bf16 %v9117
      %v9134 = vunpack.c.l.bf16 %v9118
      %v9135 = vunpack.c.l.bf16 %v9119
      %v9136 = vunpack.c.l.bf16 %v9120
      %v9137 = vunpack.c.l.bf16 %v9121
      %v9138 = vunpack.c.l.bf16 %v9122
      %v9139 = vunpack.c.l.bf16 %v9123
      %v9140 = vunpack.c.l.bf16 %v9124
      %v9141 = vunpack.c.l.bf16 %v9125
      %v9142 = vunpack.c.l.bf16 %v9126
      %v9143 = vunpack.c.l.bf16 %v9127
      %v9144 = vunpack.c.l.bf16 %v9128
      %v9145 = vunpack.c.l.bf16 %v9129
      %v9146 = vunpack.c.l.bf16 %v9130
      %v9147 = vld [vmem:[%s6 + $0x3] sm:$0x1]
      %v9148 = vlaneseq
      %v9149 = vshrl.u32 %v9148, 7
      %v9150 = vsub.s32 0, %v9149
      %v9151 = vrot.slane %v9147, %v9150
      %v9152 = vmul.f32 %v9131, %v9151
      %v9153 = vmul.f32 %v9132, %v9151
      %v9154 = vmul.f32 %v9133, %v9151
      %v9155 = vmul.f32 %v9134, %v9151
      %v9156 = vmul.f32 %v9135, %v9151
      %v9157 = vmul.f32 %v9136, %v9151
      %v9158 = vmul.f32 %v9137, %v9151
      %v9159 = vmul.f32 %v9138, %v9151
      %v9160 = vmul.f32 %v9139, %v9151
      %v9161 = vmul.f32 %v9140, %v9151
      %v9162 = vmul.f32 %v9141, %v9151
      %v9163 = vmul.f32 %v9142, %v9151
      %v9164 = vmul.f32 %v9143, %v9151
      %v9165 = vmul.f32 %v9144, %v9151
      %v9166 = vmul.f32 %v9145, %v9151
      %v9167 = vmul.f32 %v9146, %v9151
      %v9168 = vadd.f32 %v9099, %v9152
      %v9169 = vadd.f32 %v9100, %v9153
      %v9170 = vadd.f32 %v9101, %v9154
      %v9171 = vadd.f32 %v9102, %v9155
      %v9172 = vadd.f32 %v9103, %v9156
      %v9173 = vadd.f32 %v9104, %v9157
      %v9174 = vadd.f32 %v9105, %v9158
      %v9175 = vadd.f32 %v9106, %v9159
      %v9176 = vadd.f32 %v9107, %v9160
      %v9177 = vadd.f32 %v9108, %v9161
      %v9178 = vadd.f32 %v9109, %v9162
      %v9179 = vadd.f32 %v9110, %v9163
      %v9180 = vadd.f32 %v9111, %v9164
      %v9181 = vadd.f32 %v9112, %v9165
      %v9182 = vadd.f32 %v9113, %v9166
      %v9183 = vadd.f32 %v9114, %v9167
      %v9184 = vld [vmem:[%s2969 + $0x8] sm:$0x1]
      %v9185 = vld [vmem:[%s2969 + $0x14] sm:$0x1]
      %v9186 = vld [vmem:[%s2969 + $0x20] sm:$0x1]
      %v9187 = vld [vmem:[%s2969 + $0x2c] sm:$0x1]
      %v9188 = vld [vmem:[%s2969 + $0x38] sm:$0x1]
      %v9189 = vld [vmem:[%s2969 + $0x44] sm:$0x1]
      %v9190 = vld [vmem:[%s2969 + $0x50] sm:$0x1]
      %v9191 = vld [vmem:[%s2969 + $0x5c] sm:$0x1]
      %v9192 = vunpack.c.l.bf16 %v9184
      %v9193 = vunpack.c.l.bf16 %v9185
      %v9194 = vunpack.c.l.bf16 %v9186
      %v9195 = vunpack.c.l.bf16 %v9187
      %v9196 = vunpack.c.l.bf16 %v9188
      %v9197 = vunpack.c.l.bf16 %v9189
      %v9198 = vunpack.c.l.bf16 %v9190
      %v9199 = vunpack.c.l.bf16 %v9191
      %v9200 = vld [vmem:[%s6 + $0x4] sm:$0x1]
      %v9201 = vlaneseq
      %v9202 = vshrl.u32 %v9201, 7
      %v9203 = vsub.s32 0, %v9202
      %v9204 = vrot.slane %v9200, %v9203
      %v9205 = vmul.f32 %v9131, %v9204
      %v9206 = vmul.f32 %v9132, %v9204
      %v9207 = vmul.f32 %v9192, %v9204
      %v9208 = vmul.f32 %v9133, %v9204
      %v9209 = vmul.f32 %v9134, %v9204
      %v9210 = vmul.f32 %v9193, %v9204
      %v9211 = vmul.f32 %v9135, %v9204
      %v9212 = vmul.f32 %v9136, %v9204
      %v9213 = vmul.f32 %v9194, %v9204
      %v9214 = vmul.f32 %v9137, %v9204
      %v9215 = vmul.f32 %v9138, %v9204
      %v9216 = vmul.f32 %v9195, %v9204
      %v9217 = vmul.f32 %v9139, %v9204
      %v9218 = vmul.f32 %v9140, %v9204
      %v9219 = vmul.f32 %v9196, %v9204
      %v9220 = vmul.f32 %v9141, %v9204
      %v9221 = vmul.f32 %v9142, %v9204
      %v9222 = vmul.f32 %v9197, %v9204
      %v9223 = vmul.f32 %v9143, %v9204
      %v9224 = vmul.f32 %v9144, %v9204
      %v9225 = vmul.f32 %v9198, %v9204
      %v9226 = vmul.f32 %v9145, %v9204
      %v9227 = vmul.f32 %v9146, %v9204
      %v9228 = vmul.f32 %v9199, %v9204
      %v9253 = vrot.slane %v9205, 1
      %v9254 = vrot.slane %v9206, 1
      %v9255 = vsel %vm7583, %v9253, %v9254
      %v9256 = vrot.slane %v9207, 1
      %v9257 = vsel %vm7583, %v9254, %v9256
      %v9258 = vrot.slane %v9208, 1
      %v9259 = vrot.slane %v9209, 1
      %v9260 = vsel %vm7583, %v9258, %v9259
      %v9261 = vrot.slane %v9210, 1
      %v9262 = vsel %vm7583, %v9259, %v9261
      %v9263 = vrot.slane %v9211, 1
      %v9264 = vrot.slane %v9212, 1
      %v9265 = vsel %vm7583, %v9263, %v9264
      %v9266 = vrot.slane %v9213, 1
      %v9267 = vsel %vm7583, %v9264, %v9266
      %v9268 = vrot.slane %v9214, 1
      %v9269 = vrot.slane %v9215, 1
      %v9270 = vsel %vm7583, %v9268, %v9269
      %v9271 = vrot.slane %v9216, 1
      %v9272 = vsel %vm7583, %v9269, %v9271
      %v9273 = vrot.slane %v9217, 1
      %v9274 = vrot.slane %v9218, 1
      %v9275 = vsel %vm7583, %v9273, %v9274
      %v9276 = vrot.slane %v9219, 1
      %v9277 = vsel %vm7583, %v9274, %v9276
      %v9278 = vrot.slane %v9220, 1
      %v9279 = vrot.slane %v9221, 1
      %v9280 = vsel %vm7583, %v9278, %v9279
      %v9281 = vrot.slane %v9222, 1
      %v9282 = vsel %vm7583, %v9279, %v9281
      %v9283 = vrot.slane %v9223, 1
      %v9284 = vrot.slane %v9224, 1
      %v9285 = vsel %vm7583, %v9283, %v9284
      %v9286 = vrot.slane %v9225, 1
      %v9287 = vsel %vm7583, %v9284, %v9286
      %v9288 = vrot.slane %v9226, 1
      %v9289 = vrot.slane %v9227, 1
      %v9290 = vsel %vm7583, %v9288, %v9289
      %v9291 = vrot.slane %v9228, 1
      %v9292 = vsel %vm7583, %v9289, %v9291
      %v9309 = vadd.f32 %v9168, %v9255
      %v9310 = vadd.f32 %v9169, %v9257
      %v9311 = vadd.f32 %v9170, %v9260
      %v9312 = vadd.f32 %v9171, %v9262
      %v9313 = vadd.f32 %v9172, %v9265
      %v9314 = vadd.f32 %v9173, %v9267
      %v9315 = vadd.f32 %v9174, %v9270
      %v9316 = vadd.f32 %v9175, %v9272
      %v9317 = vadd.f32 %v9176, %v9275
      %v9318 = vadd.f32 %v9177, %v9277
      %v9319 = vadd.f32 %v9178, %v9280
      %v9320 = vadd.f32 %v9179, %v9282
      %v9321 = vadd.f32 %v9180, %v9285
      %v9322 = vadd.f32 %v9181, %v9287
      %v9323 = vadd.f32 %v9182, %v9290
      %v9324 = vadd.f32 %v9183, %v9292
      %v9325 = vld [vmem:[%s2969] sm:$0xe]
      %v9326 = vld [vmem:[%s2969 + $0xc] sm:$0xe]
      %v9327 = vld [vmem:[%s2969 + $0x18] sm:$0xe]
      %v9328 = vld [vmem:[%s2969 + $0x24] sm:$0xe]
      %v9329 = vld [vmem:[%s2969 + $0x30] sm:$0xe]
      %v9330 = vld [vmem:[%s2969 + $0x3c] sm:$0xe]
      %v9331 = vld [vmem:[%s2969 + $0x48] sm:$0xe]
      %v9332 = vld [vmem:[%s2969 + $0x54] sm:$0xe]
      %v9333 = vunpack.c.l.bf16 %v9325
      %v9334 = vunpack.c.l.bf16 %v9326
      %v9335 = vunpack.c.l.bf16 %v9327
      %v9336 = vunpack.c.l.bf16 %v9328
      %v9337 = vunpack.c.l.bf16 %v9329
      %v9338 = vunpack.c.l.bf16 %v9330
      %v9339 = vunpack.c.l.bf16 %v9331
      %v9340 = vunpack.c.l.bf16 %v9332
      %v9341 = vld [vmem:[%s6 + $0x5] sm:$0x1]
      %v9342 = vlaneseq
      %v9343 = vshrl.u32 %v9342, 7
      %v9344 = vsub.s32 0, %v9343
      %v9345 = vrot.slane %v9341, %v9344
      %v9346 = vmul.f32 %v9333, %v9345
      %v9347 = vmul.f32 %v9132, %v9345
      %v9348 = vmul.f32 %v9192, %v9345
      %v9349 = vmul.f32 %v9334, %v9345
      %v9350 = vmul.f32 %v9134, %v9345
      %v9351 = vmul.f32 %v9193, %v9345
      %v9352 = vmul.f32 %v9335, %v9345
      %v9353 = vmul.f32 %v9136, %v9345
      %v9354 = vmul.f32 %v9194, %v9345
      %v9355 = vmul.f32 %v9336, %v9345
      %v9356 = vmul.f32 %v9138, %v9345
      %v9357 = vmul.f32 %v9195, %v9345
      %v9358 = vmul.f32 %v9337, %v9345
      %v9359 = vmul.f32 %v9140, %v9345
      %v9360 = vmul.f32 %v9196, %v9345
      %v9361 = vmul.f32 %v9338, %v9345
      %v9362 = vmul.f32 %v9142, %v9345
      %v9363 = vmul.f32 %v9197, %v9345
      %v9364 = vmul.f32 %v9339, %v9345
      %v9365 = vmul.f32 %v9144, %v9345
      %v9366 = vmul.f32 %v9198, %v9345
      %v9367 = vmul.f32 %v9340, %v9345
      %v9368 = vmul.f32 %v9146, %v9345
      %v9369 = vmul.f32 %v9199, %v9345
      %v9394 = vrot.slane %v9346, 2
      %v9395 = vrot.slane %v9347, 2
      %v9396 = vsel %vm7725, %v9394, %v9395
      %v9397 = vrot.slane %v9348, 2
      %v9398 = vsel %vm7725, %v9395, %v9397
      %v9399 = vrot.slane %v9349, 2
      %v9400 = vrot.slane %v9350, 2
      %v9401 = vsel %vm7725, %v9399, %v9400
      %v9402 = vrot.slane %v9351, 2
      %v9403 = vsel %vm7725, %v9400, %v9402
      %v9404 = vrot.slane %v9352, 2
      %v9405 = vrot.slane %v9353, 2
      %v9406 = vsel %vm7725, %v9404, %v9405
      %v9407 = vrot.slane %v9354, 2
      %v9408 = vsel %vm7725, %v9405, %v9407
      %v9409 = vrot.slane %v9355, 2
      %v9410 = vrot.slane %v9356, 2
      %v9411 = vsel %vm7725, %v9409, %v9410
      %v9412 = vrot.slane %v9357, 2
      %v9413 = vsel %vm7725, %v9410, %v9412
      %v9414 = vrot.slane %v9358, 2
      %v9415 = vrot.slane %v9359, 2
      %v9416 = vsel %vm7725, %v9414, %v9415
      %v9417 = vrot.slane %v9360, 2
      %v9418 = vsel %vm7725, %v9415, %v9417
      %v9419 = vrot.slane %v9361, 2
      %v9420 = vrot.slane %v9362, 2
      %v9421 = vsel %vm7725, %v9419, %v9420
      %v9422 = vrot.slane %v9363, 2
      %v9423 = vsel %vm7725, %v9420, %v9422
      %v9424 = vrot.slane %v9364, 2
      %v9425 = vrot.slane %v9365, 2
      %v9426 = vsel %vm7725, %v9424, %v9425
      %v9427 = vrot.slane %v9366, 2
      %v9428 = vsel %vm7725, %v9425, %v9427
      %v9429 = vrot.slane %v9367, 2
      %v9430 = vrot.slane %v9368, 2
      %v9431 = vsel %vm7725, %v9429, %v9430
      %v9432 = vrot.slane %v9369, 2
      %v9433 = vsel %vm7725, %v9430, %v9432
      %v9450 = vadd.f32 %v9309, %v9396
      %v9451 = vadd.f32 %v9310, %v9398
      %v9452 = vadd.f32 %v9311, %v9401
      %v9453 = vadd.f32 %v9312, %v9403
      %v9454 = vadd.f32 %v9313, %v9406
      %v9455 = vadd.f32 %v9314, %v9408
      %v9456 = vadd.f32 %v9315, %v9411
      %v9457 = vadd.f32 %v9316, %v9413
      %v9458 = vadd.f32 %v9317, %v9416
      %v9459 = vadd.f32 %v9318, %v9418
      %v9460 = vadd.f32 %v9319, %v9421
      %v9461 = vadd.f32 %v9320, %v9423
      %v9462 = vadd.f32 %v9321, %v9426
      %v9463 = vadd.f32 %v9322, %v9428
      %v9464 = vadd.f32 %v9323, %v9431
      %v9465 = vadd.f32 %v9324, %v9433
      %s9466 = scalar_lea.vmem [#allocation2], 120
      %v9467 = vld [vmem:[%s9466] sm:$0xf]
      %v9468 = vld [vmem:[%s9466 + $0x4] sm:$0xf]
      %v9469 = vld [vmem:[%s9466 + $0xc] sm:$0xf]
      %v9470 = vld [vmem:[%s9466 + $0x10] sm:$0xf]
      %v9471 = vld [vmem:[%s9466 + $0x18] sm:$0xf]
      %v9472 = vld [vmem:[%s9466 + $0x1c] sm:$0xf]
      %v9473 = vld [vmem:[%s9466 + $0x24] sm:$0xf]
      %v9474 = vld [vmem:[%s9466 + $0x28] sm:$0xf]
      %v9475 = vld [vmem:[%s9466 + $0x30] sm:$0xf]
      %v9476 = vld [vmem:[%s9466 + $0x34] sm:$0xf]
      %v9477 = vld [vmem:[%s9466 + $0x3c] sm:$0xf]
      %v9478 = vld [vmem:[%s9466 + $0x40] sm:$0xf]
      %v9479 = vld [vmem:[%s9466 + $0x48] sm:$0xf]
      %v9480 = vld [vmem:[%s9466 + $0x4c] sm:$0xf]
      %v9481 = vld [vmem:[%s9466 + $0x54] sm:$0xf]
      %v9482 = vld [vmem:[%s9466 + $0x58] sm:$0xf]
      %v9483 = vunpack.c.l.bf16 %v9467
      %v9484 = vunpack.c.l.bf16 %v9468
      %v9485 = vunpack.c.l.bf16 %v9469
      %v9486 = vunpack.c.l.bf16 %v9470
      %v9487 = vunpack.c.l.bf16 %v9471
      %v9488 = vunpack.c.l.bf16 %v9472
      %v9489 = vunpack.c.l.bf16 %v9473
      %v9490 = vunpack.c.l.bf16 %v9474
      %v9491 = vunpack.c.l.bf16 %v9475
      %v9492 = vunpack.c.l.bf16 %v9476
      %v9493 = vunpack.c.l.bf16 %v9477
      %v9494 = vunpack.c.l.bf16 %v9478
      %v9495 = vunpack.c.l.bf16 %v9479
      %v9496 = vunpack.c.l.bf16 %v9480
      %v9497 = vunpack.c.l.bf16 %v9481
      %v9498 = vunpack.c.l.bf16 %v9482
      %v9499 = vld [vmem:[%s6 + $0x6] sm:$0x1]
      %v9500 = vlaneseq
      %v9501 = vshrl.u32 %v9500, 7
      %v9502 = vsub.s32 0, %v9501
      %v9503 = vrot.slane %v9499, %v9502
      %v9504 = vmul.f32 %v9483, %v9503
      %v9505 = vmul.f32 %v9484, %v9503
      %v9506 = vmul.f32 %v9485, %v9503
      %v9507 = vmul.f32 %v9486, %v9503
      %v9508 = vmul.f32 %v9487, %v9503
      %v9509 = vmul.f32 %v9488, %v9503
      %v9510 = vmul.f32 %v9489, %v9503
      %v9511 = vmul.f32 %v9490, %v9503
      %v9512 = vmul.f32 %v9491, %v9503
      %v9513 = vmul.f32 %v9492, %v9503
      %v9514 = vmul.f32 %v9493, %v9503
      %v9515 = vmul.f32 %v9494, %v9503
      %v9516 = vmul.f32 %v9495, %v9503
      %v9517 = vmul.f32 %v9496, %v9503
      %v9518 = vmul.f32 %v9497, %v9503
      %v9519 = vmul.f32 %v9498, %v9503
      %v9520 = vadd.f32 %v9450, %v9504
      %v9521 = vadd.f32 %v9451, %v9505
      %v9522 = vadd.f32 %v9452, %v9506
      %v9523 = vadd.f32 %v9453, %v9507
      %v9524 = vadd.f32 %v9454, %v9508
      %v9525 = vadd.f32 %v9455, %v9509
      %v9526 = vadd.f32 %v9456, %v9510
      %v9527 = vadd.f32 %v9457, %v9511
      %v9528 = vadd.f32 %v9458, %v9512
      %v9529 = vadd.f32 %v9459, %v9513
      %v9530 = vadd.f32 %v9460, %v9514
      %v9531 = vadd.f32 %v9461, %v9515
      %v9532 = vadd.f32 %v9462, %v9516
      %v9533 = vadd.f32 %v9463, %v9517
      %v9534 = vadd.f32 %v9464, %v9518
      %v9535 = vadd.f32 %v9465, %v9519
      %v9536 = vld [vmem:[%s9466 + $0x8] sm:$0x1]
      %v9537 = vld [vmem:[%s9466 + $0x14] sm:$0x1]
      %v9538 = vld [vmem:[%s9466 + $0x20] sm:$0x1]
      %v9539 = vld [vmem:[%s9466 + $0x2c] sm:$0x1]
      %v9540 = vld [vmem:[%s9466 + $0x38] sm:$0x1]
      %v9541 = vld [vmem:[%s9466 + $0x44] sm:$0x1]
      %v9542 = vld [vmem:[%s9466 + $0x50] sm:$0x1]
      %v9543 = vld [vmem:[%s9466 + $0x5c] sm:$0x1]
      %v9544 = vunpack.c.l.bf16 %v9536
      %v9545 = vunpack.c.l.bf16 %v9537
      %v9546 = vunpack.c.l.bf16 %v9538
      %v9547 = vunpack.c.l.bf16 %v9539
      %v9548 = vunpack.c.l.bf16 %v9540
      %v9549 = vunpack.c.l.bf16 %v9541
      %v9550 = vunpack.c.l.bf16 %v9542
      %v9551 = vunpack.c.l.bf16 %v9543
      %v9552 = vld [vmem:[%s6 + $0x7] sm:$0x1]
      %v9553 = vlaneseq
      %v9554 = vshrl.u32 %v9553, 7
      %v9555 = vsub.s32 0, %v9554
      %v9556 = vrot.slane %v9552, %v9555
      %v9557 = vmul.f32 %v9483, %v9556
      %v9558 = vmul.f32 %v9484, %v9556
      %v9559 = vmul.f32 %v9544, %v9556
      %v9560 = vmul.f32 %v9485, %v9556
      %v9561 = vmul.f32 %v9486, %v9556
      %v9562 = vmul.f32 %v9545, %v9556
      %v9563 = vmul.f32 %v9487, %v9556
      %v9564 = vmul.f32 %v9488, %v9556
      %v9565 = vmul.f32 %v9546, %v9556
      %v9566 = vmul.f32 %v9489, %v9556
      %v9567 = vmul.f32 %v9490, %v9556
      %v9568 = vmul.f32 %v9547, %v9556
      %v9569 = vmul.f32 %v9491, %v9556
      %v9570 = vmul.f32 %v9492, %v9556
      %v9571 = vmul.f32 %v9548, %v9556
      %v9572 = vmul.f32 %v9493, %v9556
      %v9573 = vmul.f32 %v9494, %v9556
      %v9574 = vmul.f32 %v9549, %v9556
      %v9575 = vmul.f32 %v9495, %v9556
      %v9576 = vmul.f32 %v9496, %v9556
      %v9577 = vmul.f32 %v9550, %v9556
      %v9578 = vmul.f32 %v9497, %v9556
      %v9579 = vmul.f32 %v9498, %v9556
      %v9580 = vmul.f32 %v9551, %v9556
      %v9605 = vrot.slane %v9557, 1
      %v9606 = vrot.slane %v9558, 1
      %v9607 = vsel %vm7583, %v9605, %v9606
      %v9608 = vrot.slane %v9559, 1
      %v9609 = vsel %vm7583, %v9606, %v9608
      %v9610 = vrot.slane %v9560, 1
      %v9611 = vrot.slane %v9561, 1
      %v9612 = vsel %vm7583, %v9610, %v9611
      %v9613 = vrot.slane %v9562, 1
      %v9614 = vsel %vm7583, %v9611, %v9613
      %v9615 = vrot.slane %v9563, 1
      %v9616 = vrot.slane %v9564, 1
      %v9617 = vsel %vm7583, %v9615, %v9616
      %v9618 = vrot.slane %v9565, 1
      %v9619 = vsel %vm7583, %v9616, %v9618
      %v9620 = vrot.slane %v9566, 1
      %v9621 = vrot.slane %v9567, 1
      %v9622 = vsel %vm7583, %v9620, %v9621
      %v9623 = vrot.slane %v9568, 1
      %v9624 = vsel %vm7583, %v9621, %v9623
      %v9625 = vrot.slane %v9569, 1
      %v9626 = vrot.slane %v9570, 1
      %v9627 = vsel %vm7583, %v9625, %v9626
      %v9628 = vrot.slane %v9571, 1
      %v9629 = vsel %vm7583, %v9626, %v9628
      %v9630 = vrot.slane %v9572, 1
      %v9631 = vrot.slane %v9573, 1
      %v9632 = vsel %vm7583, %v9630, %v9631
      %v9633 = vrot.slane %v9574, 1
      %v9634 = vsel %vm7583, %v9631, %v9633
      %v9635 = vrot.slane %v9575, 1
      %v9636 = vrot.slane %v9576, 1
      %v9637 = vsel %vm7583, %v9635, %v9636
      %v9638 = vrot.slane %v9577, 1
      %v9639 = vsel %vm7583, %v9636, %v9638
      %v9640 = vrot.slane %v9578, 1
      %v9641 = vrot.slane %v9579, 1
      %v9642 = vsel %vm7583, %v9640, %v9641
      %v9643 = vrot.slane %v9580, 1
      %v9644 = vsel %vm7583, %v9641, %v9643
      %v9661 = vadd.f32 %v9520, %v9607
      %v9662 = vadd.f32 %v9521, %v9609
      %v9663 = vadd.f32 %v9522, %v9612
      %v9664 = vadd.f32 %v9523, %v9614
      %v9665 = vadd.f32 %v9524, %v9617
      %v9666 = vadd.f32 %v9525, %v9619
      %v9667 = vadd.f32 %v9526, %v9622
      %v9668 = vadd.f32 %v9527, %v9624
      %v9669 = vadd.f32 %v9528, %v9627
      %v9670 = vadd.f32 %v9529, %v9629
      %v9671 = vadd.f32 %v9530, %v9632
      %v9672 = vadd.f32 %v9531, %v9634
      %v9673 = vadd.f32 %v9532, %v9637
      %v9674 = vadd.f32 %v9533, %v9639
      %v9675 = vadd.f32 %v9534, %v9642
      %v9676 = vadd.f32 %v9535, %v9644
      %v9677 = vld [vmem:[%s9466] sm:$0xe]
      %v9678 = vld [vmem:[%s9466 + $0xc] sm:$0xe]
      %v9679 = vld [vmem:[%s9466 + $0x18] sm:$0xe]
      %v9680 = vld [vmem:[%s9466 + $0x24] sm:$0xe]
      %v9681 = vld [vmem:[%s9466 + $0x30] sm:$0xe]
      %v9682 = vld [vmem:[%s9466 + $0x3c] sm:$0xe]
      %v9683 = vld [vmem:[%s9466 + $0x48] sm:$0xe]
      %v9684 = vld [vmem:[%s9466 + $0x54] sm:$0xe]
      %v9685 = vunpack.c.l.bf16 %v9677
      %v9686 = vunpack.c.l.bf16 %v9678
      %v9687 = vunpack.c.l.bf16 %v9679
      %v9688 = vunpack.c.l.bf16 %v9680
      %v9689 = vunpack.c.l.bf16 %v9681
      %v9690 = vunpack.c.l.bf16 %v9682
      %v9691 = vunpack.c.l.bf16 %v9683
      %v9692 = vunpack.c.l.bf16 %v9684
      %v9693 = vld [vmem:[%s6 + $0x8] sm:$0x1]
      %v9694 = vlaneseq
      %v9695 = vshrl.u32 %v9694, 7
      %v9696 = vsub.s32 0, %v9695
      %v9697 = vrot.slane %v9693, %v9696
      %v9698 = vmul.f32 %v9685, %v9697
      %v9699 = vmul.f32 %v9484, %v9697
      %v9700 = vmul.f32 %v9544, %v9697
      %v9701 = vmul.f32 %v9686, %v9697
      %v9702 = vmul.f32 %v9486, %v9697
      %v9703 = vmul.f32 %v9545, %v9697
      %v9704 = vmul.f32 %v9687, %v9697
      %v9705 = vmul.f32 %v9488, %v9697
      %v9706 = vmul.f32 %v9546, %v9697
      %v9707 = vmul.f32 %v9688, %v9697
      %v9708 = vmul.f32 %v9490, %v9697
      %v9709 = vmul.f32 %v9547, %v9697
      %v9710 = vmul.f32 %v9689, %v9697
      %v9711 = vmul.f32 %v9492, %v9697
      %v9712 = vmul.f32 %v9548, %v9697
      %v9713 = vmul.f32 %v9690, %v9697
      %v9714 = vmul.f32 %v9494, %v9697
      %v9715 = vmul.f32 %v9549, %v9697
      %v9716 = vmul.f32 %v9691, %v9697
      %v9717 = vmul.f32 %v9496, %v9697
      %v9718 = vmul.f32 %v9550, %v9697
      %v9719 = vmul.f32 %v9692, %v9697
      %v9720 = vmul.f32 %v9498, %v9697
      %v9721 = vmul.f32 %v9551, %v9697
      %v9746 = vrot.slane %v9698, 2
      %v9747 = vrot.slane %v9699, 2
      %v9748 = vsel %vm7725, %v9746, %v9747
      %v9749 = vrot.slane %v9700, 2
      %v9750 = vsel %vm7725, %v9747, %v9749
      %v9751 = vrot.slane %v9701, 2
      %v9752 = vrot.slane %v9702, 2
      %v9753 = vsel %vm7725, %v9751, %v9752
      %v9754 = vrot.slane %v9703, 2
      %v9755 = vsel %vm7725, %v9752, %v9754
      %v9756 = vrot.slane %v9704, 2
      %v9757 = vrot.slane %v9705, 2
      %v9758 = vsel %vm7725, %v9756, %v9757
      %v9759 = vrot.slane %v9706, 2
      %v9760 = vsel %vm7725, %v9757, %v9759
      %v9761 = vrot.slane %v9707, 2
      %v9762 = vrot.slane %v9708, 2
      %v9763 = vsel %vm7725, %v9761, %v9762
      %v9764 = vrot.slane %v9709, 2
      %v9765 = vsel %vm7725, %v9762, %v9764
      %v9766 = vrot.slane %v9710, 2
      %v9767 = vrot.slane %v9711, 2
      %v9768 = vsel %vm7725, %v9766, %v9767
      %v9769 = vrot.slane %v9712, 2
      %v9770 = vsel %vm7725, %v9767, %v9769
      %v9771 = vrot.slane %v9713, 2
      %v9772 = vrot.slane %v9714, 2
      %v9773 = vsel %vm7725, %v9771, %v9772
      %v9774 = vrot.slane %v9715, 2
      %v9775 = vsel %vm7725, %v9772, %v9774
      %v9776 = vrot.slane %v9716, 2
      %v9777 = vrot.slane %v9717, 2
      %v9778 = vsel %vm7725, %v9776, %v9777
      %v9779 = vrot.slane %v9718, 2
      %v9780 = vsel %vm7725, %v9777, %v9779
      %v9781 = vrot.slane %v9719, 2
      %v9782 = vrot.slane %v9720, 2
      %v9783 = vsel %vm7725, %v9781, %v9782
      %v9784 = vrot.slane %v9721, 2
      %v9785 = vsel %vm7725, %v9782, %v9784
      %v9802 = vadd.f32 %v9661, %v9748
      %v9803 = vadd.f32 %v9662, %v9750
      %v9804 = vadd.f32 %v9663, %v9753
      %v9805 = vadd.f32 %v9664, %v9755
      %v9806 = vadd.f32 %v9665, %v9758
      %v9807 = vadd.f32 %v9666, %v9760
      %v9808 = vadd.f32 %v9667, %v9763
      %v9809 = vadd.f32 %v9668, %v9765
      %v9810 = vadd.f32 %v9669, %v9768
      %v9811 = vadd.f32 %v9670, %v9770
      %v9812 = vadd.f32 %v9671, %v9773
      %v9813 = vadd.f32 %v9672, %v9775
      %v9814 = vadd.f32 %v9673, %v9778
      %v9815 = vadd.f32 %v9674, %v9780
      %v9816 = vadd.f32 %v9675, %v9783
      %v9817 = vadd.f32 %v9676, %v9785
      %v9818 = vsel %vm3621, %v9802, 0.0
      %9819 = vadd.xlane.f32.xlu0 %v9818
      %v9820 = vpop.xlane.xlu0 %9819
      %v9821 = vsel %vm3621, %v9803, 0.0
      %9822 = vadd.xlane.f32.xlu0 %v9821
      %v9823 = vpop.xlane.xlu0 %9822
      %v9824 = vsel %vm3621, %v9804, 0.0
      %9825 = vadd.xlane.f32.xlu0 %v9824
      %v9826 = vpop.xlane.xlu0 %9825
      %v9827 = vsel %vm3621, %v9805, 0.0
      %9828 = vadd.xlane.f32.xlu0 %v9827
      %v9829 = vpop.xlane.xlu0 %9828
      %v9830 = vsel %vm3621, %v9806, 0.0
      %9831 = vadd.xlane.f32.xlu0 %v9830
      %v9832 = vpop.xlane.xlu0 %9831
      %v9833 = vsel %vm3621, %v9807, 0.0
      %9834 = vadd.xlane.f32.xlu0 %v9833
      %v9835 = vpop.xlane.xlu0 %9834
      %v9836 = vsel %vm3621, %v9808, 0.0
      %9837 = vadd.xlane.f32.xlu0 %v9836
      %v9838 = vpop.xlane.xlu0 %9837
      %v9839 = vsel %vm3621, %v9809, 0.0
      %9840 = vadd.xlane.f32.xlu0 %v9839
      %v9841 = vpop.xlane.xlu0 %9840
      %v9842 = vsel %vm3621, %v9810, 0.0
      %9843 = vadd.xlane.f32.xlu0 %v9842
      %v9844 = vpop.xlane.xlu0 %9843
      %v9845 = vsel %vm3621, %v9811, 0.0
      %9846 = vadd.xlane.f32.xlu0 %v9845
      %v9847 = vpop.xlane.xlu0 %9846
      %v9848 = vsel %vm3621, %v9812, 0.0
      %9849 = vadd.xlane.f32.xlu0 %v9848
      %v9850 = vpop.xlane.xlu0 %9849
      %v9851 = vsel %vm3621, %v9813, 0.0
      %9852 = vadd.xlane.f32.xlu0 %v9851
      %v9853 = vpop.xlane.xlu0 %9852
      %v9854 = vsel %vm3621, %v9814, 0.0
      %9855 = vadd.xlane.f32.xlu0 %v9854
      %v9856 = vpop.xlane.xlu0 %9855
      %v9857 = vsel %vm3621, %v9815, 0.0
      %9858 = vadd.xlane.f32.xlu0 %v9857
      %v9859 = vpop.xlane.xlu0 %9858
      %v9860 = vsel %vm3621, %v9816, 0.0
      %9861 = vadd.xlane.f32.xlu0 %v9860
      %v9862 = vpop.xlane.xlu0 %9861
      %v9863 = vsel %vm3621, %v9817, 0.0
      %9864 = vadd.xlane.f32.xlu0 %v9863
      %v9865 = vpop.xlane.xlu0 %9864
      %v9882 = vlaneseq
      %v9883 = vshrl.u32 %v9882, 7
      %v9884 = vsub.s32 %v8565, %v9883
      %v9885 = vrot.slane %v9820, %v9884
      %v9886 = vlaneseq
      %v9887 = vshrl.u32 %v9886, 7
      %v9888 = vsub.s32 %v8570, %v9887
      %v9889 = vrot.slane %v9823, %v9888
      %v9890 = vsel %vm8575, %v9889, %v9885
      %v9891 = vlaneseq
      %v9892 = vshrl.u32 %v9891, 7
      %v9893 = vsub.s32 %v8565, %v9892
      %v9894 = vrot.slane %v9826, %v9893
      %v9895 = vlaneseq
      %v9896 = vshrl.u32 %v9895, 7
      %v9897 = vsub.s32 %v8570, %v9896
      %v9898 = vrot.slane %v9829, %v9897
      %v9899 = vsel %vm8575, %v9898, %v9894
      %v9900 = vlaneseq
      %v9901 = vshrl.u32 %v9900, 7
      %v9902 = vsub.s32 %v8565, %v9901
      %v9903 = vrot.slane %v9832, %v9902
      %v9904 = vlaneseq
      %v9905 = vshrl.u32 %v9904, 7
      %v9906 = vsub.s32 %v8570, %v9905
      %v9907 = vrot.slane %v9835, %v9906
      %v9908 = vsel %vm8575, %v9907, %v9903
      %v9909 = vlaneseq
      %v9910 = vshrl.u32 %v9909, 7
      %v9911 = vsub.s32 %v8565, %v9910
      %v9912 = vrot.slane %v9838, %v9911
      %v9913 = vlaneseq
      %v9914 = vshrl.u32 %v9913, 7
      %v9915 = vsub.s32 %v8570, %v9914
      %v9916 = vrot.slane %v9841, %v9915
      %v9917 = vsel %vm8575, %v9916, %v9912
      %v9918 = vlaneseq
      %v9919 = vshrl.u32 %v9918, 7
      %v9920 = vsub.s32 %v8565, %v9919
      %v9921 = vrot.slane %v9844, %v9920
      %v9922 = vlaneseq
      %v9923 = vshrl.u32 %v9922, 7
      %v9924 = vsub.s32 %v8570, %v9923
      %v9925 = vrot.slane %v9847, %v9924
      %v9926 = vsel %vm8575, %v9925, %v9921
      %v9927 = vlaneseq
      %v9928 = vshrl.u32 %v9927, 7
      %v9929 = vsub.s32 %v8565, %v9928
      %v9930 = vrot.slane %v9850, %v9929
      %v9931 = vlaneseq
      %v9932 = vshrl.u32 %v9931, 7
      %v9933 = vsub.s32 %v8570, %v9932
      %v9934 = vrot.slane %v9853, %v9933
      %v9935 = vsel %vm8575, %v9934, %v9930
      %v9936 = vlaneseq
      %v9937 = vshrl.u32 %v9936, 7
      %v9938 = vsub.s32 %v8565, %v9937
      %v9939 = vrot.slane %v9856, %v9938
      %v9940 = vlaneseq
      %v9941 = vshrl.u32 %v9940, 7
      %v9942 = vsub.s32 %v8570, %v9941
      %v9943 = vrot.slane %v9859, %v9942
      %v9944 = vsel %vm8575, %v9943, %v9939
      %v9945 = vlaneseq
      %v9946 = vshrl.u32 %v9945, 7
      %v9947 = vsub.s32 %v8565, %v9946
      %v9948 = vrot.slane %v9862, %v9947
      %v9949 = vlaneseq
      %v9950 = vshrl.u32 %v9949, 7
      %v9951 = vsub.s32 %v8570, %v9950
      %v9952 = vrot.slane %v9865, %v9951
      %v9953 = vsel %vm8575, %v9952, %v9948
      %v9954 = vsel %vm8640, %v9899, %v9890
      %v9955 = vsel %vm8642, %v9908, %v9954
      %v9956 = vsel %vm8644, %v9917, %v9955
      %v9957 = vsel %vm8646, %v9926, %v9956
      %v9958 = vsel %vm8648, %v9935, %v9957
      %v9959 = vsel %vm8650, %v9944, %v9958
      %v9960 = vsel %vm8652, %v9953, %v9959
      %v9962 = vcombine.high %v9960, 0.0
      %v9964 = vunpack.c.l.s4 1983009808
      %v9965 = vunpack.c.0.s8 %v9964
      %v9966 = vlaneseq
      %v9967 = vshrl.u32 %v9966, 7
      %v9968 = vsub.s32 %v9965, %v9967
      %v9969 = vrot.slane %v9960, %v9968
      %v9971 = vunpack.c.l.s4 1983009808
      %v9972 = vunpack.c.0.s8 %v9971
      %v9973 = vlaneseq
      %v9974 = vshrl.u32 %v9973, 7
      %v9975 = vsub.s32 %v9972, %v9974
      %v9976 = vrot.slane %v9962, %v9975
      %v9977 = vcombine.high %v9969, 0.0
      %v9979 = vunpack.c.l.s4 1934713408
      %v9980 = vunpack.c.0.s8 %v9979
      %v9981 = vlaneseq
      %v9982 = vshrl.u32 %v9981, 7
      %v9983 = vsub.s32 %v9980, %v9982
      %v9984 = vrot.slane %v9969, %v9983
      %v9986 = vunpack.c.l.s4 1934713408
      %v9987 = vunpack.c.0.s8 %v9986
      %v9988 = vlaneseq
      %v9989 = vshrl.u32 %v9988, 7
      %v9990 = vsub.s32 %v9987, %v9989
      %v9991 = vrot.slane %v9977, %v9990
      %v9992 = vcombine.high %v9976, 0.0
      %v9994 = vunpack.c.l.s4 1934713408
      %v9995 = vunpack.c.0.s8 %v9994
      %v9996 = vlaneseq
      %v9997 = vshrl.u32 %v9996, 7
      %v9998 = vsub.s32 %v9995, %v9997
      %v9999 = vrot.slane %v9976, %v9998
      %v10001 = vunpack.c.l.s4 1934713408
      %v10002 = vunpack.c.0.s8 %v10001
      %v10003 = vlaneseq
      %v10004 = vshrl.u32 %v10003, 7
      %v10005 = vsub.s32 %v10002, %v10004
      %v10006 = vrot.slane %v9992, %v10005
      %v10007 = vcombine.high %v9984, 0.0
      %v10008 = vcombine.high %v9991, 0.0
      %v10009 = vcombine.high %v9999, 0.0
      %v10010 = vcombine.high %v10006, 0.0
      %10012 = vrot.lane.b32.xlu0 %v10007, 16
      %v10013 = vpop.permute.xlu0 %10012
      %10016 = vrot.lane.b32.xlu0 %v9991, 32
      %v10017 = vpop.permute.xlu0 %10016
      %10020 = vrot.lane.b32.xlu0 %v10008, 48
      %v10021 = vpop.permute.xlu0 %10020
      %10024 = vrot.lane.b32.xlu0 %v9999, 64
      %v10025 = vpop.permute.xlu0 %10024
      %10028 = vrot.lane.b32.xlu0 %v10009, 80
      %v10029 = vpop.permute.xlu0 %10028
      %10032 = vrot.lane.b32.xlu0 %v10006, 96
      %v10033 = vpop.permute.xlu0 %10032
      %10036 = vrot.lane.b32.xlu0 %v10010, 112
      %v10037 = vpop.permute.xlu0 %10036
      %v10039 = vsel %vm8732, %v9984, %v10013
      %v10040 = vsel %vm8734, %v10039, %v10017
      %v10041 = vsel %vm8736, %v10040, %v10021
      %v10042 = vsel %vm3621, %v10041, %v10025
      %v10043 = vsel %vm8739, %v10042, %v10029
      %v10044 = vsel %vm8741, %v10043, %v10033
      %v10045 = vsel %vm8743, %v10044, %v10037
      %v10046 = vld [vmem:[#allocation4] sm:$0x1]
      %10048 = vset.pattern.permute.xlu0 0
      %10049 = vperm.xlu0 %10048, %v10046
      %v10050 = vpop.permute.xlu0 %10049
      %v10052 = vlaneseq
      %v10053 = vshrl.u32 %v10052, 7
      %v10054 = vsub.s32 0, %v10053
      %v10055 = vrot.slane %v10050, %v10054
      %v10056 = vadd.f32 %v10045, %v10055
      %v10057 = vld [vmem:[%s318 + $0x1] sm:$0x1]
      %v10058 = vadd.f32 %v10056, %v10057
      %10059 = vst.msk [vmem:[%s322 + $0x1] sm:$0x1] %vm8761, %v10058
      %p10060 = scmp.lt.s32.totalorder %s21, 1
      %s10061 = scalar_select %p10060, %s21, 1
      %s10062 = smul.addr %s10061, 2
      %s10063 = scalar_lea.vmem %s8, %s10062
      // Predicated region
      $region53: #{cnn_superres_forward.1} parent=51 // pred_check
        %p10064 = pneg %p217
      $region54: #{cnn_superres_forward.1} parent=51 // pred_check_branch
        %10066 = sbr.rel (%p10064) target = $region56
      $region55: #{cnn_superres_forward.1} parent=51 // pred_region
        _
      $region56: #{cnn_superres_forward.1} parent=51 // pred_fallthru
        _
    $region52: #{cnn_superres_forward.1} parent=5 // pred_fallthru
      _
    %p10067 = scmp.le.s32.totalorder 2, %s16
    // Predicated region
    $region57: #{cnn_superres_forward.1} parent=5 // pred_check
      %p10068 = pneg %p10067
    $region58: #{cnn_superres_forward.1} parent=5 // pred_check_branch
      %10070 = sbr.rel (%p10068) target = $region60
    $region59: #{cnn_superres_forward.1} parent=5 // pred_region
      %s10071 = ssub.s32 %s16, 2
      // Predicated region
      $region61: #{cnn_superres_forward.1} parent=59 // pred_check
        %p10072 = pneg %p223
      $region62: #{cnn_superres_forward.1} parent=59 // pred_check_branch
        %10074 = sbr.rel (%p10072) target = $region64
      $region63: #{cnn_superres_forward.1} parent=59 // pred_region
        %p10075 = scmp.lt.s32.totalorder %s22, 1
        %s10076 = scalar_select %p10075, %s22, 1
        %s10077 = smul.addr %s10076, 2
        %s10078 = scalar_lea.vmem %s8, %s10077
      $region64: #{cnn_superres_forward.1} parent=59 // pred_fallthru
        _
    $region60: #{cnn_superres_forward.1} parent=5 // pred_fallthru
      _
  $region6: #{cnn_superres_forward.1} parent=0 // loop_footer
    %s20 = sadd.s32 1, %s16
  $region7: #{cnn_superres_forward.1} parent=0 // loop_footer_branch
    %15 = sbr.rel target = $region3
  $region8: #{cnn_superres_forward.1} parent=0 // loop_exit
    _

</llo_original>
